<compile_context>
chip_gen: v7x
topology: tpu7x:2x2x1
jax: 0.10.0
libtpu: 0.0.40
codegen_flags: <defaults>
</compile_context>

<pallas_src>
import functools
import math

import jax
import jax.numpy as jnp
from jax.experimental import pallas as pl
from jax.experimental.pallas import tpu as pltpu


_VMEM = pl.BlockSpec(memory_space=pltpu.MemorySpace.VMEM)


def _pcall(kernel, out_shape, *args):
    """Grid-less pallas_call; every operand is a whole-array VMEM block."""
    multi = isinstance(out_shape, (tuple, list))
    return pl.pallas_call(
        kernel,
        out_shape=tuple(out_shape) if multi else out_shape,
        in_specs=[_VMEM] * len(args),
        out_specs=tuple([_VMEM] * len(out_shape)) if multi else _VMEM,
    )(*args)


# ----------------------------- in-kernel helpers -----------------------------

def _bf16(x):
    return x.astype(jnp.bfloat16)


def _moving_avg_decomp(s, k):
    """Autoformer series_decomp of a (L, C) block: replicate-pad moving average
    (AvgPool1d(k, stride=1)) computed with clamped in-kernel shifts."""
    L = s.shape[0]
    pad = (k - 1) // 2
    acc = s
    for i in range(1, pad + 1):
        back = jnp.concatenate([s[:1]] * i + [s[:L - i]], axis=0)   # s[max(t-i,0)]
        fwd = jnp.concatenate([s[i:]] + [s[L - 1:]] * i, axis=0)    # s[min(t+i,L-1)]
        acc = acc + back + fwd
    trend = acc * (1.0 / k)
    return s - trend, trend


def _circ_prev(x):
    """x[t-1] with circular wrap along time (axis 0) of a (L, C) block."""
    return jnp.concatenate([x[-1:], x[:-1]], axis=0)


def _circ_next(x):
    """x[t+1] with circular wrap along time (axis 0) of a (L, C) block."""
    return jnp.concatenate([x[1:], x[:1]], axis=0)


# ------------------------------ Pallas kernels ------------------------------

def _embed_kernel(x_ref, xm_ref, wp_ref, wc_ref, wn_ref, wm_ref, o_ref):
    """DataEmbedding_wo_pos: circular 3-tap TokenEmbedding conv + timeF linear."""
    B = x_ref.shape[0]
    wp, wc, wn, wm = wp_ref[...], wc_ref[...], wn_ref[...], wm_ref[...]
    for b in range(B):
        x = x_ref[b]                                    # (L, C) f32
        xm = xm_ref[b]                                  # (L, Cm) f32
        y = jnp.dot(_bf16(_circ_prev(x)), wp, preferred_element_type=jnp.float32)
        y = y + jnp.dot(_bf16(x), wc, preferred_element_type=jnp.float32)
        y = y + jnp.dot(_bf16(_circ_next(x)), wn, preferred_element_type=jnp.float32)
        y = y + jnp.dot(_bf16(xm), wm, preferred_element_type=jnp.float32)
        o_ref[b] = y


def _qkv_kernel(x_ref, w_ref, b_ref, o_ref):
    """Fused Q|K|V projection for self-attention: (B,L,D) -> (B,L,3D)."""
    B = x_ref.shape[0]
    w, bias = w_ref[...], b_ref[...]
    for b in range(B):
        o_ref[b] = jnp.dot(_bf16(x_ref[b]), w,
                           preferred_element_type=jnp.float32) + bias


def _q_kv_kernel(x_ref, c_ref, wq_ref, bq_ref, wkv_ref, bkv_ref, q_ref, kv_ref):
    """Cross-attention projections: Q from x, fused K|V from cross."""
    B = x_ref.shape[0]
    wq, bq = wq_ref[...], bq_ref[...]
    wkv, bkv = wkv_ref[...], bkv_ref[...]
    for b in range(B):
        q_ref[b] = jnp.dot(_bf16(x_ref[b]), wq,
                           preferred_element_type=jnp.float32) + bq
        kv_ref[b] = jnp.dot(_bf16(c_ref[b]), wkv,
                            preferred_element_type=jnp.float32) + bkv


def _proj_add_decomp_kernel(agg_ref, x_ref, w_ref, b_ref, s_ref, t_ref, *, k):
    """out_projection(attn) + residual add + series_decomp, in one kernel."""
    B = agg_ref.shape[0]
    w, bias = w_ref[...], b_ref[...]
    for b in range(B):
        out = jnp.dot(_bf16(agg_ref[b]), w,
                      preferred_element_type=jnp.float32) + bias
        sea, tr = _moving_avg_decomp(x_ref[b] + out, k)
        s_ref[b] = sea
        t_ref[b] = tr


def _ffn_decomp_kernel(x_ref, w1_ref, w2_ref, s_ref, t_ref, *, k):
    """Position-wise FFN (conv1 k=1 -> relu -> conv2 k=1, no bias) + residual
    + series_decomp; hidden activation never leaves VMEM."""
    B = x_ref.shape[0]
    w1, w2 = w1_ref[...], w2_ref[...]
    for b in range(B):
        x = x_ref[b]
        h = jnp.dot(_bf16(x), w1, preferred_element_type=jnp.float32)
        h = jnp.maximum(h, 0.0)
        y = jnp.dot(_bf16(h), w2, preferred_element_type=jnp.float32)
        sea, tr = _moving_avg_decomp(x + y, k)
        s_ref[b] = sea
        t_ref[b] = tr


def _trend_proj_kernel(t1_ref, t2_ref, t3_ref, wp_ref, wc_ref, wn_ref, o_ref):
    """residual_trend = t1+t2+t3 then Conv1d(d_model,c_out,3,circular,no bias)."""
    B = t1_ref.shape[0]
    wp, wc, wn = wp_ref[...], wc_ref[...], wn_ref[...]
    for b in range(B):
        t = t1_ref[b] + t2_ref[b] + t3_ref[b]
        y = jnp.dot(_bf16(_circ_prev(t)), wp, preferred_element_type=jnp.float32)
        y = y + jnp.dot(_bf16(t), wc, preferred_element_type=jnp.float32)
        y = y + jnp.dot(_bf16(_circ_next(t)), wn, preferred_element_type=jnp.float32)
        o_ref[b] = y


def _decomp_kernel(x_ref, s_ref, t_ref, *, k):
    """Standalone series_decomp (used on the raw encoder input)."""
    B = x_ref.shape[0]
    for b in range(B):
        sea, tr = _moving_avg_decomp(x_ref[b], k)
        s_ref[b] = sea
        t_ref[b] = tr


def _mynorm_body(x, g, beta):
    mu = jnp.mean(x, axis=-1, keepdims=True)
    var = jnp.mean((x - mu) ** 2, axis=-1, keepdims=True)
    xhat = (x - mu) * jax.lax.rsqrt(var + 1e-5) * g + beta
    bias = jnp.mean(xhat, axis=0, keepdims=True)     # my_Layernorm de-biasing
    return xhat - bias


def _mynorm_kernel(x_ref, g_ref, b_ref, o_ref):
    B = x_ref.shape[0]
    g, beta = g_ref[...], b_ref[...]
    for b in range(B):
        o_ref[b] = _mynorm_body(x_ref[b], g, beta)


def _mynorm_proj_kernel(x_ref, g_ref, b_ref, w_ref, o_ref):
    """my_Layernorm fused with the decoder's final Linear(d_model, c_out)."""
    B = x_ref.shape[0]
    g, beta, w = g_ref[...], b_ref[...], w_ref[...]
    for b in range(B):
        y = _mynorm_body(x_ref[b], g, beta)
        o_ref[b] = jnp.dot(_bf16(y), w, preferred_element_type=jnp.float32)


# ------------------------------ kernel wrappers ------------------------------

def series_decomp(x, k):
    B, L, C = x.shape
    sds = jax.ShapeDtypeStruct((B, L, C), jnp.float32)
    return _pcall(functools.partial(_decomp_kernel, k=k), (sds, sds),
                  x.astype(jnp.float32))


def data_embedding(p, x, x_mark):
    B, L, _ = x.shape
    D = p["w_cur"].shape[1]
    return _pcall(_embed_kernel, jax.ShapeDtypeStruct((B, L, D), jnp.float32),
                  x, x_mark, p["w_prev"], p["w_cur"], p["w_next"], p["w_mark"])


def self_attention_block(p, x, n_heads, factor, k_ma):
    """AutoCorrelationLayer (self) + residual + series_decomp."""
    B, L, D = x.shape
    qkv = _pcall(_qkv_kernel, jax.ShapeDtypeStruct((B, L, 3 * D), jnp.float32),
                 x, p["w_qkv"], p["b_qkv"])
    q = qkv[..., :D].reshape(B, L, n_heads, -1)
    k = qkv[..., D:2 * D].reshape(B, L, n_heads, -1)
    v = qkv[..., 2 * D:].reshape(B, L, n_heads, -1)
    agg = auto_correlation(q, k, v, factor).reshape(B, L, D)
    sds = jax.ShapeDtypeStruct((B, L, D), jnp.float32)
    return _pcall(functools.partial(_proj_add_decomp_kernel, k=k_ma),
                  (sds, sds), agg, x, p["w_o"], p["b_o"])


def cross_attention_block(p, x, cross, n_heads, factor, k_ma):
    """AutoCorrelationLayer (cross) + residual + series_decomp."""
    B, L, D = x.shape
    S = cross.shape[1]
    q_out, kv_out = _pcall(
        _q_kv_kernel,
        (jax.ShapeDtypeStruct((B, L, D), jnp.float32),
         jax.ShapeDtypeStruct((B, S, 2 * D), jnp.float32)),
        x, cross, p["w_q"], p["b_q"], p["w_kv"], p["b_kv"])
    q = q_out.reshape(B, L, n_heads, -1)
    k = kv_out[..., :D].reshape(B, S, n_heads, -1)
    v = kv_out[..., D:].reshape(B, S, n_heads, -1)
    agg = auto_correlation(q, k, v, factor).reshape(B, L, D)
    sds = jax.ShapeDtypeStruct((B, L, D), jnp.float32)
    return _pcall(functools.partial(_proj_add_decomp_kernel, k=k_ma),
                  (sds, sds), agg, x, p["w_o"], p["b_o"])


def ffn_decomp(p, x, k_ma):
    B, L, D = x.shape
    sds = jax.ShapeDtypeStruct((B, L, D), jnp.float32)
    return _pcall(functools.partial(_ffn_decomp_kernel, k=k_ma),
                  (sds, sds), x, p["w1"], p["w2"])


def my_layernorm(x, gamma, beta):
    B, L, D = x.shape
    return _pcall(_mynorm_kernel, jax.ShapeDtypeStruct((B, L, D), jnp.float32),
                  x, gamma, beta)


# ------------------------------ JAX glue pieces ------------------------------

def sinusoid_pe(L, d_model):
    pos = jnp.arange(L, dtype=jnp.float32)[:, None]
    div = jnp.exp(jnp.arange(0, d_model, 2, dtype=jnp.float32)
                  * (-math.log(10000.0) / d_model))
    pe = jnp.zeros((L, d_model), jnp.float32)
    pe = pe.at[:, 0::2].set(jnp.sin(pos * div))
    pe = pe.at[:, 1::2].set(jnp.cos(pos * div))
    return pe[None]


def avgpool2(x):
    # nn.AvgPool1d(2) along time (floor mode), channels-last layout
    B, L, C = x.shape
    L2 = L // 2
    return x[:, :2 * L2, :].reshape(B, L2, 2, C).mean(axis=2)


def upsample_linear(x, out_size):
    # torch.nn.Upsample(size=out_size, mode='linear', align_corners=False)
    # TODO(synk): interpolation gather kept in JAX glue (tiny, data-layout op).
    B, Lin, C = x.shape
    scale = Lin / out_size
    i = jnp.arange(out_size, dtype=jnp.float32)
    src = jnp.clip((i + 0.5) * scale - 0.5, 0.0, None)
    i0 = jnp.clip(jnp.floor(src).astype(jnp.int32), 0, Lin - 1)
    i1 = jnp.clip(i0 + 1, 0, Lin - 1)
    w = (src - i0.astype(jnp.float32))[None, :, None]
    return x[:, i0, :] * (1.0 - w) + x[:, i1, :] * w


def auto_correlation(q, k, v, factor):
    """AutoCorrelation (inference-mode time-delay aggregation).
    q: (B, L, H, E); k, v: (B, S, H, E) -> (B, L, H, E).
    TODO(synk): rfft/irfft period correlation has no Pallas TPU equivalent;
                computed with XLA FFT (review says this part is fine)."""
    B, L, H, E = q.shape
    S = v.shape[1]
    if L > S:
        zeros = jnp.zeros((B, L - S, H, E), jnp.float32)
        v = jnp.concatenate([v, zeros], axis=1)
        k = jnp.concatenate([k, zeros], axis=1)
    else:
        v = v[:, :L]
        k = k[:, :L]
    qp = jnp.transpose(q, (0, 2, 3, 1))    # (B, H, E, L)
    kp = jnp.transpose(k, (0, 2, 3, 1))
    vp = jnp.transpose(v, (0, 2, 3, 1))
    corr = jnp.fft.irfft(jnp.fft.rfft(qp, axis=-1) * jnp.conj(jnp.fft.rfft(kp, axis=-1)),
                         n=L, axis=-1)
    top_k = int(factor * math.log(L))
    mean_value = corr.mean(axis=1).mean(axis=1)            # (B, L)
    weights, delay = jax.lax.top_k(mean_value, top_k)      # (B, top_k)
    tmp_corr = jax.nn.softmax(weights, axis=-1)
    # single vectorized circular gather: no python loop, no 2x V duplication
    idx = (jnp.arange(L, dtype=jnp.int32)[None, None, :] + delay[:, :, None]) % L
    idx = jnp.broadcast_to(idx[:, :, None, None, :], (B, top_k, H, E, L))
    pattern = jnp.take_along_axis(vp[:, None], idx, axis=-1)        # (B,K,H,E,L)
    delays_agg = jnp.sum(pattern * tmp_corr[:, :, None, None, None], axis=1)
    return jnp.transpose(delays_agg, (0, 3, 1, 2))         # (B, L, H, E)


# ------------------------------ model blocks ------------------------------

def encoder_layer(p, x, cfg):
    s, _ = self_attention_block(p["attn"], x, cfg["n_heads"], cfg["factor"],
                                cfg["moving_avg"])
    res, _ = ffn_decomp(p, s, cfg["moving_avg"])
    return res


def encoder(p, x, cfg):
    for lp in p["layers"]:
        x = encoder_layer(lp, x, cfg)
    return my_layernorm(x, p["ln_g"], p["ln_b"])


def decoder_layer(p, x, cross, cfg):
    B, L, _ = x.shape
    x, t1 = self_attention_block(p["self"], x, cfg["n_heads"], cfg["factor"],
                                 cfg["moving_avg"])
    x, t2 = cross_attention_block(p["cross"], x, cross, cfg["n_heads"],
                                  cfg["factor"], cfg["moving_avg"])
    x, t3 = ffn_decomp(p, x, cfg["moving_avg"])
    c_out = p["wt_cur"].shape[1]
    rt = _pcall(_trend_proj_kernel,
                jax.ShapeDtypeStruct((B, L, c_out), jnp.float32),
                t1, t2, t3, p["wt_prev"], p["wt_cur"], p["wt_next"])
    return x, rt


def decoder(p, x, cross, trend, cfg):
    for lp in p["layers"]:
        x, rt = decoder_layer(lp, x, cross, cfg)
        trend = trend + rt
    B, L, D = x.shape
    if p.get("proj") is not None:
        c_out = p["proj"].shape[1]
        x = _pcall(_mynorm_proj_kernel,
                   jax.ShapeDtypeStruct((B, L, c_out), jnp.float32),
                   x, p["ln_g"], p["ln_b"], p["proj"])
    else:
        x = my_layernorm(x, p["ln_g"], p["ln_b"])
    return x, trend


# ------------------------------ Model forward ------------------------------

def model_forward(params, x_enc, x_mark_enc, x_dec, x_mark_dec, *, cfg):
    seq_len, label_len, pred_len = cfg["seq_len"], cfg["label_len"], cfg["pred_len"]
    k_ma = cfg["moving_avg"]
    d_model = cfg["d_model"]

    mean = jnp.repeat(jnp.mean(x_enc, axis=1, keepdims=True), pred_len, axis=1)
    zeros = jnp.zeros((x_dec.shape[0], pred_len, x_dec.shape[2]), jnp.float32)
    seasonal_init, trend_init = series_decomp(x_enc, k_ma)
    trend_init = jnp.concatenate([trend_init[:, -label_len:, :], mean], axis=1)
    seasonal_init = jnp.concatenate([seasonal_init[:, -label_len:, :], zeros], axis=1)

    enc_out0 = data_embedding(params["enc_emb"], x_enc, x_mark_enc)
    enc_out = encoder(params["encoder"], enc_out0, cfg)
    dec_out = data_embedding(params["dec_emb"], seasonal_init, x_mark_dec)

    enc_out_1 = avgpool2(enc_out)
    enc_out_1 = enc_out_1 + sinusoid_pe(enc_out_1.shape[1], d_model)   # pos_embpart
    enc_out_2 = encoder(params["encoder"], enc_out_1, cfg)

    dec_out_1 = avgpool2(dec_out)
    dec_out_1 = dec_out_1 + sinusoid_pe(dec_out_1.shape[1], d_model)   # pos_embpart
    trend_init_0 = avgpool2(trend_init)

    seasonal_part, _trend_part_0 = decoder(params["decoder_1"], dec_out_1, enc_out_2,
                                           trend_init_0, cfg)
    seasonal_part_1 = upsample_linear(seasonal_part, seq_len + pred_len)   # upsmp2
    seasonal_part_1 = seasonal_part_1 + sinusoid_pe(seq_len + pred_len, d_model)  # pos_emb

    seasonal_part, trend_part = decoder(params["decoder"], seasonal_part_1, enc_out,
                                        trend_init, cfg)
    # data != 'bus', quan == False, output_attention == False
    return trend_part + seasonal_part


# ------------------------------ Parameter init ------------------------------

def init_params(key, cfg):
    d_model, d_ff = cfg["d_model"], cfg["d_ff"]
    enc_in, c_out, mark_in = cfg["enc_in"], cfg["c_out"], cfg["mark_in"]

    keys = [key]

    def nxt():
        keys[0], sub = jax.random.split(keys[0])
        return sub

    def w(din, dout):
        # matmul weights stored bf16 (MXU operands); accumulate in f32 in-kernel
        return (jax.random.normal(nxt(), (din, dout), jnp.float32)
                * (1.0 / math.sqrt(din))).astype(jnp.bfloat16)

    def bvec(dout):
        return jax.random.normal(nxt(), (1, dout), jnp.float32) * 0.02

    def self_attn():
        return dict(w_qkv=w(d_model, 3 * d_model), b_qkv=bvec(3 * d_model),
                    w_o=w(d_model, d_model), b_o=bvec(d_model))

    def cross_attn():
        return dict(w_q=w(d_model, d_model), b_q=bvec(d_model),
                    w_kv=w(d_model, 2 * d_model), b_kv=bvec(2 * d_model),
                    w_o=w(d_model, d_model), b_o=bvec(d_model))

    def enc_layer():
        return dict(attn=self_attn(), w1=w(d_model, d_ff), w2=w(d_ff, d_model))

    def dec_layer():
        return dict(self=self_attn(), cross=cross_attn(),
                    w1=w(d_model, d_ff), w2=w(d_ff, d_model),
                    wt_prev=w(d_model, c_out), wt_cur=w(d_model, c_out),
                    wt_next=w(d_model, c_out))

    def emb():
        return dict(w_prev=w(enc_in, d_model), w_cur=w(enc_in, d_model),
                    w_next=w(enc_in, d_model), w_mark=w(mark_in, d_model))

    def ln():
        return (jnp.ones((1, d_model), jnp.float32),
                jnp.zeros((1, d_model), jnp.float32))

    g1, b1 = ln(); g2, b2 = ln(); g3, b3 = ln()
    return dict(
        enc_emb=emb(),
        dec_emb=emb(),
        encoder=dict(layers=[enc_layer() for _ in range(cfg["e_layers"])],
                     ln_g=g1, ln_b=b1),
        decoder_1=dict(layers=[dec_layer() for _ in range(cfg["d_layers"])],
                       ln_g=g2, ln_b=b2, proj=None),
        decoder=dict(layers=[dec_layer() for _ in range(cfg["d_layers"])],
                     ln_g=g3, ln_b=b3, proj=w(d_model, c_out)),
    )


# ------------------------------ Entry point ------------------------------

if __name__ == "__main__":
    cfg = dict(seq_len=16, label_len=16, pred_len=8,
               enc_in=4, c_out=4, mark_in=4,          # freq='h' -> 4 time features
               d_model=32, d_ff=64, n_heads=4,
               e_layers=1, d_layers=1,
               moving_avg=5, factor=1)

    key = jax.random.PRNGKey(0)
    k1, k2, k3, k4, kp = jax.random.split(key, 5)
    B = 2
    L_dec = cfg["label_len"] + cfg["pred_len"]
    x_enc = jax.random.normal(k1, (B, cfg["seq_len"], cfg["enc_in"]), jnp.float32)
    x_mark_enc = jax.random.normal(k2, (B, cfg["seq_len"], cfg["mark_in"]), jnp.float32)
    x_dec = jax.random.normal(k3, (B, L_dec, cfg["enc_in"]), jnp.float32)
    x_mark_dec = jax.random.normal(k4, (B, L_dec, cfg["mark_in"]), jnp.float32)

    params = init_params(kp, cfg)

    fwd = jax.jit(functools.partial(model_forward, cfg=cfg))
    out = fwd(params, x_enc, x_mark_enc, x_dec, x_mark_dec)
    out = jax.block_until_ready(out)
    assert out.shape == (B, L_dec, cfg["c_out"])
    assert bool(jnp.all(jnp.isfinite(out)))
    print("KERNEL_OK")
</pallas_src>

<mosaic_0001>
module attributes {stable_mosaic.version = 11 : i64} {
  func.func @_embed_kernel(%arg0: memref<2x16x4xf32, #tpu.memory_space<vmem>>, %arg1: memref<2x16x4xf32, #tpu.memory_space<vmem>>, %arg2: memref<4x32xbf16, #tpu.memory_space<vmem>>, %arg3: memref<4x32xbf16, #tpu.memory_space<vmem>>, %arg4: memref<4x32xbf16, #tpu.memory_space<vmem>>, %arg5: memref<4x32xbf16, #tpu.memory_space<vmem>>, %arg6: memref<2x16x32xf32, #tpu.memory_space<vmem>>) attributes {dimension_semantics = [], scalar_prefetch = 0 : i64, scratch_operands = 0 : i64, tpu.core_type = #tpu.core_type<tc>} {
    %c0 = arith.constant 0 : index
    %c0_0 = arith.constant 0 : index
    %0 = vector.load %arg2[%c0, %c0_0] : memref<4x32xbf16, #tpu.memory_space<vmem>>, vector<4x32xbf16>
    %c0_1 = arith.constant 0 : index
    %c0_2 = arith.constant 0 : index
    %1 = vector.load %arg3[%c0_1, %c0_2] : memref<4x32xbf16, #tpu.memory_space<vmem>>, vector<4x32xbf16>
    %c0_3 = arith.constant 0 : index
    %c0_4 = arith.constant 0 : index
    %2 = vector.load %arg4[%c0_3, %c0_4] : memref<4x32xbf16, #tpu.memory_space<vmem>>, vector<4x32xbf16>
    %c0_5 = arith.constant 0 : index
    %c0_6 = arith.constant 0 : index
    %3 = vector.load %arg5[%c0_5, %c0_6] : memref<4x32xbf16, #tpu.memory_space<vmem>>, vector<4x32xbf16>
    %c0_7 = arith.constant 0 : index
    %c0_8 = arith.constant 0 : index
    %c0_9 = arith.constant 0 : index
    %4 = vector.load %arg0[%c0_7, %c0_8, %c0_9] : memref<2x16x4xf32, #tpu.memory_space<vmem>>, vector<1x16x4xf32>
    %5 = vector.shape_cast %4 : vector<1x16x4xf32> to vector<16x4xf32>
    %c0_10 = arith.constant 0 : index
    %c0_11 = arith.constant 0 : index
    %c0_12 = arith.constant 0 : index
    %6 = vector.load %arg1[%c0_10, %c0_11, %c0_12] : memref<2x16x4xf32, #tpu.memory_space<vmem>>, vector<1x16x4xf32>
    %7 = vector.shape_cast %6 : vector<1x16x4xf32> to vector<16x4xf32>
    %8 = vector.extract_strided_slice %5 {offsets = [15, 0], sizes = [1, 4], strides = [1, 1]} : vector<16x4xf32> to vector<1x4xf32>
    %9 = vector.extract_strided_slice %5 {offsets = [0, 0], sizes = [15, 4], strides = [1, 1]} : vector<16x4xf32> to vector<15x4xf32>
    %10 = tpu.concatenate %8, %9 in 0 : vector<1x4xf32>, vector<15x4xf32> -> vector<16x4xf32>
    %11 = arith.truncf %10 : vector<16x4xf32> to vector<16x4xbf16>
    %cst = arith.constant dense<0.000000e+00> : vector<16x32xf32>
    %12 = tpu.matmul %11, %0, %cst {dimension_numbers = #tpu.dot_dimension_numbers<[1], [0], [0], [1], [0, 0, 1, 1], [], []>} : vector<16x4xbf16>, vector<4x32xbf16>, vector<16x32xf32> -> vector<16x32xf32>
    %13 = arith.truncf %5 : vector<16x4xf32> to vector<16x4xbf16>
    %cst_13 = arith.constant dense<0.000000e+00> : vector<16x32xf32>
    %14 = tpu.matmul %13, %1, %cst_13 {dimension_numbers = #tpu.dot_dimension_numbers<[1], [0], [0], [1], [0, 0, 1, 1], [], []>} : vector<16x4xbf16>, vector<4x32xbf16>, vector<16x32xf32> -> vector<16x32xf32>
    %15 = arith.addf %12, %14 : vector<16x32xf32>
    %16 = vector.extract_strided_slice %5 {offsets = [1, 0], sizes = [15, 4], strides = [1, 1]} : vector<16x4xf32> to vector<15x4xf32>
    %17 = vector.extract_strided_slice %5 {offsets = [0, 0], sizes = [1, 4], strides = [1, 1]} : vector<16x4xf32> to vector<1x4xf32>
    %18 = tpu.concatenate %16, %17 in 0 : vector<15x4xf32>, vector<1x4xf32> -> vector<16x4xf32>
    %19 = arith.truncf %18 : vector<16x4xf32> to vector<16x4xbf16>
    %cst_14 = arith.constant dense<0.000000e+00> : vector<16x32xf32>
    %20 = tpu.matmul %19, %2, %cst_14 {dimension_numbers = #tpu.dot_dimension_numbers<[1], [0], [0], [1], [0, 0, 1, 1], [], []>} : vector<16x4xbf16>, vector<4x32xbf16>, vector<16x32xf32> -> vector<16x32xf32>
    %21 = arith.addf %15, %20 : vector<16x32xf32>
    %22 = arith.truncf %7 : vector<16x4xf32> to vector<16x4xbf16>
    %cst_15 = arith.constant dense<0.000000e+00> : vector<16x32xf32>
    %23 = tpu.matmul %22, %3, %cst_15 {dimension_numbers = #tpu.dot_dimension_numbers<[1], [0], [0], [1], [0, 0, 1, 1], [], []>} : vector<16x4xbf16>, vector<4x32xbf16>, vector<16x32xf32> -> vector<16x32xf32>
    %24 = arith.addf %21, %23 : vector<16x32xf32>
    %c0_16 = arith.constant 0 : index
    %c0_17 = arith.constant 0 : index
    %c0_18 = arith.constant 0 : index
    %25 = vector.load %arg6[%c0_16, %c0_17, %c0_18] : memref<2x16x32xf32, #tpu.memory_space<vmem>>, vector<1x16x32xf32>
    %26 = vector.shape_cast %25 : vector<1x16x32xf32> to vector<16x32xf32>
    %27 = vector.shape_cast %24 : vector<16x32xf32> to vector<1x16x32xf32>
    tpu.vector_store %arg6[%c0_16, %c0_17, %c0_18], %27 {strides = array<i32>} : memref<2x16x32xf32, #tpu.memory_space<vmem>>, vector<1x16x32xf32>,
    %c1 = arith.constant 1 : index
    %c0_19 = arith.constant 0 : index
    %c0_20 = arith.constant 0 : index
    %28 = vector.load %arg0[%c1, %c0_19, %c0_20] : memref<2x16x4xf32, #tpu.memory_space<vmem>>, vector<1x16x4xf32>
    %29 = vector.shape_cast %28 : vector<1x16x4xf32> to vector<16x4xf32>
    %c1_21 = arith.constant 1 : index
    %c0_22 = arith.constant 0 : index
    %c0_23 = arith.constant 0 : index
    %30 = vector.load %arg1[%c1_21, %c0_22, %c0_23] : memref<2x16x4xf32, #tpu.memory_space<vmem>>, vector<1x16x4xf32>
    %31 = vector.shape_cast %30 : vector<1x16x4xf32> to vector<16x4xf32>
    %32 = vector.extract_strided_slice %29 {offsets = [15, 0], sizes = [1, 4], strides = [1, 1]} : vector<16x4xf32> to vector<1x4xf32>
    %33 = vector.extract_strided_slice %29 {offsets = [0, 0], sizes = [15, 4], strides = [1, 1]} : vector<16x4xf32> to vector<15x4xf32>
    %34 = tpu.concatenate %32, %33 in 0 : vector<1x4xf32>, vector<15x4xf32> -> vector<16x4xf32>
    %35 = arith.truncf %34 : vector<16x4xf32> to vector<16x4xbf16>
    %cst_24 = arith.constant dense<0.000000e+00> : vector<16x32xf32>
    %36 = tpu.matmul %35, %0, %cst_24 {dimension_numbers = #tpu.dot_dimension_numbers<[1], [0], [0], [1], [0, 0, 1, 1], [], []>} : vector<16x4xbf16>, vector<4x32xbf16>, vector<16x32xf32> -> vector<16x32xf32>
    %37 = arith.truncf %29 : vector<16x4xf32> to vector<16x4xbf16>
    %cst_25 = arith.constant dense<0.000000e+00> : vector<16x32xf32>
    %38 = tpu.matmul %37, %1, %cst_25 {dimension_numbers = #tpu.dot_dimension_numbers<[1], [0], [0], [1], [0, 0, 1, 1], [], []>} : vector<16x4xbf16>, vector<4x32xbf16>, vector<16x32xf32> -> vector<16x32xf32>
    %39 = arith.addf %36, %38 : vector<16x32xf32>
    %40 = vector.extract_strided_slice %29 {offsets = [1, 0], sizes = [15, 4], strides = [1, 1]} : vector<16x4xf32> to vector<15x4xf32>
    %41 = vector.extract_strided_slice %29 {offsets = [0, 0], sizes = [1, 4], strides = [1, 1]} : vector<16x4xf32> to vector<1x4xf32>
    %42 = tpu.concatenate %40, %41 in 0 : vector<15x4xf32>, vector<1x4xf32> -> vector<16x4xf32>
    %43 = arith.truncf %42 : vector<16x4xf32> to vector<16x4xbf16>
    %cst_26 = arith.constant dense<0.000000e+00> : vector<16x32xf32>
    %44 = tpu.matmul %43, %2, %cst_26 {dimension_numbers = #tpu.dot_dimension_numbers<[1], [0], [0], [1], [0, 0, 1, 1], [], []>} : vector<16x4xbf16>, vector<4x32xbf16>, vector<16x32xf32> -> vector<16x32xf32>
    %45 = arith.addf %39, %44 : vector<16x32xf32>
    %46 = arith.truncf %31 : vector<16x4xf32> to vector<16x4xbf16>
    %cst_27 = arith.constant dense<0.000000e+00> : vector<16x32xf32>
    %47 = tpu.matmul %46, %3, %cst_27 {dimension_numbers = #tpu.dot_dimension_numbers<[1], [0], [0], [1], [0, 0, 1, 1], [], []>} : vector<16x4xbf16>, vector<4x32xbf16>, vector<16x32xf32> -> vector<16x32xf32>
    %48 = arith.addf %45, %47 : vector<16x32xf32>
    %c1_28 = arith.constant 1 : index
    %c0_29 = arith.constant 0 : index
    %c0_30 = arith.constant 0 : index
    %49 = vector.load %arg6[%c1_28, %c0_29, %c0_30] : memref<2x16x32xf32, #tpu.memory_space<vmem>>, vector<1x16x32xf32>
    %50 = vector.shape_cast %49 : vector<1x16x32xf32> to vector<16x32xf32>
    %51 = vector.shape_cast %48 : vector<16x32xf32> to vector<1x16x32xf32>
    tpu.vector_store %arg6[%c1_28, %c0_29, %c0_30], %51 {strides = array<i32>} : memref<2x16x32xf32, #tpu.memory_space<vmem>>, vector<1x16x32xf32>,
    return
  }
}

module attributes {stable_mosaic.version = 11 : i64} {
  func.func @_qkv_kernel(%arg0: memref<2x16x32xf32, #tpu.memory_space<vmem>>, %arg1: memref<32x96xbf16, #tpu.memory_space<vmem>>, %arg2: memref<1x96xf32, #tpu.memory_space<vmem>>, %arg3: memref<2x16x96xf32, #tpu.memory_space<vmem>>) attributes {dimension_semantics = [], scalar_prefetch = 0 : i64, scratch_operands = 0 : i64, tpu.core_type = #tpu.core_type<tc>} {
    %c0 = arith.constant 0 : index
    %c0_0 = arith.constant 0 : index
    %0 = vector.load %arg1[%c0, %c0_0] : memref<32x96xbf16, #tpu.memory_space<vmem>>, vector<32x96xbf16>
    %c0_1 = arith.constant 0 : index
    %c0_2 = arith.constant 0 : index
    %1 = vector.load %arg2[%c0_1, %c0_2] : memref<1x96xf32, #tpu.memory_space<vmem>>, vector<1x96xf32>
    %c0_3 = arith.constant 0 : index
    %c0_4 = arith.constant 0 : index
    %c0_5 = arith.constant 0 : index
    %2 = vector.load %arg0[%c0_3, %c0_4, %c0_5] : memref<2x16x32xf32, #tpu.memory_space<vmem>>, vector<1x16x32xf32>
    %3 = vector.shape_cast %2 : vector<1x16x32xf32> to vector<16x32xf32>
    %4 = arith.truncf %3 : vector<16x32xf32> to vector<16x32xbf16>
    %cst = arith.constant dense<0.000000e+00> : vector<16x96xf32>
    %5 = tpu.matmul %4, %0, %cst {dimension_numbers = #tpu.dot_dimension_numbers<[1], [0], [0], [1], [0, 0, 1, 1], [], []>} : vector<16x32xbf16>, vector<32x96xbf16>, vector<16x96xf32> -> vector<16x96xf32>
    %6 = vector.broadcast %1 : vector<1x96xf32> to vector<16x96xf32>
    %7 = arith.addf %5, %6 : vector<16x96xf32>
    %c0_6 = arith.constant 0 : index
    %c0_7 = arith.constant 0 : index
    %c0_8 = arith.constant 0 : index
    %8 = vector.load %arg3[%c0_6, %c0_7, %c0_8] : memref<2x16x96xf32, #tpu.memory_space<vmem>>, vector<1x16x96xf32>
    %9 = vector.shape_cast %8 : vector<1x16x96xf32> to vector<16x96xf32>
    %10 = vector.shape_cast %7 : vector<16x96xf32> to vector<1x16x96xf32>
    tpu.vector_store %arg3[%c0_6, %c0_7, %c0_8], %10 {strides = array<i32>} : memref<2x16x96xf32, #tpu.memory_space<vmem>>, vector<1x16x96xf32>,
    %c1 = arith.constant 1 : index
    %c0_9 = arith.constant 0 : index
    %c0_10 = arith.constant 0 : index
    %11 = vector.load %arg0[%c1, %c0_9, %c0_10] : memref<2x16x32xf32, #tpu.memory_space<vmem>>, vector<1x16x32xf32>
    %12 = vector.shape_cast %11 : vector<1x16x32xf32> to vector<16x32xf32>
    %13 = arith.truncf %12 : vector<16x32xf32> to vector<16x32xbf16>
    %cst_11 = arith.constant dense<0.000000e+00> : vector<16x96xf32>
    %14 = tpu.matmul %13, %0, %cst_11 {dimension_numbers = #tpu.dot_dimension_numbers<[1], [0], [0], [1], [0, 0, 1, 1], [], []>} : vector<16x32xbf16>, vector<32x96xbf16>, vector<16x96xf32> -> vector<16x96xf32>
    %15 = vector.broadcast %1 : vector<1x96xf32> to vector<16x96xf32>
    %16 = arith.addf %14, %15 : vector<16x96xf32>
    %c1_12 = arith.constant 1 : index
    %c0_13 = arith.constant 0 : index
    %c0_14 = arith.constant 0 : index
    %17 = vector.load %arg3[%c1_12, %c0_13, %c0_14] : memref<2x16x96xf32, #tpu.memory_space<vmem>>, vector<1x16x96xf32>
    %18 = vector.shape_cast %17 : vector<1x16x96xf32> to vector<16x96xf32>
    %19 = vector.shape_cast %16 : vector<16x96xf32> to vector<1x16x96xf32>
    tpu.vector_store %arg3[%c1_12, %c0_13, %c0_14], %19 {strides = array<i32>} : memref<2x16x96xf32, #tpu.memory_space<vmem>>, vector<1x16x96xf32>,
    return
  }
}

module attributes {stable_mosaic.version = 11 : i64} {
  func.func @_proj_add_decomp_kernel(%arg0: memref<2x16x32xf32, #tpu.memory_space<vmem>>, %arg1: memref<2x16x32xf32, #tpu.memory_space<vmem>>, %arg2: memref<32x32xbf16, #tpu.memory_space<vmem>>, %arg3: memref<1x32xf32, #tpu.memory_space<vmem>>, %arg4: memref<2x16x32xf32, #tpu.memory_space<vmem>>, %arg5: memref<2x16x32xf32, #tpu.memory_space<vmem>>) attributes {dimension_semantics = [], scalar_prefetch = 0 : i64, scratch_operands = 0 : i64, tpu.core_type = #tpu.core_type<tc>} {
    %c0 = arith.constant 0 : index
    %c0_0 = arith.constant 0 : index
    %0 = vector.load %arg2[%c0, %c0_0] : memref<32x32xbf16, #tpu.memory_space<vmem>>, vector<32x32xbf16>
    %c0_1 = arith.constant 0 : index
    %c0_2 = arith.constant 0 : index
    %1 = vector.load %arg3[%c0_1, %c0_2] : memref<1x32xf32, #tpu.memory_space<vmem>>, vector<1x32xf32>
    %c0_3 = arith.constant 0 : index
    %c0_4 = arith.constant 0 : index
    %c0_5 = arith.constant 0 : index
    %2 = vector.load %arg0[%c0_3, %c0_4, %c0_5] : memref<2x16x32xf32, #tpu.memory_space<vmem>>, vector<1x16x32xf32>
    %3 = vector.shape_cast %2 : vector<1x16x32xf32> to vector<16x32xf32>
    %4 = arith.truncf %3 : vector<16x32xf32> to vector<16x32xbf16>
    %cst = arith.constant dense<0.000000e+00> : vector<16x32xf32>
    %5 = tpu.matmul %4, %0, %cst {dimension_numbers = #tpu.dot_dimension_numbers<[1], [0], [0], [1], [0, 0, 1, 1], [], []>} : vector<16x32xbf16>, vector<32x32xbf16>, vector<16x32xf32> -> vector<16x32xf32>
    %6 = vector.broadcast %1 : vector<1x32xf32> to vector<16x32xf32>
    %7 = arith.addf %5, %6 : vector<16x32xf32>
    %c0_6 = arith.constant 0 : index
    %c0_7 = arith.constant 0 : index
    %c0_8 = arith.constant 0 : index
    %8 = vector.load %arg1[%c0_6, %c0_7, %c0_8] : memref<2x16x32xf32, #tpu.memory_space<vmem>>, vector<1x16x32xf32>
    %9 = vector.shape_cast %8 : vector<1x16x32xf32> to vector<16x32xf32>
    %10 = arith.addf %9, %7 : vector<16x32xf32>
    %11 = vector.extract_strided_slice %10 {offsets = [0, 0], sizes = [1, 32], strides = [1, 1]} : vector<16x32xf32> to vector<1x32xf32>
    %12 = vector.extract_strided_slice %10 {offsets = [0, 0], sizes = [15, 32], strides = [1, 1]} : vector<16x32xf32> to vector<15x32xf32>
    %13 = tpu.concatenate %11, %12 in 0 : vector<1x32xf32>, vector<15x32xf32> -> vector<16x32xf32>
    %14 = vector.extract_strided_slice %10 {offsets = [1, 0], sizes = [15, 32], strides = [1, 1]} : vector<16x32xf32> to vector<15x32xf32>
    %15 = vector.extract_strided_slice %10 {offsets = [15, 0], sizes = [1, 32], strides = [1, 1]} : vector<16x32xf32> to vector<1x32xf32>
    %16 = tpu.concatenate %14, %15 in 0 : vector<15x32xf32>, vector<1x32xf32> -> vector<16x32xf32>
    %17 = arith.addf %10, %13 : vector<16x32xf32>
    %18 = arith.addf %17, %16 : vector<16x32xf32>
    %19 = vector.extract_strided_slice %10 {offsets = [0, 0], sizes = [1, 32], strides = [1, 1]} : vector<16x32xf32> to vector<1x32xf32>
    %20 = vector.extract_strided_slice %10 {offsets = [0, 0], sizes = [14, 32], strides = [1, 1]} : vector<16x32xf32> to vector<14x32xf32>
    %21 = tpu.concatenate %19, %19, %20 in 0 : vector<1x32xf32>, vector<1x32xf32>, vector<14x32xf32> -> vector<16x32xf32>
    %22 = vector.extract_strided_slice %10 {offsets = [2, 0], sizes = [14, 32], strides = [1, 1]} : vector<16x32xf32> to vector<14x32xf32>
    %23 = vector.extract_strided_slice %10 {offsets = [15, 0], sizes = [1, 32], strides = [1, 1]} : vector<16x32xf32> to vector<1x32xf32>
    %24 = tpu.concatenate %22, %23, %23 in 0 : vector<14x32xf32>, vector<1x32xf32>, vector<1x32xf32> -> vector<16x32xf32>
    %25 = arith.addf %18, %21 : vector<16x32xf32>
    %26 = arith.addf %25, %24 : vector<16x32xf32>
    %cst_9 = arith.constant 2.000000e-01 : f32
    %27 = vector.broadcast %cst_9 : f32 to vector<16x32xf32>
    %28 = arith.mulf %26, %27 : vector<16x32xf32>
    %29 = arith.subf %10, %28 : vector<16x32xf32>
    %c0_10 = arith.constant 0 : index
    %c0_11 = arith.constant 0 : index
    %c0_12 = arith.constant 0 : index
    %30 = vector.load %arg4[%c0_10, %c0_11, %c0_12] : memref<2x16x32xf32, #tpu.memory_space<vmem>>, vector<1x16x32xf32>
    %31 = vector.shape_cast %30 : vector<1x16x32xf32> to vector<16x32xf32>
    %32 = vector.shape_cast %29 : vector<16x32xf32> to vector<1x16x32xf32>
    tpu.vector_store %arg4[%c0_10, %c0_11, %c0_12], %32 {strides = array<i32>} : memref<2x16x32xf32, #tpu.memory_space<vmem>>, vector<1x16x32xf32>,
    %c0_13 = arith.constant 0 : index
    %c0_14 = arith.constant 0 : index
    %c0_15 = arith.constant 0 : index
    %33 = vector.load %arg5[%c0_13, %c0_14, %c0_15] : memref<2x16x32xf32, #tpu.memory_space<vmem>>, vector<1x16x32xf32>
    %34 = vector.shape_cast %33 : vector<1x16x32xf32> to vector<16x32xf32>
    %35 = vector.shape_cast %28 : vector<16x32xf32> to vector<1x16x32xf32>
    tpu.vector_store %arg5[%c0_13, %c0_14, %c0_15], %35 {strides = array<i32>} : memref<2x16x32xf32, #tpu.memory_space<vmem>>, vector<1x16x32xf32>,
    %c1 = arith.constant 1 : index
    %c0_16 = arith.constant 0 : index
    %c0_17 = arith.constant 0 : index
    %36 = vector.load %arg0[%c1, %c0_16, %c0_17] : memref<2x16x32xf32, #tpu.memory_space<vmem>>, vector<1x16x32xf32>
    %37 = vector.shape_cast %36 : vector<1x16x32xf32> to vector<16x32xf32>
    %38 = arith.truncf %37 : vector<16x32xf32> to vector<16x32xbf16>
    %cst_18 = arith.constant dense<0.000000e+00> : vector<16x32xf32>
    %39 = tpu.matmul %38, %0, %cst_18 {dimension_numbers = #tpu.dot_dimension_numbers<[1], [0], [0], [1], [0, 0, 1, 1], [], []>} : vector<16x32xbf16>, vector<32x32xbf16>, vector<16x32xf32> -> vector<16x32xf32>
    %40 = vector.broadcast %1 : vector<1x32xf32> to vector<16x32xf32>
    %41 = arith.addf %39, %40 : vector<16x32xf32>
    %c1_19 = arith.constant 1 : index
    %c0_20 = arith.constant 0 : index
    %c0_21 = arith.constant 0 : index
    %42 = vector.load %arg1[%c1_19, %c0_20, %c0_21] : memref<2x16x32xf32, #tpu.memory_space<vmem>>, vector<1x16x32xf32>
    %43 = vector.shape_cast %42 : vector<1x16x32xf32> to vector<16x32xf32>
    %44 = arith.addf %43, %41 : vector<16x32xf32>
    %45 = vector.extract_strided_slice %44 {offsets = [0, 0], sizes = [1, 32], strides = [1, 1]} : vector<16x32xf32> to vector<1x32xf32>
    %46 = vector.extract_strided_slice %44 {offsets = [0, 0], sizes = [15, 32], strides = [1, 1]} : vector<16x32xf32> to vector<15x32xf32>
    %47 = tpu.concatenate %45, %46 in 0 : vector<1x32xf32>, vector<15x32xf32> -> vector<16x32xf32>
    %48 = vector.extract_strided_slice %44 {offsets = [1, 0], sizes = [15, 32], strides = [1, 1]} : vector<16x32xf32> to vector<15x32xf32>
    %49 = vector.extract_strided_slice %44 {offsets = [15, 0], sizes = [1, 32], strides = [1, 1]} : vector<16x32xf32> to vector<1x32xf32>
    %50 = tpu.concatenate %48, %49 in 0 : vector<15x32xf32>, vector<1x32xf32> -> vector<16x32xf32>
    %51 = arith.addf %44, %47 : vector<16x32xf32>
    %52 = arith.addf %51, %50 : vector<16x32xf32>
    %53 = vector.extract_strided_slice %44 {offsets = [0, 0], sizes = [1, 32], strides = [1, 1]} : vector<16x32xf32> to vector<1x32xf32>
    %54 = vector.extract_strided_slice %44 {offsets = [0, 0], sizes = [14, 32], strides = [1, 1]} : vector<16x32xf32> to vector<14x32xf32>
    %55 = tpu.concatenate %53, %53, %54 in 0 : vector<1x32xf32>, vector<1x32xf32>, vector<14x32xf32> -> vector<16x32xf32>
    %56 = vector.extract_strided_slice %44 {offsets = [2, 0], sizes = [14, 32], strides = [1, 1]} : vector<16x32xf32> to vector<14x32xf32>
    %57 = vector.extract_strided_slice %44 {offsets = [15, 0], sizes = [1, 32], strides = [1, 1]} : vector<16x32xf32> to vector<1x32xf32>
    %58 = tpu.concatenate %56, %57, %57 in 0 : vector<14x32xf32>, vector<1x32xf32>, vector<1x32xf32> -> vector<16x32xf32>
    %59 = arith.addf %52, %55 : vector<16x32xf32>
    %60 = arith.addf %59, %58 : vector<16x32xf32>
    %cst_22 = arith.constant 2.000000e-01 : f32
    %61 = vector.broadcast %cst_22 : f32 to vector<16x32xf32>
    %62 = arith.mulf %60, %61 : vector<16x32xf32>
    %63 = arith.subf %44, %62 : vector<16x32xf32>
    %c1_23 = arith.constant 1 : index
    %c0_24 = arith.constant 0 : index
    %c0_25 = arith.constant 0 : index
    %64 = vector.load %arg4[%c1_23, %c0_24, %c0_25] : memref<2x16x32xf32, #tpu.memory_space<vmem>>, vector<1x16x32xf32>
    %65 = vector.shape_cast %64 : vector<1x16x32xf32> to vector<16x32xf32>
    %66 = vector.shape_cast %63 : vector<16x32xf32> to vector<1x16x32xf32>
    tpu.vector_store %arg4[%c1_23, %c0_24, %c0_25], %66 {strides = array<i32>} : memref<2x16x32xf32, #tpu.memory_space<vmem>>, vector<1x16x32xf32>,
    %c1_26 = arith.constant 1 : index
    %c0_27 = arith.constant 0 : index
    %c0_28 = arith.constant 0 : index
    %67 = vector.load %arg5[%c1_26, %c0_27, %c0_28] : memref<2x16x32xf32, #tpu.memory_space<vmem>>, vector<1x16x32xf32>
    %68 = vector.shape_cast %67 : vector<1x16x32xf32> to vector<16x32xf32>
    %69 = vector.shape_cast %62 : vector<16x32xf32> to vector<1x16x32xf32>
    tpu.vector_store %arg5[%c1_26, %c0_27, %c0_28], %69 {strides = array<i32>} : memref<2x16x32xf32, #tpu.memory_space<vmem>>, vector<1x16x32xf32>,
    return
  }
}

module attributes {stable_mosaic.version = 11 : i64} {
  func.func @_ffn_decomp_kernel(%arg0: memref<2x16x32xf32, #tpu.memory_space<vmem>>, %arg1: memref<32x64xbf16, #tpu.memory_space<vmem>>, %arg2: memref<64x32xbf16, #tpu.memory_space<vmem>>, %arg3: memref<2x16x32xf32, #tpu.memory_space<vmem>>, %arg4: memref<2x16x32xf32, #tpu.memory_space<vmem>>) attributes {dimension_semantics = [], scalar_prefetch = 0 : i64, scratch_operands = 0 : i64, tpu.core_type = #tpu.core_type<tc>} {
    %c0 = arith.constant 0 : index
    %c0_0 = arith.constant 0 : index
    %0 = vector.load %arg1[%c0, %c0_0] : memref<32x64xbf16, #tpu.memory_space<vmem>>, vector<32x64xbf16>
    %c0_1 = arith.constant 0 : index
    %c0_2 = arith.constant 0 : index
    %1 = vector.load %arg2[%c0_1, %c0_2] : memref<64x32xbf16, #tpu.memory_space<vmem>>, vector<64x32xbf16>
    %c0_3 = arith.constant 0 : index
    %c0_4 = arith.constant 0 : index
    %c0_5 = arith.constant 0 : index
    %2 = vector.load %arg0[%c0_3, %c0_4, %c0_5] : memref<2x16x32xf32, #tpu.memory_space<vmem>>, vector<1x16x32xf32>
    %3 = vector.shape_cast %2 : vector<1x16x32xf32> to vector<16x32xf32>
    %4 = arith.truncf %3 : vector<16x32xf32> to vector<16x32xbf16>
    %cst = arith.constant dense<0.000000e+00> : vector<16x64xf32>
    %5 = tpu.matmul %4, %0, %cst {dimension_numbers = #tpu.dot_dimension_numbers<[1], [0], [0], [1], [0, 0, 1, 1], [], []>} : vector<16x32xbf16>, vector<32x64xbf16>, vector<16x64xf32> -> vector<16x64xf32>
    %cst_6 = arith.constant 0.000000e+00 : f32
    %6 = vector.broadcast %cst_6 : f32 to vector<16x64xf32>
    %7 = arith.maximumf %5, %6 : vector<16x64xf32>
    %8 = arith.truncf %7 : vector<16x64xf32> to vector<16x64xbf16>
    %cst_7 = arith.constant dense<0.000000e+00> : vector<16x32xf32>
    %9 = tpu.matmul %8, %1, %cst_7 {dimension_numbers = #tpu.dot_dimension_numbers<[1], [0], [0], [1], [0, 0, 1, 1], [], []>} : vector<16x64xbf16>, vector<64x32xbf16>, vector<16x32xf32> -> vector<16x32xf32>
    %10 = arith.addf %3, %9 : vector<16x32xf32>
    %11 = vector.extract_strided_slice %10 {offsets = [0, 0], sizes = [1, 32], strides = [1, 1]} : vector<16x32xf32> to vector<1x32xf32>
    %12 = vector.extract_strided_slice %10 {offsets = [0, 0], sizes = [15, 32], strides = [1, 1]} : vector<16x32xf32> to vector<15x32xf32>
    %13 = tpu.concatenate %11, %12 in 0 : vector<1x32xf32>, vector<15x32xf32> -> vector<16x32xf32>
    %14 = vector.extract_strided_slice %10 {offsets = [1, 0], sizes = [15, 32], strides = [1, 1]} : vector<16x32xf32> to vector<15x32xf32>
    %15 = vector.extract_strided_slice %10 {offsets = [15, 0], sizes = [1, 32], strides = [1, 1]} : vector<16x32xf32> to vector<1x32xf32>
    %16 = tpu.concatenate %14, %15 in 0 : vector<15x32xf32>, vector<1x32xf32> -> vector<16x32xf32>
    %17 = arith.addf %10, %13 : vector<16x32xf32>
    %18 = arith.addf %17, %16 : vector<16x32xf32>
    %19 = vector.extract_strided_slice %10 {offsets = [0, 0], sizes = [1, 32], strides = [1, 1]} : vector<16x32xf32> to vector<1x32xf32>
    %20 = vector.extract_strided_slice %10 {offsets = [0, 0], sizes = [14, 32], strides = [1, 1]} : vector<16x32xf32> to vector<14x32xf32>
    %21 = tpu.concatenate %19, %19, %20 in 0 : vector<1x32xf32>, vector<1x32xf32>, vector<14x32xf32> -> vector<16x32xf32>
    %22 = vector.extract_strided_slice %10 {offsets = [2, 0], sizes = [14, 32], strides = [1, 1]} : vector<16x32xf32> to vector<14x32xf32>
    %23 = vector.extract_strided_slice %10 {offsets = [15, 0], sizes = [1, 32], strides = [1, 1]} : vector<16x32xf32> to vector<1x32xf32>
    %24 = tpu.concatenate %22, %23, %23 in 0 : vector<14x32xf32>, vector<1x32xf32>, vector<1x32xf32> -> vector<16x32xf32>
    %25 = arith.addf %18, %21 : vector<16x32xf32>
    %26 = arith.addf %25, %24 : vector<16x32xf32>
    %cst_8 = arith.constant 2.000000e-01 : f32
    %27 = vector.broadcast %cst_8 : f32 to vector<16x32xf32>
    %28 = arith.mulf %26, %27 : vector<16x32xf32>
    %29 = arith.subf %10, %28 : vector<16x32xf32>
    %c0_9 = arith.constant 0 : index
    %c0_10 = arith.constant 0 : index
    %c0_11 = arith.constant 0 : index
    %30 = vector.load %arg3[%c0_9, %c0_10, %c0_11] : memref<2x16x32xf32, #tpu.memory_space<vmem>>, vector<1x16x32xf32>
    %31 = vector.shape_cast %30 : vector<1x16x32xf32> to vector<16x32xf32>
    %32 = vector.shape_cast %29 : vector<16x32xf32> to vector<1x16x32xf32>
    tpu.vector_store %arg3[%c0_9, %c0_10, %c0_11], %32 {strides = array<i32>} : memref<2x16x32xf32, #tpu.memory_space<vmem>>, vector<1x16x32xf32>,
    %c0_12 = arith.constant 0 : index
    %c0_13 = arith.constant 0 : index
    %c0_14 = arith.constant 0 : index
    %33 = vector.load %arg4[%c0_12, %c0_13, %c0_14] : memref<2x16x32xf32, #tpu.memory_space<vmem>>, vector<1x16x32xf32>
    %34 = vector.shape_cast %33 : vector<1x16x32xf32> to vector<16x32xf32>
    %35 = vector.shape_cast %28 : vector<16x32xf32> to vector<1x16x32xf32>
    tpu.vector_store %arg4[%c0_12, %c0_13, %c0_14], %35 {strides = array<i32>} : memref<2x16x32xf32, #tpu.memory_space<vmem>>, vector<1x16x32xf32>,
    %c1 = arith.constant 1 : index
    %c0_15 = arith.constant 0 : index
    %c0_16 = arith.constant 0 : index
    %36 = vector.load %arg0[%c1, %c0_15, %c0_16] : memref<2x16x32xf32, #tpu.memory_space<vmem>>, vector<1x16x32xf32>
    %37 = vector.shape_cast %36 : vector<1x16x32xf32> to vector<16x32xf32>
    %38 = arith.truncf %37 : vector<16x32xf32> to vector<16x32xbf16>
    %cst_17 = arith.constant dense<0.000000e+00> : vector<16x64xf32>
    %39 = tpu.matmul %38, %0, %cst_17 {dimension_numbers = #tpu.dot_dimension_numbers<[1], [0], [0], [1], [0, 0, 1, 1], [], []>} : vector<16x32xbf16>, vector<32x64xbf16>, vector<16x64xf32> -> vector<16x64xf32>
    %cst_18 = arith.constant 0.000000e+00 : f32
    %40 = vector.broadcast %cst_18 : f32 to vector<16x64xf32>
    %41 = arith.maximumf %39, %40 : vector<16x64xf32>
    %42 = arith.truncf %41 : vector<16x64xf32> to vector<16x64xbf16>
    %cst_19 = arith.constant dense<0.000000e+00> : vector<16x32xf32>
    %43 = tpu.matmul %42, %1, %cst_19 {dimension_numbers = #tpu.dot_dimension_numbers<[1], [0], [0], [1], [0, 0, 1, 1], [], []>} : vector<16x64xbf16>, vector<64x32xbf16>, vector<16x32xf32> -> vector<16x32xf32>
    %44 = arith.addf %37, %43 : vector<16x32xf32>
    %45 = vector.extract_strided_slice %44 {offsets = [0, 0], sizes = [1, 32], strides = [1, 1]} : vector<16x32xf32> to vector<1x32xf32>
    %46 = vector.extract_strided_slice %44 {offsets = [0, 0], sizes = [15, 32], strides = [1, 1]} : vector<16x32xf32> to vector<15x32xf32>
    %47 = tpu.concatenate %45, %46 in 0 : vector<1x32xf32>, vector<15x32xf32> -> vector<16x32xf32>
    %48 = vector.extract_strided_slice %44 {offsets = [1, 0], sizes = [15, 32], strides = [1, 1]} : vector<16x32xf32> to vector<15x32xf32>
    %49 = vector.extract_strided_slice %44 {offsets = [15, 0], sizes = [1, 32], strides = [1, 1]} : vector<16x32xf32> to vector<1x32xf32>
    %50 = tpu.concatenate %48, %49 in 0 : vector<15x32xf32>, vector<1x32xf32> -> vector<16x32xf32>
    %51 = arith.addf %44, %47 : vector<16x32xf32>
    %52 = arith.addf %51, %50 : vector<16x32xf32>
    %53 = vector.extract_strided_slice %44 {offsets = [0, 0], sizes = [1, 32], strides = [1, 1]} : vector<16x32xf32> to vector<1x32xf32>
    %54 = vector.extract_strided_slice %44 {offsets = [0, 0], sizes = [14, 32], strides = [1, 1]} : vector<16x32xf32> to vector<14x32xf32>
    %55 = tpu.concatenate %53, %53, %54 in 0 : vector<1x32xf32>, vector<1x32xf32>, vector<14x32xf32> -> vector<16x32xf32>
    %56 = vector.extract_strided_slice %44 {offsets = [2, 0], sizes = [14, 32], strides = [1, 1]} : vector<16x32xf32> to vector<14x32xf32>
    %57 = vector.extract_strided_slice %44 {offsets = [15, 0], sizes = [1, 32], strides = [1, 1]} : vector<16x32xf32> to vector<1x32xf32>
    %58 = tpu.concatenate %56, %57, %57 in 0 : vector<14x32xf32>, vector<1x32xf32>, vector<1x32xf32> -> vector<16x32xf32>
    %59 = arith.addf %52, %55 : vector<16x32xf32>
    %60 = arith.addf %59, %58 : vector<16x32xf32>
    %cst_20 = arith.constant 2.000000e-01 : f32
    %61 = vector.broadcast %cst_20 : f32 to vector<16x32xf32>
    %62 = arith.mulf %60, %61 : vector<16x32xf32>
    %63 = arith.subf %44, %62 : vector<16x32xf32>
    %c1_21 = arith.constant 1 : index
    %c0_22 = arith.constant 0 : index
    %c0_23 = arith.constant 0 : index
    %64 = vector.load %arg3[%c1_21, %c0_22, %c0_23] : memref<2x16x32xf32, #tpu.memory_space<vmem>>, vector<1x16x32xf32>
    %65 = vector.shape_cast %64 : vector<1x16x32xf32> to vector<16x32xf32>
    %66 = vector.shape_cast %63 : vector<16x32xf32> to vector<1x16x32xf32>
    tpu.vector_store %arg3[%c1_21, %c0_22, %c0_23], %66 {strides = array<i32>} : memref<2x16x32xf32, #tpu.memory_space<vmem>>, vector<1x16x32xf32>,
    %c1_24 = arith.constant 1 : index
    %c0_25 = arith.constant 0 : index
    %c0_26 = arith.constant 0 : index
    %67 = vector.load %arg4[%c1_24, %c0_25, %c0_26] : memref<2x16x32xf32, #tpu.memory_space<vmem>>, vector<1x16x32xf32>
    %68 = vector.shape_cast %67 : vector<1x16x32xf32> to vector<16x32xf32>
    %69 = vector.shape_cast %62 : vector<16x32xf32> to vector<1x16x32xf32>
    tpu.vector_store %arg4[%c1_24, %c0_25, %c0_26], %69 {strides = array<i32>} : memref<2x16x32xf32, #tpu.memory_space<vmem>>, vector<1x16x32xf32>,
    return
  }
}

module attributes {stable_mosaic.version = 11 : i64} {
  func.func @_mynorm_kernel(%arg0: memref<2x16x32xf32, #tpu.memory_space<vmem>>, %arg1: memref<1x32xf32, #tpu.memory_space<vmem>>, %arg2: memref<1x32xf32, #tpu.memory_space<vmem>>, %arg3: memref<2x16x32xf32, #tpu.memory_space<vmem>>) attributes {dimension_semantics = [], scalar_prefetch = 0 : i64, scratch_operands = 0 : i64, tpu.core_type = #tpu.core_type<tc>} {
    %c0 = arith.constant 0 : index
    %c0_0 = arith.constant 0 : index
    %0 = vector.load %arg1[%c0, %c0_0] : memref<1x32xf32, #tpu.memory_space<vmem>>, vector<1x32xf32>
    %c0_1 = arith.constant 0 : index
    %c0_2 = arith.constant 0 : index
    %1 = vector.load %arg2[%c0_1, %c0_2] : memref<1x32xf32, #tpu.memory_space<vmem>>, vector<1x32xf32>
    %c0_3 = arith.constant 0 : index
    %c0_4 = arith.constant 0 : index
    %c0_5 = arith.constant 0 : index
    %2 = vector.load %arg0[%c0_3, %c0_4, %c0_5] : memref<2x16x32xf32, #tpu.memory_space<vmem>>, vector<1x16x32xf32>
    %3 = vector.shape_cast %2 : vector<1x16x32xf32> to vector<16x32xf32>
    %cst = arith.constant dense<0.000000e+00> : vector<16xf32>
    %4 = vector.multi_reduction <add>, %3, %cst [1] : vector<16x32xf32> to vector<16xf32>
    %5 = vector.shape_cast %4 : vector<16xf32> to vector<16x1xf32>
    %cst_6 = arith.constant 3.200000e+01 : f32
    %6 = vector.broadcast %cst_6 : f32 to vector<16x1xf32>
    %7 = arith.divf %5, %6 : vector<16x1xf32>
    %8 = vector.broadcast %7 : vector<16x1xf32> to vector<16x32xf32>
    %9 = arith.subf %3, %8 : vector<16x32xf32>
    %10 = arith.mulf %9, %9 : vector<16x32xf32>
    %cst_7 = arith.constant dense<0.000000e+00> : vector<16xf32>
    %11 = vector.multi_reduction <add>, %10, %cst_7 [1] : vector<16x32xf32> to vector<16xf32>
    %12 = vector.shape_cast %11 : vector<16xf32> to vector<16x1xf32>
    %cst_8 = arith.constant 3.200000e+01 : f32
    %13 = vector.broadcast %cst_8 : f32 to vector<16x1xf32>
    %14 = arith.divf %12, %13 : vector<16x1xf32>
    %15 = vector.broadcast %7 : vector<16x1xf32> to vector<16x32xf32>
    %16 = arith.subf %3, %15 : vector<16x32xf32>
    %cst_9 = arith.constant 9.99999974E-6 : f32
    %17 = vector.broadcast %cst_9 : f32 to vector<16x1xf32>
    %18 = arith.addf %14, %17 : vector<16x1xf32>
    %19 = math.rsqrt %18 : vector<16x1xf32>
    %20 = vector.broadcast %19 : vector<16x1xf32> to vector<16x32xf32>
    %21 = arith.mulf %16, %20 : vector<16x32xf32>
    %22 = vector.broadcast %0 : vector<1x32xf32> to vector<16x32xf32>
    %23 = arith.mulf %21, %22 : vector<16x32xf32>
    %24 = vector.broadcast %1 : vector<1x32xf32> to vector<16x32xf32>
    %25 = arith.addf %23, %24 : vector<16x32xf32>
    %cst_10 = arith.constant dense<0.000000e+00> : vector<32xf32>
    %26 = vector.multi_reduction <add>, %25, %cst_10 [0] : vector<16x32xf32> to vector<32xf32>
    %27 = vector.shape_cast %26 : vector<32xf32> to vector<1x32xf32>
    %cst_11 = arith.constant 1.600000e+01 : f32
    %28 = vector.broadcast %cst_11 : f32 to vector<1x32xf32>
    %29 = arith.divf %27, %28 : vector<1x32xf32>
    %30 = vector.broadcast %29 : vector<1x32xf32> to vector<16x32xf32>
    %31 = arith.subf %25, %30 : vector<16x32xf32>
    %c0_12 = arith.constant 0 : index
    %c0_13 = arith.constant 0 : index
    %c0_14 = arith.constant 0 : index
    %32 = vector.load %arg3[%c0_12, %c0_13, %c0_14] : memref<2x16x32xf32, #tpu.memory_space<vmem>>, vector<1x16x32xf32>
    %33 = vector.shape_cast %32 : vector<1x16x32xf32> to vector<16x32xf32>
    %34 = vector.shape_cast %31 : vector<16x32xf32> to vector<1x16x32xf32>
    tpu.vector_store %arg3[%c0_12, %c0_13, %c0_14], %34 {strides = array<i32>} : memref<2x16x32xf32, #tpu.memory_space<vmem>>, vector<1x16x32xf32>,
    %c1 = arith.constant 1 : index
    %c0_15 = arith.constant 0 : index
    %c0_16 = arith.constant 0 : index
    %35 = vector.load %arg0[%c1, %c0_15, %c0_16] : memref<2x16x32xf32, #tpu.memory_space<vmem>>, vector<1x16x32xf32>
    %36 = vector.shape_cast %35 : vector<1x16x32xf32> to vector<16x32xf32>
    %cst_17 = arith.constant dense<0.000000e+00> : vector<16xf32>
    %37 = vector.multi_reduction <add>, %36, %cst_17 [1] : vector<16x32xf32> to vector<16xf32>
    %38 = vector.shape_cast %37 : vector<16xf32> to vector<16x1xf32>
    %cst_18 = arith.constant 3.200000e+01 : f32
    %39 = vector.broadcast %cst_18 : f32 to vector<16x1xf32>
    %40 = arith.divf %38, %39 : vector<16x1xf32>
    %41 = vector.broadcast %40 : vector<16x1xf32> to vector<16x32xf32>
    %42 = arith.subf %36, %41 : vector<16x32xf32>
    %43 = arith.mulf %42, %42 : vector<16x32xf32>
    %cst_19 = arith.constant dense<0.000000e+00> : vector<16xf32>
    %44 = vector.multi_reduction <add>, %43, %cst_19 [1] : vector<16x32xf32> to vector<16xf32>
    %45 = vector.shape_cast %44 : vector<16xf32> to vector<16x1xf32>
    %cst_20 = arith.constant 3.200000e+01 : f32
    %46 = vector.broadcast %cst_20 : f32 to vector<16x1xf32>
    %47 = arith.divf %45, %46 : vector<16x1xf32>
    %48 = vector.broadcast %40 : vector<16x1xf32> to vector<16x32xf32>
    %49 = arith.subf %36, %48 : vector<16x32xf32>
    %cst_21 = arith.constant 9.99999974E-6 : f32
    %50 = vector.broadcast %cst_21 : f32 to vector<16x1xf32>
    %51 = arith.addf %47, %50 : vector<16x1xf32>
    %52 = math.rsqrt %51 : vector<16x1xf32>
    %53 = vector.broadcast %52 : vector<16x1xf32> to vector<16x32xf32>
    %54 = arith.mulf %49, %53 : vector<16x32xf32>
    %55 = vector.broadcast %0 : vector<1x32xf32> to vector<16x32xf32>
    %56 = arith.mulf %54, %55 : vector<16x32xf32>
    %57 = vector.broadcast %1 : vector<1x32xf32> to vector<16x32xf32>
    %58 = arith.addf %56, %57 : vector<16x32xf32>
    %cst_22 = arith.constant dense<0.000000e+00> : vector<32xf32>
    %59 = vector.multi_reduction <add>, %58, %cst_22 [0] : vector<16x32xf32> to vector<32xf32>
    %60 = vector.shape_cast %59 : vector<32xf32> to vector<1x32xf32>
    %cst_23 = arith.constant 1.600000e+01 : f32
    %61 = vector.broadcast %cst_23 : f32 to vector<1x32xf32>
    %62 = arith.divf %60, %61 : vector<1x32xf32>
    %63 = vector.broadcast %62 : vector<1x32xf32> to vector<16x32xf32>
    %64 = arith.subf %58, %63 : vector<16x32xf32>
    %c1_24 = arith.constant 1 : index
    %c0_25 = arith.constant 0 : index
    %c0_26 = arith.constant 0 : index
    %65 = vector.load %arg3[%c1_24, %c0_25, %c0_26] : memref<2x16x32xf32, #tpu.memory_space<vmem>>, vector<1x16x32xf32>
    %66 = vector.shape_cast %65 : vector<1x16x32xf32> to vector<16x32xf32>
    %67 = vector.shape_cast %64 : vector<16x32xf32> to vector<1x16x32xf32>
    tpu.vector_store %arg3[%c1_24, %c0_25, %c0_26], %67 {strides = array<i32>} : memref<2x16x32xf32, #tpu.memory_space<vmem>>, vector<1x16x32xf32>,
    return
  }
}

module attributes {stable_mosaic.version = 11 : i64} {
  func.func @_qkv_kernel(%arg0: memref<2x8x32xf32, #tpu.memory_space<vmem>>, %arg1: memref<32x96xbf16, #tpu.memory_space<vmem>>, %arg2: memref<1x96xf32, #tpu.memory_space<vmem>>, %arg3: memref<2x8x96xf32, #tpu.memory_space<vmem>>) attributes {dimension_semantics = [], scalar_prefetch = 0 : i64, scratch_operands = 0 : i64, tpu.core_type = #tpu.core_type<tc>} {
    %c0 = arith.constant 0 : index
    %c0_0 = arith.constant 0 : index
    %0 = vector.load %arg1[%c0, %c0_0] : memref<32x96xbf16, #tpu.memory_space<vmem>>, vector<32x96xbf16>
    %c0_1 = arith.constant 0 : index
    %c0_2 = arith.constant 0 : index
    %1 = vector.load %arg2[%c0_1, %c0_2] : memref<1x96xf32, #tpu.memory_space<vmem>>, vector<1x96xf32>
    %c0_3 = arith.constant 0 : index
    %c0_4 = arith.constant 0 : index
    %c0_5 = arith.constant 0 : index
    %2 = vector.load %arg0[%c0_3, %c0_4, %c0_5] : memref<2x8x32xf32, #tpu.memory_space<vmem>>, vector<1x8x32xf32>
    %3 = vector.shape_cast %2 : vector<1x8x32xf32> to vector<8x32xf32>
    %4 = arith.truncf %3 : vector<8x32xf32> to vector<8x32xbf16>
    %cst = arith.constant dense<0.000000e+00> : vector<8x96xf32>
    %5 = tpu.matmul %4, %0, %cst {dimension_numbers = #tpu.dot_dimension_numbers<[1], [0], [0], [1], [0, 0, 1, 1], [], []>} : vector<8x32xbf16>, vector<32x96xbf16>, vector<8x96xf32> -> vector<8x96xf32>
    %6 = vector.broadcast %1 : vector<1x96xf32> to vector<8x96xf32>
    %7 = arith.addf %5, %6 : vector<8x96xf32>
    %c0_6 = arith.constant 0 : index
    %c0_7 = arith.constant 0 : index
    %c0_8 = arith.constant 0 : index
    %8 = vector.load %arg3[%c0_6, %c0_7, %c0_8] : memref<2x8x96xf32, #tpu.memory_space<vmem>>, vector<1x8x96xf32>
    %9 = vector.shape_cast %8 : vector<1x8x96xf32> to vector<8x96xf32>
    %10 = vector.shape_cast %7 : vector<8x96xf32> to vector<1x8x96xf32>
    tpu.vector_store %arg3[%c0_6, %c0_7, %c0_8], %10 {strides = array<i32>} : memref<2x8x96xf32, #tpu.memory_space<vmem>>, vector<1x8x96xf32>,
    %c1 = arith.constant 1 : index
    %c0_9 = arith.constant 0 : index
    %c0_10 = arith.constant 0 : index
    %11 = vector.load %arg0[%c1, %c0_9, %c0_10] : memref<2x8x32xf32, #tpu.memory_space<vmem>>, vector<1x8x32xf32>
    %12 = vector.shape_cast %11 : vector<1x8x32xf32> to vector<8x32xf32>
    %13 = arith.truncf %12 : vector<8x32xf32> to vector<8x32xbf16>
    %cst_11 = arith.constant dense<0.000000e+00> : vector<8x96xf32>
    %14 = tpu.matmul %13, %0, %cst_11 {dimension_numbers = #tpu.dot_dimension_numbers<[1], [0], [0], [1], [0, 0, 1, 1], [], []>} : vector<8x32xbf16>, vector<32x96xbf16>, vector<8x96xf32> -> vector<8x96xf32>
    %15 = vector.broadcast %1 : vector<1x96xf32> to vector<8x96xf32>
    %16 = arith.addf %14, %15 : vector<8x96xf32>
    %c1_12 = arith.constant 1 : index
    %c0_13 = arith.constant 0 : index
    %c0_14 = arith.constant 0 : index
    %17 = vector.load %arg3[%c1_12, %c0_13, %c0_14] : memref<2x8x96xf32, #tpu.memory_space<vmem>>, vector<1x8x96xf32>
    %18 = vector.shape_cast %17 : vector<1x8x96xf32> to vector<8x96xf32>
    %19 = vector.shape_cast %16 : vector<8x96xf32> to vector<1x8x96xf32>
    tpu.vector_store %arg3[%c1_12, %c0_13, %c0_14], %19 {strides = array<i32>} : memref<2x8x96xf32, #tpu.memory_space<vmem>>, vector<1x8x96xf32>,
    return
  }
}

module attributes {stable_mosaic.version = 11 : i64} {
  func.func @_ffn_decomp_kernel(%arg0: memref<2x8x32xf32, #tpu.memory_space<vmem>>, %arg1: memref<32x64xbf16, #tpu.memory_space<vmem>>, %arg2: memref<64x32xbf16, #tpu.memory_space<vmem>>, %arg3: memref<2x8x32xf32, #tpu.memory_space<vmem>>, %arg4: memref<2x8x32xf32, #tpu.memory_space<vmem>>) attributes {dimension_semantics = [], scalar_prefetch = 0 : i64, scratch_operands = 0 : i64, tpu.core_type = #tpu.core_type<tc>} {
    %c0 = arith.constant 0 : index
    %c0_0 = arith.constant 0 : index
    %0 = vector.load %arg1[%c0, %c0_0] : memref<32x64xbf16, #tpu.memory_space<vmem>>, vector<32x64xbf16>
    %c0_1 = arith.constant 0 : index
    %c0_2 = arith.constant 0 : index
    %1 = vector.load %arg2[%c0_1, %c0_2] : memref<64x32xbf16, #tpu.memory_space<vmem>>, vector<64x32xbf16>
    %c0_3 = arith.constant 0 : index
    %c0_4 = arith.constant 0 : index
    %c0_5 = arith.constant 0 : index
    %2 = vector.load %arg0[%c0_3, %c0_4, %c0_5] : memref<2x8x32xf32, #tpu.memory_space<vmem>>, vector<1x8x32xf32>
    %3 = vector.shape_cast %2 : vector<1x8x32xf32> to vector<8x32xf32>
    %4 = arith.truncf %3 : vector<8x32xf32> to vector<8x32xbf16>
    %cst = arith.constant dense<0.000000e+00> : vector<8x64xf32>
    %5 = tpu.matmul %4, %0, %cst {dimension_numbers = #tpu.dot_dimension_numbers<[1], [0], [0], [1], [0, 0, 1, 1], [], []>} : vector<8x32xbf16>, vector<32x64xbf16>, vector<8x64xf32> -> vector<8x64xf32>
    %cst_6 = arith.constant 0.000000e+00 : f32
    %6 = vector.broadcast %cst_6 : f32 to vector<8x64xf32>
    %7 = arith.maximumf %5, %6 : vector<8x64xf32>
    %8 = arith.truncf %7 : vector<8x64xf32> to vector<8x64xbf16>
    %cst_7 = arith.constant dense<0.000000e+00> : vector<8x32xf32>
    %9 = tpu.matmul %8, %1, %cst_7 {dimension_numbers = #tpu.dot_dimension_numbers<[1], [0], [0], [1], [0, 0, 1, 1], [], []>} : vector<8x64xbf16>, vector<64x32xbf16>, vector<8x32xf32> -> vector<8x32xf32>
    %10 = arith.addf %3, %9 : vector<8x32xf32>
    %11 = vector.extract_strided_slice %10 {offsets = [0, 0], sizes = [1, 32], strides = [1, 1]} : vector<8x32xf32> to vector<1x32xf32>
    %12 = vector.extract_strided_slice %10 {offsets = [0, 0], sizes = [7, 32], strides = [1, 1]} : vector<8x32xf32> to vector<7x32xf32>
    %13 = tpu.concatenate %11, %12 in 0 : vector<1x32xf32>, vector<7x32xf32> -> vector<8x32xf32>
    %14 = vector.extract_strided_slice %10 {offsets = [1, 0], sizes = [7, 32], strides = [1, 1]} : vector<8x32xf32> to vector<7x32xf32>
    %15 = vector.extract_strided_slice %10 {offsets = [7, 0], sizes = [1, 32], strides = [1, 1]} : vector<8x32xf32> to vector<1x32xf32>
    %16 = tpu.concatenate %14, %15 in 0 : vector<7x32xf32>, vector<1x32xf32> -> vector<8x32xf32>
    %17 = arith.addf %10, %13 : vector<8x32xf32>
    %18 = arith.addf %17, %16 : vector<8x32xf32>
    %19 = vector.extract_strided_slice %10 {offsets = [0, 0], sizes = [1, 32], strides = [1, 1]} : vector<8x32xf32> to vector<1x32xf32>
    %20 = vector.extract_strided_slice %10 {offsets = [0, 0], sizes = [6, 32], strides = [1, 1]} : vector<8x32xf32> to vector<6x32xf32>
    %21 = tpu.concatenate %19, %19, %20 in 0 : vector<1x32xf32>, vector<1x32xf32>, vector<6x32xf32> -> vector<8x32xf32>
    %22 = vector.extract_strided_slice %10 {offsets = [2, 0], sizes = [6, 32], strides = [1, 1]} : vector<8x32xf32> to vector<6x32xf32>
    %23 = vector.extract_strided_slice %10 {offsets = [7, 0], sizes = [1, 32], strides = [1, 1]} : vector<8x32xf32> to vector<1x32xf32>
    %24 = tpu.concatenate %22, %23, %23 in 0 : vector<6x32xf32>, vector<1x32xf32>, vector<1x32xf32> -> vector<8x32xf32>
    %25 = arith.addf %18, %21 : vector<8x32xf32>
    %26 = arith.addf %25, %24 : vector<8x32xf32>
    %cst_8 = arith.constant 2.000000e-01 : f32
    %27 = vector.broadcast %cst_8 : f32 to vector<8x32xf32>
    %28 = arith.mulf %26, %27 : vector<8x32xf32>
    %29 = arith.subf %10, %28 : vector<8x32xf32>
    %c0_9 = arith.constant 0 : index
    %c0_10 = arith.constant 0 : index
    %c0_11 = arith.constant 0 : index
    %30 = vector.load %arg3[%c0_9, %c0_10, %c0_11] : memref<2x8x32xf32, #tpu.memory_space<vmem>>, vector<1x8x32xf32>
    %31 = vector.shape_cast %30 : vector<1x8x32xf32> to vector<8x32xf32>
    %32 = vector.shape_cast %29 : vector<8x32xf32> to vector<1x8x32xf32>
    tpu.vector_store %arg3[%c0_9, %c0_10, %c0_11], %32 {strides = array<i32>} : memref<2x8x32xf32, #tpu.memory_space<vmem>>, vector<1x8x32xf32>,
    %c0_12 = arith.constant 0 : index
    %c0_13 = arith.constant 0 : index
    %c0_14 = arith.constant 0 : index
    %33 = vector.load %arg4[%c0_12, %c0_13, %c0_14] : memref<2x8x32xf32, #tpu.memory_space<vmem>>, vector<1x8x32xf32>
    %34 = vector.shape_cast %33 : vector<1x8x32xf32> to vector<8x32xf32>
    %35 = vector.shape_cast %28 : vector<8x32xf32> to vector<1x8x32xf32>
    tpu.vector_store %arg4[%c0_12, %c0_13, %c0_14], %35 {strides = array<i32>} : memref<2x8x32xf32, #tpu.memory_space<vmem>>, vector<1x8x32xf32>,
    %c1 = arith.constant 1 : index
    %c0_15 = arith.constant 0 : index
    %c0_16 = arith.constant 0 : index
    %36 = vector.load %arg0[%c1, %c0_15, %c0_16] : memref<2x8x32xf32, #tpu.memory_space<vmem>>, vector<1x8x32xf32>
    %37 = vector.shape_cast %36 : vector<1x8x32xf32> to vector<8x32xf32>
    %38 = arith.truncf %37 : vector<8x32xf32> to vector<8x32xbf16>
    %cst_17 = arith.constant dense<0.000000e+00> : vector<8x64xf32>
    %39 = tpu.matmul %38, %0, %cst_17 {dimension_numbers = #tpu.dot_dimension_numbers<[1], [0], [0], [1], [0, 0, 1, 1], [], []>} : vector<8x32xbf16>, vector<32x64xbf16>, vector<8x64xf32> -> vector<8x64xf32>
    %cst_18 = arith.constant 0.000000e+00 : f32
    %40 = vector.broadcast %cst_18 : f32 to vector<8x64xf32>
    %41 = arith.maximumf %39, %40 : vector<8x64xf32>
    %42 = arith.truncf %41 : vector<8x64xf32> to vector<8x64xbf16>
    %cst_19 = arith.constant dense<0.000000e+00> : vector<8x32xf32>
    %43 = tpu.matmul %42, %1, %cst_19 {dimension_numbers = #tpu.dot_dimension_numbers<[1], [0], [0], [1], [0, 0, 1, 1], [], []>} : vector<8x64xbf16>, vector<64x32xbf16>, vector<8x32xf32> -> vector<8x32xf32>
    %44 = arith.addf %37, %43 : vector<8x32xf32>
    %45 = vector.extract_strided_slice %44 {offsets = [0, 0], sizes = [1, 32], strides = [1, 1]} : vector<8x32xf32> to vector<1x32xf32>
    %46 = vector.extract_strided_slice %44 {offsets = [0, 0], sizes = [7, 32], strides = [1, 1]} : vector<8x32xf32> to vector<7x32xf32>
    %47 = tpu.concatenate %45, %46 in 0 : vector<1x32xf32>, vector<7x32xf32> -> vector<8x32xf32>
    %48 = vector.extract_strided_slice %44 {offsets = [1, 0], sizes = [7, 32], strides = [1, 1]} : vector<8x32xf32> to vector<7x32xf32>
    %49 = vector.extract_strided_slice %44 {offsets = [7, 0], sizes = [1, 32], strides = [1, 1]} : vector<8x32xf32> to vector<1x32xf32>
    %50 = tpu.concatenate %48, %49 in 0 : vector<7x32xf32>, vector<1x32xf32> -> vector<8x32xf32>
    %51 = arith.addf %44, %47 : vector<8x32xf32>
    %52 = arith.addf %51, %50 : vector<8x32xf32>
    %53 = vector.extract_strided_slice %44 {offsets = [0, 0], sizes = [1, 32], strides = [1, 1]} : vector<8x32xf32> to vector<1x32xf32>
    %54 = vector.extract_strided_slice %44 {offsets = [0, 0], sizes = [6, 32], strides = [1, 1]} : vector<8x32xf32> to vector<6x32xf32>
    %55 = tpu.concatenate %53, %53, %54 in 0 : vector<1x32xf32>, vector<1x32xf32>, vector<6x32xf32> -> vector<8x32xf32>
    %56 = vector.extract_strided_slice %44 {offsets = [2, 0], sizes = [6, 32], strides = [1, 1]} : vector<8x32xf32> to vector<6x32xf32>
    %57 = vector.extract_strided_slice %44 {offsets = [7, 0], sizes = [1, 32], strides = [1, 1]} : vector<8x32xf32> to vector<1x32xf32>
    %58 = tpu.concatenate %56, %57, %57 in 0 : vector<6x32xf32>, vector<1x32xf32>, vector<1x32xf32> -> vector<8x32xf32>
    %59 = arith.addf %52, %55 : vector<8x32xf32>
    %60 = arith.addf %59, %58 : vector<8x32xf32>
    %cst_20 = arith.constant 2.000000e-01 : f32
    %61 = vector.broadcast %cst_20 : f32 to vector<8x32xf32>
    %62 = arith.mulf %60, %61 : vector<8x32xf32>
    %63 = arith.subf %44, %62 : vector<8x32xf32>
    %c1_21 = arith.constant 1 : index
    %c0_22 = arith.constant 0 : index
    %c0_23 = arith.constant 0 : index
    %64 = vector.load %arg3[%c1_21, %c0_22, %c0_23] : memref<2x8x32xf32, #tpu.memory_space<vmem>>, vector<1x8x32xf32>
    %65 = vector.shape_cast %64 : vector<1x8x32xf32> to vector<8x32xf32>
    %66 = vector.shape_cast %63 : vector<8x32xf32> to vector<1x8x32xf32>
    tpu.vector_store %arg3[%c1_21, %c0_22, %c0_23], %66 {strides = array<i32>} : memref<2x8x32xf32, #tpu.memory_space<vmem>>, vector<1x8x32xf32>,
    %c1_24 = arith.constant 1 : index
    %c0_25 = arith.constant 0 : index
    %c0_26 = arith.constant 0 : index
    %67 = vector.load %arg4[%c1_24, %c0_25, %c0_26] : memref<2x8x32xf32, #tpu.memory_space<vmem>>, vector<1x8x32xf32>
    %68 = vector.shape_cast %67 : vector<1x8x32xf32> to vector<8x32xf32>
    %69 = vector.shape_cast %62 : vector<8x32xf32> to vector<1x8x32xf32>
    tpu.vector_store %arg4[%c1_24, %c0_25, %c0_26], %69 {strides = array<i32>} : memref<2x8x32xf32, #tpu.memory_space<vmem>>, vector<1x8x32xf32>,
    return
  }
}

module attributes {stable_mosaic.version = 11 : i64} {
  func.func @_proj_add_decomp_kernel(%arg0: memref<2x8x32xf32, #tpu.memory_space<vmem>>, %arg1: memref<2x8x32xf32, #tpu.memory_space<vmem>>, %arg2: memref<32x32xbf16, #tpu.memory_space<vmem>>, %arg3: memref<1x32xf32, #tpu.memory_space<vmem>>, %arg4: memref<2x8x32xf32, #tpu.memory_space<vmem>>, %arg5: memref<2x8x32xf32, #tpu.memory_space<vmem>>) attributes {dimension_semantics = [], scalar_prefetch = 0 : i64, scratch_operands = 0 : i64, tpu.core_type = #tpu.core_type<tc>} {
    %c0 = arith.constant 0 : index
    %c0_0 = arith.constant 0 : index
    %0 = vector.load %arg2[%c0, %c0_0] : memref<32x32xbf16, #tpu.memory_space<vmem>>, vector<32x32xbf16>
    %c0_1 = arith.constant 0 : index
    %c0_2 = arith.constant 0 : index
    %1 = vector.load %arg3[%c0_1, %c0_2] : memref<1x32xf32, #tpu.memory_space<vmem>>, vector<1x32xf32>
    %c0_3 = arith.constant 0 : index
    %c0_4 = arith.constant 0 : index
    %c0_5 = arith.constant 0 : index
    %2 = vector.load %arg0[%c0_3, %c0_4, %c0_5] : memref<2x8x32xf32, #tpu.memory_space<vmem>>, vector<1x8x32xf32>
    %3 = vector.shape_cast %2 : vector<1x8x32xf32> to vector<8x32xf32>
    %4 = arith.truncf %3 : vector<8x32xf32> to vector<8x32xbf16>
    %cst = arith.constant dense<0.000000e+00> : vector<8x32xf32>
    %5 = tpu.matmul %4, %0, %cst {dimension_numbers = #tpu.dot_dimension_numbers<[1], [0], [0], [1], [0, 0, 1, 1], [], []>} : vector<8x32xbf16>, vector<32x32xbf16>, vector<8x32xf32> -> vector<8x32xf32>
    %6 = vector.broadcast %1 : vector<1x32xf32> to vector<8x32xf32>
    %7 = arith.addf %5, %6 : vector<8x32xf32>
    %c0_6 = arith.constant 0 : index
    %c0_7 = arith.constant 0 : index
    %c0_8 = arith.constant 0 : index
    %8 = vector.load %arg1[%c0_6, %c0_7, %c0_8] : memref<2x8x32xf32, #tpu.memory_space<vmem>>, vector<1x8x32xf32>
    %9 = vector.shape_cast %8 : vector<1x8x32xf32> to vector<8x32xf32>
    %10 = arith.addf %9, %7 : vector<8x32xf32>
    %11 = vector.extract_strided_slice %10 {offsets = [0, 0], sizes = [1, 32], strides = [1, 1]} : vector<8x32xf32> to vector<1x32xf32>
    %12 = vector.extract_strided_slice %10 {offsets = [0, 0], sizes = [7, 32], strides = [1, 1]} : vector<8x32xf32> to vector<7x32xf32>
    %13 = tpu.concatenate %11, %12 in 0 : vector<1x32xf32>, vector<7x32xf32> -> vector<8x32xf32>
    %14 = vector.extract_strided_slice %10 {offsets = [1, 0], sizes = [7, 32], strides = [1, 1]} : vector<8x32xf32> to vector<7x32xf32>
    %15 = vector.extract_strided_slice %10 {offsets = [7, 0], sizes = [1, 32], strides = [1, 1]} : vector<8x32xf32> to vector<1x32xf32>
    %16 = tpu.concatenate %14, %15 in 0 : vector<7x32xf32>, vector<1x32xf32> -> vector<8x32xf32>
    %17 = arith.addf %10, %13 : vector<8x32xf32>
    %18 = arith.addf %17, %16 : vector<8x32xf32>
    %19 = vector.extract_strided_slice %10 {offsets = [0, 0], sizes = [1, 32], strides = [1, 1]} : vector<8x32xf32> to vector<1x32xf32>
    %20 = vector.extract_strided_slice %10 {offsets = [0, 0], sizes = [6, 32], strides = [1, 1]} : vector<8x32xf32> to vector<6x32xf32>
    %21 = tpu.concatenate %19, %19, %20 in 0 : vector<1x32xf32>, vector<1x32xf32>, vector<6x32xf32> -> vector<8x32xf32>
    %22 = vector.extract_strided_slice %10 {offsets = [2, 0], sizes = [6, 32], strides = [1, 1]} : vector<8x32xf32> to vector<6x32xf32>
    %23 = vector.extract_strided_slice %10 {offsets = [7, 0], sizes = [1, 32], strides = [1, 1]} : vector<8x32xf32> to vector<1x32xf32>
    %24 = tpu.concatenate %22, %23, %23 in 0 : vector<6x32xf32>, vector<1x32xf32>, vector<1x32xf32> -> vector<8x32xf32>
    %25 = arith.addf %18, %21 : vector<8x32xf32>
    %26 = arith.addf %25, %24 : vector<8x32xf32>
    %cst_9 = arith.constant 2.000000e-01 : f32
    %27 = vector.broadcast %cst_9 : f32 to vector<8x32xf32>
    %28 = arith.mulf %26, %27 : vector<8x32xf32>
    %29 = arith.subf %10, %28 : vector<8x32xf32>
    %c0_10 = arith.constant 0 : index
    %c0_11 = arith.constant 0 : index
    %c0_12 = arith.constant 0 : index
    %30 = vector.load %arg4[%c0_10, %c0_11, %c0_12] : memref<2x8x32xf32, #tpu.memory_space<vmem>>, vector<1x8x32xf32>
    %31 = vector.shape_cast %30 : vector<1x8x32xf32> to vector<8x32xf32>
    %32 = vector.shape_cast %29 : vector<8x32xf32> to vector<1x8x32xf32>
    tpu.vector_store %arg4[%c0_10, %c0_11, %c0_12], %32 {strides = array<i32>} : memref<2x8x32xf32, #tpu.memory_space<vmem>>, vector<1x8x32xf32>,
    %c0_13 = arith.constant 0 : index
    %c0_14 = arith.constant 0 : index
    %c0_15 = arith.constant 0 : index
    %33 = vector.load %arg5[%c0_13, %c0_14, %c0_15] : memref<2x8x32xf32, #tpu.memory_space<vmem>>, vector<1x8x32xf32>
    %34 = vector.shape_cast %33 : vector<1x8x32xf32> to vector<8x32xf32>
    %35 = vector.shape_cast %28 : vector<8x32xf32> to vector<1x8x32xf32>
    tpu.vector_store %arg5[%c0_13, %c0_14, %c0_15], %35 {strides = array<i32>} : memref<2x8x32xf32, #tpu.memory_space<vmem>>, vector<1x8x32xf32>,
    %c1 = arith.constant 1 : index
    %c0_16 = arith.constant 0 : index
    %c0_17 = arith.constant 0 : index
    %36 = vector.load %arg0[%c1, %c0_16, %c0_17] : memref<2x8x32xf32, #tpu.memory_space<vmem>>, vector<1x8x32xf32>
    %37 = vector.shape_cast %36 : vector<1x8x32xf32> to vector<8x32xf32>
    %38 = arith.truncf %37 : vector<8x32xf32> to vector<8x32xbf16>
    %cst_18 = arith.constant dense<0.000000e+00> : vector<8x32xf32>
    %39 = tpu.matmul %38, %0, %cst_18 {dimension_numbers = #tpu.dot_dimension_numbers<[1], [0], [0], [1], [0, 0, 1, 1], [], []>} : vector<8x32xbf16>, vector<32x32xbf16>, vector<8x32xf32> -> vector<8x32xf32>
    %40 = vector.broadcast %1 : vector<1x32xf32> to vector<8x32xf32>
    %41 = arith.addf %39, %40 : vector<8x32xf32>
    %c1_19 = arith.constant 1 : index
    %c0_20 = arith.constant 0 : index
    %c0_21 = arith.constant 0 : index
    %42 = vector.load %arg1[%c1_19, %c0_20, %c0_21] : memref<2x8x32xf32, #tpu.memory_space<vmem>>, vector<1x8x32xf32>
    %43 = vector.shape_cast %42 : vector<1x8x32xf32> to vector<8x32xf32>
    %44 = arith.addf %43, %41 : vector<8x32xf32>
    %45 = vector.extract_strided_slice %44 {offsets = [0, 0], sizes = [1, 32], strides = [1, 1]} : vector<8x32xf32> to vector<1x32xf32>
    %46 = vector.extract_strided_slice %44 {offsets = [0, 0], sizes = [7, 32], strides = [1, 1]} : vector<8x32xf32> to vector<7x32xf32>
    %47 = tpu.concatenate %45, %46 in 0 : vector<1x32xf32>, vector<7x32xf32> -> vector<8x32xf32>
    %48 = vector.extract_strided_slice %44 {offsets = [1, 0], sizes = [7, 32], strides = [1, 1]} : vector<8x32xf32> to vector<7x32xf32>
    %49 = vector.extract_strided_slice %44 {offsets = [7, 0], sizes = [1, 32], strides = [1, 1]} : vector<8x32xf32> to vector<1x32xf32>
    %50 = tpu.concatenate %48, %49 in 0 : vector<7x32xf32>, vector<1x32xf32> -> vector<8x32xf32>
    %51 = arith.addf %44, %47 : vector<8x32xf32>
    %52 = arith.addf %51, %50 : vector<8x32xf32>
    %53 = vector.extract_strided_slice %44 {offsets = [0, 0], sizes = [1, 32], strides = [1, 1]} : vector<8x32xf32> to vector<1x32xf32>
    %54 = vector.extract_strided_slice %44 {offsets = [0, 0], sizes = [6, 32], strides = [1, 1]} : vector<8x32xf32> to vector<6x32xf32>
    %55 = tpu.concatenate %53, %53, %54 in 0 : vector<1x32xf32>, vector<1x32xf32>, vector<6x32xf32> -> vector<8x32xf32>
    %56 = vector.extract_strided_slice %44 {offsets = [2, 0], sizes = [6, 32], strides = [1, 1]} : vector<8x32xf32> to vector<6x32xf32>
    %57 = vector.extract_strided_slice %44 {offsets = [7, 0], sizes = [1, 32], strides = [1, 1]} : vector<8x32xf32> to vector<1x32xf32>
    %58 = tpu.concatenate %56, %57, %57 in 0 : vector<6x32xf32>, vector<1x32xf32>, vector<1x32xf32> -> vector<8x32xf32>
    %59 = arith.addf %52, %55 : vector<8x32xf32>
    %60 = arith.addf %59, %58 : vector<8x32xf32>
    %cst_22 = arith.constant 2.000000e-01 : f32
    %61 = vector.broadcast %cst_22 : f32 to vector<8x32xf32>
    %62 = arith.mulf %60, %61 : vector<8x32xf32>
    %63 = arith.subf %44, %62 : vector<8x32xf32>
    %c1_23 = arith.constant 1 : index
    %c0_24 = arith.constant 0 : index
    %c0_25 = arith.constant 0 : index
    %64 = vector.load %arg4[%c1_23, %c0_24, %c0_25] : memref<2x8x32xf32, #tpu.memory_space<vmem>>, vector<1x8x32xf32>
    %65 = vector.shape_cast %64 : vector<1x8x32xf32> to vector<8x32xf32>
    %66 = vector.shape_cast %63 : vector<8x32xf32> to vector<1x8x32xf32>
    tpu.vector_store %arg4[%c1_23, %c0_24, %c0_25], %66 {strides = array<i32>} : memref<2x8x32xf32, #tpu.memory_space<vmem>>, vector<1x8x32xf32>,
    %c1_26 = arith.constant 1 : index
    %c0_27 = arith.constant 0 : index
    %c0_28 = arith.constant 0 : index
    %67 = vector.load %arg5[%c1_26, %c0_27, %c0_28] : memref<2x8x32xf32, #tpu.memory_space<vmem>>, vector<1x8x32xf32>
    %68 = vector.shape_cast %67 : vector<1x8x32xf32> to vector<8x32xf32>
    %69 = vector.shape_cast %62 : vector<8x32xf32> to vector<1x8x32xf32>
    tpu.vector_store %arg5[%c1_26, %c0_27, %c0_28], %69 {strides = array<i32>} : memref<2x8x32xf32, #tpu.memory_space<vmem>>, vector<1x8x32xf32>,
    return
  }
}

module attributes {stable_mosaic.version = 11 : i64} {
  func.func @_mynorm_kernel(%arg0: memref<2x8x32xf32, #tpu.memory_space<vmem>>, %arg1: memref<1x32xf32, #tpu.memory_space<vmem>>, %arg2: memref<1x32xf32, #tpu.memory_space<vmem>>, %arg3: memref<2x8x32xf32, #tpu.memory_space<vmem>>) attributes {dimension_semantics = [], scalar_prefetch = 0 : i64, scratch_operands = 0 : i64, tpu.core_type = #tpu.core_type<tc>} {
    %c0 = arith.constant 0 : index
    %c0_0 = arith.constant 0 : index
    %0 = vector.load %arg1[%c0, %c0_0] : memref<1x32xf32, #tpu.memory_space<vmem>>, vector<1x32xf32>
    %c0_1 = arith.constant 0 : index
    %c0_2 = arith.constant 0 : index
    %1 = vector.load %arg2[%c0_1, %c0_2] : memref<1x32xf32, #tpu.memory_space<vmem>>, vector<1x32xf32>
    %c0_3 = arith.constant 0 : index
    %c0_4 = arith.constant 0 : index
    %c0_5 = arith.constant 0 : index
    %2 = vector.load %arg0[%c0_3, %c0_4, %c0_5] : memref<2x8x32xf32, #tpu.memory_space<vmem>>, vector<1x8x32xf32>
    %3 = vector.shape_cast %2 : vector<1x8x32xf32> to vector<8x32xf32>
    %cst = arith.constant dense<0.000000e+00> : vector<8xf32>
    %4 = vector.multi_reduction <add>, %3, %cst [1] : vector<8x32xf32> to vector<8xf32>
    %5 = vector.shape_cast %4 : vector<8xf32> to vector<8x1xf32>
    %cst_6 = arith.constant 3.200000e+01 : f32
    %6 = vector.broadcast %cst_6 : f32 to vector<8x1xf32>
    %7 = arith.divf %5, %6 : vector<8x1xf32>
    %8 = vector.broadcast %7 : vector<8x1xf32> to vector<8x32xf32>
    %9 = arith.subf %3, %8 : vector<8x32xf32>
    %10 = arith.mulf %9, %9 : vector<8x32xf32>
    %cst_7 = arith.constant dense<0.000000e+00> : vector<8xf32>
    %11 = vector.multi_reduction <add>, %10, %cst_7 [1] : vector<8x32xf32> to vector<8xf32>
    %12 = vector.shape_cast %11 : vector<8xf32> to vector<8x1xf32>
    %cst_8 = arith.constant 3.200000e+01 : f32
    %13 = vector.broadcast %cst_8 : f32 to vector<8x1xf32>
    %14 = arith.divf %12, %13 : vector<8x1xf32>
    %15 = vector.broadcast %7 : vector<8x1xf32> to vector<8x32xf32>
    %16 = arith.subf %3, %15 : vector<8x32xf32>
    %cst_9 = arith.constant 9.99999974E-6 : f32
    %17 = vector.broadcast %cst_9 : f32 to vector<8x1xf32>
    %18 = arith.addf %14, %17 : vector<8x1xf32>
    %19 = math.rsqrt %18 : vector<8x1xf32>
    %20 = vector.broadcast %19 : vector<8x1xf32> to vector<8x32xf32>
    %21 = arith.mulf %16, %20 : vector<8x32xf32>
    %22 = vector.broadcast %0 : vector<1x32xf32> to vector<8x32xf32>
    %23 = arith.mulf %21, %22 : vector<8x32xf32>
    %24 = vector.broadcast %1 : vector<1x32xf32> to vector<8x32xf32>
    %25 = arith.addf %23, %24 : vector<8x32xf32>
    %cst_10 = arith.constant dense<0.000000e+00> : vector<32xf32>
    %26 = vector.multi_reduction <add>, %25, %cst_10 [0] : vector<8x32xf32> to vector<32xf32>
    %27 = vector.shape_cast %26 : vector<32xf32> to vector<1x32xf32>
    %cst_11 = arith.constant 8.000000e+00 : f32
    %28 = vector.broadcast %cst_11 : f32 to vector<1x32xf32>
    %29 = arith.divf %27, %28 : vector<1x32xf32>
    %30 = vector.broadcast %29 : vector<1x32xf32> to vector<8x32xf32>
    %31 = arith.subf %25, %30 : vector<8x32xf32>
    %c0_12 = arith.constant 0 : index
    %c0_13 = arith.constant 0 : index
    %c0_14 = arith.constant 0 : index
    %32 = vector.load %arg3[%c0_12, %c0_13, %c0_14] : memref<2x8x32xf32, #tpu.memory_space<vmem>>, vector<1x8x32xf32>
    %33 = vector.shape_cast %32 : vector<1x8x32xf32> to vector<8x32xf32>
    %34 = vector.shape_cast %31 : vector<8x32xf32> to vector<1x8x32xf32>
    tpu.vector_store %arg3[%c0_12, %c0_13, %c0_14], %34 {strides = array<i32>} : memref<2x8x32xf32, #tpu.memory_space<vmem>>, vector<1x8x32xf32>,
    %c1 = arith.constant 1 : index
    %c0_15 = arith.constant 0 : index
    %c0_16 = arith.constant 0 : index
    %35 = vector.load %arg0[%c1, %c0_15, %c0_16] : memref<2x8x32xf32, #tpu.memory_space<vmem>>, vector<1x8x32xf32>
    %36 = vector.shape_cast %35 : vector<1x8x32xf32> to vector<8x32xf32>
    %cst_17 = arith.constant dense<0.000000e+00> : vector<8xf32>
    %37 = vector.multi_reduction <add>, %36, %cst_17 [1] : vector<8x32xf32> to vector<8xf32>
    %38 = vector.shape_cast %37 : vector<8xf32> to vector<8x1xf32>
    %cst_18 = arith.constant 3.200000e+01 : f32
    %39 = vector.broadcast %cst_18 : f32 to vector<8x1xf32>
    %40 = arith.divf %38, %39 : vector<8x1xf32>
    %41 = vector.broadcast %40 : vector<8x1xf32> to vector<8x32xf32>
    %42 = arith.subf %36, %41 : vector<8x32xf32>
    %43 = arith.mulf %42, %42 : vector<8x32xf32>
    %cst_19 = arith.constant dense<0.000000e+00> : vector<8xf32>
    %44 = vector.multi_reduction <add>, %43, %cst_19 [1] : vector<8x32xf32> to vector<8xf32>
    %45 = vector.shape_cast %44 : vector<8xf32> to vector<8x1xf32>
    %cst_20 = arith.constant 3.200000e+01 : f32
    %46 = vector.broadcast %cst_20 : f32 to vector<8x1xf32>
    %47 = arith.divf %45, %46 : vector<8x1xf32>
    %48 = vector.broadcast %40 : vector<8x1xf32> to vector<8x32xf32>
    %49 = arith.subf %36, %48 : vector<8x32xf32>
    %cst_21 = arith.constant 9.99999974E-6 : f32
    %50 = vector.broadcast %cst_21 : f32 to vector<8x1xf32>
    %51 = arith.addf %47, %50 : vector<8x1xf32>
    %52 = math.rsqrt %51 : vector<8x1xf32>
    %53 = vector.broadcast %52 : vector<8x1xf32> to vector<8x32xf32>
    %54 = arith.mulf %49, %53 : vector<8x32xf32>
    %55 = vector.broadcast %0 : vector<1x32xf32> to vector<8x32xf32>
    %56 = arith.mulf %54, %55 : vector<8x32xf32>
    %57 = vector.broadcast %1 : vector<1x32xf32> to vector<8x32xf32>
    %58 = arith.addf %56, %57 : vector<8x32xf32>
    %cst_22 = arith.constant dense<0.000000e+00> : vector<32xf32>
    %59 = vector.multi_reduction <add>, %58, %cst_22 [0] : vector<8x32xf32> to vector<32xf32>
    %60 = vector.shape_cast %59 : vector<32xf32> to vector<1x32xf32>
    %cst_23 = arith.constant 8.000000e+00 : f32
    %61 = vector.broadcast %cst_23 : f32 to vector<1x32xf32>
    %62 = arith.divf %60, %61 : vector<1x32xf32>
    %63 = vector.broadcast %62 : vector<1x32xf32> to vector<8x32xf32>
    %64 = arith.subf %58, %63 : vector<8x32xf32>
    %c1_24 = arith.constant 1 : index
    %c0_25 = arith.constant 0 : index
    %c0_26 = arith.constant 0 : index
    %65 = vector.load %arg3[%c1_24, %c0_25, %c0_26] : memref<2x8x32xf32, #tpu.memory_space<vmem>>, vector<1x8x32xf32>
    %66 = vector.shape_cast %65 : vector<1x8x32xf32> to vector<8x32xf32>
    %67 = vector.shape_cast %64 : vector<8x32xf32> to vector<1x8x32xf32>
    tpu.vector_store %arg3[%c1_24, %c0_25, %c0_26], %67 {strides = array<i32>} : memref<2x8x32xf32, #tpu.memory_space<vmem>>, vector<1x8x32xf32>,
    return
  }
}

module attributes {stable_mosaic.version = 11 : i64} {
  func.func @_decomp_kernel(%arg0: memref<2x16x4xf32, #tpu.memory_space<vmem>>, %arg1: memref<2x16x4xf32, #tpu.memory_space<vmem>>, %arg2: memref<2x16x4xf32, #tpu.memory_space<vmem>>) attributes {dimension_semantics = [], scalar_prefetch = 0 : i64, scratch_operands = 0 : i64, tpu.core_type = #tpu.core_type<tc>} {
    %c0 = arith.constant 0 : index
    %c0_0 = arith.constant 0 : index
    %c0_1 = arith.constant 0 : index
    %0 = vector.load %arg0[%c0, %c0_0, %c0_1] : memref<2x16x4xf32, #tpu.memory_space<vmem>>, vector<1x16x4xf32>
    %1 = vector.shape_cast %0 : vector<1x16x4xf32> to vector<16x4xf32>
    %2 = vector.extract_strided_slice %1 {offsets = [0, 0], sizes = [1, 4], strides = [1, 1]} : vector<16x4xf32> to vector<1x4xf32>
    %3 = vector.extract_strided_slice %1 {offsets = [0, 0], sizes = [15, 4], strides = [1, 1]} : vector<16x4xf32> to vector<15x4xf32>
    %4 = tpu.concatenate %2, %3 in 0 : vector<1x4xf32>, vector<15x4xf32> -> vector<16x4xf32>
    %5 = vector.extract_strided_slice %1 {offsets = [1, 0], sizes = [15, 4], strides = [1, 1]} : vector<16x4xf32> to vector<15x4xf32>
    %6 = vector.extract_strided_slice %1 {offsets = [15, 0], sizes = [1, 4], strides = [1, 1]} : vector<16x4xf32> to vector<1x4xf32>
    %7 = tpu.concatenate %5, %6 in 0 : vector<15x4xf32>, vector<1x4xf32> -> vector<16x4xf32>
    %8 = arith.addf %1, %4 : vector<16x4xf32>
    %9 = arith.addf %8, %7 : vector<16x4xf32>
    %10 = vector.extract_strided_slice %1 {offsets = [0, 0], sizes = [1, 4], strides = [1, 1]} : vector<16x4xf32> to vector<1x4xf32>
    %11 = vector.extract_strided_slice %1 {offsets = [0, 0], sizes = [14, 4], strides = [1, 1]} : vector<16x4xf32> to vector<14x4xf32>
    %12 = tpu.concatenate %10, %10, %11 in 0 : vector<1x4xf32>, vector<1x4xf32>, vector<14x4xf32> -> vector<16x4xf32>
    %13 = vector.extract_strided_slice %1 {offsets = [2, 0], sizes = [14, 4], strides = [1, 1]} : vector<16x4xf32> to vector<14x4xf32>
    %14 = vector.extract_strided_slice %1 {offsets = [15, 0], sizes = [1, 4], strides = [1, 1]} : vector<16x4xf32> to vector<1x4xf32>
    %15 = tpu.concatenate %13, %14, %14 in 0 : vector<14x4xf32>, vector<1x4xf32>, vector<1x4xf32> -> vector<16x4xf32>
    %16 = arith.addf %9, %12 : vector<16x4xf32>
    %17 = arith.addf %16, %15 : vector<16x4xf32>
    %cst = arith.constant 2.000000e-01 : f32
    %18 = vector.broadcast %cst : f32 to vector<16x4xf32>
    %19 = arith.mulf %17, %18 : vector<16x4xf32>
    %20 = arith.subf %1, %19 : vector<16x4xf32>
    %c0_2 = arith.constant 0 : index
    %c0_3 = arith.constant 0 : index
    %c0_4 = arith.constant 0 : index
    %21 = vector.load %arg1[%c0_2, %c0_3, %c0_4] : memref<2x16x4xf32, #tpu.memory_space<vmem>>, vector<1x16x4xf32>
    %22 = vector.shape_cast %21 : vector<1x16x4xf32> to vector<16x4xf32>
    %23 = vector.shape_cast %20 : vector<16x4xf32> to vector<1x16x4xf32>
    tpu.vector_store %arg1[%c0_2, %c0_3, %c0_4], %23 {strides = array<i32>} : memref<2x16x4xf32, #tpu.memory_space<vmem>>, vector<1x16x4xf32>,
    %c0_5 = arith.constant 0 : index
    %c0_6 = arith.constant 0 : index
    %c0_7 = arith.constant 0 : index
    %24 = vector.load %arg2[%c0_5, %c0_6, %c0_7] : memref<2x16x4xf32, #tpu.memory_space<vmem>>, vector<1x16x4xf32>
    %25 = vector.shape_cast %24 : vector<1x16x4xf32> to vector<16x4xf32>
    %26 = vector.shape_cast %19 : vector<16x4xf32> to vector<1x16x4xf32>
    tpu.vector_store %arg2[%c0_5, %c0_6, %c0_7], %26 {strides = array<i32>} : memref<2x16x4xf32, #tpu.memory_space<vmem>>, vector<1x16x4xf32>,
    %c1 = arith.constant 1 : index
    %c0_8 = arith.constant 0 : index
    %c0_9 = arith.constant 0 : index
    %27 = vector.load %arg0[%c1, %c0_8, %c0_9] : memref<2x16x4xf32, #tpu.memory_space<vmem>>, vector<1x16x4xf32>
    %28 = vector.shape_cast %27 : vector<1x16x4xf32> to vector<16x4xf32>
    %29 = vector.extract_strided_slice %28 {offsets = [0, 0], sizes = [1, 4], strides = [1, 1]} : vector<16x4xf32> to vector<1x4xf32>
    %30 = vector.extract_strided_slice %28 {offsets = [0, 0], sizes = [15, 4], strides = [1, 1]} : vector<16x4xf32> to vector<15x4xf32>
    %31 = tpu.concatenate %29, %30 in 0 : vector<1x4xf32>, vector<15x4xf32> -> vector<16x4xf32>
    %32 = vector.extract_strided_slice %28 {offsets = [1, 0], sizes = [15, 4], strides = [1, 1]} : vector<16x4xf32> to vector<15x4xf32>
    %33 = vector.extract_strided_slice %28 {offsets = [15, 0], sizes = [1, 4], strides = [1, 1]} : vector<16x4xf32> to vector<1x4xf32>
    %34 = tpu.concatenate %32, %33 in 0 : vector<15x4xf32>, vector<1x4xf32> -> vector<16x4xf32>
    %35 = arith.addf %28, %31 : vector<16x4xf32>
    %36 = arith.addf %35, %34 : vector<16x4xf32>
    %37 = vector.extract_strided_slice %28 {offsets = [0, 0], sizes = [1, 4], strides = [1, 1]} : vector<16x4xf32> to vector<1x4xf32>
    %38 = vector.extract_strided_slice %28 {offsets = [0, 0], sizes = [14, 4], strides = [1, 1]} : vector<16x4xf32> to vector<14x4xf32>
    %39 = tpu.concatenate %37, %37, %38 in 0 : vector<1x4xf32>, vector<1x4xf32>, vector<14x4xf32> -> vector<16x4xf32>
    %40 = vector.extract_strided_slice %28 {offsets = [2, 0], sizes = [14, 4], strides = [1, 1]} : vector<16x4xf32> to vector<14x4xf32>
    %41 = vector.extract_strided_slice %28 {offsets = [15, 0], sizes = [1, 4], strides = [1, 1]} : vector<16x4xf32> to vector<1x4xf32>
    %42 = tpu.concatenate %40, %41, %41 in 0 : vector<14x4xf32>, vector<1x4xf32>, vector<1x4xf32> -> vector<16x4xf32>
    %43 = arith.addf %36, %39 : vector<16x4xf32>
    %44 = arith.addf %43, %42 : vector<16x4xf32>
    %cst_10 = arith.constant 2.000000e-01 : f32
    %45 = vector.broadcast %cst_10 : f32 to vector<16x4xf32>
    %46 = arith.mulf %44, %45 : vector<16x4xf32>
    %47 = arith.subf %28, %46 : vector<16x4xf32>
    %c1_11 = arith.constant 1 : index
    %c0_12 = arith.constant 0 : index
    %c0_13 = arith.constant 0 : index
    %48 = vector.load %arg1[%c1_11, %c0_12, %c0_13] : memref<2x16x4xf32, #tpu.memory_space<vmem>>, vector<1x16x4xf32>
    %49 = vector.shape_cast %48 : vector<1x16x4xf32> to vector<16x4xf32>
    %50 = vector.shape_cast %47 : vector<16x4xf32> to vector<1x16x4xf32>
    tpu.vector_store %arg1[%c1_11, %c0_12, %c0_13], %50 {strides = array<i32>} : memref<2x16x4xf32, #tpu.memory_space<vmem>>, vector<1x16x4xf32>,
    %c1_14 = arith.constant 1 : index
    %c0_15 = arith.constant 0 : index
    %c0_16 = arith.constant 0 : index
    %51 = vector.load %arg2[%c1_14, %c0_15, %c0_16] : memref<2x16x4xf32, #tpu.memory_space<vmem>>, vector<1x16x4xf32>
    %52 = vector.shape_cast %51 : vector<1x16x4xf32> to vector<16x4xf32>
    %53 = vector.shape_cast %46 : vector<16x4xf32> to vector<1x16x4xf32>
    tpu.vector_store %arg2[%c1_14, %c0_15, %c0_16], %53 {strides = array<i32>} : memref<2x16x4xf32, #tpu.memory_space<vmem>>, vector<1x16x4xf32>,
    return
  }
}

module attributes {stable_mosaic.version = 11 : i64} {
  func.func @_embed_kernel(%arg0: memref<2x24x4xf32, #tpu.memory_space<vmem>>, %arg1: memref<2x24x4xf32, #tpu.memory_space<vmem>>, %arg2: memref<4x32xbf16, #tpu.memory_space<vmem>>, %arg3: memref<4x32xbf16, #tpu.memory_space<vmem>>, %arg4: memref<4x32xbf16, #tpu.memory_space<vmem>>, %arg5: memref<4x32xbf16, #tpu.memory_space<vmem>>, %arg6: memref<2x24x32xf32, #tpu.memory_space<vmem>>) attributes {dimension_semantics = [], scalar_prefetch = 0 : i64, scratch_operands = 0 : i64, tpu.core_type = #tpu.core_type<tc>} {
    %c0 = arith.constant 0 : index
    %c0_0 = arith.constant 0 : index
    %0 = vector.load %arg2[%c0, %c0_0] : memref<4x32xbf16, #tpu.memory_space<vmem>>, vector<4x32xbf16>
    %c0_1 = arith.constant 0 : index
    %c0_2 = arith.constant 0 : index
    %1 = vector.load %arg3[%c0_1, %c0_2] : memref<4x32xbf16, #tpu.memory_space<vmem>>, vector<4x32xbf16>
    %c0_3 = arith.constant 0 : index
    %c0_4 = arith.constant 0 : index
    %2 = vector.load %arg4[%c0_3, %c0_4] : memref<4x32xbf16, #tpu.memory_space<vmem>>, vector<4x32xbf16>
    %c0_5 = arith.constant 0 : index
    %c0_6 = arith.constant 0 : index
    %3 = vector.load %arg5[%c0_5, %c0_6] : memref<4x32xbf16, #tpu.memory_space<vmem>>, vector<4x32xbf16>
    %c0_7 = arith.constant 0 : index
    %c0_8 = arith.constant 0 : index
    %c0_9 = arith.constant 0 : index
    %4 = vector.load %arg0[%c0_7, %c0_8, %c0_9] : memref<2x24x4xf32, #tpu.memory_space<vmem>>, vector<1x24x4xf32>
    %5 = vector.shape_cast %4 : vector<1x24x4xf32> to vector<24x4xf32>
    %c0_10 = arith.constant 0 : index
    %c0_11 = arith.constant 0 : index
    %c0_12 = arith.constant 0 : index
    %6 = vector.load %arg1[%c0_10, %c0_11, %c0_12] : memref<2x24x4xf32, #tpu.memory_space<vmem>>, vector<1x24x4xf32>
    %7 = vector.shape_cast %6 : vector<1x24x4xf32> to vector<24x4xf32>
    %8 = vector.extract_strided_slice %5 {offsets = [23, 0], sizes = [1, 4], strides = [1, 1]} : vector<24x4xf32> to vector<1x4xf32>
    %9 = vector.extract_strided_slice %5 {offsets = [0, 0], sizes = [23, 4], strides = [1, 1]} : vector<24x4xf32> to vector<23x4xf32>
    %10 = tpu.concatenate %8, %9 in 0 : vector<1x4xf32>, vector<23x4xf32> -> vector<24x4xf32>
    %11 = arith.truncf %10 : vector<24x4xf32> to vector<24x4xbf16>
    %cst = arith.constant dense<0.000000e+00> : vector<24x32xf32>
    %12 = tpu.matmul %11, %0, %cst {dimension_numbers = #tpu.dot_dimension_numbers<[1], [0], [0], [1], [0, 0, 1, 1], [], []>} : vector<24x4xbf16>, vector<4x32xbf16>, vector<24x32xf32> -> vector<24x32xf32>
    %13 = arith.truncf %5 : vector<24x4xf32> to vector<24x4xbf16>
    %cst_13 = arith.constant dense<0.000000e+00> : vector<24x32xf32>
    %14 = tpu.matmul %13, %1, %cst_13 {dimension_numbers = #tpu.dot_dimension_numbers<[1], [0], [0], [1], [0, 0, 1, 1], [], []>} : vector<24x4xbf16>, vector<4x32xbf16>, vector<24x32xf32> -> vector<24x32xf32>
    %15 = arith.addf %12, %14 : vector<24x32xf32>
    %16 = vector.extract_strided_slice %5 {offsets = [1, 0], sizes = [23, 4], strides = [1, 1]} : vector<24x4xf32> to vector<23x4xf32>
    %17 = vector.extract_strided_slice %5 {offsets = [0, 0], sizes = [1, 4], strides = [1, 1]} : vector<24x4xf32> to vector<1x4xf32>
    %18 = tpu.concatenate %16, %17 in 0 : vector<23x4xf32>, vector<1x4xf32> -> vector<24x4xf32>
    %19 = arith.truncf %18 : vector<24x4xf32> to vector<24x4xbf16>
    %cst_14 = arith.constant dense<0.000000e+00> : vector<24x32xf32>
    %20 = tpu.matmul %19, %2, %cst_14 {dimension_numbers = #tpu.dot_dimension_numbers<[1], [0], [0], [1], [0, 0, 1, 1], [], []>} : vector<24x4xbf16>, vector<4x32xbf16>, vector<24x32xf32> -> vector<24x32xf32>
    %21 = arith.addf %15, %20 : vector<24x32xf32>
    %22 = arith.truncf %7 : vector<24x4xf32> to vector<24x4xbf16>
    %cst_15 = arith.constant dense<0.000000e+00> : vector<24x32xf32>
    %23 = tpu.matmul %22, %3, %cst_15 {dimension_numbers = #tpu.dot_dimension_numbers<[1], [0], [0], [1], [0, 0, 1, 1], [], []>} : vector<24x4xbf16>, vector<4x32xbf16>, vector<24x32xf32> -> vector<24x32xf32>
    %24 = arith.addf %21, %23 : vector<24x32xf32>
    %c0_16 = arith.constant 0 : index
    %c0_17 = arith.constant 0 : index
    %c0_18 = arith.constant 0 : index
    %25 = vector.load %arg6[%c0_16, %c0_17, %c0_18] : memref<2x24x32xf32, #tpu.memory_space<vmem>>, vector<1x24x32xf32>
    %26 = vector.shape_cast %25 : vector<1x24x32xf32> to vector<24x32xf32>
    %27 = vector.shape_cast %24 : vector<24x32xf32> to vector<1x24x32xf32>
    tpu.vector_store %arg6[%c0_16, %c0_17, %c0_18], %27 {strides = array<i32>} : memref<2x24x32xf32, #tpu.memory_space<vmem>>, vector<1x24x32xf32>,
    %c1 = arith.constant 1 : index
    %c0_19 = arith.constant 0 : index
    %c0_20 = arith.constant 0 : index
    %28 = vector.load %arg0[%c1, %c0_19, %c0_20] : memref<2x24x4xf32, #tpu.memory_space<vmem>>, vector<1x24x4xf32>
    %29 = vector.shape_cast %28 : vector<1x24x4xf32> to vector<24x4xf32>
    %c1_21 = arith.constant 1 : index
    %c0_22 = arith.constant 0 : index
    %c0_23 = arith.constant 0 : index
    %30 = vector.load %arg1[%c1_21, %c0_22, %c0_23] : memref<2x24x4xf32, #tpu.memory_space<vmem>>, vector<1x24x4xf32>
    %31 = vector.shape_cast %30 : vector<1x24x4xf32> to vector<24x4xf32>
    %32 = vector.extract_strided_slice %29 {offsets = [23, 0], sizes = [1, 4], strides = [1, 1]} : vector<24x4xf32> to vector<1x4xf32>
    %33 = vector.extract_strided_slice %29 {offsets = [0, 0], sizes = [23, 4], strides = [1, 1]} : vector<24x4xf32> to vector<23x4xf32>
    %34 = tpu.concatenate %32, %33 in 0 : vector<1x4xf32>, vector<23x4xf32> -> vector<24x4xf32>
    %35 = arith.truncf %34 : vector<24x4xf32> to vector<24x4xbf16>
    %cst_24 = arith.constant dense<0.000000e+00> : vector<24x32xf32>
    %36 = tpu.matmul %35, %0, %cst_24 {dimension_numbers = #tpu.dot_dimension_numbers<[1], [0], [0], [1], [0, 0, 1, 1], [], []>} : vector<24x4xbf16>, vector<4x32xbf16>, vector<24x32xf32> -> vector<24x32xf32>
    %37 = arith.truncf %29 : vector<24x4xf32> to vector<24x4xbf16>
    %cst_25 = arith.constant dense<0.000000e+00> : vector<24x32xf32>
    %38 = tpu.matmul %37, %1, %cst_25 {dimension_numbers = #tpu.dot_dimension_numbers<[1], [0], [0], [1], [0, 0, 1, 1], [], []>} : vector<24x4xbf16>, vector<4x32xbf16>, vector<24x32xf32> -> vector<24x32xf32>
    %39 = arith.addf %36, %38 : vector<24x32xf32>
    %40 = vector.extract_strided_slice %29 {offsets = [1, 0], sizes = [23, 4], strides = [1, 1]} : vector<24x4xf32> to vector<23x4xf32>
    %41 = vector.extract_strided_slice %29 {offsets = [0, 0], sizes = [1, 4], strides = [1, 1]} : vector<24x4xf32> to vector<1x4xf32>
    %42 = tpu.concatenate %40, %41 in 0 : vector<23x4xf32>, vector<1x4xf32> -> vector<24x4xf32>
    %43 = arith.truncf %42 : vector<24x4xf32> to vector<24x4xbf16>
    %cst_26 = arith.constant dense<0.000000e+00> : vector<24x32xf32>
    %44 = tpu.matmul %43, %2, %cst_26 {dimension_numbers = #tpu.dot_dimension_numbers<[1], [0], [0], [1], [0, 0, 1, 1], [], []>} : vector<24x4xbf16>, vector<4x32xbf16>, vector<24x32xf32> -> vector<24x32xf32>
    %45 = arith.addf %39, %44 : vector<24x32xf32>
    %46 = arith.truncf %31 : vector<24x4xf32> to vector<24x4xbf16>
    %cst_27 = arith.constant dense<0.000000e+00> : vector<24x32xf32>
    %47 = tpu.matmul %46, %3, %cst_27 {dimension_numbers = #tpu.dot_dimension_numbers<[1], [0], [0], [1], [0, 0, 1, 1], [], []>} : vector<24x4xbf16>, vector<4x32xbf16>, vector<24x32xf32> -> vector<24x32xf32>
    %48 = arith.addf %45, %47 : vector<24x32xf32>
    %c1_28 = arith.constant 1 : index
    %c0_29 = arith.constant 0 : index
    %c0_30 = arith.constant 0 : index
    %49 = vector.load %arg6[%c1_28, %c0_29, %c0_30] : memref<2x24x32xf32, #tpu.memory_space<vmem>>, vector<1x24x32xf32>
    %50 = vector.shape_cast %49 : vector<1x24x32xf32> to vector<24x32xf32>
    %51 = vector.shape_cast %48 : vector<24x32xf32> to vector<1x24x32xf32>
    tpu.vector_store %arg6[%c1_28, %c0_29, %c0_30], %51 {strides = array<i32>} : memref<2x24x32xf32, #tpu.memory_space<vmem>>, vector<1x24x32xf32>,
    return
  }
}

module attributes {stable_mosaic.version = 11 : i64} {
  func.func @_qkv_kernel(%arg0: memref<2x12x32xf32, #tpu.memory_space<vmem>>, %arg1: memref<32x96xbf16, #tpu.memory_space<vmem>>, %arg2: memref<1x96xf32, #tpu.memory_space<vmem>>, %arg3: memref<2x12x96xf32, #tpu.memory_space<vmem>>) attributes {dimension_semantics = [], scalar_prefetch = 0 : i64, scratch_operands = 0 : i64, tpu.core_type = #tpu.core_type<tc>} {
    %c0 = arith.constant 0 : index
    %c0_0 = arith.constant 0 : index
    %0 = vector.load %arg1[%c0, %c0_0] : memref<32x96xbf16, #tpu.memory_space<vmem>>, vector<32x96xbf16>
    %c0_1 = arith.constant 0 : index
    %c0_2 = arith.constant 0 : index
    %1 = vector.load %arg2[%c0_1, %c0_2] : memref<1x96xf32, #tpu.memory_space<vmem>>, vector<1x96xf32>
    %c0_3 = arith.constant 0 : index
    %c0_4 = arith.constant 0 : index
    %c0_5 = arith.constant 0 : index
    %2 = vector.load %arg0[%c0_3, %c0_4, %c0_5] : memref<2x12x32xf32, #tpu.memory_space<vmem>>, vector<1x12x32xf32>
    %3 = vector.shape_cast %2 : vector<1x12x32xf32> to vector<12x32xf32>
    %4 = arith.truncf %3 : vector<12x32xf32> to vector<12x32xbf16>
    %cst = arith.constant dense<0.000000e+00> : vector<12x96xf32>
    %5 = tpu.matmul %4, %0, %cst {dimension_numbers = #tpu.dot_dimension_numbers<[1], [0], [0], [1], [0, 0, 1, 1], [], []>} : vector<12x32xbf16>, vector<32x96xbf16>, vector<12x96xf32> -> vector<12x96xf32>
    %6 = vector.broadcast %1 : vector<1x96xf32> to vector<12x96xf32>
    %7 = arith.addf %5, %6 : vector<12x96xf32>
    %c0_6 = arith.constant 0 : index
    %c0_7 = arith.constant 0 : index
    %c0_8 = arith.constant 0 : index
    %8 = vector.load %arg3[%c0_6, %c0_7, %c0_8] : memref<2x12x96xf32, #tpu.memory_space<vmem>>, vector<1x12x96xf32>
    %9 = vector.shape_cast %8 : vector<1x12x96xf32> to vector<12x96xf32>
    %10 = vector.shape_cast %7 : vector<12x96xf32> to vector<1x12x96xf32>
    tpu.vector_store %arg3[%c0_6, %c0_7, %c0_8], %10 {strides = array<i32>} : memref<2x12x96xf32, #tpu.memory_space<vmem>>, vector<1x12x96xf32>,
    %c1 = arith.constant 1 : index
    %c0_9 = arith.constant 0 : index
    %c0_10 = arith.constant 0 : index
    %11 = vector.load %arg0[%c1, %c0_9, %c0_10] : memref<2x12x32xf32, #tpu.memory_space<vmem>>, vector<1x12x32xf32>
    %12 = vector.shape_cast %11 : vector<1x12x32xf32> to vector<12x32xf32>
    %13 = arith.truncf %12 : vector<12x32xf32> to vector<12x32xbf16>
    %cst_11 = arith.constant dense<0.000000e+00> : vector<12x96xf32>
    %14 = tpu.matmul %13, %0, %cst_11 {dimension_numbers = #tpu.dot_dimension_numbers<[1], [0], [0], [1], [0, 0, 1, 1], [], []>} : vector<12x32xbf16>, vector<32x96xbf16>, vector<12x96xf32> -> vector<12x96xf32>
    %15 = vector.broadcast %1 : vector<1x96xf32> to vector<12x96xf32>
    %16 = arith.addf %14, %15 : vector<12x96xf32>
    %c1_12 = arith.constant 1 : index
    %c0_13 = arith.constant 0 : index
    %c0_14 = arith.constant 0 : index
    %17 = vector.load %arg3[%c1_12, %c0_13, %c0_14] : memref<2x12x96xf32, #tpu.memory_space<vmem>>, vector<1x12x96xf32>
    %18 = vector.shape_cast %17 : vector<1x12x96xf32> to vector<12x96xf32>
    %19 = vector.shape_cast %16 : vector<12x96xf32> to vector<1x12x96xf32>
    tpu.vector_store %arg3[%c1_12, %c0_13, %c0_14], %19 {strides = array<i32>} : memref<2x12x96xf32, #tpu.memory_space<vmem>>, vector<1x12x96xf32>,
    return
  }
}

module attributes {stable_mosaic.version = 11 : i64} {
  func.func @_proj_add_decomp_kernel(%arg0: memref<2x12x32xf32, #tpu.memory_space<vmem>>, %arg1: memref<2x12x32xf32, #tpu.memory_space<vmem>>, %arg2: memref<32x32xbf16, #tpu.memory_space<vmem>>, %arg3: memref<1x32xf32, #tpu.memory_space<vmem>>, %arg4: memref<2x12x32xf32, #tpu.memory_space<vmem>>, %arg5: memref<2x12x32xf32, #tpu.memory_space<vmem>>) attributes {dimension_semantics = [], scalar_prefetch = 0 : i64, scratch_operands = 0 : i64, tpu.core_type = #tpu.core_type<tc>} {
    %c0 = arith.constant 0 : index
    %c0_0 = arith.constant 0 : index
    %0 = vector.load %arg2[%c0, %c0_0] : memref<32x32xbf16, #tpu.memory_space<vmem>>, vector<32x32xbf16>
    %c0_1 = arith.constant 0 : index
    %c0_2 = arith.constant 0 : index
    %1 = vector.load %arg3[%c0_1, %c0_2] : memref<1x32xf32, #tpu.memory_space<vmem>>, vector<1x32xf32>
    %c0_3 = arith.constant 0 : index
    %c0_4 = arith.constant 0 : index
    %c0_5 = arith.constant 0 : index
    %2 = vector.load %arg0[%c0_3, %c0_4, %c0_5] : memref<2x12x32xf32, #tpu.memory_space<vmem>>, vector<1x12x32xf32>
    %3 = vector.shape_cast %2 : vector<1x12x32xf32> to vector<12x32xf32>
    %4 = arith.truncf %3 : vector<12x32xf32> to vector<12x32xbf16>
    %cst = arith.constant dense<0.000000e+00> : vector<12x32xf32>
    %5 = tpu.matmul %4, %0, %cst {dimension_numbers = #tpu.dot_dimension_numbers<[1], [0], [0], [1], [0, 0, 1, 1], [], []>} : vector<12x32xbf16>, vector<32x32xbf16>, vector<12x32xf32> -> vector<12x32xf32>
    %6 = vector.broadcast %1 : vector<1x32xf32> to vector<12x32xf32>
    %7 = arith.addf %5, %6 : vector<12x32xf32>
    %c0_6 = arith.constant 0 : index
    %c0_7 = arith.constant 0 : index
    %c0_8 = arith.constant 0 : index
    %8 = vector.load %arg1[%c0_6, %c0_7, %c0_8] : memref<2x12x32xf32, #tpu.memory_space<vmem>>, vector<1x12x32xf32>
    %9 = vector.shape_cast %8 : vector<1x12x32xf32> to vector<12x32xf32>
    %10 = arith.addf %9, %7 : vector<12x32xf32>
    %11 = vector.extract_strided_slice %10 {offsets = [0, 0], sizes = [1, 32], strides = [1, 1]} : vector<12x32xf32> to vector<1x32xf32>
    %12 = vector.extract_strided_slice %10 {offsets = [0, 0], sizes = [11, 32], strides = [1, 1]} : vector<12x32xf32> to vector<11x32xf32>
    %13 = tpu.concatenate %11, %12 in 0 : vector<1x32xf32>, vector<11x32xf32> -> vector<12x32xf32>
    %14 = vector.extract_strided_slice %10 {offsets = [1, 0], sizes = [11, 32], strides = [1, 1]} : vector<12x32xf32> to vector<11x32xf32>
    %15 = vector.extract_strided_slice %10 {offsets = [11, 0], sizes = [1, 32], strides = [1, 1]} : vector<12x32xf32> to vector<1x32xf32>
    %16 = tpu.concatenate %14, %15 in 0 : vector<11x32xf32>, vector<1x32xf32> -> vector<12x32xf32>
    %17 = arith.addf %10, %13 : vector<12x32xf32>
    %18 = arith.addf %17, %16 : vector<12x32xf32>
    %19 = vector.extract_strided_slice %10 {offsets = [0, 0], sizes = [1, 32], strides = [1, 1]} : vector<12x32xf32> to vector<1x32xf32>
    %20 = vector.extract_strided_slice %10 {offsets = [0, 0], sizes = [10, 32], strides = [1, 1]} : vector<12x32xf32> to vector<10x32xf32>
    %21 = tpu.concatenate %19, %19, %20 in 0 : vector<1x32xf32>, vector<1x32xf32>, vector<10x32xf32> -> vector<12x32xf32>
    %22 = vector.extract_strided_slice %10 {offsets = [2, 0], sizes = [10, 32], strides = [1, 1]} : vector<12x32xf32> to vector<10x32xf32>
    %23 = vector.extract_strided_slice %10 {offsets = [11, 0], sizes = [1, 32], strides = [1, 1]} : vector<12x32xf32> to vector<1x32xf32>
    %24 = tpu.concatenate %22, %23, %23 in 0 : vector<10x32xf32>, vector<1x32xf32>, vector<1x32xf32> -> vector<12x32xf32>
    %25 = arith.addf %18, %21 : vector<12x32xf32>
    %26 = arith.addf %25, %24 : vector<12x32xf32>
    %cst_9 = arith.constant 2.000000e-01 : f32
    %27 = vector.broadcast %cst_9 : f32 to vector<12x32xf32>
    %28 = arith.mulf %26, %27 : vector<12x32xf32>
    %29 = arith.subf %10, %28 : vector<12x32xf32>
    %c0_10 = arith.constant 0 : index
    %c0_11 = arith.constant 0 : index
    %c0_12 = arith.constant 0 : index
    %30 = vector.load %arg4[%c0_10, %c0_11, %c0_12] : memref<2x12x32xf32, #tpu.memory_space<vmem>>, vector<1x12x32xf32>
    %31 = vector.shape_cast %30 : vector<1x12x32xf32> to vector<12x32xf32>
    %32 = vector.shape_cast %29 : vector<12x32xf32> to vector<1x12x32xf32>
    tpu.vector_store %arg4[%c0_10, %c0_11, %c0_12], %32 {strides = array<i32>} : memref<2x12x32xf32, #tpu.memory_space<vmem>>, vector<1x12x32xf32>,
    %c0_13 = arith.constant 0 : index
    %c0_14 = arith.constant 0 : index
    %c0_15 = arith.constant 0 : index
    %33 = vector.load %arg5[%c0_13, %c0_14, %c0_15] : memref<2x12x32xf32, #tpu.memory_space<vmem>>, vector<1x12x32xf32>
    %34 = vector.shape_cast %33 : vector<1x12x32xf32> to vector<12x32xf32>
    %35 = vector.shape_cast %28 : vector<12x32xf32> to vector<1x12x32xf32>
    tpu.vector_store %arg5[%c0_13, %c0_14, %c0_15], %35 {strides = array<i32>} : memref<2x12x32xf32, #tpu.memory_space<vmem>>, vector<1x12x32xf32>,
    %c1 = arith.constant 1 : index
    %c0_16 = arith.constant 0 : index
    %c0_17 = arith.constant 0 : index
    %36 = vector.load %arg0[%c1, %c0_16, %c0_17] : memref<2x12x32xf32, #tpu.memory_space<vmem>>, vector<1x12x32xf32>
    %37 = vector.shape_cast %36 : vector<1x12x32xf32> to vector<12x32xf32>
    %38 = arith.truncf %37 : vector<12x32xf32> to vector<12x32xbf16>
    %cst_18 = arith.constant dense<0.000000e+00> : vector<12x32xf32>
    %39 = tpu.matmul %38, %0, %cst_18 {dimension_numbers = #tpu.dot_dimension_numbers<[1], [0], [0], [1], [0, 0, 1, 1], [], []>} : vector<12x32xbf16>, vector<32x32xbf16>, vector<12x32xf32> -> vector<12x32xf32>
    %40 = vector.broadcast %1 : vector<1x32xf32> to vector<12x32xf32>
    %41 = arith.addf %39, %40 : vector<12x32xf32>
    %c1_19 = arith.constant 1 : index
    %c0_20 = arith.constant 0 : index
    %c0_21 = arith.constant 0 : index
    %42 = vector.load %arg1[%c1_19, %c0_20, %c0_21] : memref<2x12x32xf32, #tpu.memory_space<vmem>>, vector<1x12x32xf32>
    %43 = vector.shape_cast %42 : vector<1x12x32xf32> to vector<12x32xf32>
    %44 = arith.addf %43, %41 : vector<12x32xf32>
    %45 = vector.extract_strided_slice %44 {offsets = [0, 0], sizes = [1, 32], strides = [1, 1]} : vector<12x32xf32> to vector<1x32xf32>
    %46 = vector.extract_strided_slice %44 {offsets = [0, 0], sizes = [11, 32], strides = [1, 1]} : vector<12x32xf32> to vector<11x32xf32>
    %47 = tpu.concatenate %45, %46 in 0 : vector<1x32xf32>, vector<11x32xf32> -> vector<12x32xf32>
    %48 = vector.extract_strided_slice %44 {offsets = [1, 0], sizes = [11, 32], strides = [1, 1]} : vector<12x32xf32> to vector<11x32xf32>
    %49 = vector.extract_strided_slice %44 {offsets = [11, 0], sizes = [1, 32], strides = [1, 1]} : vector<12x32xf32> to vector<1x32xf32>
    %50 = tpu.concatenate %48, %49 in 0 : vector<11x32xf32>, vector<1x32xf32> -> vector<12x32xf32>
    %51 = arith.addf %44, %47 : vector<12x32xf32>
    %52 = arith.addf %51, %50 : vector<12x32xf32>
    %53 = vector.extract_strided_slice %44 {offsets = [0, 0], sizes = [1, 32], strides = [1, 1]} : vector<12x32xf32> to vector<1x32xf32>
    %54 = vector.extract_strided_slice %44 {offsets = [0, 0], sizes = [10, 32], strides = [1, 1]} : vector<12x32xf32> to vector<10x32xf32>
    %55 = tpu.concatenate %53, %53, %54 in 0 : vector<1x32xf32>, vector<1x32xf32>, vector<10x32xf32> -> vector<12x32xf32>
    %56 = vector.extract_strided_slice %44 {offsets = [2, 0], sizes = [10, 32], strides = [1, 1]} : vector<12x32xf32> to vector<10x32xf32>
    %57 = vector.extract_strided_slice %44 {offsets = [11, 0], sizes = [1, 32], strides = [1, 1]} : vector<12x32xf32> to vector<1x32xf32>
    %58 = tpu.concatenate %56, %57, %57 in 0 : vector<10x32xf32>, vector<1x32xf32>, vector<1x32xf32> -> vector<12x32xf32>
    %59 = arith.addf %52, %55 : vector<12x32xf32>
    %60 = arith.addf %59, %58 : vector<12x32xf32>
    %cst_22 = arith.constant 2.000000e-01 : f32
    %61 = vector.broadcast %cst_22 : f32 to vector<12x32xf32>
    %62 = arith.mulf %60, %61 : vector<12x32xf32>
    %63 = arith.subf %44, %62 : vector<12x32xf32>
    %c1_23 = arith.constant 1 : index
    %c0_24 = arith.constant 0 : index
    %c0_25 = arith.constant 0 : index
    %64 = vector.load %arg4[%c1_23, %c0_24, %c0_25] : memref<2x12x32xf32, #tpu.memory_space<vmem>>, vector<1x12x32xf32>
    %65 = vector.shape_cast %64 : vector<1x12x32xf32> to vector<12x32xf32>
    %66 = vector.shape_cast %63 : vector<12x32xf32> to vector<1x12x32xf32>
    tpu.vector_store %arg4[%c1_23, %c0_24, %c0_25], %66 {strides = array<i32>} : memref<2x12x32xf32, #tpu.memory_space<vmem>>, vector<1x12x32xf32>,
    %c1_26 = arith.constant 1 : index
    %c0_27 = arith.constant 0 : index
    %c0_28 = arith.constant 0 : index
    %67 = vector.load %arg5[%c1_26, %c0_27, %c0_28] : memref<2x12x32xf32, #tpu.memory_space<vmem>>, vector<1x12x32xf32>
    %68 = vector.shape_cast %67 : vector<1x12x32xf32> to vector<12x32xf32>
    %69 = vector.shape_cast %62 : vector<12x32xf32> to vector<1x12x32xf32>
    tpu.vector_store %arg5[%c1_26, %c0_27, %c0_28], %69 {strides = array<i32>} : memref<2x12x32xf32, #tpu.memory_space<vmem>>, vector<1x12x32xf32>,
    return
  }
}

module attributes {stable_mosaic.version = 11 : i64} {
  func.func @_q_kv_kernel(%arg0: memref<2x12x32xf32, #tpu.memory_space<vmem>>, %arg1: memref<2x8x32xf32, #tpu.memory_space<vmem>>, %arg2: memref<32x32xbf16, #tpu.memory_space<vmem>>, %arg3: memref<1x32xf32, #tpu.memory_space<vmem>>, %arg4: memref<32x64xbf16, #tpu.memory_space<vmem>>, %arg5: memref<1x64xf32, #tpu.memory_space<vmem>>, %arg6: memref<2x12x32xf32, #tpu.memory_space<vmem>>, %arg7: memref<2x8x64xf32, #tpu.memory_space<vmem>>) attributes {dimension_semantics = [], scalar_prefetch = 0 : i64, scratch_operands = 0 : i64, tpu.core_type = #tpu.core_type<tc>} {
    %c0 = arith.constant 0 : index
    %c0_0 = arith.constant 0 : index
    %0 = vector.load %arg2[%c0, %c0_0] : memref<32x32xbf16, #tpu.memory_space<vmem>>, vector<32x32xbf16>
    %c0_1 = arith.constant 0 : index
    %c0_2 = arith.constant 0 : index
    %1 = vector.load %arg3[%c0_1, %c0_2] : memref<1x32xf32, #tpu.memory_space<vmem>>, vector<1x32xf32>
    %c0_3 = arith.constant 0 : index
    %c0_4 = arith.constant 0 : index
    %2 = vector.load %arg4[%c0_3, %c0_4] : memref<32x64xbf16, #tpu.memory_space<vmem>>, vector<32x64xbf16>
    %c0_5 = arith.constant 0 : index
    %c0_6 = arith.constant 0 : index
    %3 = vector.load %arg5[%c0_5, %c0_6] : memref<1x64xf32, #tpu.memory_space<vmem>>, vector<1x64xf32>
    %c0_7 = arith.constant 0 : index
    %c0_8 = arith.constant 0 : index
    %c0_9 = arith.constant 0 : index
    %4 = vector.load %arg0[%c0_7, %c0_8, %c0_9] : memref<2x12x32xf32, #tpu.memory_space<vmem>>, vector<1x12x32xf32>
    %5 = vector.shape_cast %4 : vector<1x12x32xf32> to vector<12x32xf32>
    %6 = arith.truncf %5 : vector<12x32xf32> to vector<12x32xbf16>
    %cst = arith.constant dense<0.000000e+00> : vector<12x32xf32>
    %7 = tpu.matmul %6, %0, %cst {dimension_numbers = #tpu.dot_dimension_numbers<[1], [0], [0], [1], [0, 0, 1, 1], [], []>} : vector<12x32xbf16>, vector<32x32xbf16>, vector<12x32xf32> -> vector<12x32xf32>
    %8 = vector.broadcast %1 : vector<1x32xf32> to vector<12x32xf32>
    %9 = arith.addf %7, %8 : vector<12x32xf32>
    %c0_10 = arith.constant 0 : index
    %c0_11 = arith.constant 0 : index
    %c0_12 = arith.constant 0 : index
    %10 = vector.load %arg6[%c0_10, %c0_11, %c0_12] : memref<2x12x32xf32, #tpu.memory_space<vmem>>, vector<1x12x32xf32>
    %11 = vector.shape_cast %10 : vector<1x12x32xf32> to vector<12x32xf32>
    %12 = vector.shape_cast %9 : vector<12x32xf32> to vector<1x12x32xf32>
    tpu.vector_store %arg6[%c0_10, %c0_11, %c0_12], %12 {strides = array<i32>} : memref<2x12x32xf32, #tpu.memory_space<vmem>>, vector<1x12x32xf32>,
    %c0_13 = arith.constant 0 : index
    %c0_14 = arith.constant 0 : index
    %c0_15 = arith.constant 0 : index
    %13 = vector.load %arg1[%c0_13, %c0_14, %c0_15] : memref<2x8x32xf32, #tpu.memory_space<vmem>>, vector<1x8x32xf32>
    %14 = vector.shape_cast %13 : vector<1x8x32xf32> to vector<8x32xf32>
    %15 = arith.truncf %14 : vector<8x32xf32> to vector<8x32xbf16>
    %cst_16 = arith.constant dense<0.000000e+00> : vector<8x64xf32>
    %16 = tpu.matmul %15, %2, %cst_16 {dimension_numbers = #tpu.dot_dimension_numbers<[1], [0], [0], [1], [0, 0, 1, 1], [], []>} : vector<8x32xbf16>, vector<32x64xbf16>, vector<8x64xf32> -> vector<8x64xf32>
    %17 = vector.broadcast %3 : vector<1x64xf32> to vector<8x64xf32>
    %18 = arith.addf %16, %17 : vector<8x64xf32>
    %c0_17 = arith.constant 0 : index
    %c0_18 = arith.constant 0 : index
    %c0_19 = arith.constant 0 : index
    %19 = vector.load %arg7[%c0_17, %c0_18, %c0_19] : memref<2x8x64xf32, #tpu.memory_space<vmem>>, vector<1x8x64xf32>
    %20 = vector.shape_cast %19 : vector<1x8x64xf32> to vector<8x64xf32>
    %21 = vector.shape_cast %18 : vector<8x64xf32> to vector<1x8x64xf32>
    tpu.vector_store %arg7[%c0_17, %c0_18, %c0_19], %21 {strides = array<i32>} : memref<2x8x64xf32, #tpu.memory_space<vmem>>, vector<1x8x64xf32>,
    %c1 = arith.constant 1 : index
    %c0_20 = arith.constant 0 : index
    %c0_21 = arith.constant 0 : index
    %22 = vector.load %arg0[%c1, %c0_20, %c0_21] : memref<2x12x32xf32, #tpu.memory_space<vmem>>, vector<1x12x32xf32>
    %23 = vector.shape_cast %22 : vector<1x12x32xf32> to vector<12x32xf32>
    %24 = arith.truncf %23 : vector<12x32xf32> to vector<12x32xbf16>
    %cst_22 = arith.constant dense<0.000000e+00> : vector<12x32xf32>
    %25 = tpu.matmul %24, %0, %cst_22 {dimension_numbers = #tpu.dot_dimension_numbers<[1], [0], [0], [1], [0, 0, 1, 1], [], []>} : vector<12x32xbf16>, vector<32x32xbf16>, vector<12x32xf32> -> vector<12x32xf32>
    %26 = vector.broadcast %1 : vector<1x32xf32> to vector<12x32xf32>
    %27 = arith.addf %25, %26 : vector<12x32xf32>
    %c1_23 = arith.constant 1 : index
    %c0_24 = arith.constant 0 : index
    %c0_25 = arith.constant 0 : index
    %28 = vector.load %arg6[%c1_23, %c0_24, %c0_25] : memref<2x12x32xf32, #tpu.memory_space<vmem>>, vector<1x12x32xf32>
    %29 = vector.shape_cast %28 : vector<1x12x32xf32> to vector<12x32xf32>
    %30 = vector.shape_cast %27 : vector<12x32xf32> to vector<1x12x32xf32>
    tpu.vector_store %arg6[%c1_23, %c0_24, %c0_25], %30 {strides = array<i32>} : memref<2x12x32xf32, #tpu.memory_space<vmem>>, vector<1x12x32xf32>,
    %c1_26 = arith.constant 1 : index
    %c0_27 = arith.constant 0 : index
    %c0_28 = arith.constant 0 : index
    %31 = vector.load %arg1[%c1_26, %c0_27, %c0_28] : memref<2x8x32xf32, #tpu.memory_space<vmem>>, vector<1x8x32xf32>
    %32 = vector.shape_cast %31 : vector<1x8x32xf32> to vector<8x32xf32>
    %33 = arith.truncf %32 : vector<8x32xf32> to vector<8x32xbf16>
    %cst_29 = arith.constant dense<0.000000e+00> : vector<8x64xf32>
    %34 = tpu.matmul %33, %2, %cst_29 {dimension_numbers = #tpu.dot_dimension_numbers<[1], [0], [0], [1], [0, 0, 1, 1], [], []>} : vector<8x32xbf16>, vector<32x64xbf16>, vector<8x64xf32> -> vector<8x64xf32>
    %35 = vector.broadcast %3 : vector<1x64xf32> to vector<8x64xf32>
    %36 = arith.addf %34, %35 : vector<8x64xf32>
    %c1_30 = arith.constant 1 : index
    %c0_31 = arith.constant 0 : index
    %c0_32 = arith.constant 0 : index
    %37 = vector.load %arg7[%c1_30, %c0_31, %c0_32] : memref<2x8x64xf32, #tpu.memory_space<vmem>>, vector<1x8x64xf32>
    %38 = vector.shape_cast %37 : vector<1x8x64xf32> to vector<8x64xf32>
    %39 = vector.shape_cast %36 : vector<8x64xf32> to vector<1x8x64xf32>
    tpu.vector_store %arg7[%c1_30, %c0_31, %c0_32], %39 {strides = array<i32>} : memref<2x8x64xf32, #tpu.memory_space<vmem>>, vector<1x8x64xf32>,
    return
  }
}

module attributes {stable_mosaic.version = 11 : i64} {
  func.func @_mynorm_kernel(%arg0: memref<2x12x32xf32, #tpu.memory_space<vmem>>, %arg1: memref<1x32xf32, #tpu.memory_space<vmem>>, %arg2: memref<1x32xf32, #tpu.memory_space<vmem>>, %arg3: memref<2x12x32xf32, #tpu.memory_space<vmem>>) attributes {dimension_semantics = [], scalar_prefetch = 0 : i64, scratch_operands = 0 : i64, tpu.core_type = #tpu.core_type<tc>} {
    %c0 = arith.constant 0 : index
    %c0_0 = arith.constant 0 : index
    %0 = vector.load %arg1[%c0, %c0_0] : memref<1x32xf32, #tpu.memory_space<vmem>>, vector<1x32xf32>
    %c0_1 = arith.constant 0 : index
    %c0_2 = arith.constant 0 : index
    %1 = vector.load %arg2[%c0_1, %c0_2] : memref<1x32xf32, #tpu.memory_space<vmem>>, vector<1x32xf32>
    %c0_3 = arith.constant 0 : index
    %c0_4 = arith.constant 0 : index
    %c0_5 = arith.constant 0 : index
    %2 = vector.load %arg0[%c0_3, %c0_4, %c0_5] : memref<2x12x32xf32, #tpu.memory_space<vmem>>, vector<1x12x32xf32>
    %3 = vector.shape_cast %2 : vector<1x12x32xf32> to vector<12x32xf32>
    %cst = arith.constant dense<0.000000e+00> : vector<12xf32>
    %4 = vector.multi_reduction <add>, %3, %cst [1] : vector<12x32xf32> to vector<12xf32>
    %5 = vector.shape_cast %4 : vector<12xf32> to vector<12x1xf32>
    %cst_6 = arith.constant 3.200000e+01 : f32
    %6 = vector.broadcast %cst_6 : f32 to vector<12x1xf32>
    %7 = arith.divf %5, %6 : vector<12x1xf32>
    %8 = vector.broadcast %7 : vector<12x1xf32> to vector<12x32xf32>
    %9 = arith.subf %3, %8 : vector<12x32xf32>
    %10 = arith.mulf %9, %9 : vector<12x32xf32>
    %cst_7 = arith.constant dense<0.000000e+00> : vector<12xf32>
    %11 = vector.multi_reduction <add>, %10, %cst_7 [1] : vector<12x32xf32> to vector<12xf32>
    %12 = vector.shape_cast %11 : vector<12xf32> to vector<12x1xf32>
    %cst_8 = arith.constant 3.200000e+01 : f32
    %13 = vector.broadcast %cst_8 : f32 to vector<12x1xf32>
    %14 = arith.divf %12, %13 : vector<12x1xf32>
    %15 = vector.broadcast %7 : vector<12x1xf32> to vector<12x32xf32>
    %16 = arith.subf %3, %15 : vector<12x32xf32>
    %cst_9 = arith.constant 9.99999974E-6 : f32
    %17 = vector.broadcast %cst_9 : f32 to vector<12x1xf32>
    %18 = arith.addf %14, %17 : vector<12x1xf32>
    %19 = math.rsqrt %18 : vector<12x1xf32>
    %20 = vector.broadcast %19 : vector<12x1xf32> to vector<12x32xf32>
    %21 = arith.mulf %16, %20 : vector<12x32xf32>
    %22 = vector.broadcast %0 : vector<1x32xf32> to vector<12x32xf32>
    %23 = arith.mulf %21, %22 : vector<12x32xf32>
    %24 = vector.broadcast %1 : vector<1x32xf32> to vector<12x32xf32>
    %25 = arith.addf %23, %24 : vector<12x32xf32>
    %cst_10 = arith.constant dense<0.000000e+00> : vector<32xf32>
    %26 = vector.multi_reduction <add>, %25, %cst_10 [0] : vector<12x32xf32> to vector<32xf32>
    %27 = vector.shape_cast %26 : vector<32xf32> to vector<1x32xf32>
    %cst_11 = arith.constant 1.200000e+01 : f32
    %28 = vector.broadcast %cst_11 : f32 to vector<1x32xf32>
    %29 = arith.divf %27, %28 : vector<1x32xf32>
    %30 = vector.broadcast %29 : vector<1x32xf32> to vector<12x32xf32>
    %31 = arith.subf %25, %30 : vector<12x32xf32>
    %c0_12 = arith.constant 0 : index
    %c0_13 = arith.constant 0 : index
    %c0_14 = arith.constant 0 : index
    %32 = vector.load %arg3[%c0_12, %c0_13, %c0_14] : memref<2x12x32xf32, #tpu.memory_space<vmem>>, vector<1x12x32xf32>
    %33 = vector.shape_cast %32 : vector<1x12x32xf32> to vector<12x32xf32>
    %34 = vector.shape_cast %31 : vector<12x32xf32> to vector<1x12x32xf32>
    tpu.vector_store %arg3[%c0_12, %c0_13, %c0_14], %34 {strides = array<i32>} : memref<2x12x32xf32, #tpu.memory_space<vmem>>, vector<1x12x32xf32>,
    %c1 = arith.constant 1 : index
    %c0_15 = arith.constant 0 : index
    %c0_16 = arith.constant 0 : index
    %35 = vector.load %arg0[%c1, %c0_15, %c0_16] : memref<2x12x32xf32, #tpu.memory_space<vmem>>, vector<1x12x32xf32>
    %36 = vector.shape_cast %35 : vector<1x12x32xf32> to vector<12x32xf32>
    %cst_17 = arith.constant dense<0.000000e+00> : vector<12xf32>
    %37 = vector.multi_reduction <add>, %36, %cst_17 [1] : vector<12x32xf32> to vector<12xf32>
    %38 = vector.shape_cast %37 : vector<12xf32> to vector<12x1xf32>
    %cst_18 = arith.constant 3.200000e+01 : f32
    %39 = vector.broadcast %cst_18 : f32 to vector<12x1xf32>
    %40 = arith.divf %38, %39 : vector<12x1xf32>
    %41 = vector.broadcast %40 : vector<12x1xf32> to vector<12x32xf32>
    %42 = arith.subf %36, %41 : vector<12x32xf32>
    %43 = arith.mulf %42, %42 : vector<12x32xf32>
    %cst_19 = arith.constant dense<0.000000e+00> : vector<12xf32>
    %44 = vector.multi_reduction <add>, %43, %cst_19 [1] : vector<12x32xf32> to vector<12xf32>
    %45 = vector.shape_cast %44 : vector<12xf32> to vector<12x1xf32>
    %cst_20 = arith.constant 3.200000e+01 : f32
    %46 = vector.broadcast %cst_20 : f32 to vector<12x1xf32>
    %47 = arith.divf %45, %46 : vector<12x1xf32>
    %48 = vector.broadcast %40 : vector<12x1xf32> to vector<12x32xf32>
    %49 = arith.subf %36, %48 : vector<12x32xf32>
    %cst_21 = arith.constant 9.99999974E-6 : f32
    %50 = vector.broadcast %cst_21 : f32 to vector<12x1xf32>
    %51 = arith.addf %47, %50 : vector<12x1xf32>
    %52 = math.rsqrt %51 : vector<12x1xf32>
    %53 = vector.broadcast %52 : vector<12x1xf32> to vector<12x32xf32>
    %54 = arith.mulf %49, %53 : vector<12x32xf32>
    %55 = vector.broadcast %0 : vector<1x32xf32> to vector<12x32xf32>
    %56 = arith.mulf %54, %55 : vector<12x32xf32>
    %57 = vector.broadcast %1 : vector<1x32xf32> to vector<12x32xf32>
    %58 = arith.addf %56, %57 : vector<12x32xf32>
    %cst_22 = arith.constant dense<0.000000e+00> : vector<32xf32>
    %59 = vector.multi_reduction <add>, %58, %cst_22 [0] : vector<12x32xf32> to vector<32xf32>
    %60 = vector.shape_cast %59 : vector<32xf32> to vector<1x32xf32>
    %cst_23 = arith.constant 1.200000e+01 : f32
    %61 = vector.broadcast %cst_23 : f32 to vector<1x32xf32>
    %62 = arith.divf %60, %61 : vector<1x32xf32>
    %63 = vector.broadcast %62 : vector<1x32xf32> to vector<12x32xf32>
    %64 = arith.subf %58, %63 : vector<12x32xf32>
    %c1_24 = arith.constant 1 : index
    %c0_25 = arith.constant 0 : index
    %c0_26 = arith.constant 0 : index
    %65 = vector.load %arg3[%c1_24, %c0_25, %c0_26] : memref<2x12x32xf32, #tpu.memory_space<vmem>>, vector<1x12x32xf32>
    %66 = vector.shape_cast %65 : vector<1x12x32xf32> to vector<12x32xf32>
    %67 = vector.shape_cast %64 : vector<12x32xf32> to vector<1x12x32xf32>
    tpu.vector_store %arg3[%c1_24, %c0_25, %c0_26], %67 {strides = array<i32>} : memref<2x12x32xf32, #tpu.memory_space<vmem>>, vector<1x12x32xf32>,
    return
  }
}

module attributes {stable_mosaic.version = 11 : i64} {
  func.func @_ffn_decomp_kernel(%arg0: memref<2x12x32xf32, #tpu.memory_space<vmem>>, %arg1: memref<32x64xbf16, #tpu.memory_space<vmem>>, %arg2: memref<64x32xbf16, #tpu.memory_space<vmem>>, %arg3: memref<2x12x32xf32, #tpu.memory_space<vmem>>, %arg4: memref<2x12x32xf32, #tpu.memory_space<vmem>>) attributes {dimension_semantics = [], scalar_prefetch = 0 : i64, scratch_operands = 0 : i64, tpu.core_type = #tpu.core_type<tc>} {
    %c0 = arith.constant 0 : index
    %c0_0 = arith.constant 0 : index
    %0 = vector.load %arg1[%c0, %c0_0] : memref<32x64xbf16, #tpu.memory_space<vmem>>, vector<32x64xbf16>
    %c0_1 = arith.constant 0 : index
    %c0_2 = arith.constant 0 : index
    %1 = vector.load %arg2[%c0_1, %c0_2] : memref<64x32xbf16, #tpu.memory_space<vmem>>, vector<64x32xbf16>
    %c0_3 = arith.constant 0 : index
    %c0_4 = arith.constant 0 : index
    %c0_5 = arith.constant 0 : index
    %2 = vector.load %arg0[%c0_3, %c0_4, %c0_5] : memref<2x12x32xf32, #tpu.memory_space<vmem>>, vector<1x12x32xf32>
    %3 = vector.shape_cast %2 : vector<1x12x32xf32> to vector<12x32xf32>
    %4 = arith.truncf %3 : vector<12x32xf32> to vector<12x32xbf16>
    %cst = arith.constant dense<0.000000e+00> : vector<12x64xf32>
    %5 = tpu.matmul %4, %0, %cst {dimension_numbers = #tpu.dot_dimension_numbers<[1], [0], [0], [1], [0, 0, 1, 1], [], []>} : vector<12x32xbf16>, vector<32x64xbf16>, vector<12x64xf32> -> vector<12x64xf32>
    %cst_6 = arith.constant 0.000000e+00 : f32
    %6 = vector.broadcast %cst_6 : f32 to vector<12x64xf32>
    %7 = arith.maximumf %5, %6 : vector<12x64xf32>
    %8 = arith.truncf %7 : vector<12x64xf32> to vector<12x64xbf16>
    %cst_7 = arith.constant dense<0.000000e+00> : vector<12x32xf32>
    %9 = tpu.matmul %8, %1, %cst_7 {dimension_numbers = #tpu.dot_dimension_numbers<[1], [0], [0], [1], [0, 0, 1, 1], [], []>} : vector<12x64xbf16>, vector<64x32xbf16>, vector<12x32xf32> -> vector<12x32xf32>
    %10 = arith.addf %3, %9 : vector<12x32xf32>
    %11 = vector.extract_strided_slice %10 {offsets = [0, 0], sizes = [1, 32], strides = [1, 1]} : vector<12x32xf32> to vector<1x32xf32>
    %12 = vector.extract_strided_slice %10 {offsets = [0, 0], sizes = [11, 32], strides = [1, 1]} : vector<12x32xf32> to vector<11x32xf32>
    %13 = tpu.concatenate %11, %12 in 0 : vector<1x32xf32>, vector<11x32xf32> -> vector<12x32xf32>
    %14 = vector.extract_strided_slice %10 {offsets = [1, 0], sizes = [11, 32], strides = [1, 1]} : vector<12x32xf32> to vector<11x32xf32>
    %15 = vector.extract_strided_slice %10 {offsets = [11, 0], sizes = [1, 32], strides = [1, 1]} : vector<12x32xf32> to vector<1x32xf32>
    %16 = tpu.concatenate %14, %15 in 0 : vector<11x32xf32>, vector<1x32xf32> -> vector<12x32xf32>
    %17 = arith.addf %10, %13 : vector<12x32xf32>
    %18 = arith.addf %17, %16 : vector<12x32xf32>
    %19 = vector.extract_strided_slice %10 {offsets = [0, 0], sizes = [1, 32], strides = [1, 1]} : vector<12x32xf32> to vector<1x32xf32>
    %20 = vector.extract_strided_slice %10 {offsets = [0, 0], sizes = [10, 32], strides = [1, 1]} : vector<12x32xf32> to vector<10x32xf32>
    %21 = tpu.concatenate %19, %19, %20 in 0 : vector<1x32xf32>, vector<1x32xf32>, vector<10x32xf32> -> vector<12x32xf32>
    %22 = vector.extract_strided_slice %10 {offsets = [2, 0], sizes = [10, 32], strides = [1, 1]} : vector<12x32xf32> to vector<10x32xf32>
    %23 = vector.extract_strided_slice %10 {offsets = [11, 0], sizes = [1, 32], strides = [1, 1]} : vector<12x32xf32> to vector<1x32xf32>
    %24 = tpu.concatenate %22, %23, %23 in 0 : vector<10x32xf32>, vector<1x32xf32>, vector<1x32xf32> -> vector<12x32xf32>
    %25 = arith.addf %18, %21 : vector<12x32xf32>
    %26 = arith.addf %25, %24 : vector<12x32xf32>
    %cst_8 = arith.constant 2.000000e-01 : f32
    %27 = vector.broadcast %cst_8 : f32 to vector<12x32xf32>
    %28 = arith.mulf %26, %27 : vector<12x32xf32>
    %29 = arith.subf %10, %28 : vector<12x32xf32>
    %c0_9 = arith.constant 0 : index
    %c0_10 = arith.constant 0 : index
    %c0_11 = arith.constant 0 : index
    %30 = vector.load %arg3[%c0_9, %c0_10, %c0_11] : memref<2x12x32xf32, #tpu.memory_space<vmem>>, vector<1x12x32xf32>
    %31 = vector.shape_cast %30 : vector<1x12x32xf32> to vector<12x32xf32>
    %32 = vector.shape_cast %29 : vector<12x32xf32> to vector<1x12x32xf32>
    tpu.vector_store %arg3[%c0_9, %c0_10, %c0_11], %32 {strides = array<i32>} : memref<2x12x32xf32, #tpu.memory_space<vmem>>, vector<1x12x32xf32>,
    %c0_12 = arith.constant 0 : index
    %c0_13 = arith.constant 0 : index
    %c0_14 = arith.constant 0 : index
    %33 = vector.load %arg4[%c0_12, %c0_13, %c0_14] : memref<2x12x32xf32, #tpu.memory_space<vmem>>, vector<1x12x32xf32>
    %34 = vector.shape_cast %33 : vector<1x12x32xf32> to vector<12x32xf32>
    %35 = vector.shape_cast %28 : vector<12x32xf32> to vector<1x12x32xf32>
    tpu.vector_store %arg4[%c0_12, %c0_13, %c0_14], %35 {strides = array<i32>} : memref<2x12x32xf32, #tpu.memory_space<vmem>>, vector<1x12x32xf32>,
    %c1 = arith.constant 1 : index
    %c0_15 = arith.constant 0 : index
    %c0_16 = arith.constant 0 : index
    %36 = vector.load %arg0[%c1, %c0_15, %c0_16] : memref<2x12x32xf32, #tpu.memory_space<vmem>>, vector<1x12x32xf32>
    %37 = vector.shape_cast %36 : vector<1x12x32xf32> to vector<12x32xf32>
    %38 = arith.truncf %37 : vector<12x32xf32> to vector<12x32xbf16>
    %cst_17 = arith.constant dense<0.000000e+00> : vector<12x64xf32>
    %39 = tpu.matmul %38, %0, %cst_17 {dimension_numbers = #tpu.dot_dimension_numbers<[1], [0], [0], [1], [0, 0, 1, 1], [], []>} : vector<12x32xbf16>, vector<32x64xbf16>, vector<12x64xf32> -> vector<12x64xf32>
    %cst_18 = arith.constant 0.000000e+00 : f32
    %40 = vector.broadcast %cst_18 : f32 to vector<12x64xf32>
    %41 = arith.maximumf %39, %40 : vector<12x64xf32>
    %42 = arith.truncf %41 : vector<12x64xf32> to vector<12x64xbf16>
    %cst_19 = arith.constant dense<0.000000e+00> : vector<12x32xf32>
    %43 = tpu.matmul %42, %1, %cst_19 {dimension_numbers = #tpu.dot_dimension_numbers<[1], [0], [0], [1], [0, 0, 1, 1], [], []>} : vector<12x64xbf16>, vector<64x32xbf16>, vector<12x32xf32> -> vector<12x32xf32>
    %44 = arith.addf %37, %43 : vector<12x32xf32>
    %45 = vector.extract_strided_slice %44 {offsets = [0, 0], sizes = [1, 32], strides = [1, 1]} : vector<12x32xf32> to vector<1x32xf32>
    %46 = vector.extract_strided_slice %44 {offsets = [0, 0], sizes = [11, 32], strides = [1, 1]} : vector<12x32xf32> to vector<11x32xf32>
    %47 = tpu.concatenate %45, %46 in 0 : vector<1x32xf32>, vector<11x32xf32> -> vector<12x32xf32>
    %48 = vector.extract_strided_slice %44 {offsets = [1, 0], sizes = [11, 32], strides = [1, 1]} : vector<12x32xf32> to vector<11x32xf32>
    %49 = vector.extract_strided_slice %44 {offsets = [11, 0], sizes = [1, 32], strides = [1, 1]} : vector<12x32xf32> to vector<1x32xf32>
    %50 = tpu.concatenate %48, %49 in 0 : vector<11x32xf32>, vector<1x32xf32> -> vector<12x32xf32>
    %51 = arith.addf %44, %47 : vector<12x32xf32>
    %52 = arith.addf %51, %50 : vector<12x32xf32>
    %53 = vector.extract_strided_slice %44 {offsets = [0, 0], sizes = [1, 32], strides = [1, 1]} : vector<12x32xf32> to vector<1x32xf32>
    %54 = vector.extract_strided_slice %44 {offsets = [0, 0], sizes = [10, 32], strides = [1, 1]} : vector<12x32xf32> to vector<10x32xf32>
    %55 = tpu.concatenate %53, %53, %54 in 0 : vector<1x32xf32>, vector<1x32xf32>, vector<10x32xf32> -> vector<12x32xf32>
    %56 = vector.extract_strided_slice %44 {offsets = [2, 0], sizes = [10, 32], strides = [1, 1]} : vector<12x32xf32> to vector<10x32xf32>
    %57 = vector.extract_strided_slice %44 {offsets = [11, 0], sizes = [1, 32], strides = [1, 1]} : vector<12x32xf32> to vector<1x32xf32>
    %58 = tpu.concatenate %56, %57, %57 in 0 : vector<10x32xf32>, vector<1x32xf32>, vector<1x32xf32> -> vector<12x32xf32>
    %59 = arith.addf %52, %55 : vector<12x32xf32>
    %60 = arith.addf %59, %58 : vector<12x32xf32>
    %cst_20 = arith.constant 2.000000e-01 : f32
    %61 = vector.broadcast %cst_20 : f32 to vector<12x32xf32>
    %62 = arith.mulf %60, %61 : vector<12x32xf32>
    %63 = arith.subf %44, %62 : vector<12x32xf32>
    %c1_21 = arith.constant 1 : index
    %c0_22 = arith.constant 0 : index
    %c0_23 = arith.constant 0 : index
    %64 = vector.load %arg3[%c1_21, %c0_22, %c0_23] : memref<2x12x32xf32, #tpu.memory_space<vmem>>, vector<1x12x32xf32>
    %65 = vector.shape_cast %64 : vector<1x12x32xf32> to vector<12x32xf32>
    %66 = vector.shape_cast %63 : vector<12x32xf32> to vector<1x12x32xf32>
    tpu.vector_store %arg3[%c1_21, %c0_22, %c0_23], %66 {strides = array<i32>} : memref<2x12x32xf32, #tpu.memory_space<vmem>>, vector<1x12x32xf32>,
    %c1_24 = arith.constant 1 : index
    %c0_25 = arith.constant 0 : index
    %c0_26 = arith.constant 0 : index
    %67 = vector.load %arg4[%c1_24, %c0_25, %c0_26] : memref<2x12x32xf32, #tpu.memory_space<vmem>>, vector<1x12x32xf32>
    %68 = vector.shape_cast %67 : vector<1x12x32xf32> to vector<12x32xf32>
    %69 = vector.shape_cast %62 : vector<12x32xf32> to vector<1x12x32xf32>
    tpu.vector_store %arg4[%c1_24, %c0_25, %c0_26], %69 {strides = array<i32>} : memref<2x12x32xf32, #tpu.memory_space<vmem>>, vector<1x12x32xf32>,
    return
  }
}

module attributes {stable_mosaic.version = 11 : i64} {
  func.func @_qkv_kernel(%arg0: memref<2x24x32xf32, #tpu.memory_space<vmem>>, %arg1: memref<32x96xbf16, #tpu.memory_space<vmem>>, %arg2: memref<1x96xf32, #tpu.memory_space<vmem>>, %arg3: memref<2x24x96xf32, #tpu.memory_space<vmem>>) attributes {dimension_semantics = [], scalar_prefetch = 0 : i64, scratch_operands = 0 : i64, tpu.core_type = #tpu.core_type<tc>} {
    %c0 = arith.constant 0 : index
    %c0_0 = arith.constant 0 : index
    %0 = vector.load %arg1[%c0, %c0_0] : memref<32x96xbf16, #tpu.memory_space<vmem>>, vector<32x96xbf16>
    %c0_1 = arith.constant 0 : index
    %c0_2 = arith.constant 0 : index
    %1 = vector.load %arg2[%c0_1, %c0_2] : memref<1x96xf32, #tpu.memory_space<vmem>>, vector<1x96xf32>
    %c0_3 = arith.constant 0 : index
    %c0_4 = arith.constant 0 : index
    %c0_5 = arith.constant 0 : index
    %2 = vector.load %arg0[%c0_3, %c0_4, %c0_5] : memref<2x24x32xf32, #tpu.memory_space<vmem>>, vector<1x24x32xf32>
    %3 = vector.shape_cast %2 : vector<1x24x32xf32> to vector<24x32xf32>
    %4 = arith.truncf %3 : vector<24x32xf32> to vector<24x32xbf16>
    %cst = arith.constant dense<0.000000e+00> : vector<24x96xf32>
    %5 = tpu.matmul %4, %0, %cst {dimension_numbers = #tpu.dot_dimension_numbers<[1], [0], [0], [1], [0, 0, 1, 1], [], []>} : vector<24x32xbf16>, vector<32x96xbf16>, vector<24x96xf32> -> vector<24x96xf32>
    %6 = vector.broadcast %1 : vector<1x96xf32> to vector<24x96xf32>
    %7 = arith.addf %5, %6 : vector<24x96xf32>
    %c0_6 = arith.constant 0 : index
    %c0_7 = arith.constant 0 : index
    %c0_8 = arith.constant 0 : index
    %8 = vector.load %arg3[%c0_6, %c0_7, %c0_8] : memref<2x24x96xf32, #tpu.memory_space<vmem>>, vector<1x24x96xf32>
    %9 = vector.shape_cast %8 : vector<1x24x96xf32> to vector<24x96xf32>
    %10 = vector.shape_cast %7 : vector<24x96xf32> to vector<1x24x96xf32>
    tpu.vector_store %arg3[%c0_6, %c0_7, %c0_8], %10 {strides = array<i32>} : memref<2x24x96xf32, #tpu.memory_space<vmem>>, vector<1x24x96xf32>,
    %c1 = arith.constant 1 : index
    %c0_9 = arith.constant 0 : index
    %c0_10 = arith.constant 0 : index
    %11 = vector.load %arg0[%c1, %c0_9, %c0_10] : memref<2x24x32xf32, #tpu.memory_space<vmem>>, vector<1x24x32xf32>
    %12 = vector.shape_cast %11 : vector<1x24x32xf32> to vector<24x32xf32>
    %13 = arith.truncf %12 : vector<24x32xf32> to vector<24x32xbf16>
    %cst_11 = arith.constant dense<0.000000e+00> : vector<24x96xf32>
    %14 = tpu.matmul %13, %0, %cst_11 {dimension_numbers = #tpu.dot_dimension_numbers<[1], [0], [0], [1], [0, 0, 1, 1], [], []>} : vector<24x32xbf16>, vector<32x96xbf16>, vector<24x96xf32> -> vector<24x96xf32>
    %15 = vector.broadcast %1 : vector<1x96xf32> to vector<24x96xf32>
    %16 = arith.addf %14, %15 : vector<24x96xf32>
    %c1_12 = arith.constant 1 : index
    %c0_13 = arith.constant 0 : index
    %c0_14 = arith.constant 0 : index
    %17 = vector.load %arg3[%c1_12, %c0_13, %c0_14] : memref<2x24x96xf32, #tpu.memory_space<vmem>>, vector<1x24x96xf32>
    %18 = vector.shape_cast %17 : vector<1x24x96xf32> to vector<24x96xf32>
    %19 = vector.shape_cast %16 : vector<24x96xf32> to vector<1x24x96xf32>
    tpu.vector_store %arg3[%c1_12, %c0_13, %c0_14], %19 {strides = array<i32>} : memref<2x24x96xf32, #tpu.memory_space<vmem>>, vector<1x24x96xf32>,
    return
  }
}

module attributes {stable_mosaic.version = 11 : i64} {
  func.func @_proj_add_decomp_kernel(%arg0: memref<2x24x32xf32, #tpu.memory_space<vmem>>, %arg1: memref<2x24x32xf32, #tpu.memory_space<vmem>>, %arg2: memref<32x32xbf16, #tpu.memory_space<vmem>>, %arg3: memref<1x32xf32, #tpu.memory_space<vmem>>, %arg4: memref<2x24x32xf32, #tpu.memory_space<vmem>>, %arg5: memref<2x24x32xf32, #tpu.memory_space<vmem>>) attributes {dimension_semantics = [], scalar_prefetch = 0 : i64, scratch_operands = 0 : i64, tpu.core_type = #tpu.core_type<tc>} {
    %c0 = arith.constant 0 : index
    %c0_0 = arith.constant 0 : index
    %0 = vector.load %arg2[%c0, %c0_0] : memref<32x32xbf16, #tpu.memory_space<vmem>>, vector<32x32xbf16>
    %c0_1 = arith.constant 0 : index
    %c0_2 = arith.constant 0 : index
    %1 = vector.load %arg3[%c0_1, %c0_2] : memref<1x32xf32, #tpu.memory_space<vmem>>, vector<1x32xf32>
    %c0_3 = arith.constant 0 : index
    %c0_4 = arith.constant 0 : index
    %c0_5 = arith.constant 0 : index
    %2 = vector.load %arg0[%c0_3, %c0_4, %c0_5] : memref<2x24x32xf32, #tpu.memory_space<vmem>>, vector<1x24x32xf32>
    %3 = vector.shape_cast %2 : vector<1x24x32xf32> to vector<24x32xf32>
    %4 = arith.truncf %3 : vector<24x32xf32> to vector<24x32xbf16>
    %cst = arith.constant dense<0.000000e+00> : vector<24x32xf32>
    %5 = tpu.matmul %4, %0, %cst {dimension_numbers = #tpu.dot_dimension_numbers<[1], [0], [0], [1], [0, 0, 1, 1], [], []>} : vector<24x32xbf16>, vector<32x32xbf16>, vector<24x32xf32> -> vector<24x32xf32>
    %6 = vector.broadcast %1 : vector<1x32xf32> to vector<24x32xf32>
    %7 = arith.addf %5, %6 : vector<24x32xf32>
    %c0_6 = arith.constant 0 : index
    %c0_7 = arith.constant 0 : index
    %c0_8 = arith.constant 0 : index
    %8 = vector.load %arg1[%c0_6, %c0_7, %c0_8] : memref<2x24x32xf32, #tpu.memory_space<vmem>>, vector<1x24x32xf32>
    %9 = vector.shape_cast %8 : vector<1x24x32xf32> to vector<24x32xf32>
    %10 = arith.addf %9, %7 : vector<24x32xf32>
    %11 = vector.extract_strided_slice %10 {offsets = [0, 0], sizes = [1, 32], strides = [1, 1]} : vector<24x32xf32> to vector<1x32xf32>
    %12 = vector.extract_strided_slice %10 {offsets = [0, 0], sizes = [23, 32], strides = [1, 1]} : vector<24x32xf32> to vector<23x32xf32>
    %13 = tpu.concatenate %11, %12 in 0 : vector<1x32xf32>, vector<23x32xf32> -> vector<24x32xf32>
    %14 = vector.extract_strided_slice %10 {offsets = [1, 0], sizes = [23, 32], strides = [1, 1]} : vector<24x32xf32> to vector<23x32xf32>
    %15 = vector.extract_strided_slice %10 {offsets = [23, 0], sizes = [1, 32], strides = [1, 1]} : vector<24x32xf32> to vector<1x32xf32>
    %16 = tpu.concatenate %14, %15 in 0 : vector<23x32xf32>, vector<1x32xf32> -> vector<24x32xf32>
    %17 = arith.addf %10, %13 : vector<24x32xf32>
    %18 = arith.addf %17, %16 : vector<24x32xf32>
    %19 = vector.extract_strided_slice %10 {offsets = [0, 0], sizes = [1, 32], strides = [1, 1]} : vector<24x32xf32> to vector<1x32xf32>
    %20 = vector.extract_strided_slice %10 {offsets = [0, 0], sizes = [22, 32], strides = [1, 1]} : vector<24x32xf32> to vector<22x32xf32>
    %21 = tpu.concatenate %19, %19, %20 in 0 : vector<1x32xf32>, vector<1x32xf32>, vector<22x32xf32> -> vector<24x32xf32>
    %22 = vector.extract_strided_slice %10 {offsets = [2, 0], sizes = [22, 32], strides = [1, 1]} : vector<24x32xf32> to vector<22x32xf32>
    %23 = vector.extract_strided_slice %10 {offsets = [23, 0], sizes = [1, 32], strides = [1, 1]} : vector<24x32xf32> to vector<1x32xf32>
    %24 = tpu.concatenate %22, %23, %23 in 0 : vector<22x32xf32>, vector<1x32xf32>, vector<1x32xf32> -> vector<24x32xf32>
    %25 = arith.addf %18, %21 : vector<24x32xf32>
    %26 = arith.addf %25, %24 : vector<24x32xf32>
    %cst_9 = arith.constant 2.000000e-01 : f32
    %27 = vector.broadcast %cst_9 : f32 to vector<24x32xf32>
    %28 = arith.mulf %26, %27 : vector<24x32xf32>
    %29 = arith.subf %10, %28 : vector<24x32xf32>
    %c0_10 = arith.constant 0 : index
    %c0_11 = arith.constant 0 : index
    %c0_12 = arith.constant 0 : index
    %30 = vector.load %arg4[%c0_10, %c0_11, %c0_12] : memref<2x24x32xf32, #tpu.memory_space<vmem>>, vector<1x24x32xf32>
    %31 = vector.shape_cast %30 : vector<1x24x32xf32> to vector<24x32xf32>
    %32 = vector.shape_cast %29 : vector<24x32xf32> to vector<1x24x32xf32>
    tpu.vector_store %arg4[%c0_10, %c0_11, %c0_12], %32 {strides = array<i32>} : memref<2x24x32xf32, #tpu.memory_space<vmem>>, vector<1x24x32xf32>,
    %c0_13 = arith.constant 0 : index
    %c0_14 = arith.constant 0 : index
    %c0_15 = arith.constant 0 : index
    %33 = vector.load %arg5[%c0_13, %c0_14, %c0_15] : memref<2x24x32xf32, #tpu.memory_space<vmem>>, vector<1x24x32xf32>
    %34 = vector.shape_cast %33 : vector<1x24x32xf32> to vector<24x32xf32>
    %35 = vector.shape_cast %28 : vector<24x32xf32> to vector<1x24x32xf32>
    tpu.vector_store %arg5[%c0_13, %c0_14, %c0_15], %35 {strides = array<i32>} : memref<2x24x32xf32, #tpu.memory_space<vmem>>, vector<1x24x32xf32>,
    %c1 = arith.constant 1 : index
    %c0_16 = arith.constant 0 : index
    %c0_17 = arith.constant 0 : index
    %36 = vector.load %arg0[%c1, %c0_16, %c0_17] : memref<2x24x32xf32, #tpu.memory_space<vmem>>, vector<1x24x32xf32>
    %37 = vector.shape_cast %36 : vector<1x24x32xf32> to vector<24x32xf32>
    %38 = arith.truncf %37 : vector<24x32xf32> to vector<24x32xbf16>
    %cst_18 = arith.constant dense<0.000000e+00> : vector<24x32xf32>
    %39 = tpu.matmul %38, %0, %cst_18 {dimension_numbers = #tpu.dot_dimension_numbers<[1], [0], [0], [1], [0, 0, 1, 1], [], []>} : vector<24x32xbf16>, vector<32x32xbf16>, vector<24x32xf32> -> vector<24x32xf32>
    %40 = vector.broadcast %1 : vector<1x32xf32> to vector<24x32xf32>
    %41 = arith.addf %39, %40 : vector<24x32xf32>
    %c1_19 = arith.constant 1 : index
    %c0_20 = arith.constant 0 : index
    %c0_21 = arith.constant 0 : index
    %42 = vector.load %arg1[%c1_19, %c0_20, %c0_21] : memref<2x24x32xf32, #tpu.memory_space<vmem>>, vector<1x24x32xf32>
    %43 = vector.shape_cast %42 : vector<1x24x32xf32> to vector<24x32xf32>
    %44 = arith.addf %43, %41 : vector<24x32xf32>
    %45 = vector.extract_strided_slice %44 {offsets = [0, 0], sizes = [1, 32], strides = [1, 1]} : vector<24x32xf32> to vector<1x32xf32>
    %46 = vector.extract_strided_slice %44 {offsets = [0, 0], sizes = [23, 32], strides = [1, 1]} : vector<24x32xf32> to vector<23x32xf32>
    %47 = tpu.concatenate %45, %46 in 0 : vector<1x32xf32>, vector<23x32xf32> -> vector<24x32xf32>
    %48 = vector.extract_strided_slice %44 {offsets = [1, 0], sizes = [23, 32], strides = [1, 1]} : vector<24x32xf32> to vector<23x32xf32>
    %49 = vector.extract_strided_slice %44 {offsets = [23, 0], sizes = [1, 32], strides = [1, 1]} : vector<24x32xf32> to vector<1x32xf32>
    %50 = tpu.concatenate %48, %49 in 0 : vector<23x32xf32>, vector<1x32xf32> -> vector<24x32xf32>
    %51 = arith.addf %44, %47 : vector<24x32xf32>
    %52 = arith.addf %51, %50 : vector<24x32xf32>
    %53 = vector.extract_strided_slice %44 {offsets = [0, 0], sizes = [1, 32], strides = [1, 1]} : vector<24x32xf32> to vector<1x32xf32>
    %54 = vector.extract_strided_slice %44 {offsets = [0, 0], sizes = [22, 32], strides = [1, 1]} : vector<24x32xf32> to vector<22x32xf32>
    %55 = tpu.concatenate %53, %53, %54 in 0 : vector<1x32xf32>, vector<1x32xf32>, vector<22x32xf32> -> vector<24x32xf32>
    %56 = vector.extract_strided_slice %44 {offsets = [2, 0], sizes = [22, 32], strides = [1, 1]} : vector<24x32xf32> to vector<22x32xf32>
    %57 = vector.extract_strided_slice %44 {offsets = [23, 0], sizes = [1, 32], strides = [1, 1]} : vector<24x32xf32> to vector<1x32xf32>
    %58 = tpu.concatenate %56, %57, %57 in 0 : vector<22x32xf32>, vector<1x32xf32>, vector<1x32xf32> -> vector<24x32xf32>
    %59 = arith.addf %52, %55 : vector<24x32xf32>
    %60 = arith.addf %59, %58 : vector<24x32xf32>
    %cst_22 = arith.constant 2.000000e-01 : f32
    %61 = vector.broadcast %cst_22 : f32 to vector<24x32xf32>
    %62 = arith.mulf %60, %61 : vector<24x32xf32>
    %63 = arith.subf %44, %62 : vector<24x32xf32>
    %c1_23 = arith.constant 1 : index
    %c0_24 = arith.constant 0 : index
    %c0_25 = arith.constant 0 : index
    %64 = vector.load %arg4[%c1_23, %c0_24, %c0_25] : memref<2x24x32xf32, #tpu.memory_space<vmem>>, vector<1x24x32xf32>
    %65 = vector.shape_cast %64 : vector<1x24x32xf32> to vector<24x32xf32>
    %66 = vector.shape_cast %63 : vector<24x32xf32> to vector<1x24x32xf32>
    tpu.vector_store %arg4[%c1_23, %c0_24, %c0_25], %66 {strides = array<i32>} : memref<2x24x32xf32, #tpu.memory_space<vmem>>, vector<1x24x32xf32>,
    %c1_26 = arith.constant 1 : index
    %c0_27 = arith.constant 0 : index
    %c0_28 = arith.constant 0 : index
    %67 = vector.load %arg5[%c1_26, %c0_27, %c0_28] : memref<2x24x32xf32, #tpu.memory_space<vmem>>, vector<1x24x32xf32>
    %68 = vector.shape_cast %67 : vector<1x24x32xf32> to vector<24x32xf32>
    %69 = vector.shape_cast %62 : vector<24x32xf32> to vector<1x24x32xf32>
    tpu.vector_store %arg5[%c1_26, %c0_27, %c0_28], %69 {strides = array<i32>} : memref<2x24x32xf32, #tpu.memory_space<vmem>>, vector<1x24x32xf32>,
    return
  }
}

module attributes {stable_mosaic.version = 11 : i64} {
  func.func @_q_kv_kernel(%arg0: memref<2x24x32xf32, #tpu.memory_space<vmem>>, %arg1: memref<2x16x32xf32, #tpu.memory_space<vmem>>, %arg2: memref<32x32xbf16, #tpu.memory_space<vmem>>, %arg3: memref<1x32xf32, #tpu.memory_space<vmem>>, %arg4: memref<32x64xbf16, #tpu.memory_space<vmem>>, %arg5: memref<1x64xf32, #tpu.memory_space<vmem>>, %arg6: memref<2x24x32xf32, #tpu.memory_space<vmem>>, %arg7: memref<2x16x64xf32, #tpu.memory_space<vmem>>) attributes {dimension_semantics = [], scalar_prefetch = 0 : i64, scratch_operands = 0 : i64, tpu.core_type = #tpu.core_type<tc>} {
    %c0 = arith.constant 0 : index
    %c0_0 = arith.constant 0 : index
    %0 = vector.load %arg2[%c0, %c0_0] : memref<32x32xbf16, #tpu.memory_space<vmem>>, vector<32x32xbf16>
    %c0_1 = arith.constant 0 : index
    %c0_2 = arith.constant 0 : index
    %1 = vector.load %arg3[%c0_1, %c0_2] : memref<1x32xf32, #tpu.memory_space<vmem>>, vector<1x32xf32>
    %c0_3 = arith.constant 0 : index
    %c0_4 = arith.constant 0 : index
    %2 = vector.load %arg4[%c0_3, %c0_4] : memref<32x64xbf16, #tpu.memory_space<vmem>>, vector<32x64xbf16>
    %c0_5 = arith.constant 0 : index
    %c0_6 = arith.constant 0 : index
    %3 = vector.load %arg5[%c0_5, %c0_6] : memref<1x64xf32, #tpu.memory_space<vmem>>, vector<1x64xf32>
    %c0_7 = arith.constant 0 : index
    %c0_8 = arith.constant 0 : index
    %c0_9 = arith.constant 0 : index
    %4 = vector.load %arg0[%c0_7, %c0_8, %c0_9] : memref<2x24x32xf32, #tpu.memory_space<vmem>>, vector<1x24x32xf32>
    %5 = vector.shape_cast %4 : vector<1x24x32xf32> to vector<24x32xf32>
    %6 = arith.truncf %5 : vector<24x32xf32> to vector<24x32xbf16>
    %cst = arith.constant dense<0.000000e+00> : vector<24x32xf32>
    %7 = tpu.matmul %6, %0, %cst {dimension_numbers = #tpu.dot_dimension_numbers<[1], [0], [0], [1], [0, 0, 1, 1], [], []>} : vector<24x32xbf16>, vector<32x32xbf16>, vector<24x32xf32> -> vector<24x32xf32>
    %8 = vector.broadcast %1 : vector<1x32xf32> to vector<24x32xf32>
    %9 = arith.addf %7, %8 : vector<24x32xf32>
    %c0_10 = arith.constant 0 : index
    %c0_11 = arith.constant 0 : index
    %c0_12 = arith.constant 0 : index
    %10 = vector.load %arg6[%c0_10, %c0_11, %c0_12] : memref<2x24x32xf32, #tpu.memory_space<vmem>>, vector<1x24x32xf32>
    %11 = vector.shape_cast %10 : vector<1x24x32xf32> to vector<24x32xf32>
    %12 = vector.shape_cast %9 : vector<24x32xf32> to vector<1x24x32xf32>
    tpu.vector_store %arg6[%c0_10, %c0_11, %c0_12], %12 {strides = array<i32>} : memref<2x24x32xf32, #tpu.memory_space<vmem>>, vector<1x24x32xf32>,
    %c0_13 = arith.constant 0 : index
    %c0_14 = arith.constant 0 : index
    %c0_15 = arith.constant 0 : index
    %13 = vector.load %arg1[%c0_13, %c0_14, %c0_15] : memref<2x16x32xf32, #tpu.memory_space<vmem>>, vector<1x16x32xf32>
    %14 = vector.shape_cast %13 : vector<1x16x32xf32> to vector<16x32xf32>
    %15 = arith.truncf %14 : vector<16x32xf32> to vector<16x32xbf16>
    %cst_16 = arith.constant dense<0.000000e+00> : vector<16x64xf32>
    %16 = tpu.matmul %15, %2, %cst_16 {dimension_numbers = #tpu.dot_dimension_numbers<[1], [0], [0], [1], [0, 0, 1, 1], [], []>} : vector<16x32xbf16>, vector<32x64xbf16>, vector<16x64xf32> -> vector<16x64xf32>
    %17 = vector.broadcast %3 : vector<1x64xf32> to vector<16x64xf32>
    %18 = arith.addf %16, %17 : vector<16x64xf32>
    %c0_17 = arith.constant 0 : index
    %c0_18 = arith.constant 0 : index
    %c0_19 = arith.constant 0 : index
    %19 = vector.load %arg7[%c0_17, %c0_18, %c0_19] : memref<2x16x64xf32, #tpu.memory_space<vmem>>, vector<1x16x64xf32>
    %20 = vector.shape_cast %19 : vector<1x16x64xf32> to vector<16x64xf32>
    %21 = vector.shape_cast %18 : vector<16x64xf32> to vector<1x16x64xf32>
    tpu.vector_store %arg7[%c0_17, %c0_18, %c0_19], %21 {strides = array<i32>} : memref<2x16x64xf32, #tpu.memory_space<vmem>>, vector<1x16x64xf32>,
    %c1 = arith.constant 1 : index
    %c0_20 = arith.constant 0 : index
    %c0_21 = arith.constant 0 : index
    %22 = vector.load %arg0[%c1, %c0_20, %c0_21] : memref<2x24x32xf32, #tpu.memory_space<vmem>>, vector<1x24x32xf32>
    %23 = vector.shape_cast %22 : vector<1x24x32xf32> to vector<24x32xf32>
    %24 = arith.truncf %23 : vector<24x32xf32> to vector<24x32xbf16>
    %cst_22 = arith.constant dense<0.000000e+00> : vector<24x32xf32>
    %25 = tpu.matmul %24, %0, %cst_22 {dimension_numbers = #tpu.dot_dimension_numbers<[1], [0], [0], [1], [0, 0, 1, 1], [], []>} : vector<24x32xbf16>, vector<32x32xbf16>, vector<24x32xf32> -> vector<24x32xf32>
    %26 = vector.broadcast %1 : vector<1x32xf32> to vector<24x32xf32>
    %27 = arith.addf %25, %26 : vector<24x32xf32>
    %c1_23 = arith.constant 1 : index
    %c0_24 = arith.constant 0 : index
    %c0_25 = arith.constant 0 : index
    %28 = vector.load %arg6[%c1_23, %c0_24, %c0_25] : memref<2x24x32xf32, #tpu.memory_space<vmem>>, vector<1x24x32xf32>
    %29 = vector.shape_cast %28 : vector<1x24x32xf32> to vector<24x32xf32>
    %30 = vector.shape_cast %27 : vector<24x32xf32> to vector<1x24x32xf32>
    tpu.vector_store %arg6[%c1_23, %c0_24, %c0_25], %30 {strides = array<i32>} : memref<2x24x32xf32, #tpu.memory_space<vmem>>, vector<1x24x32xf32>,
    %c1_26 = arith.constant 1 : index
    %c0_27 = arith.constant 0 : index
    %c0_28 = arith.constant 0 : index
    %31 = vector.load %arg1[%c1_26, %c0_27, %c0_28] : memref<2x16x32xf32, #tpu.memory_space<vmem>>, vector<1x16x32xf32>
    %32 = vector.shape_cast %31 : vector<1x16x32xf32> to vector<16x32xf32>
    %33 = arith.truncf %32 : vector<16x32xf32> to vector<16x32xbf16>
    %cst_29 = arith.constant dense<0.000000e+00> : vector<16x64xf32>
    %34 = tpu.matmul %33, %2, %cst_29 {dimension_numbers = #tpu.dot_dimension_numbers<[1], [0], [0], [1], [0, 0, 1, 1], [], []>} : vector<16x32xbf16>, vector<32x64xbf16>, vector<16x64xf32> -> vector<16x64xf32>
    %35 = vector.broadcast %3 : vector<1x64xf32> to vector<16x64xf32>
    %36 = arith.addf %34, %35 : vector<16x64xf32>
    %c1_30 = arith.constant 1 : index
    %c0_31 = arith.constant 0 : index
    %c0_32 = arith.constant 0 : index
    %37 = vector.load %arg7[%c1_30, %c0_31, %c0_32] : memref<2x16x64xf32, #tpu.memory_space<vmem>>, vector<1x16x64xf32>
    %38 = vector.shape_cast %37 : vector<1x16x64xf32> to vector<16x64xf32>
    %39 = vector.shape_cast %36 : vector<16x64xf32> to vector<1x16x64xf32>
    tpu.vector_store %arg7[%c1_30, %c0_31, %c0_32], %39 {strides = array<i32>} : memref<2x16x64xf32, #tpu.memory_space<vmem>>, vector<1x16x64xf32>,
    return
  }
}

module attributes {stable_mosaic.version = 11 : i64} {
  func.func @_ffn_decomp_kernel(%arg0: memref<2x24x32xf32, #tpu.memory_space<vmem>>, %arg1: memref<32x64xbf16, #tpu.memory_space<vmem>>, %arg2: memref<64x32xbf16, #tpu.memory_space<vmem>>, %arg3: memref<2x24x32xf32, #tpu.memory_space<vmem>>, %arg4: memref<2x24x32xf32, #tpu.memory_space<vmem>>) attributes {dimension_semantics = [], scalar_prefetch = 0 : i64, scratch_operands = 0 : i64, tpu.core_type = #tpu.core_type<tc>} {
    %c0 = arith.constant 0 : index
    %c0_0 = arith.constant 0 : index
    %0 = vector.load %arg1[%c0, %c0_0] : memref<32x64xbf16, #tpu.memory_space<vmem>>, vector<32x64xbf16>
    %c0_1 = arith.constant 0 : index
    %c0_2 = arith.constant 0 : index
    %1 = vector.load %arg2[%c0_1, %c0_2] : memref<64x32xbf16, #tpu.memory_space<vmem>>, vector<64x32xbf16>
    %c0_3 = arith.constant 0 : index
    %c0_4 = arith.constant 0 : index
    %c0_5 = arith.constant 0 : index
    %2 = vector.load %arg0[%c0_3, %c0_4, %c0_5] : memref<2x24x32xf32, #tpu.memory_space<vmem>>, vector<1x24x32xf32>
    %3 = vector.shape_cast %2 : vector<1x24x32xf32> to vector<24x32xf32>
    %4 = arith.truncf %3 : vector<24x32xf32> to vector<24x32xbf16>
    %cst = arith.constant dense<0.000000e+00> : vector<24x64xf32>
    %5 = tpu.matmul %4, %0, %cst {dimension_numbers = #tpu.dot_dimension_numbers<[1], [0], [0], [1], [0, 0, 1, 1], [], []>} : vector<24x32xbf16>, vector<32x64xbf16>, vector<24x64xf32> -> vector<24x64xf32>
    %cst_6 = arith.constant 0.000000e+00 : f32
    %6 = vector.broadcast %cst_6 : f32 to vector<24x64xf32>
    %7 = arith.maximumf %5, %6 : vector<24x64xf32>
    %8 = arith.truncf %7 : vector<24x64xf32> to vector<24x64xbf16>
    %cst_7 = arith.constant dense<0.000000e+00> : vector<24x32xf32>
    %9 = tpu.matmul %8, %1, %cst_7 {dimension_numbers = #tpu.dot_dimension_numbers<[1], [0], [0], [1], [0, 0, 1, 1], [], []>} : vector<24x64xbf16>, vector<64x32xbf16>, vector<24x32xf32> -> vector<24x32xf32>
    %10 = arith.addf %3, %9 : vector<24x32xf32>
    %11 = vector.extract_strided_slice %10 {offsets = [0, 0], sizes = [1, 32], strides = [1, 1]} : vector<24x32xf32> to vector<1x32xf32>
    %12 = vector.extract_strided_slice %10 {offsets = [0, 0], sizes = [23, 32], strides = [1, 1]} : vector<24x32xf32> to vector<23x32xf32>
    %13 = tpu.concatenate %11, %12 in 0 : vector<1x32xf32>, vector<23x32xf32> -> vector<24x32xf32>
    %14 = vector.extract_strided_slice %10 {offsets = [1, 0], sizes = [23, 32], strides = [1, 1]} : vector<24x32xf32> to vector<23x32xf32>
    %15 = vector.extract_strided_slice %10 {offsets = [23, 0], sizes = [1, 32], strides = [1, 1]} : vector<24x32xf32> to vector<1x32xf32>
    %16 = tpu.concatenate %14, %15 in 0 : vector<23x32xf32>, vector<1x32xf32> -> vector<24x32xf32>
    %17 = arith.addf %10, %13 : vector<24x32xf32>
    %18 = arith.addf %17, %16 : vector<24x32xf32>
    %19 = vector.extract_strided_slice %10 {offsets = [0, 0], sizes = [1, 32], strides = [1, 1]} : vector<24x32xf32> to vector<1x32xf32>
    %20 = vector.extract_strided_slice %10 {offsets = [0, 0], sizes = [22, 32], strides = [1, 1]} : vector<24x32xf32> to vector<22x32xf32>
    %21 = tpu.concatenate %19, %19, %20 in 0 : vector<1x32xf32>, vector<1x32xf32>, vector<22x32xf32> -> vector<24x32xf32>
    %22 = vector.extract_strided_slice %10 {offsets = [2, 0], sizes = [22, 32], strides = [1, 1]} : vector<24x32xf32> to vector<22x32xf32>
    %23 = vector.extract_strided_slice %10 {offsets = [23, 0], sizes = [1, 32], strides = [1, 1]} : vector<24x32xf32> to vector<1x32xf32>
    %24 = tpu.concatenate %22, %23, %23 in 0 : vector<22x32xf32>, vector<1x32xf32>, vector<1x32xf32> -> vector<24x32xf32>
    %25 = arith.addf %18, %21 : vector<24x32xf32>
    %26 = arith.addf %25, %24 : vector<24x32xf32>
    %cst_8 = arith.constant 2.000000e-01 : f32
    %27 = vector.broadcast %cst_8 : f32 to vector<24x32xf32>
    %28 = arith.mulf %26, %27 : vector<24x32xf32>
    %29 = arith.subf %10, %28 : vector<24x32xf32>
    %c0_9 = arith.constant 0 : index
    %c0_10 = arith.constant 0 : index
    %c0_11 = arith.constant 0 : index
    %30 = vector.load %arg3[%c0_9, %c0_10, %c0_11] : memref<2x24x32xf32, #tpu.memory_space<vmem>>, vector<1x24x32xf32>
    %31 = vector.shape_cast %30 : vector<1x24x32xf32> to vector<24x32xf32>
    %32 = vector.shape_cast %29 : vector<24x32xf32> to vector<1x24x32xf32>
    tpu.vector_store %arg3[%c0_9, %c0_10, %c0_11], %32 {strides = array<i32>} : memref<2x24x32xf32, #tpu.memory_space<vmem>>, vector<1x24x32xf32>,
    %c0_12 = arith.constant 0 : index
    %c0_13 = arith.constant 0 : index
    %c0_14 = arith.constant 0 : index
    %33 = vector.load %arg4[%c0_12, %c0_13, %c0_14] : memref<2x24x32xf32, #tpu.memory_space<vmem>>, vector<1x24x32xf32>
    %34 = vector.shape_cast %33 : vector<1x24x32xf32> to vector<24x32xf32>
    %35 = vector.shape_cast %28 : vector<24x32xf32> to vector<1x24x32xf32>
    tpu.vector_store %arg4[%c0_12, %c0_13, %c0_14], %35 {strides = array<i32>} : memref<2x24x32xf32, #tpu.memory_space<vmem>>, vector<1x24x32xf32>,
    %c1 = arith.constant 1 : index
    %c0_15 = arith.constant 0 : index
    %c0_16 = arith.constant 0 : index
    %36 = vector.load %arg0[%c1, %c0_15, %c0_16] : memref<2x24x32xf32, #tpu.memory_space<vmem>>, vector<1x24x32xf32>
    %37 = vector.shape_cast %36 : vector<1x24x32xf32> to vector<24x32xf32>
    %38 = arith.truncf %37 : vector<24x32xf32> to vector<24x32xbf16>
    %cst_17 = arith.constant dense<0.000000e+00> : vector<24x64xf32>
    %39 = tpu.matmul %38, %0, %cst_17 {dimension_numbers = #tpu.dot_dimension_numbers<[1], [0], [0], [1], [0, 0, 1, 1], [], []>} : vector<24x32xbf16>, vector<32x64xbf16>, vector<24x64xf32> -> vector<24x64xf32>
    %cst_18 = arith.constant 0.000000e+00 : f32
    %40 = vector.broadcast %cst_18 : f32 to vector<24x64xf32>
    %41 = arith.maximumf %39, %40 : vector<24x64xf32>
    %42 = arith.truncf %41 : vector<24x64xf32> to vector<24x64xbf16>
    %cst_19 = arith.constant dense<0.000000e+00> : vector<24x32xf32>
    %43 = tpu.matmul %42, %1, %cst_19 {dimension_numbers = #tpu.dot_dimension_numbers<[1], [0], [0], [1], [0, 0, 1, 1], [], []>} : vector<24x64xbf16>, vector<64x32xbf16>, vector<24x32xf32> -> vector<24x32xf32>
    %44 = arith.addf %37, %43 : vector<24x32xf32>
    %45 = vector.extract_strided_slice %44 {offsets = [0, 0], sizes = [1, 32], strides = [1, 1]} : vector<24x32xf32> to vector<1x32xf32>
    %46 = vector.extract_strided_slice %44 {offsets = [0, 0], sizes = [23, 32], strides = [1, 1]} : vector<24x32xf32> to vector<23x32xf32>
    %47 = tpu.concatenate %45, %46 in 0 : vector<1x32xf32>, vector<23x32xf32> -> vector<24x32xf32>
    %48 = vector.extract_strided_slice %44 {offsets = [1, 0], sizes = [23, 32], strides = [1, 1]} : vector<24x32xf32> to vector<23x32xf32>
    %49 = vector.extract_strided_slice %44 {offsets = [23, 0], sizes = [1, 32], strides = [1, 1]} : vector<24x32xf32> to vector<1x32xf32>
    %50 = tpu.concatenate %48, %49 in 0 : vector<23x32xf32>, vector<1x32xf32> -> vector<24x32xf32>
    %51 = arith.addf %44, %47 : vector<24x32xf32>
    %52 = arith.addf %51, %50 : vector<24x32xf32>
    %53 = vector.extract_strided_slice %44 {offsets = [0, 0], sizes = [1, 32], strides = [1, 1]} : vector<24x32xf32> to vector<1x32xf32>
    %54 = vector.extract_strided_slice %44 {offsets = [0, 0], sizes = [22, 32], strides = [1, 1]} : vector<24x32xf32> to vector<22x32xf32>
    %55 = tpu.concatenate %53, %53, %54 in 0 : vector<1x32xf32>, vector<1x32xf32>, vector<22x32xf32> -> vector<24x32xf32>
    %56 = vector.extract_strided_slice %44 {offsets = [2, 0], sizes = [22, 32], strides = [1, 1]} : vector<24x32xf32> to vector<22x32xf32>
    %57 = vector.extract_strided_slice %44 {offsets = [23, 0], sizes = [1, 32], strides = [1, 1]} : vector<24x32xf32> to vector<1x32xf32>
    %58 = tpu.concatenate %56, %57, %57 in 0 : vector<22x32xf32>, vector<1x32xf32>, vector<1x32xf32> -> vector<24x32xf32>
    %59 = arith.addf %52, %55 : vector<24x32xf32>
    %60 = arith.addf %59, %58 : vector<24x32xf32>
    %cst_20 = arith.constant 2.000000e-01 : f32
    %61 = vector.broadcast %cst_20 : f32 to vector<24x32xf32>
    %62 = arith.mulf %60, %61 : vector<24x32xf32>
    %63 = arith.subf %44, %62 : vector<24x32xf32>
    %c1_21 = arith.constant 1 : index
    %c0_22 = arith.constant 0 : index
    %c0_23 = arith.constant 0 : index
    %64 = vector.load %arg3[%c1_21, %c0_22, %c0_23] : memref<2x24x32xf32, #tpu.memory_space<vmem>>, vector<1x24x32xf32>
    %65 = vector.shape_cast %64 : vector<1x24x32xf32> to vector<24x32xf32>
    %66 = vector.shape_cast %63 : vector<24x32xf32> to vector<1x24x32xf32>
    tpu.vector_store %arg3[%c1_21, %c0_22, %c0_23], %66 {strides = array<i32>} : memref<2x24x32xf32, #tpu.memory_space<vmem>>, vector<1x24x32xf32>,
    %c1_24 = arith.constant 1 : index
    %c0_25 = arith.constant 0 : index
    %c0_26 = arith.constant 0 : index
    %67 = vector.load %arg4[%c1_24, %c0_25, %c0_26] : memref<2x24x32xf32, #tpu.memory_space<vmem>>, vector<1x24x32xf32>
    %68 = vector.shape_cast %67 : vector<1x24x32xf32> to vector<24x32xf32>
    %69 = vector.shape_cast %62 : vector<24x32xf32> to vector<1x24x32xf32>
    tpu.vector_store %arg4[%c1_24, %c0_25, %c0_26], %69 {strides = array<i32>} : memref<2x24x32xf32, #tpu.memory_space<vmem>>, vector<1x24x32xf32>,
    return
  }
}

module attributes {stable_mosaic.version = 11 : i64} {
  func.func @_trend_proj_kernel(%arg0: memref<2x24x32xf32, #tpu.memory_space<vmem>>, %arg1: memref<2x24x32xf32, #tpu.memory_space<vmem>>, %arg2: memref<2x24x32xf32, #tpu.memory_space<vmem>>, %arg3: memref<32x4xbf16, #tpu.memory_space<vmem>>, %arg4: memref<32x4xbf16, #tpu.memory_space<vmem>>, %arg5: memref<32x4xbf16, #tpu.memory_space<vmem>>, %arg6: memref<2x24x4xf32, #tpu.memory_space<vmem>>) attributes {dimension_semantics = [], scalar_prefetch = 0 : i64, scratch_operands = 0 : i64, tpu.core_type = #tpu.core_type<tc>} {
    %c0 = arith.constant 0 : index
    %c0_0 = arith.constant 0 : index
    %0 = vector.load %arg3[%c0, %c0_0] : memref<32x4xbf16, #tpu.memory_space<vmem>>, vector<32x4xbf16>
    %c0_1 = arith.constant 0 : index
    %c0_2 = arith.constant 0 : index
    %1 = vector.load %arg4[%c0_1, %c0_2] : memref<32x4xbf16, #tpu.memory_space<vmem>>, vector<32x4xbf16>
    %c0_3 = arith.constant 0 : index
    %c0_4 = arith.constant 0 : index
    %2 = vector.load %arg5[%c0_3, %c0_4] : memref<32x4xbf16, #tpu.memory_space<vmem>>, vector<32x4xbf16>
    %c0_5 = arith.constant 0 : index
    %c0_6 = arith.constant 0 : index
    %c0_7 = arith.constant 0 : index
    %3 = vector.load %arg0[%c0_5, %c0_6, %c0_7] : memref<2x24x32xf32, #tpu.memory_space<vmem>>, vector<1x24x32xf32>
    %4 = vector.shape_cast %3 : vector<1x24x32xf32> to vector<24x32xf32>
    %c0_8 = arith.constant 0 : index
    %c0_9 = arith.constant 0 : index
    %c0_10 = arith.constant 0 : index
    %5 = vector.load %arg1[%c0_8, %c0_9, %c0_10] : memref<2x24x32xf32, #tpu.memory_space<vmem>>, vector<1x24x32xf32>
    %6 = vector.shape_cast %5 : vector<1x24x32xf32> to vector<24x32xf32>
    %7 = arith.addf %4, %6 : vector<24x32xf32>
    %c0_11 = arith.constant 0 : index
    %c0_12 = arith.constant 0 : index
    %c0_13 = arith.constant 0 : index
    %8 = vector.load %arg2[%c0_11, %c0_12, %c0_13] : memref<2x24x32xf32, #tpu.memory_space<vmem>>, vector<1x24x32xf32>
    %9 = vector.shape_cast %8 : vector<1x24x32xf32> to vector<24x32xf32>
    %10 = arith.addf %7, %9 : vector<24x32xf32>
    %11 = vector.extract_strided_slice %10 {offsets = [23, 0], sizes = [1, 32], strides = [1, 1]} : vector<24x32xf32> to vector<1x32xf32>
    %12 = vector.extract_strided_slice %10 {offsets = [0, 0], sizes = [23, 32], strides = [1, 1]} : vector<24x32xf32> to vector<23x32xf32>
    %13 = tpu.concatenate %11, %12 in 0 : vector<1x32xf32>, vector<23x32xf32> -> vector<24x32xf32>
    %14 = arith.truncf %13 : vector<24x32xf32> to vector<24x32xbf16>
    %cst = arith.constant dense<0.000000e+00> : vector<24x4xf32>
    %15 = tpu.matmul %14, %0, %cst {dimension_numbers = #tpu.dot_dimension_numbers<[1], [0], [0], [1], [0, 0, 1, 1], [], []>} : vector<24x32xbf16>, vector<32x4xbf16>, vector<24x4xf32> -> vector<24x4xf32>
    %16 = arith.truncf %10 : vector<24x32xf32> to vector<24x32xbf16>
    %cst_14 = arith.constant dense<0.000000e+00> : vector<24x4xf32>
    %17 = tpu.matmul %16, %1, %cst_14 {dimension_numbers = #tpu.dot_dimension_numbers<[1], [0], [0], [1], [0, 0, 1, 1], [], []>} : vector<24x32xbf16>, vector<32x4xbf16>, vector<24x4xf32> -> vector<24x4xf32>
    %18 = arith.addf %15, %17 : vector<24x4xf32>
    %19 = vector.extract_strided_slice %10 {offsets = [1, 0], sizes = [23, 32], strides = [1, 1]} : vector<24x32xf32> to vector<23x32xf32>
    %20 = vector.extract_strided_slice %10 {offsets = [0, 0], sizes = [1, 32], strides = [1, 1]} : vector<24x32xf32> to vector<1x32xf32>
    %21 = tpu.concatenate %19, %20 in 0 : vector<23x32xf32>, vector<1x32xf32> -> vector<24x32xf32>
    %22 = arith.truncf %21 : vector<24x32xf32> to vector<24x32xbf16>
    %cst_15 = arith.constant dense<0.000000e+00> : vector<24x4xf32>
    %23 = tpu.matmul %22, %2, %cst_15 {dimension_numbers = #tpu.dot_dimension_numbers<[1], [0], [0], [1], [0, 0, 1, 1], [], []>} : vector<24x32xbf16>, vector<32x4xbf16>, vector<24x4xf32> -> vector<24x4xf32>
    %24 = arith.addf %18, %23 : vector<24x4xf32>
    %c0_16 = arith.constant 0 : index
    %c0_17 = arith.constant 0 : index
    %c0_18 = arith.constant 0 : index
    %25 = vector.load %arg6[%c0_16, %c0_17, %c0_18] : memref<2x24x4xf32, #tpu.memory_space<vmem>>, vector<1x24x4xf32>
    %26 = vector.shape_cast %25 : vector<1x24x4xf32> to vector<24x4xf32>
    %27 = vector.shape_cast %24 : vector<24x4xf32> to vector<1x24x4xf32>
    tpu.vector_store %arg6[%c0_16, %c0_17, %c0_18], %27 {strides = array<i32>} : memref<2x24x4xf32, #tpu.memory_space<vmem>>, vector<1x24x4xf32>,
    %c1 = arith.constant 1 : index
    %c0_19 = arith.constant 0 : index
    %c0_20 = arith.constant 0 : index
    %28 = vector.load %arg0[%c1, %c0_19, %c0_20] : memref<2x24x32xf32, #tpu.memory_space<vmem>>, vector<1x24x32xf32>
    %29 = vector.shape_cast %28 : vector<1x24x32xf32> to vector<24x32xf32>
    %c1_21 = arith.constant 1 : index
    %c0_22 = arith.constant 0 : index
    %c0_23 = arith.constant 0 : index
    %30 = vector.load %arg1[%c1_21, %c0_22, %c0_23] : memref<2x24x32xf32, #tpu.memory_space<vmem>>, vector<1x24x32xf32>
    %31 = vector.shape_cast %30 : vector<1x24x32xf32> to vector<24x32xf32>
    %32 = arith.addf %29, %31 : vector<24x32xf32>
    %c1_24 = arith.constant 1 : index
    %c0_25 = arith.constant 0 : index
    %c0_26 = arith.constant 0 : index
    %33 = vector.load %arg2[%c1_24, %c0_25, %c0_26] : memref<2x24x32xf32, #tpu.memory_space<vmem>>, vector<1x24x32xf32>
    %34 = vector.shape_cast %33 : vector<1x24x32xf32> to vector<24x32xf32>
    %35 = arith.addf %32, %34 : vector<24x32xf32>
    %36 = vector.extract_strided_slice %35 {offsets = [23, 0], sizes = [1, 32], strides = [1, 1]} : vector<24x32xf32> to vector<1x32xf32>
    %37 = vector.extract_strided_slice %35 {offsets = [0, 0], sizes = [23, 32], strides = [1, 1]} : vector<24x32xf32> to vector<23x32xf32>
    %38 = tpu.concatenate %36, %37 in 0 : vector<1x32xf32>, vector<23x32xf32> -> vector<24x32xf32>
    %39 = arith.truncf %38 : vector<24x32xf32> to vector<24x32xbf16>
    %cst_27 = arith.constant dense<0.000000e+00> : vector<24x4xf32>
    %40 = tpu.matmul %39, %0, %cst_27 {dimension_numbers = #tpu.dot_dimension_numbers<[1], [0], [0], [1], [0, 0, 1, 1], [], []>} : vector<24x32xbf16>, vector<32x4xbf16>, vector<24x4xf32> -> vector<24x4xf32>
    %41 = arith.truncf %35 : vector<24x32xf32> to vector<24x32xbf16>
    %cst_28 = arith.constant dense<0.000000e+00> : vector<24x4xf32>
    %42 = tpu.matmul %41, %1, %cst_28 {dimension_numbers = #tpu.dot_dimension_numbers<[1], [0], [0], [1], [0, 0, 1, 1], [], []>} : vector<24x32xbf16>, vector<32x4xbf16>, vector<24x4xf32> -> vector<24x4xf32>
    %43 = arith.addf %40, %42 : vector<24x4xf32>
    %44 = vector.extract_strided_slice %35 {offsets = [1, 0], sizes = [23, 32], strides = [1, 1]} : vector<24x32xf32> to vector<23x32xf32>
    %45 = vector.extract_strided_slice %35 {offsets = [0, 0], sizes = [1, 32], strides = [1, 1]} : vector<24x32xf32> to vector<1x32xf32>
    %46 = tpu.concatenate %44, %45 in 0 : vector<23x32xf32>, vector<1x32xf32> -> vector<24x32xf32>
    %47 = arith.truncf %46 : vector<24x32xf32> to vector<24x32xbf16>
    %cst_29 = arith.constant dense<0.000000e+00> : vector<24x4xf32>
    %48 = tpu.matmul %47, %2, %cst_29 {dimension_numbers = #tpu.dot_dimension_numbers<[1], [0], [0], [1], [0, 0, 1, 1], [], []>} : vector<24x32xbf16>, vector<32x4xbf16>, vector<24x4xf32> -> vector<24x4xf32>
    %49 = arith.addf %43, %48 : vector<24x4xf32>
    %c1_30 = arith.constant 1 : index
    %c0_31 = arith.constant 0 : index
    %c0_32 = arith.constant 0 : index
    %50 = vector.load %arg6[%c1_30, %c0_31, %c0_32] : memref<2x24x4xf32, #tpu.memory_space<vmem>>, vector<1x24x4xf32>
    %51 = vector.shape_cast %50 : vector<1x24x4xf32> to vector<24x4xf32>
    %52 = vector.shape_cast %49 : vector<24x4xf32> to vector<1x24x4xf32>
    tpu.vector_store %arg6[%c1_30, %c0_31, %c0_32], %52 {strides = array<i32>} : memref<2x24x4xf32, #tpu.memory_space<vmem>>, vector<1x24x4xf32>,
    return
  }
}

module attributes {stable_mosaic.version = 11 : i64} {
  func.func @_mynorm_proj_kernel(%arg0: memref<2x24x32xf32, #tpu.memory_space<vmem>>, %arg1: memref<1x32xf32, #tpu.memory_space<vmem>>, %arg2: memref<1x32xf32, #tpu.memory_space<vmem>>, %arg3: memref<32x4xbf16, #tpu.memory_space<vmem>>, %arg4: memref<2x24x4xf32, #tpu.memory_space<vmem>>) attributes {dimension_semantics = [], scalar_prefetch = 0 : i64, scratch_operands = 0 : i64, tpu.core_type = #tpu.core_type<tc>} {
    %c0 = arith.constant 0 : index
    %c0_0 = arith.constant 0 : index
    %0 = vector.load %arg1[%c0, %c0_0] : memref<1x32xf32, #tpu.memory_space<vmem>>, vector<1x32xf32>
    %c0_1 = arith.constant 0 : index
    %c0_2 = arith.constant 0 : index
    %1 = vector.load %arg2[%c0_1, %c0_2] : memref<1x32xf32, #tpu.memory_space<vmem>>, vector<1x32xf32>
    %c0_3 = arith.constant 0 : index
    %c0_4 = arith.constant 0 : index
    %2 = vector.load %arg3[%c0_3, %c0_4] : memref<32x4xbf16, #tpu.memory_space<vmem>>, vector<32x4xbf16>
    %c0_5 = arith.constant 0 : index
    %c0_6 = arith.constant 0 : index
    %c0_7 = arith.constant 0 : index
    %3 = vector.load %arg0[%c0_5, %c0_6, %c0_7] : memref<2x24x32xf32, #tpu.memory_space<vmem>>, vector<1x24x32xf32>
    %4 = vector.shape_cast %3 : vector<1x24x32xf32> to vector<24x32xf32>
    %cst = arith.constant dense<0.000000e+00> : vector<24xf32>
    %5 = vector.multi_reduction <add>, %4, %cst [1] : vector<24x32xf32> to vector<24xf32>
    %6 = vector.shape_cast %5 : vector<24xf32> to vector<24x1xf32>
    %cst_8 = arith.constant 3.200000e+01 : f32
    %7 = vector.broadcast %cst_8 : f32 to vector<24x1xf32>
    %8 = arith.divf %6, %7 : vector<24x1xf32>
    %9 = vector.broadcast %8 : vector<24x1xf32> to vector<24x32xf32>
    %10 = arith.subf %4, %9 : vector<24x32xf32>
    %11 = arith.mulf %10, %10 : vector<24x32xf32>
    %cst_9 = arith.constant dense<0.000000e+00> : vector<24xf32>
    %12 = vector.multi_reduction <add>, %11, %cst_9 [1] : vector<24x32xf32> to vector<24xf32>
    %13 = vector.shape_cast %12 : vector<24xf32> to vector<24x1xf32>
    %cst_10 = arith.constant 3.200000e+01 : f32
    %14 = vector.broadcast %cst_10 : f32 to vector<24x1xf32>
    %15 = arith.divf %13, %14 : vector<24x1xf32>
    %16 = vector.broadcast %8 : vector<24x1xf32> to vector<24x32xf32>
    %17 = arith.subf %4, %16 : vector<24x32xf32>
    %cst_11 = arith.constant 9.99999974E-6 : f32
    %18 = vector.broadcast %cst_11 : f32 to vector<24x1xf32>
    %19 = arith.addf %15, %18 : vector<24x1xf32>
    %20 = math.rsqrt %19 : vector<24x1xf32>
    %21 = vector.broadcast %20 : vector<24x1xf32> to vector<24x32xf32>
    %22 = arith.mulf %17, %21 : vector<24x32xf32>
    %23 = vector.broadcast %0 : vector<1x32xf32> to vector<24x32xf32>
    %24 = arith.mulf %22, %23 : vector<24x32xf32>
    %25 = vector.broadcast %1 : vector<1x32xf32> to vector<24x32xf32>
    %26 = arith.addf %24, %25 : vector<24x32xf32>
    %cst_12 = arith.constant dense<0.000000e+00> : vector<32xf32>
    %27 = vector.multi_reduction <add>, %26, %cst_12 [0] : vector<24x32xf32> to vector<32xf32>
    %28 = vector.shape_cast %27 : vector<32xf32> to vector<1x32xf32>
    %cst_13 = arith.constant 2.400000e+01 : f32
    %29 = vector.broadcast %cst_13 : f32 to vector<1x32xf32>
    %30 = arith.divf %28, %29 : vector<1x32xf32>
    %31 = vector.broadcast %30 : vector<1x32xf32> to vector<24x32xf32>
    %32 = arith.subf %26, %31 : vector<24x32xf32>
    %33 = arith.truncf %32 : vector<24x32xf32> to vector<24x32xbf16>
    %cst_14 = arith.constant dense<0.000000e+00> : vector<24x4xf32>
    %34 = tpu.matmul %33, %2, %cst_14 {dimension_numbers = #tpu.dot_dimension_numbers<[1], [0], [0], [1], [0, 0, 1, 1], [], []>} : vector<24x32xbf16>, vector<32x4xbf16>, vector<24x4xf32> -> vector<24x4xf32>
    %c0_15 = arith.constant 0 : index
    %c0_16 = arith.constant 0 : index
    %c0_17 = arith.constant 0 : index
    %35 = vector.load %arg4[%c0_15, %c0_16, %c0_17] : memref<2x24x4xf32, #tpu.memory_space<vmem>>, vector<1x24x4xf32>
    %36 = vector.shape_cast %35 : vector<1x24x4xf32> to vector<24x4xf32>
    %37 = vector.shape_cast %34 : vector<24x4xf32> to vector<1x24x4xf32>
    tpu.vector_store %arg4[%c0_15, %c0_16, %c0_17], %37 {strides = array<i32>} : memref<2x24x4xf32, #tpu.memory_space<vmem>>, vector<1x24x4xf32>,
    %c1 = arith.constant 1 : index
    %c0_18 = arith.constant 0 : index
    %c0_19 = arith.constant 0 : index
    %38 = vector.load %arg0[%c1, %c0_18, %c0_19] : memref<2x24x32xf32, #tpu.memory_space<vmem>>, vector<1x24x32xf32>
    %39 = vector.shape_cast %38 : vector<1x24x32xf32> to vector<24x32xf32>
    %cst_20 = arith.constant dense<0.000000e+00> : vector<24xf32>
    %40 = vector.multi_reduction <add>, %39, %cst_20 [1] : vector<24x32xf32> to vector<24xf32>
    %41 = vector.shape_cast %40 : vector<24xf32> to vector<24x1xf32>
    %cst_21 = arith.constant 3.200000e+01 : f32
    %42 = vector.broadcast %cst_21 : f32 to vector<24x1xf32>
    %43 = arith.divf %41, %42 : vector<24x1xf32>
    %44 = vector.broadcast %43 : vector<24x1xf32> to vector<24x32xf32>
    %45 = arith.subf %39, %44 : vector<24x32xf32>
    %46 = arith.mulf %45, %45 : vector<24x32xf32>
    %cst_22 = arith.constant dense<0.000000e+00> : vector<24xf32>
    %47 = vector.multi_reduction <add>, %46, %cst_22 [1] : vector<24x32xf32> to vector<24xf32>
    %48 = vector.shape_cast %47 : vector<24xf32> to vector<24x1xf32>
    %cst_23 = arith.constant 3.200000e+01 : f32
    %49 = vector.broadcast %cst_23 : f32 to vector<24x1xf32>
    %50 = arith.divf %48, %49 : vector<24x1xf32>
    %51 = vector.broadcast %43 : vector<24x1xf32> to vector<24x32xf32>
    %52 = arith.subf %39, %51 : vector<24x32xf32>
    %cst_24 = arith.constant 9.99999974E-6 : f32
    %53 = vector.broadcast %cst_24 : f32 to vector<24x1xf32>
    %54 = arith.addf %50, %53 : vector<24x1xf32>
    %55 = math.rsqrt %54 : vector<24x1xf32>
    %56 = vector.broadcast %55 : vector<24x1xf32> to vector<24x32xf32>
    %57 = arith.mulf %52, %56 : vector<24x32xf32>
    %58 = vector.broadcast %0 : vector<1x32xf32> to vector<24x32xf32>
    %59 = arith.mulf %57, %58 : vector<24x32xf32>
    %60 = vector.broadcast %1 : vector<1x32xf32> to vector<24x32xf32>
    %61 = arith.addf %59, %60 : vector<24x32xf32>
    %cst_25 = arith.constant dense<0.000000e+00> : vector<32xf32>
    %62 = vector.multi_reduction <add>, %61, %cst_25 [0] : vector<24x32xf32> to vector<32xf32>
    %63 = vector.shape_cast %62 : vector<32xf32> to vector<1x32xf32>
    %cst_26 = arith.constant 2.400000e+01 : f32
    %64 = vector.broadcast %cst_26 : f32 to vector<1x32xf32>
    %65 = arith.divf %63, %64 : vector<1x32xf32>
    %66 = vector.broadcast %65 : vector<1x32xf32> to vector<24x32xf32>
    %67 = arith.subf %61, %66 : vector<24x32xf32>
    %68 = arith.truncf %67 : vector<24x32xf32> to vector<24x32xbf16>
    %cst_27 = arith.constant dense<0.000000e+00> : vector<24x4xf32>
    %69 = tpu.matmul %68, %2, %cst_27 {dimension_numbers = #tpu.dot_dimension_numbers<[1], [0], [0], [1], [0, 0, 1, 1], [], []>} : vector<24x32xbf16>, vector<32x4xbf16>, vector<24x4xf32> -> vector<24x4xf32>
    %c1_28 = arith.constant 1 : index
    %c0_29 = arith.constant 0 : index
    %c0_30 = arith.constant 0 : index
    %70 = vector.load %arg4[%c1_28, %c0_29, %c0_30] : memref<2x24x4xf32, #tpu.memory_space<vmem>>, vector<1x24x4xf32>
    %71 = vector.shape_cast %70 : vector<1x24x4xf32> to vector<24x4xf32>
    %72 = vector.shape_cast %69 : vector<24x4xf32> to vector<1x24x4xf32>
    tpu.vector_store %arg4[%c1_28, %c0_29, %c0_30], %72 {strides = array<i32>} : memref<2x24x4xf32, #tpu.memory_space<vmem>>, vector<1x24x4xf32>,
    return
  }
}

</mosaic_0001>

<llo_original>
// kernel: model_forward.29
$region0: #{model_forward.29}
  #allocation0 [shape = 'u32[]', space=smem, size = 0x4, offset = 0x4, fixed_abs, tag = 'smem constant byte address 0x4 - core index']
  #allocation1 [shape = 'u32[144,128]{1,0:T(1,128)}', space=vmem, size = 0x12000, scoped, tag = 'internal scratch']
  %s0 = inlined_call_operand.vmem [shape: f32[2,16,32], index: 0, kind: input, shape index: {}]
  %s1 = inlined_call_operand.vmem [shape: bf16[32,96], index: 1, kind: input, shape index: {}]
  %s2 = inlined_call_operand.vmem [shape: f32[1,96], index: 2, kind: input, shape index: {}]
  %s3 = inlined_call_operand.vmem [shape: f32[2,16,96], index: 3, kind: output, shape index: {}]
  %s4 = sld [smem:[#allocation0]]
  $region22: #{model_forward.29} parent=0
    _
  %s6 = ssub.s32 1, %s4
  %s7 = scalar_select 0, %s6, %s4
  // Predicated region
  $region2: #{model_forward.29} parent=0 // pred_check
    _
  $region3: #{model_forward.29} parent=0 // pred_check_branch
    %9 = sbr.rel (0) target = $region5
  $region4: #{model_forward.29} parent=0 // pred_region
    _
  $region5: #{model_forward.29} parent=0 // pred_fallthru
    _
  // Predicated region
  $region6: #{model_forward.29} parent=0 // pred_check
    _
  $region7: #{model_forward.29} parent=0 // pred_check_branch
    %11 = sbr.rel (0) target = $region9
  $region8: #{model_forward.29} parent=0 // pred_region
    _
  $region9: #{model_forward.29} parent=0 // pred_fallthru
    _
  // Predicated region
  $region10: #{model_forward.29} parent=0 // pred_check
    _
  $region11: #{model_forward.29} parent=0 // pred_check_branch
    %13 = sbr.rel (0) target = $region13
  $region12: #{model_forward.29} parent=0 // pred_region
    _
  $region13: #{model_forward.29} parent=0 // pred_fallthru
    _
  %v15 = vld [vmem:[%s1] sm:$0xf]
  %v16 = vld [vmem:[%s1 + $0x4] sm:$0xf]
  %v17 = vld [vmem:[%s1 + $0x8] sm:$0xf]
  %v18 = vld [vmem:[%s1 + $0xc] sm:$0xf]
  %v19 = vld [vmem:[%s2] sm:$0x1]
  %v20 = vld [vmem:[%s0] sm:$0xff]
  %v21 = vld [vmem:[%s0 + $0x8] sm:$0xff]
  %v22 = vpack.c.bf16 %v21, %v20
  %v24 = vlaneseq
  %v25 = vshrl.u32 %v24, 7
  %v26 = vsub.s32 0, %v25
  %v27 = vrot.slane %v19, %v26
  %v33 = vunpack.c.l.b16 %v15
  %v34 = vunpack.c.l.b16 %v16
  %v35 = vunpack.c.l.b16 %v17
  %v36 = vunpack.c.l.b16 %v18
  %v37 = vpack.c.b16 %v34, %v33
  %v38 = vpack.c.b16 %v36, %v35
  %vm41 = vcmask 261120
  %v43 = vsel %vm41, %v22, 0
  %45 = vmatprep.subr.bf16.mxu0 0
  %46 = vmatpush1.bf16.msra.mxu0 %v37
  %47 = vmatprep.subr.bf16.mxu0 0
  %48 = vmatpush1.bf16.msra.mxu0 %v38
  %49 = vmatprep.subr.bf16.mxu0 0
  %50 = vmatpush1.bf16.msra.mxu0 0
  %51 = vmatprep.subr.bf16.mxu0 0
  %52 = vmatpush1.bf16.msra.mxu0 0
  %53 = vmatprep.subr.bf16.mxu0 0
  %54 = vmatpush1.bf16.msra.mxu0 0
  %55 = vmatprep.subr.bf16.mxu0 0
  %56 = vmatpush1.bf16.msra.mxu0 0
  %57 = vmatprep.subr.bf16.mxu0 0
  %58 = vmatpush1.bf16.msra.mxu0 0
  %59 = vmatprep.subr.bf16.mxu0 0
  %60 = vmatpush1.bf16.msra.mxu0 0
  %61 = vmatprep.subr.bf16.mxu0 0
  %62 = vmatpush1.bf16.msra.mxu0 0
  %63 = vmatprep.subr.bf16.mxu0 0
  %64 = vmatpush1.bf16.msra.mxu0 0
  %65 = vmatprep.subr.bf16.mxu0 0
  %66 = vmatpush1.bf16.msra.mxu0 0
  %67 = vmatprep.subr.bf16.mxu0 0
  %68 = vmatpush1.bf16.msra.mxu0 0
  %69 = vmatprep.subr.bf16.mxu0 0
  %70 = vmatpush1.bf16.msra.mxu0 0
  %71 = vmatprep.subr.bf16.mxu0 0
  %72 = vmatpush1.bf16.msra.mxu0 0
  %73 = vmatprep.subr.bf16.mxu0 0
  %74 = vmatpush1.bf16.msra.mxu0 0
  %75 = vmatprep.subr.bf16.mxu0 0
  %76 = vmatpush1.bf16.msra.mxu0 0
  %77 = vmatprep.mubr.bf16.mxu0 0
  %78 = vmatmul.mubr.bf16.gmra.mrb[0].mxu0 %v43
  %v79 = vpop.f32.mrb[0].mxu0
  %v80 = vadd.f32 %v27, %v79
  %v81 = vpop.f32.mrb[0].mxu0
  %v82 = vpop.f32.mrb[0].mxu0
  %v83 = vadd.f32 %v27, %v82
  %v84 = vpop.f32.mrb[0].mxu0
  %85 = vdwg.mxu0
  %vm86 = vcmask 785408
  %87 = vst.msk [vmem:[%s3] sm:$0xff] %vm86, %v80
  %88 = vst.msk [vmem:[%s3 + $0x8] sm:$0xff] %vm86, %v83
  %s89 = scalar_lea.vmem %s0, 16
  %v90 = vld [vmem:[%s89] sm:$0xff]
  %v91 = vld [vmem:[%s89 + $0x8] sm:$0xff]
  %v92 = vpack.c.bf16 %v91, %v90
  %v94 = vsel %vm41, %v92, 0
  %96 = vmatprep.subr.bf16.mxu0 0
  %97 = vmatpush1.bf16.msra.mxu0 %v37
  %98 = vmatprep.subr.bf16.mxu0 0
  %99 = vmatpush1.bf16.msra.mxu0 %v38
  %100 = vmatprep.subr.bf16.mxu0 0
  %101 = vmatpush1.bf16.msra.mxu0 0
  %102 = vmatprep.subr.bf16.mxu0 0
  %103 = vmatpush1.bf16.msra.mxu0 0
  %104 = vmatprep.subr.bf16.mxu0 0
  %105 = vmatpush1.bf16.msra.mxu0 0
  %106 = vmatprep.subr.bf16.mxu0 0
  %107 = vmatpush1.bf16.msra.mxu0 0
  %108 = vmatprep.subr.bf16.mxu0 0
  %109 = vmatpush1.bf16.msra.mxu0 0
  %110 = vmatprep.subr.bf16.mxu0 0
  %111 = vmatpush1.bf16.msra.mxu0 0
  %112 = vmatprep.subr.bf16.mxu0 0
  %113 = vmatpush1.bf16.msra.mxu0 0
  %114 = vmatprep.subr.bf16.mxu0 0
  %115 = vmatpush1.bf16.msra.mxu0 0
  %116 = vmatprep.subr.bf16.mxu0 0
  %117 = vmatpush1.bf16.msra.mxu0 0
  %118 = vmatprep.subr.bf16.mxu0 0
  %119 = vmatpush1.bf16.msra.mxu0 0
  %120 = vmatprep.subr.bf16.mxu0 0
  %121 = vmatpush1.bf16.msra.mxu0 0
  %122 = vmatprep.subr.bf16.mxu0 0
  %123 = vmatpush1.bf16.msra.mxu0 0
  %124 = vmatprep.subr.bf16.mxu0 0
  %125 = vmatpush1.bf16.msra.mxu0 0
  %126 = vmatprep.subr.bf16.mxu0 0
  %127 = vmatpush1.bf16.msra.mxu0 0
  %128 = vmatprep.mubr.bf16.mxu0 0
  %129 = vmatmul.mubr.bf16.gmra.mrb[0].mxu0 %v94
  %v130 = vpop.f32.mrb[0].mxu0
  %v131 = vadd.f32 %v27, %v130
  %v132 = vpop.f32.mrb[0].mxu0
  %v133 = vpop.f32.mrb[0].mxu0
  %v134 = vadd.f32 %v27, %v133
  %v135 = vpop.f32.mrb[0].mxu0
  %136 = vdwg.mxu0
  %s137 = scalar_lea.vmem %s3, 16
  %138 = vst.msk [vmem:[%s137] sm:$0xff] %vm86, %v131
  %139 = vst.msk [vmem:[%s137 + $0x8] sm:$0xff] %vm86, %v134
  // Predicated region
  $region14: #{model_forward.29} parent=0 // pred_check
    _
  $region15: #{model_forward.29} parent=0 // pred_check_branch
    %141 = sbr.rel (0) target = $region17
  $region16: #{model_forward.29} parent=0 // pred_region
    _
  $region17: #{model_forward.29} parent=0 // pred_fallthru
    _
  // Predicated region
  $region18: #{model_forward.29} parent=0 // pred_check
    _
  $region19: #{model_forward.29} parent=0 // pred_check_branch
    %143 = sbr.rel (0) target = $region21
  $region20: #{model_forward.29} parent=0 // pred_region
    _
  $region21: #{model_forward.29} parent=0 // pred_fallthru
    _

// kernel: model_forward.28
$region0: #{model_forward.28}
  #allocation0 [shape = 'u32[]', space=smem, size = 0x4, offset = 0x4, fixed_abs, tag = 'smem constant byte address 0x4 - core index']
  #allocation1 [shape = 'u32[144,128]{1,0:T(1,128)}', space=vmem, size = 0x12000, scoped, tag = 'internal scratch']
  %s0 = inlined_call_operand.vmem [shape: f32[2,16,4], index: 0, kind: input, shape index: {}]
  %s1 = inlined_call_operand.vmem [shape: f32[2,16,4], index: 1, kind: input, shape index: {}]
  %s2 = inlined_call_operand.vmem [shape: bf16[4,32], index: 2, kind: input, shape index: {}]
  %s3 = inlined_call_operand.vmem [shape: bf16[4,32], index: 3, kind: input, shape index: {}]
  %s4 = inlined_call_operand.vmem [shape: bf16[4,32], index: 4, kind: input, shape index: {}]
  %s5 = inlined_call_operand.vmem [shape: bf16[4,32], index: 5, kind: input, shape index: {}]
  %s6 = inlined_call_operand.vmem [shape: f32[2,16,32], index: 6, kind: output, shape index: {}]
  %s7 = sld [smem:[#allocation0]]
  $region34: #{model_forward.28} parent=0
    _
  %s9 = ssub.s32 1, %s7
  %s10 = scalar_select 0, %s9, %s7
  // Predicated region
  $region2: #{model_forward.28} parent=0 // pred_check
    _
  $region3: #{model_forward.28} parent=0 // pred_check_branch
    %12 = sbr.rel (0) target = $region5
  $region4: #{model_forward.28} parent=0 // pred_region
    _
  $region5: #{model_forward.28} parent=0 // pred_fallthru
    _
  // Predicated region
  $region6: #{model_forward.28} parent=0 // pred_check
    _
  $region7: #{model_forward.28} parent=0 // pred_check_branch
    %14 = sbr.rel (0) target = $region9
  $region8: #{model_forward.28} parent=0 // pred_region
    _
  $region9: #{model_forward.28} parent=0 // pred_fallthru
    _
  // Predicated region
  $region10: #{model_forward.28} parent=0 // pred_check
    _
  $region11: #{model_forward.28} parent=0 // pred_check_branch
    %16 = sbr.rel (0) target = $region13
  $region12: #{model_forward.28} parent=0 // pred_region
    _
  $region13: #{model_forward.28} parent=0 // pred_fallthru
    _
  // Predicated region
  $region14: #{model_forward.28} parent=0 // pred_check
    _
  $region15: #{model_forward.28} parent=0 // pred_check_branch
    %18 = sbr.rel (0) target = $region17
  $region16: #{model_forward.28} parent=0 // pred_region
    _
  $region17: #{model_forward.28} parent=0 // pred_fallthru
    _
  // Predicated region
  $region18: #{model_forward.28} parent=0 // pred_check
    _
  $region19: #{model_forward.28} parent=0 // pred_check_branch
    %20 = sbr.rel (0) target = $region21
  $region20: #{model_forward.28} parent=0 // pred_region
    _
  $region21: #{model_forward.28} parent=0 // pred_fallthru
    _
  // Predicated region
  $region22: #{model_forward.28} parent=0 // pred_check
    _
  $region23: #{model_forward.28} parent=0 // pred_check_branch
    %22 = sbr.rel (0) target = $region25
  $region24: #{model_forward.28} parent=0 // pred_region
    _
  $region25: #{model_forward.28} parent=0 // pred_fallthru
    _
  %v24 = vld [vmem:[%s2] sm:$0x3]
  %v25 = vld [vmem:[%s3] sm:$0x3]
  %v26 = vld [vmem:[%s4] sm:$0x3]
  %v27 = vld [vmem:[%s5] sm:$0x3]
  %v28 = vld [vmem:[%s0] sm:$0xff]
  %v29 = vld [vmem:[%s0 + $0x8] sm:$0xff]
  %v30 = vld [vmem:[%s1] sm:$0xff]
  %v31 = vld [vmem:[%s1 + $0x8] sm:$0xff]
  %v33 = vrot.slane %v29, 7
  %vm36 = vcmask 1040384
  %v37 = vrot.slane %v28, 7
  %v38 = vsel %vm36, %v37, %v33
  %v41 = vsel %vm36, %v33, %v37
  %v42 = vpack.c.bf16 %v38, %v41
  %v43 = vpack.c.bf16 %v29, %v28
  %vm44 = vcmask 31744
  %v46 = vsel %vm44, %v43, 0
  %vm48 = vcmask 1041408
  %v50 = vsel %vm48, %v25, 0
  %52 = vmatprep.subr.bf16.mxu0 0
  %53 = vmatpush1.bf16.msra.mxu0 %v50
  %54 = vmatprep.subr.bf16.mxu0 0
  %55 = vmatpush1.bf16.msra.mxu0 0
  %56 = vmatprep.subr.bf16.mxu0 0
  %57 = vmatpush1.bf16.msra.mxu0 0
  %58 = vmatprep.subr.bf16.mxu0 0
  %59 = vmatpush1.bf16.msra.mxu0 0
  %60 = vmatprep.subr.bf16.mxu0 0
  %61 = vmatpush1.bf16.msra.mxu0 0
  %62 = vmatprep.subr.bf16.mxu0 0
  %63 = vmatpush1.bf16.msra.mxu0 0
  %64 = vmatprep.subr.bf16.mxu0 0
  %65 = vmatpush1.bf16.msra.mxu0 0
  %66 = vmatprep.subr.bf16.mxu0 0
  %67 = vmatpush1.bf16.msra.mxu0 0
  %68 = vmatprep.subr.bf16.mxu0 0
  %69 = vmatpush1.bf16.msra.mxu0 0
  %70 = vmatprep.subr.bf16.mxu0 0
  %71 = vmatpush1.bf16.msra.mxu0 0
  %72 = vmatprep.subr.bf16.mxu0 0
  %73 = vmatpush1.bf16.msra.mxu0 0
  %74 = vmatprep.subr.bf16.mxu0 0
  %75 = vmatpush1.bf16.msra.mxu0 0
  %76 = vmatprep.subr.bf16.mxu0 0
  %77 = vmatpush1.bf16.msra.mxu0 0
  %78 = vmatprep.subr.bf16.mxu0 0
  %79 = vmatpush1.bf16.msra.mxu0 0
  %80 = vmatprep.subr.bf16.mxu0 0
  %81 = vmatpush1.bf16.msra.mxu0 0
  %82 = vmatprep.subr.bf16.mxu0 0
  %83 = vmatpush1.bf16.msra.mxu0 0
  %84 = vmatprep.mubr.bf16.mxu0 0
  %85 = vmatmul.mubr.bf16.gmra.mrb[0].mxu0 %v46
  %v86 = vpop.f32.mrb[0].mxu0
  %v87 = vadd.f32 0.0, %v86
  %v88 = vpop.f32.mrb[0].mxu0
  %v89 = vpop.f32.mrb[0].mxu0
  %v90 = vadd.f32 0.0, %v89
  %v91 = vpop.f32.mrb[0].mxu0
  %92 = vdwg.mxu0
  %v94 = vsel %vm44, %v42, 0
  %v97 = vsel %vm48, %v24, 0
  %99 = vmatprep.subr.bf16.mxu0 0
  %100 = vmatpush1.bf16.msra.mxu0 %v97
  %101 = vmatprep.subr.bf16.mxu0 0
  %102 = vmatpush1.bf16.msra.mxu0 0
  %103 = vmatprep.subr.bf16.mxu0 0
  %104 = vmatpush1.bf16.msra.mxu0 0
  %105 = vmatprep.subr.bf16.mxu0 0
  %106 = vmatpush1.bf16.msra.mxu0 0
  %107 = vmatprep.subr.bf16.mxu0 0
  %108 = vmatpush1.bf16.msra.mxu0 0
  %109 = vmatprep.subr.bf16.mxu0 0
  %110 = vmatpush1.bf16.msra.mxu0 0
  %111 = vmatprep.subr.bf16.mxu0 0
  %112 = vmatpush1.bf16.msra.mxu0 0
  %113 = vmatprep.subr.bf16.mxu0 0
  %114 = vmatpush1.bf16.msra.mxu0 0
  %115 = vmatprep.subr.bf16.mxu0 0
  %116 = vmatpush1.bf16.msra.mxu0 0
  %117 = vmatprep.subr.bf16.mxu0 0
  %118 = vmatpush1.bf16.msra.mxu0 0
  %119 = vmatprep.subr.bf16.mxu0 0
  %120 = vmatpush1.bf16.msra.mxu0 0
  %121 = vmatprep.subr.bf16.mxu0 0
  %122 = vmatpush1.bf16.msra.mxu0 0
  %123 = vmatprep.subr.bf16.mxu0 0
  %124 = vmatpush1.bf16.msra.mxu0 0
  %125 = vmatprep.subr.bf16.mxu0 0
  %126 = vmatpush1.bf16.msra.mxu0 0
  %127 = vmatprep.subr.bf16.mxu0 0
  %128 = vmatpush1.bf16.msra.mxu0 0
  %129 = vmatprep.subr.bf16.mxu0 0
  %130 = vmatpush1.bf16.msra.mxu0 0
  %131 = vmatprep.mubr.bf16.mxu0 0
  %132 = vmatmul.mubr.bf16.gmra.mrb[0].mxu0 %v94
  %v133 = vpop.f32.mrb[0].mxu0
  %v134 = vadd.f32 %v87, %v133
  %v135 = vpop.f32.mrb[0].mxu0
  %v136 = vpop.f32.mrb[0].mxu0
  %v137 = vadd.f32 %v90, %v136
  %v138 = vpop.f32.mrb[0].mxu0
  %139 = vdwg.mxu0
  %vm140 = vcmask 1046528
  %v141 = vrot.slane %v28, 1
  %v142 = vrot.slane %v29, 1
  %v143 = vsel %vm140, %v141, %v142
  %v147 = vsel %vm140, %v142, %v141
  %v148 = vpack.c.bf16 %v147, %v143
  %v150 = vsel %vm44, %v148, 0
  %v153 = vsel %vm48, %v26, 0
  %155 = vmatprep.subr.bf16.mxu0 0
  %156 = vmatpush1.bf16.msra.mxu0 %v153
  %157 = vmatprep.subr.bf16.mxu0 0
  %158 = vmatpush1.bf16.msra.mxu0 0
  %159 = vmatprep.subr.bf16.mxu0 0
  %160 = vmatpush1.bf16.msra.mxu0 0
  %161 = vmatprep.subr.bf16.mxu0 0
  %162 = vmatpush1.bf16.msra.mxu0 0
  %163 = vmatprep.subr.bf16.mxu0 0
  %164 = vmatpush1.bf16.msra.mxu0 0
  %165 = vmatprep.subr.bf16.mxu0 0
  %166 = vmatpush1.bf16.msra.mxu0 0
  %167 = vmatprep.subr.bf16.mxu0 0
  %168 = vmatpush1.bf16.msra.mxu0 0
  %169 = vmatprep.subr.bf16.mxu0 0
  %170 = vmatpush1.bf16.msra.mxu0 0
  %171 = vmatprep.subr.bf16.mxu0 0
  %172 = vmatpush1.bf16.msra.mxu0 0
  %173 = vmatprep.subr.bf16.mxu0 0
  %174 = vmatpush1.bf16.msra.mxu0 0
  %175 = vmatprep.subr.bf16.mxu0 0
  %176 = vmatpush1.bf16.msra.mxu0 0
  %177 = vmatprep.subr.bf16.mxu0 0
  %178 = vmatpush1.bf16.msra.mxu0 0
  %179 = vmatprep.subr.bf16.mxu0 0
  %180 = vmatpush1.bf16.msra.mxu0 0
  %181 = vmatprep.subr.bf16.mxu0 0
  %182 = vmatpush1.bf16.msra.mxu0 0
  %183 = vmatprep.subr.bf16.mxu0 0
  %184 = vmatpush1.bf16.msra.mxu0 0
  %185 = vmatprep.subr.bf16.mxu0 0
  %186 = vmatpush1.bf16.msra.mxu0 0
  %187 = vmatprep.mubr.bf16.mxu0 0
  %188 = vmatmul.mubr.bf16.gmra.mrb[0].mxu0 %v150
  %v189 = vpop.f32.mrb[0].mxu0
  %v190 = vadd.f32 0.0, %v189
  %v191 = vpop.f32.mrb[0].mxu0
  %v192 = vpop.f32.mrb[0].mxu0
  %v193 = vadd.f32 0.0, %v192
  %v194 = vpop.f32.mrb[0].mxu0
  %195 = vdwg.mxu0
  %v196 = vadd.f32 %v134, %v190
  %v197 = vadd.f32 %v137, %v193
  %v198 = vpack.c.bf16 %v31, %v30
  %v200 = vsel %vm44, %v198, 0
  %v203 = vsel %vm48, %v27, 0
  %205 = vmatprep.subr.bf16.mxu0 0
  %206 = vmatpush1.bf16.msra.mxu0 %v203
  %207 = vmatprep.subr.bf16.mxu0 0
  %208 = vmatpush1.bf16.msra.mxu0 0
  %209 = vmatprep.subr.bf16.mxu0 0
  %210 = vmatpush1.bf16.msra.mxu0 0
  %211 = vmatprep.subr.bf16.mxu0 0
  %212 = vmatpush1.bf16.msra.mxu0 0
  %213 = vmatprep.subr.bf16.mxu0 0
  %214 = vmatpush1.bf16.msra.mxu0 0
  %215 = vmatprep.subr.bf16.mxu0 0
  %216 = vmatpush1.bf16.msra.mxu0 0
  %217 = vmatprep.subr.bf16.mxu0 0
  %218 = vmatpush1.bf16.msra.mxu0 0
  %219 = vmatprep.subr.bf16.mxu0 0
  %220 = vmatpush1.bf16.msra.mxu0 0
  %221 = vmatprep.subr.bf16.mxu0 0
  %222 = vmatpush1.bf16.msra.mxu0 0
  %223 = vmatprep.subr.bf16.mxu0 0
  %224 = vmatpush1.bf16.msra.mxu0 0
  %225 = vmatprep.subr.bf16.mxu0 0
  %226 = vmatpush1.bf16.msra.mxu0 0
  %227 = vmatprep.subr.bf16.mxu0 0
  %228 = vmatpush1.bf16.msra.mxu0 0
  %229 = vmatprep.subr.bf16.mxu0 0
  %230 = vmatpush1.bf16.msra.mxu0 0
  %231 = vmatprep.subr.bf16.mxu0 0
  %232 = vmatpush1.bf16.msra.mxu0 0
  %233 = vmatprep.subr.bf16.mxu0 0
  %234 = vmatpush1.bf16.msra.mxu0 0
  %235 = vmatprep.subr.bf16.mxu0 0
  %236 = vmatpush1.bf16.msra.mxu0 0
  %237 = vmatprep.mubr.bf16.mxu0 0
  %238 = vmatmul.mubr.bf16.gmra.mrb[0].mxu0 %v200
  %v239 = vpop.f32.mrb[0].mxu0
  %v240 = vadd.f32 0.0, %v239
  %v241 = vpop.f32.mrb[0].mxu0
  %v242 = vpop.f32.mrb[0].mxu0
  %v243 = vadd.f32 0.0, %v242
  %v244 = vpop.f32.mrb[0].mxu0
  %245 = vdwg.mxu0
  %v246 = vadd.f32 %v196, %v240
  %v247 = vadd.f32 %v197, %v243
  %vm248 = vcmask 261120
  %249 = vst.msk [vmem:[%s6] sm:$0xff] %vm248, %v246
  %250 = vst.msk [vmem:[%s6 + $0x8] sm:$0xff] %vm248, %v247
  %s251 = scalar_lea.vmem %s0, 16
  %v252 = vld [vmem:[%s251] sm:$0xff]
  %v253 = vld [vmem:[%s251 + $0x8] sm:$0xff]
  %s254 = scalar_lea.vmem %s1, 16
  %v255 = vld [vmem:[%s254] sm:$0xff]
  %v256 = vld [vmem:[%s254 + $0x8] sm:$0xff]
  %v258 = vrot.slane %v253, 7
  %v261 = vrot.slane %v252, 7
  %v262 = vsel %vm36, %v261, %v258
  %v265 = vsel %vm36, %v258, %v261
  %v266 = vpack.c.bf16 %v262, %v265
  %v267 = vpack.c.bf16 %v253, %v252
  %v269 = vsel %vm44, %v267, 0
  %271 = vmatprep.subr.bf16.mxu0 0
  %272 = vmatpush1.bf16.msra.mxu0 %v50
  %273 = vmatprep.subr.bf16.mxu0 0
  %274 = vmatpush1.bf16.msra.mxu0 0
  %275 = vmatprep.subr.bf16.mxu0 0
  %276 = vmatpush1.bf16.msra.mxu0 0
  %277 = vmatprep.subr.bf16.mxu0 0
  %278 = vmatpush1.bf16.msra.mxu0 0
  %279 = vmatprep.subr.bf16.mxu0 0
  %280 = vmatpush1.bf16.msra.mxu0 0
  %281 = vmatprep.subr.bf16.mxu0 0
  %282 = vmatpush1.bf16.msra.mxu0 0
  %283 = vmatprep.subr.bf16.mxu0 0
  %284 = vmatpush1.bf16.msra.mxu0 0
  %285 = vmatprep.subr.bf16.mxu0 0
  %286 = vmatpush1.bf16.msra.mxu0 0
  %287 = vmatprep.subr.bf16.mxu0 0
  %288 = vmatpush1.bf16.msra.mxu0 0
  %289 = vmatprep.subr.bf16.mxu0 0
  %290 = vmatpush1.bf16.msra.mxu0 0
  %291 = vmatprep.subr.bf16.mxu0 0
  %292 = vmatpush1.bf16.msra.mxu0 0
  %293 = vmatprep.subr.bf16.mxu0 0
  %294 = vmatpush1.bf16.msra.mxu0 0
  %295 = vmatprep.subr.bf16.mxu0 0
  %296 = vmatpush1.bf16.msra.mxu0 0
  %297 = vmatprep.subr.bf16.mxu0 0
  %298 = vmatpush1.bf16.msra.mxu0 0
  %299 = vmatprep.subr.bf16.mxu0 0
  %300 = vmatpush1.bf16.msra.mxu0 0
  %301 = vmatprep.subr.bf16.mxu0 0
  %302 = vmatpush1.bf16.msra.mxu0 0
  %303 = vmatprep.mubr.bf16.mxu0 0
  %304 = vmatmul.mubr.bf16.gmra.mrb[0].mxu0 %v269
  %v305 = vpop.f32.mrb[0].mxu0
  %v306 = vadd.f32 0.0, %v305
  %v307 = vpop.f32.mrb[0].mxu0
  %v308 = vpop.f32.mrb[0].mxu0
  %v309 = vadd.f32 0.0, %v308
  %v310 = vpop.f32.mrb[0].mxu0
  %311 = vdwg.mxu0
  %v313 = vsel %vm44, %v266, 0
  %315 = vmatprep.subr.bf16.mxu0 0
  %316 = vmatpush1.bf16.msra.mxu0 %v97
  %317 = vmatprep.subr.bf16.mxu0 0
  %318 = vmatpush1.bf16.msra.mxu0 0
  %319 = vmatprep.subr.bf16.mxu0 0
  %320 = vmatpush1.bf16.msra.mxu0 0
  %321 = vmatprep.subr.bf16.mxu0 0
  %322 = vmatpush1.bf16.msra.mxu0 0
  %323 = vmatprep.subr.bf16.mxu0 0
  %324 = vmatpush1.bf16.msra.mxu0 0
  %325 = vmatprep.subr.bf16.mxu0 0
  %326 = vmatpush1.bf16.msra.mxu0 0
  %327 = vmatprep.subr.bf16.mxu0 0
  %328 = vmatpush1.bf16.msra.mxu0 0
  %329 = vmatprep.subr.bf16.mxu0 0
  %330 = vmatpush1.bf16.msra.mxu0 0
  %331 = vmatprep.subr.bf16.mxu0 0
  %332 = vmatpush1.bf16.msra.mxu0 0
  %333 = vmatprep.subr.bf16.mxu0 0
  %334 = vmatpush1.bf16.msra.mxu0 0
  %335 = vmatprep.subr.bf16.mxu0 0
  %336 = vmatpush1.bf16.msra.mxu0 0
  %337 = vmatprep.subr.bf16.mxu0 0
  %338 = vmatpush1.bf16.msra.mxu0 0
  %339 = vmatprep.subr.bf16.mxu0 0
  %340 = vmatpush1.bf16.msra.mxu0 0
  %341 = vmatprep.subr.bf16.mxu0 0
  %342 = vmatpush1.bf16.msra.mxu0 0
  %343 = vmatprep.subr.bf16.mxu0 0
  %344 = vmatpush1.bf16.msra.mxu0 0
  %345 = vmatprep.subr.bf16.mxu0 0
  %346 = vmatpush1.bf16.msra.mxu0 0
  %347 = vmatprep.mubr.bf16.mxu0 0
  %348 = vmatmul.mubr.bf16.gmra.mrb[0].mxu0 %v313
  %v349 = vpop.f32.mrb[0].mxu0
  %v350 = vadd.f32 %v306, %v349
  %v351 = vpop.f32.mrb[0].mxu0
  %v352 = vpop.f32.mrb[0].mxu0
  %v353 = vadd.f32 %v309, %v352
  %v354 = vpop.f32.mrb[0].mxu0
  %355 = vdwg.mxu0
  %v356 = vrot.slane %v252, 1
  %v357 = vrot.slane %v253, 1
  %v358 = vsel %vm140, %v356, %v357
  %v362 = vsel %vm140, %v357, %v356
  %v363 = vpack.c.bf16 %v362, %v358
  %v365 = vsel %vm44, %v363, 0
  %367 = vmatprep.subr.bf16.mxu0 0
  %368 = vmatpush1.bf16.msra.mxu0 %v153
  %369 = vmatprep.subr.bf16.mxu0 0
  %370 = vmatpush1.bf16.msra.mxu0 0
  %371 = vmatprep.subr.bf16.mxu0 0
  %372 = vmatpush1.bf16.msra.mxu0 0
  %373 = vmatprep.subr.bf16.mxu0 0
  %374 = vmatpush1.bf16.msra.mxu0 0
  %375 = vmatprep.subr.bf16.mxu0 0
  %376 = vmatpush1.bf16.msra.mxu0 0
  %377 = vmatprep.subr.bf16.mxu0 0
  %378 = vmatpush1.bf16.msra.mxu0 0
  %379 = vmatprep.subr.bf16.mxu0 0
  %380 = vmatpush1.bf16.msra.mxu0 0
  %381 = vmatprep.subr.bf16.mxu0 0
  %382 = vmatpush1.bf16.msra.mxu0 0
  %383 = vmatprep.subr.bf16.mxu0 0
  %384 = vmatpush1.bf16.msra.mxu0 0
  %385 = vmatprep.subr.bf16.mxu0 0
  %386 = vmatpush1.bf16.msra.mxu0 0
  %387 = vmatprep.subr.bf16.mxu0 0
  %388 = vmatpush1.bf16.msra.mxu0 0
  %389 = vmatprep.subr.bf16.mxu0 0
  %390 = vmatpush1.bf16.msra.mxu0 0
  %391 = vmatprep.subr.bf16.mxu0 0
  %392 = vmatpush1.bf16.msra.mxu0 0
  %393 = vmatprep.subr.bf16.mxu0 0
  %394 = vmatpush1.bf16.msra.mxu0 0
  %395 = vmatprep.subr.bf16.mxu0 0
  %396 = vmatpush1.bf16.msra.mxu0 0
  %397 = vmatprep.subr.bf16.mxu0 0
  %398 = vmatpush1.bf16.msra.mxu0 0
  %399 = vmatprep.mubr.bf16.mxu0 0
  %400 = vmatmul.mubr.bf16.gmra.mrb[0].mxu0 %v365
  %v401 = vpop.f32.mrb[0].mxu0
  %v402 = vadd.f32 0.0, %v401
  %v403 = vpop.f32.mrb[0].mxu0
  %v404 = vpop.f32.mrb[0].mxu0
  %v405 = vadd.f32 0.0, %v404
  %v406 = vpop.f32.mrb[0].mxu0
  %407 = vdwg.mxu0
  %v408 = vadd.f32 %v350, %v402
  %v409 = vadd.f32 %v353, %v405
  %v410 = vpack.c.bf16 %v256, %v255
  %v412 = vsel %vm44, %v410, 0
  %414 = vmatprep.subr.bf16.mxu0 0
  %415 = vmatpush1.bf16.msra.mxu0 %v203
  %416 = vmatprep.subr.bf16.mxu0 0
  %417 = vmatpush1.bf16.msra.mxu0 0
  %418 = vmatprep.subr.bf16.mxu0 0
  %419 = vmatpush1.bf16.msra.mxu0 0
  %420 = vmatprep.subr.bf16.mxu0 0
  %421 = vmatpush1.bf16.msra.mxu0 0
  %422 = vmatprep.subr.bf16.mxu0 0
  %423 = vmatpush1.bf16.msra.mxu0 0
  %424 = vmatprep.subr.bf16.mxu0 0
  %425 = vmatpush1.bf16.msra.mxu0 0
  %426 = vmatprep.subr.bf16.mxu0 0
  %427 = vmatpush1.bf16.msra.mxu0 0
  %428 = vmatprep.subr.bf16.mxu0 0
  %429 = vmatpush1.bf16.msra.mxu0 0
  %430 = vmatprep.subr.bf16.mxu0 0
  %431 = vmatpush1.bf16.msra.mxu0 0
  %432 = vmatprep.subr.bf16.mxu0 0
  %433 = vmatpush1.bf16.msra.mxu0 0
  %434 = vmatprep.subr.bf16.mxu0 0
  %435 = vmatpush1.bf16.msra.mxu0 0
  %436 = vmatprep.subr.bf16.mxu0 0
  %437 = vmatpush1.bf16.msra.mxu0 0
  %438 = vmatprep.subr.bf16.mxu0 0
  %439 = vmatpush1.bf16.msra.mxu0 0
  %440 = vmatprep.subr.bf16.mxu0 0
  %441 = vmatpush1.bf16.msra.mxu0 0
  %442 = vmatprep.subr.bf16.mxu0 0
  %443 = vmatpush1.bf16.msra.mxu0 0
  %444 = vmatprep.subr.bf16.mxu0 0
  %445 = vmatpush1.bf16.msra.mxu0 0
  %446 = vmatprep.mubr.bf16.mxu0 0
  %447 = vmatmul.mubr.bf16.gmra.mrb[0].mxu0 %v412
  %v448 = vpop.f32.mrb[0].mxu0
  %v449 = vadd.f32 0.0, %v448
  %v450 = vpop.f32.mrb[0].mxu0
  %v451 = vpop.f32.mrb[0].mxu0
  %v452 = vadd.f32 0.0, %v451
  %v453 = vpop.f32.mrb[0].mxu0
  %454 = vdwg.mxu0
  %v455 = vadd.f32 %v408, %v449
  %v456 = vadd.f32 %v409, %v452
  %s457 = scalar_lea.vmem %s6, 16
  %458 = vst.msk [vmem:[%s457] sm:$0xff] %vm248, %v455
  %459 = vst.msk [vmem:[%s457 + $0x8] sm:$0xff] %vm248, %v456
  // Predicated region
  $region26: #{model_forward.28} parent=0 // pred_check
    _
  $region27: #{model_forward.28} parent=0 // pred_check_branch
    %461 = sbr.rel (0) target = $region29
  $region28: #{model_forward.28} parent=0 // pred_region
    _
  $region29: #{model_forward.28} parent=0 // pred_fallthru
    _
  // Predicated region
  $region30: #{model_forward.28} parent=0 // pred_check
    _
  $region31: #{model_forward.28} parent=0 // pred_check_branch
    %463 = sbr.rel (0) target = $region33
  $region32: #{model_forward.28} parent=0 // pred_region
    _
  $region33: #{model_forward.28} parent=0 // pred_fallthru
    _

// kernel: reverse.5
$region0: #{reverse.5}
  %s0 = inlined_call_operand.vmem [shape: f32[2,4,8,7], index: 0, kind: input, shape index: {}]
  %s1 = inlined_call_operand.vmem [shape: f32[2,4,8,7], index: 1, kind: output, shape index: {}]
  %v2 = vlaneseq
  %v3 = vsub.s32 6, %v2
  %4 = vset.pattern.permute.xlu0 %v3
  $region1: #{reverse.5} parent=0
    #allocation0 [shape = 'u8[32768]{0}', space=vmem, size = 0x8000, scoped, tag = 'operand span for operand 0']
    #allocation1 [shape = 'u8[32768]{0}', space=vmem, size = 0x8000, scoped, tag = 'operand span for operand 1']
    // Predicated region
    $region2: #{reverse.5} parent=1 // pred_check
      _
    $region3: #{reverse.5} parent=1 // pred_check_branch
      %6 = sbr.rel (0) target = $region5
    $region4: #{reverse.5} parent=1 // pred_region
      // Predicated region
      $region6: #{reverse.5} parent=4 // pred_check
        _
      $region7: #{reverse.5} parent=4 // pred_check_branch
        %8 = sbr.rel (0) target = $region9
      $region8: #{reverse.5} parent=4 // pred_region
        // Predicated region
        $region21: #{reverse.5} parent=8 // pred_check
          _
        $region22: #{reverse.5} parent=8 // pred_check_branch
          %37 = sbr.rel (0) target = $region24
        $region23: #{reverse.5} parent=8 // pred_region
          loop: start=0, step=1, limit=1
          $region25: #{reverse.5} parent=23 // loop_pre_header
            _
          $region26: #{reverse.5} parent=23 // loop_header
            %s39 = sphi 0, %s43
            %p40 = scmp.ge.s32.totalorder %s39, 1
            %s44 = sphi %s0, %s0
            %s45 = sphi [#allocation0], [#allocation0]
          $region27: #{reverse.5} parent=23 // loop_header_branch
            %42 = sbr.rel (%p40) target = $region31
          $region28: #{reverse.5} parent=23 // loop_body
            %v46 = vld [vmem:[%s44] sm:$0xff]
            %47 = vst [vmem:[%s45] sm:$0xff] %v46
            %v48 = vld [vmem:[%s44 + $0x8] sm:$0xff]
            %49 = vst [vmem:[%s45 + $0x8] sm:$0xff] %v48
            %v50 = vld [vmem:[%s44 + $0x10] sm:$0xff]
            %51 = vst [vmem:[%s45 + $0x10] sm:$0xff] %v50
            %v52 = vld [vmem:[%s44 + $0x18] sm:$0xff]
            %53 = vst [vmem:[%s45 + $0x18] sm:$0xff] %v52
            %v54 = vld [vmem:[%s44 + $0x20] sm:$0xff]
            %55 = vst [vmem:[%s45 + $0x20] sm:$0xff] %v54
            %v56 = vld [vmem:[%s44 + $0x28] sm:$0xff]
            %57 = vst [vmem:[%s45 + $0x28] sm:$0xff] %v56
            %v58 = vld [vmem:[%s44 + $0x30] sm:$0xff]
            %59 = vst [vmem:[%s45 + $0x30] sm:$0xff] %v58
            %v60 = vld [vmem:[%s44 + $0x38] sm:$0xff]
            %61 = vst [vmem:[%s45 + $0x38] sm:$0xff] %v60
          $region29: #{reverse.5} parent=23 // loop_footer
            %s43 = sadd.s32 1, %s39
          $region30: #{reverse.5} parent=23 // loop_footer_branch
            %38 = sbr.rel target = $region26
          $region31: #{reverse.5} parent=23 // loop_exit
            _
        $region24: #{reverse.5} parent=8 // pred_fallthru
          _
        // Predicated region
        $region32: #{reverse.5} parent=8 // pred_check
          _
        $region33: #{reverse.5} parent=8 // pred_check_branch
          %63 = sbr.rel target = $region35
        $region34: #{reverse.5} parent=8 // pred_region
          _
        $region35: #{reverse.5} parent=8 // pred_fallthru
          _
      $region9: #{reverse.5} parent=4 // pred_fallthru
        _
      // Predicated region
      $region10: #{reverse.5} parent=4 // pred_check
        _
      $region11: #{reverse.5} parent=4 // pred_check_branch
        %10 = sbr.rel target = $region13
      $region12: #{reverse.5} parent=4 // pred_region
        loop: start=0, step=1, limit=1
        $region14: #{reverse.5} parent=12 // loop_pre_header
          _
        $region15: #{reverse.5} parent=12 // loop_header
          %s13 = sphi 0, %s17
          %p14 = scmp.ge.s32.totalorder %s13, 1
          %s18 = sphi %s0, %s0
          %s19 = sphi [#allocation0], [#allocation0]
        $region16: #{reverse.5} parent=12 // loop_header_branch
          %16 = sbr.rel (%p14) target = $region20
        $region17: #{reverse.5} parent=12 // loop_body
          %v20 = vld [vmem:[%s18] sm:$0xff]
          %21 = vst [vmem:[%s19] sm:$0xff] %v20
          %v22 = vld [vmem:[%s18 + $0x8] sm:$0xff]
          %23 = vst [vmem:[%s19 + $0x8] sm:$0xff] %v22
          %v24 = vld [vmem:[%s18 + $0x10] sm:$0xff]
          %25 = vst [vmem:[%s19 + $0x10] sm:$0xff] %v24
          %v26 = vld [vmem:[%s18 + $0x18] sm:$0xff]
          %27 = vst [vmem:[%s19 + $0x18] sm:$0xff] %v26
          %v28 = vld [vmem:[%s18 + $0x20] sm:$0xff]
          %29 = vst [vmem:[%s19 + $0x20] sm:$0xff] %v28
          %v30 = vld [vmem:[%s18 + $0x28] sm:$0xff]
          %31 = vst [vmem:[%s19 + $0x28] sm:$0xff] %v30
          %v32 = vld [vmem:[%s18 + $0x30] sm:$0xff]
          %33 = vst [vmem:[%s19 + $0x30] sm:$0xff] %v32
          %v34 = vld [vmem:[%s18 + $0x38] sm:$0xff]
          %35 = vst [vmem:[%s19 + $0x38] sm:$0xff] %v34
        $region18: #{reverse.5} parent=12 // loop_footer
          %s17 = sadd.s32 1, %s13
        $region19: #{reverse.5} parent=12 // loop_footer_branch
          %12 = sbr.rel target = $region15
        $region20: #{reverse.5} parent=12 // loop_exit
          _
      $region13: #{reverse.5} parent=4 // pred_fallthru
        _
    $region5: #{reverse.5} parent=1 // pred_fallthru
      _
    %64 = vnop
    %v65 = vld [vmem:[#allocation0] sm:$0xff]
    %66 = vperm.xlu0 %4, %v65
    %v67 = vpop.permute.xlu0 %66
    %68 = vst [vmem:[#allocation1] sm:$0xff] %v67
    %s69 = scalar_lea.vmem [#allocation1], 8
    %s70 = scalar_lea.vmem [#allocation0], 8
    %v71 = vld [vmem:[%s70] sm:$0xff]
    %72 = vperm.xlu0 %4, %v71
    %v73 = vpop.permute.xlu0 %72
    %74 = vst [vmem:[%s69] sm:$0xff] %v73
    %s75 = scalar_lea.vmem [#allocation1], 16
    %s76 = scalar_lea.vmem [#allocation0], 16
    %v77 = vld [vmem:[%s76] sm:$0xff]
    %78 = vperm.xlu0 %4, %v77
    %v79 = vpop.permute.xlu0 %78
    %80 = vst [vmem:[%s75] sm:$0xff] %v79
    %s81 = scalar_lea.vmem [#allocation1], 24
    %s82 = scalar_lea.vmem [#allocation0], 24
    %v83 = vld [vmem:[%s82] sm:$0xff]
    %84 = vperm.xlu0 %4, %v83
    %v85 = vpop.permute.xlu0 %84
    %86 = vst [vmem:[%s81] sm:$0xff] %v85
    %s87 = scalar_lea.vmem [#allocation1], 32
    %s88 = scalar_lea.vmem [#allocation0], 32
    %v89 = vld [vmem:[%s88] sm:$0xff]
    %90 = vperm.xlu0 %4, %v89
    %v91 = vpop.permute.xlu0 %90
    %92 = vst [vmem:[%s87] sm:$0xff] %v91
    %s93 = scalar_lea.vmem [#allocation1], 40
    %s94 = scalar_lea.vmem [#allocation0], 40
    %v95 = vld [vmem:[%s94] sm:$0xff]
    %96 = vperm.xlu0 %4, %v95
    %v97 = vpop.permute.xlu0 %96
    %98 = vst [vmem:[%s93] sm:$0xff] %v97
    %s99 = scalar_lea.vmem [#allocation1], 48
    %s100 = scalar_lea.vmem [#allocation0], 48
    %v101 = vld [vmem:[%s100] sm:$0xff]
    %102 = vperm.xlu0 %4, %v101
    %v103 = vpop.permute.xlu0 %102
    %104 = vst [vmem:[%s99] sm:$0xff] %v103
    %s105 = scalar_lea.vmem [#allocation1], 56
    %s106 = scalar_lea.vmem [#allocation0], 56
    %v107 = vld [vmem:[%s106] sm:$0xff]
    %108 = vperm.xlu0 %4, %v107
    %v109 = vpop.permute.xlu0 %108
    %110 = vst [vmem:[%s105] sm:$0xff] %v109
    // Predicated region
    $region36: #{reverse.5} parent=1 // pred_check
      _
    $region37: #{reverse.5} parent=1 // pred_check_branch
      %112 = sbr.rel (0) target = $region39
    $region38: #{reverse.5} parent=1 // pred_region
      // Predicated region
      $region40: #{reverse.5} parent=38 // pred_check
        _
      $region41: #{reverse.5} parent=38 // pred_check_branch
        %114 = sbr.rel (0) target = $region43
      $region42: #{reverse.5} parent=38 // pred_region
        // Predicated region
        $region55: #{reverse.5} parent=42 // pred_check
          _
        $region56: #{reverse.5} parent=42 // pred_check_branch
          %143 = sbr.rel (0) target = $region58
        $region57: #{reverse.5} parent=42 // pred_region
          loop: start=0, step=1, limit=1
          $region59: #{reverse.5} parent=57 // loop_pre_header
            _
          $region60: #{reverse.5} parent=57 // loop_header
            %s145 = sphi 0, %s149
            %p146 = scmp.ge.s32.totalorder %s145, 1
            %s150 = sphi [#allocation1], [#allocation1]
            %s151 = sphi %s1, %s1
          $region61: #{reverse.5} parent=57 // loop_header_branch
            %148 = sbr.rel (%p146) target = $region65
          $region62: #{reverse.5} parent=57 // loop_body
            %v152 = vld [vmem:[%s150] sm:$0xff]
            %153 = vst [vmem:[%s151] sm:$0xff] %v152
            %v154 = vld [vmem:[%s150 + $0x8] sm:$0xff]
            %155 = vst [vmem:[%s151 + $0x8] sm:$0xff] %v154
            %v156 = vld [vmem:[%s150 + $0x10] sm:$0xff]
            %157 = vst [vmem:[%s151 + $0x10] sm:$0xff] %v156
            %v158 = vld [vmem:[%s150 + $0x18] sm:$0xff]
            %159 = vst [vmem:[%s151 + $0x18] sm:$0xff] %v158
            %v160 = vld [vmem:[%s150 + $0x20] sm:$0xff]
            %161 = vst [vmem:[%s151 + $0x20] sm:$0xff] %v160
            %v162 = vld [vmem:[%s150 + $0x28] sm:$0xff]
            %163 = vst [vmem:[%s151 + $0x28] sm:$0xff] %v162
            %v164 = vld [vmem:[%s150 + $0x30] sm:$0xff]
            %165 = vst [vmem:[%s151 + $0x30] sm:$0xff] %v164
            %v166 = vld [vmem:[%s150 + $0x38] sm:$0xff]
            %167 = vst [vmem:[%s151 + $0x38] sm:$0xff] %v166
          $region63: #{reverse.5} parent=57 // loop_footer
            %s149 = sadd.s32 1, %s145
          $region64: #{reverse.5} parent=57 // loop_footer_branch
            %144 = sbr.rel target = $region60
          $region65: #{reverse.5} parent=57 // loop_exit
            _
        $region58: #{reverse.5} parent=42 // pred_fallthru
          _
        // Predicated region
        $region66: #{reverse.5} parent=42 // pred_check
          _
        $region67: #{reverse.5} parent=42 // pred_check_branch
          %169 = sbr.rel target = $region69
        $region68: #{reverse.5} parent=42 // pred_region
          _
        $region69: #{reverse.5} parent=42 // pred_fallthru
          _
      $region43: #{reverse.5} parent=38 // pred_fallthru
        _
      // Predicated region
      $region44: #{reverse.5} parent=38 // pred_check
        _
      $region45: #{reverse.5} parent=38 // pred_check_branch
        %116 = sbr.rel target = $region47
      $region46: #{reverse.5} parent=38 // pred_region
        loop: start=0, step=1, limit=1
        $region48: #{reverse.5} parent=46 // loop_pre_header
          _
        $region49: #{reverse.5} parent=46 // loop_header
          %s119 = sphi 0, %s123
          %p120 = scmp.ge.s32.totalorder %s119, 1
          %s124 = sphi [#allocation1], [#allocation1]
          %s125 = sphi %s1, %s1
        $region50: #{reverse.5} parent=46 // loop_header_branch
          %122 = sbr.rel (%p120) target = $region54
        $region51: #{reverse.5} parent=46 // loop_body
          %v126 = vld [vmem:[%s124] sm:$0xff]
          %127 = vst [vmem:[%s125] sm:$0xff] %v126
          %v128 = vld [vmem:[%s124 + $0x8] sm:$0xff]
          %129 = vst [vmem:[%s125 + $0x8] sm:$0xff] %v128
          %v130 = vld [vmem:[%s124 + $0x10] sm:$0xff]
          %131 = vst [vmem:[%s125 + $0x10] sm:$0xff] %v130
          %v132 = vld [vmem:[%s124 + $0x18] sm:$0xff]
          %133 = vst [vmem:[%s125 + $0x18] sm:$0xff] %v132
          %v134 = vld [vmem:[%s124 + $0x20] sm:$0xff]
          %135 = vst [vmem:[%s125 + $0x20] sm:$0xff] %v134
          %v136 = vld [vmem:[%s124 + $0x28] sm:$0xff]
          %137 = vst [vmem:[%s125 + $0x28] sm:$0xff] %v136
          %v138 = vld [vmem:[%s124 + $0x30] sm:$0xff]
          %139 = vst [vmem:[%s125 + $0x30] sm:$0xff] %v138
          %v140 = vld [vmem:[%s124 + $0x38] sm:$0xff]
          %141 = vst [vmem:[%s125 + $0x38] sm:$0xff] %v140
        $region52: #{reverse.5} parent=46 // loop_footer
          %s123 = sadd.s32 1, %s119
        $region53: #{reverse.5} parent=46 // loop_footer_branch
          %118 = sbr.rel target = $region49
        $region54: #{reverse.5} parent=46 // loop_exit
          _
      $region47: #{reverse.5} parent=38 // pred_fallthru
        _
    $region39: #{reverse.5} parent=1 // pred_fallthru
      _
    %170 = vnop

// kernel: model_forward.30
$region0: #{model_forward.30}
  #allocation0 [shape = 'u32[]', space=smem, size = 0x4, offset = 0x4, fixed_abs, tag = 'smem constant byte address 0x4 - core index']
  #allocation1 [shape = 'u32[144,128]{1,0:T(1,128)}', space=vmem, size = 0x12000, scoped, tag = 'internal scratch']
  %s0 = inlined_call_operand.vmem [shape: f32[2,16,32], index: 0, kind: input, shape index: {}]
  %s1 = inlined_call_operand.vmem [shape: f32[2,16,32], index: 1, kind: input, shape index: {}]
  %s2 = inlined_call_operand.vmem [shape: bf16[32,32], index: 2, kind: input, shape index: {}]
  %s3 = inlined_call_operand.vmem [shape: f32[1,32], index: 3, kind: input, shape index: {}]
  %s4 = inlined_call_operand.vmem [shape: f32[2,16,32], index: 4, kind: output, shape index: {0}]
  %s5 = inlined_call_operand.hbm [shape: f32[2,16,32], index: 5, kind: output, shape index: {1}]
  %6 = xla_tuple %s4, %s5
  %s7 = sld [smem:[#allocation0]]
  $region34: #{model_forward.30} parent=0
    _
  %s9 = ssub.s32 1, %s7
  %s10 = scalar_select 0, %s9, %s7
  $region1: #{model_forward.30} parent=0
    #allocation2 [shape = 'u8[16384]{0}', space=vmem, size = 0x4000, scoped, tag = 'output window, operand 1, single buffered']
    #allocation3 [shape = 's32[1]{0}', space=sflag, size = 0x4, scoped, tag = 'scoped memory for model_forward.30']
    %11 = vsyncpa [#allocation3], 0
    // Predicated region
    $region2: #{model_forward.30} parent=1 // pred_check
      _
    $region3: #{model_forward.30} parent=1 // pred_check_branch
      %13 = sbr.rel (0) target = $region5
    $region4: #{model_forward.30} parent=1 // pred_region
      _
    $region5: #{model_forward.30} parent=1 // pred_fallthru
      _
    // Predicated region
    $region6: #{model_forward.30} parent=1 // pred_check
      _
    $region7: #{model_forward.30} parent=1 // pred_check_branch
      %15 = sbr.rel (0) target = $region9
    $region8: #{model_forward.30} parent=1 // pred_region
      _
    $region9: #{model_forward.30} parent=1 // pred_fallthru
      _
    // Predicated region
    $region10: #{model_forward.30} parent=1 // pred_check
      _
    $region11: #{model_forward.30} parent=1 // pred_check_branch
      %17 = sbr.rel (0) target = $region13
    $region12: #{model_forward.30} parent=1 // pred_region
      _
    $region13: #{model_forward.30} parent=1 // pred_fallthru
      _
    // Predicated region
    $region14: #{model_forward.30} parent=1 // pred_check
      _
    $region15: #{model_forward.30} parent=1 // pred_check_branch
      %19 = sbr.rel (0) target = $region17
    $region16: #{model_forward.30} parent=1 // pred_region
      _
    $region17: #{model_forward.30} parent=1 // pred_fallthru
      _
    %v21 = vld [vmem:[%s2] sm:$0xf]
    %v22 = vld [vmem:[%s2 + $0x4] sm:$0xf]
    %v23 = vld [vmem:[%s2 + $0x8] sm:$0xf]
    %v24 = vld [vmem:[%s2 + $0xc] sm:$0xf]
    %v25 = vld [vmem:[%s3] sm:$0x1]
    %v26 = vld [vmem:[%s0] sm:$0xff]
    %v27 = vld [vmem:[%s0 + $0x8] sm:$0xff]
    %v28 = vpack.c.bf16 %v27, %v26
    %v30 = vlaneseq
    %v31 = vshrl.u32 %v30, 7
    %v32 = vsub.s32 0, %v31
    %v33 = vrot.slane %v25, %v32
    %v39 = vunpack.c.l.b16 %v21
    %v40 = vunpack.c.l.b16 %v22
    %v41 = vunpack.c.l.b16 %v23
    %v42 = vunpack.c.l.b16 %v24
    %v43 = vpack.c.b16 %v40, %v39
    %v44 = vpack.c.b16 %v42, %v41
    %vm47 = vcmask 261120
    %v49 = vsel %vm47, %v28, 0
    %51 = vmatprep.subr.bf16.mxu0 0
    %52 = vmatpush1.bf16.msra.mxu0 %v43
    %53 = vmatprep.subr.bf16.mxu0 0
    %54 = vmatpush1.bf16.msra.mxu0 %v44
    %55 = vmatprep.subr.bf16.mxu0 0
    %56 = vmatpush1.bf16.msra.mxu0 0
    %57 = vmatprep.subr.bf16.mxu0 0
    %58 = vmatpush1.bf16.msra.mxu0 0
    %59 = vmatprep.subr.bf16.mxu0 0
    %60 = vmatpush1.bf16.msra.mxu0 0
    %61 = vmatprep.subr.bf16.mxu0 0
    %62 = vmatpush1.bf16.msra.mxu0 0
    %63 = vmatprep.subr.bf16.mxu0 0
    %64 = vmatpush1.bf16.msra.mxu0 0
    %65 = vmatprep.subr.bf16.mxu0 0
    %66 = vmatpush1.bf16.msra.mxu0 0
    %67 = vmatprep.subr.bf16.mxu0 0
    %68 = vmatpush1.bf16.msra.mxu0 0
    %69 = vmatprep.subr.bf16.mxu0 0
    %70 = vmatpush1.bf16.msra.mxu0 0
    %71 = vmatprep.subr.bf16.mxu0 0
    %72 = vmatpush1.bf16.msra.mxu0 0
    %73 = vmatprep.subr.bf16.mxu0 0
    %74 = vmatpush1.bf16.msra.mxu0 0
    %75 = vmatprep.subr.bf16.mxu0 0
    %76 = vmatpush1.bf16.msra.mxu0 0
    %77 = vmatprep.subr.bf16.mxu0 0
    %78 = vmatpush1.bf16.msra.mxu0 0
    %79 = vmatprep.subr.bf16.mxu0 0
    %80 = vmatpush1.bf16.msra.mxu0 0
    %81 = vmatprep.subr.bf16.mxu0 0
    %82 = vmatpush1.bf16.msra.mxu0 0
    %83 = vmatprep.mubr.bf16.mxu0 0
    %84 = vmatmul.mubr.bf16.gmra.mrb[0].mxu0 %v49
    %v85 = vpop.f32.mrb[0].mxu0
    %v86 = vadd.f32 %v33, %v85
    %v87 = vpop.f32.mrb[0].mxu0
    %v88 = vpop.f32.mrb[0].mxu0
    %v89 = vadd.f32 %v33, %v88
    %v90 = vpop.f32.mrb[0].mxu0
    %91 = vdwg.mxu0
    %v92 = vld [vmem:[%s1] sm:$0xff]
    %v93 = vld [vmem:[%s1 + $0x8] sm:$0xff]
    %v94 = vadd.f32 %v92, %v86
    %v95 = vadd.f32 %v93, %v89
    %vm98 = vcmask 1040384
    %v99 = vrot.slane %v94, 7
    %v100 = vrot.slane %v95, 7
    %v101 = vsel %vm98, %v99, %v100
    %v104 = vsel %vm98, %v94, %v99
    %vm105 = vcmask 1046528
    %v106 = vrot.slane %v94, 1
    %v107 = vrot.slane %v95, 1
    %v108 = vsel %vm105, %v106, %v107
    %v111 = vsel %vm105, %v107, %v95
    %v112 = vadd.f32 %v94, %v104
    %v113 = vadd.f32 %v95, %v101
    %v114 = vadd.f32 %v112, %v108
    %v115 = vadd.f32 %v113, %v111
    %vm116 = vcmask 1041408
    %v117 = vrot.slane %v94, 6
    %v118 = vrot.slane %v95, 6
    %v119 = vsel %vm116, %v117, %v118
    %v122 = vsel %vm116, %v104, %v117
    %vm123 = vcmask 1045504
    %v124 = vrot.slane %v94, 2
    %v125 = vrot.slane %v95, 2
    %v126 = vsel %vm123, %v124, %v125
    %v129 = vsel %vm123, %v125, %v107
    %v130 = vsel %vm105, %v129, %v95
    %v131 = vadd.f32 %v114, %v122
    %v132 = vadd.f32 %v115, %v119
    %v133 = vadd.f32 %v131, %v126
    %v134 = vadd.f32 %v132, %v130
    %v135 = vmul.f32 %v133, 0.2
    %v136 = vmul.f32 %v134, 0.2
    %v137 = vsub.f32 %v94, %v135
    %v138 = vsub.f32 %v95, %v136
    %139 = vst.msk [vmem:[%s4] sm:$0xff] %vm47, %v137
    %140 = vst.msk [vmem:[%s4 + $0x8] sm:$0xff] %vm47, %v138
    %141 = vst.msk [vmem:[#allocation2] sm:$0xff] %vm47, %v135
    %142 = vst.msk [vmem:[#allocation2 + $0x8] sm:$0xff] %vm47, %v136
    %s143 = scalar_lea.vmem %s0, 16
    %v144 = vld [vmem:[%s143] sm:$0xff]
    %v145 = vld [vmem:[%s143 + $0x8] sm:$0xff]
    %v146 = vpack.c.bf16 %v145, %v144
    %v148 = vsel %vm47, %v146, 0
    %150 = vmatprep.subr.bf16.mxu0 0
    %151 = vmatpush1.bf16.msra.mxu0 %v43
    %152 = vmatprep.subr.bf16.mxu0 0
    %153 = vmatpush1.bf16.msra.mxu0 %v44
    %154 = vmatprep.subr.bf16.mxu0 0
    %155 = vmatpush1.bf16.msra.mxu0 0
    %156 = vmatprep.subr.bf16.mxu0 0
    %157 = vmatpush1.bf16.msra.mxu0 0
    %158 = vmatprep.subr.bf16.mxu0 0
    %159 = vmatpush1.bf16.msra.mxu0 0
    %160 = vmatprep.subr.bf16.mxu0 0
    %161 = vmatpush1.bf16.msra.mxu0 0
    %162 = vmatprep.subr.bf16.mxu0 0
    %163 = vmatpush1.bf16.msra.mxu0 0
    %164 = vmatprep.subr.bf16.mxu0 0
    %165 = vmatpush1.bf16.msra.mxu0 0
    %166 = vmatprep.subr.bf16.mxu0 0
    %167 = vmatpush1.bf16.msra.mxu0 0
    %168 = vmatprep.subr.bf16.mxu0 0
    %169 = vmatpush1.bf16.msra.mxu0 0
    %170 = vmatprep.subr.bf16.mxu0 0
    %171 = vmatpush1.bf16.msra.mxu0 0
    %172 = vmatprep.subr.bf16.mxu0 0
    %173 = vmatpush1.bf16.msra.mxu0 0
    %174 = vmatprep.subr.bf16.mxu0 0
    %175 = vmatpush1.bf16.msra.mxu0 0
    %176 = vmatprep.subr.bf16.mxu0 0
    %177 = vmatpush1.bf16.msra.mxu0 0
    %178 = vmatprep.subr.bf16.mxu0 0
    %179 = vmatpush1.bf16.msra.mxu0 0
    %180 = vmatprep.subr.bf16.mxu0 0
    %181 = vmatpush1.bf16.msra.mxu0 0
    %182 = vmatprep.mubr.bf16.mxu0 0
    %183 = vmatmul.mubr.bf16.gmra.mrb[0].mxu0 %v148
    %v184 = vpop.f32.mrb[0].mxu0
    %v185 = vadd.f32 %v33, %v184
    %v186 = vpop.f32.mrb[0].mxu0
    %v187 = vpop.f32.mrb[0].mxu0
    %v188 = vadd.f32 %v33, %v187
    %v189 = vpop.f32.mrb[0].mxu0
    %190 = vdwg.mxu0
    %s191 = scalar_lea.vmem %s1, 16
    %v192 = vld [vmem:[%s191] sm:$0xff]
    %v193 = vld [vmem:[%s191 + $0x8] sm:$0xff]
    %v194 = vadd.f32 %v192, %v185
    %v195 = vadd.f32 %v193, %v188
    %v198 = vrot.slane %v194, 7
    %v199 = vrot.slane %v195, 7
    %v200 = vsel %vm98, %v198, %v199
    %v203 = vsel %vm98, %v194, %v198
    %v204 = vrot.slane %v194, 1
    %v205 = vrot.slane %v195, 1
    %v206 = vsel %vm105, %v204, %v205
    %v209 = vsel %vm105, %v205, %v195
    %v210 = vadd.f32 %v194, %v203
    %v211 = vadd.f32 %v195, %v200
    %v212 = vadd.f32 %v210, %v206
    %v213 = vadd.f32 %v211, %v209
    %v214 = vrot.slane %v194, 6
    %v215 = vrot.slane %v195, 6
    %v216 = vsel %vm116, %v214, %v215
    %v219 = vsel %vm116, %v203, %v214
    %v220 = vrot.slane %v194, 2
    %v221 = vrot.slane %v195, 2
    %v222 = vsel %vm123, %v220, %v221
    %v225 = vsel %vm123, %v221, %v205
    %v226 = vsel %vm105, %v225, %v195
    %v227 = vadd.f32 %v212, %v219
    %v228 = vadd.f32 %v213, %v216
    %v229 = vadd.f32 %v227, %v222
    %v230 = vadd.f32 %v228, %v226
    %v231 = vmul.f32 %v229, 0.2
    %v232 = vmul.f32 %v230, 0.2
    %v233 = vsub.f32 %v194, %v231
    %v234 = vsub.f32 %v195, %v232
    %s235 = scalar_lea.vmem %s4, 16
    %236 = vst.msk [vmem:[%s235] sm:$0xff] %vm47, %v233
    %237 = vst.msk [vmem:[%s235 + $0x8] sm:$0xff] %vm47, %v234
    %s238 = scalar_lea.vmem [#allocation2], 16
    %239 = vst.msk [vmem:[%s238] sm:$0xff] %vm47, %v231
    %240 = vst.msk [vmem:[%s238 + $0x8] sm:$0xff] %vm47, %v232
    // Predicated region
    $region18: #{model_forward.30} parent=1 // pred_check
      _
    $region19: #{model_forward.30} parent=1 // pred_check_branch
      %242 = sbr.rel (0) target = $region21
    $region20: #{model_forward.30} parent=1 // pred_region
      _
    $region21: #{model_forward.30} parent=1 // pred_fallthru
      _
    // Predicated region
    $region22: #{model_forward.30} parent=1 // pred_check
      _
    $region23: #{model_forward.30} parent=1 // pred_check_branch
      %244 = sbr.rel (0) target = $region25
    $region24: #{model_forward.30} parent=1 // pred_region
      %s246 = ssub.s32 512, 512
      %247 = vsyncadd [#allocation3], %s246
      %s248 = sshll.u32 [#allocation2], 4
      %s249 = int_to_ptr.vmem [resolvable:$true] %s248
      %254 = dma.vmem_to_hbm [thread:$0]  %s249, 512, %s5, [#allocation3], 128, 128, 8
    $region25: #{model_forward.30} parent=1 // pred_fallthru
      _
    // Predicated region
    $region26: #{model_forward.30} parent=1 // pred_check
      _
    $region27: #{model_forward.30} parent=1 // pred_check_branch
      %256 = sbr.rel (0) target = $region29
    $region28: #{model_forward.30} parent=1 // pred_region
      _
    $region29: #{model_forward.30} parent=1 // pred_fallthru
      _
    // Predicated region
    $region30: #{model_forward.30} parent=1 // pred_check
      _
    $region31: #{model_forward.30} parent=1 // pred_check_branch
      %258 = sbr.rel (0) target = $region33
    $region32: #{model_forward.30} parent=1 // pred_region
      %259 = dma.done [#allocation3], 512
    $region33: #{model_forward.30} parent=1 // pred_fallthru
      _
    %260 = vsyncpa [#allocation3], 1

// kernel: model_forward.32
$region0: #{model_forward.32}
  #allocation0 [shape = 'u32[]', space=smem, size = 0x4, offset = 0x4, fixed_abs, tag = 'smem constant byte address 0x4 - core index']
  #allocation1 [shape = 'u32[144,128]{1,0:T(1,128)}', space=vmem, size = 0x12000, scoped, tag = 'internal scratch']
  %s0 = inlined_call_operand.vmem [shape: f32[2,16,32], index: 0, kind: input, shape index: {}]
  %s1 = inlined_call_operand.vmem [shape: f32[1,32], index: 1, kind: input, shape index: {}]
  %s2 = inlined_call_operand.vmem [shape: f32[1,32], index: 2, kind: input, shape index: {}]
  %s3 = inlined_call_operand.vmem [shape: f32[2,16,32], index: 3, kind: output, shape index: {}]
  %s4 = sld [smem:[#allocation0]]
  $region22: #{model_forward.32} parent=0
    _
  %s6 = ssub.s32 1, %s4
  %s7 = scalar_select 0, %s6, %s4
  // Predicated region
  $region2: #{model_forward.32} parent=0 // pred_check
    _
  $region3: #{model_forward.32} parent=0 // pred_check_branch
    %9 = sbr.rel (0) target = $region5
  $region4: #{model_forward.32} parent=0 // pred_region
    _
  $region5: #{model_forward.32} parent=0 // pred_fallthru
    _
  // Predicated region
  $region6: #{model_forward.32} parent=0 // pred_check
    _
  $region7: #{model_forward.32} parent=0 // pred_check_branch
    %11 = sbr.rel (0) target = $region9
  $region8: #{model_forward.32} parent=0 // pred_region
    _
  $region9: #{model_forward.32} parent=0 // pred_fallthru
    _
  // Predicated region
  $region10: #{model_forward.32} parent=0 // pred_check
    _
  $region11: #{model_forward.32} parent=0 // pred_check_branch
    %13 = sbr.rel (0) target = $region13
  $region12: #{model_forward.32} parent=0 // pred_region
    _
  $region13: #{model_forward.32} parent=0 // pred_fallthru
    _
  %v14 = vld [vmem:[%s1] sm:$0x1]
  %v15 = vld [vmem:[%s2] sm:$0x1]
  %v16 = vld [vmem:[%s0] sm:$0xff]
  %v17 = vld [vmem:[%s0 + $0x8] sm:$0xff]
  %vm18 = vcmask 261120
  %v19 = vsel %vm18, %v16, 0.0
  %20 = vadd.xlane.f32.xlu0 %v19
  %v21 = vpop.xlane.xlu0 %20
  %v22 = vsel %vm18, %v17, 0.0
  %23 = vadd.xlane.f32.xlu0 %v22
  %v24 = vpop.xlane.xlu0 %23
  %v25 = vrcp.pop 32.0
  %v26 = vmul.f32 %v21, %v25
  %v27 = vmul.f32 %v24, %v25
  %v28 = vsub.f32 %v16, %v26
  %v29 = vsub.f32 %v17, %v27
  %v30 = vmul.f32 %v28, %v28
  %v31 = vmul.f32 %v29, %v29
  %v32 = vsel %vm18, %v30, 0.0
  %33 = vadd.xlane.f32.xlu0 %v32
  %v34 = vpop.xlane.xlu0 %33
  %v35 = vsel %vm18, %v31, 0.0
  %36 = vadd.xlane.f32.xlu0 %v35
  %v37 = vpop.xlane.xlu0 %36
  %v38 = vmul.f32 %v34, %v25
  %v39 = vmul.f32 %v37, %v25
  %v40 = vadd.f32 %v38, 1e-05
  %v41 = vadd.f32 %v39, 1e-05
  %v42 = vrsqrt.pop %v40
  %v43 = vrsqrt.pop %v41
  %v44 = vmul.f32 %v28, %v42
  %v45 = vmul.f32 %v29, %v43
  %v47 = vlaneseq
  %v48 = vshrl.u32 %v47, 7
  %v49 = vsub.s32 0, %v48
  %v50 = vrot.slane %v14, %v49
  %v52 = vmul.f32 %v44, %v50
  %v53 = vmul.f32 %v45, %v50
  %v55 = vlaneseq
  %v56 = vshrl.u32 %v55, 7
  %v57 = vsub.s32 0, %v56
  %v58 = vrot.slane %v15, %v57
  %v60 = vadd.f32 %v52, %v58
  %v61 = vadd.f32 %v53, %v58
  %v62 = vsel %vm18, %v60, 0.0
  %v63 = vsel %vm18, %v61, 0.0
  %v64 = vadd.f32 %v62, %v63
  %v65 = vrot.slane %v64, 4
  %v66 = vadd.f32 %v64, %v65
  %v67 = vrot.slane %v66, 2
  %v68 = vadd.f32 %v66, %v67
  %v69 = vrot.slane %v68, 1
  %v70 = vadd.f32 %v68, %v69
  %v71 = vrcp.pop 16.0
  %v72 = vmul.f32 %v70, %v71
  %v73 = vsub.f32 %v60, %v72
  %v74 = vsub.f32 %v61, %v72
  %75 = vst.msk [vmem:[%s3] sm:$0xff] %vm18, %v73
  %76 = vst.msk [vmem:[%s3 + $0x8] sm:$0xff] %vm18, %v74
  %s77 = scalar_lea.vmem %s0, 16
  %v78 = vld [vmem:[%s77] sm:$0xff]
  %v79 = vld [vmem:[%s77 + $0x8] sm:$0xff]
  %v80 = vsel %vm18, %v78, 0.0
  %81 = vadd.xlane.f32.xlu0 %v80
  %v82 = vpop.xlane.xlu0 %81
  %v83 = vsel %vm18, %v79, 0.0
  %84 = vadd.xlane.f32.xlu0 %v83
  %v85 = vpop.xlane.xlu0 %84
  %v86 = vmul.f32 %v82, %v25
  %v87 = vmul.f32 %v85, %v25
  %v88 = vsub.f32 %v78, %v86
  %v89 = vsub.f32 %v79, %v87
  %v90 = vmul.f32 %v88, %v88
  %v91 = vmul.f32 %v89, %v89
  %v92 = vsel %vm18, %v90, 0.0
  %93 = vadd.xlane.f32.xlu0 %v92
  %v94 = vpop.xlane.xlu0 %93
  %v95 = vsel %vm18, %v91, 0.0
  %96 = vadd.xlane.f32.xlu0 %v95
  %v97 = vpop.xlane.xlu0 %96
  %v98 = vmul.f32 %v94, %v25
  %v99 = vmul.f32 %v97, %v25
  %v100 = vadd.f32 %v98, 1e-05
  %v101 = vadd.f32 %v99, 1e-05
  %v102 = vrsqrt.pop %v100
  %v103 = vrsqrt.pop %v101
  %v104 = vmul.f32 %v88, %v102
  %v105 = vmul.f32 %v89, %v103
  %v106 = vmul.f32 %v104, %v50
  %v107 = vmul.f32 %v105, %v50
  %v108 = vadd.f32 %v106, %v58
  %v109 = vadd.f32 %v107, %v58
  %v110 = vsel %vm18, %v108, 0.0
  %v111 = vsel %vm18, %v109, 0.0
  %v112 = vadd.f32 %v110, %v111
  %v113 = vrot.slane %v112, 4
  %v114 = vadd.f32 %v112, %v113
  %v115 = vrot.slane %v114, 2
  %v116 = vadd.f32 %v114, %v115
  %v117 = vrot.slane %v116, 1
  %v118 = vadd.f32 %v116, %v117
  %v119 = vmul.f32 %v118, %v71
  %v120 = vsub.f32 %v108, %v119
  %v121 = vsub.f32 %v109, %v119
  %s122 = scalar_lea.vmem %s3, 16
  %123 = vst.msk [vmem:[%s122] sm:$0xff] %vm18, %v120
  %124 = vst.msk [vmem:[%s122 + $0x8] sm:$0xff] %vm18, %v121
  // Predicated region
  $region14: #{model_forward.32} parent=0 // pred_check
    _
  $region15: #{model_forward.32} parent=0 // pred_check_branch
    %126 = sbr.rel (0) target = $region17
  $region16: #{model_forward.32} parent=0 // pred_region
    _
  $region17: #{model_forward.32} parent=0 // pred_fallthru
    _
  // Predicated region
  $region18: #{model_forward.32} parent=0 // pred_check
    _
  $region19: #{model_forward.32} parent=0 // pred_check_branch
    %128 = sbr.rel (0) target = $region21
  $region20: #{model_forward.32} parent=0 // pred_region
    _
  $region21: #{model_forward.32} parent=0 // pred_fallthru
    _

// kernel: model_forward.31
$region0: #{model_forward.31}
  #allocation0 [shape = 'u32[]', space=smem, size = 0x4, offset = 0x4, fixed_abs, tag = 'smem constant byte address 0x4 - core index']
  #allocation1 [shape = 'u32[144,128]{1,0:T(1,128)}', space=vmem, size = 0x12000, scoped, tag = 'internal scratch']
  %s0 = inlined_call_operand.vmem [shape: f32[2,16,32], index: 0, kind: input, shape index: {}]
  %s1 = inlined_call_operand.vmem [shape: bf16[32,64], index: 1, kind: input, shape index: {}]
  %s2 = inlined_call_operand.vmem [shape: bf16[64,32], index: 2, kind: input, shape index: {}]
  %s3 = inlined_call_operand.vmem [shape: f32[2,16,32], index: 3, kind: output, shape index: {0}]
  %s4 = inlined_call_operand.hbm [shape: f32[2,16,32], index: 4, kind: output, shape index: {1}]
  %5 = xla_tuple %s3, %s4
  %s6 = sld [smem:[#allocation0]]
  $region30: #{model_forward.31} parent=0
    _
  %s8 = ssub.s32 1, %s6
  %s9 = scalar_select 0, %s8, %s6
  $region1: #{model_forward.31} parent=0
    #allocation2 [shape = 'u8[16384]{0}', space=vmem, size = 0x4000, scoped, tag = 'output window, operand 1, single buffered']
    #allocation3 [shape = 's32[1]{0}', space=sflag, size = 0x4, scoped, tag = 'scoped memory for model_forward.31']
    %10 = vsyncpa [#allocation3], 0
    // Predicated region
    $region2: #{model_forward.31} parent=1 // pred_check
      _
    $region3: #{model_forward.31} parent=1 // pred_check_branch
      %12 = sbr.rel (0) target = $region5
    $region4: #{model_forward.31} parent=1 // pred_region
      _
    $region5: #{model_forward.31} parent=1 // pred_fallthru
      _
    // Predicated region
    $region6: #{model_forward.31} parent=1 // pred_check
      _
    $region7: #{model_forward.31} parent=1 // pred_check_branch
      %14 = sbr.rel (0) target = $region9
    $region8: #{model_forward.31} parent=1 // pred_region
      _
    $region9: #{model_forward.31} parent=1 // pred_fallthru
      _
    // Predicated region
    $region10: #{model_forward.31} parent=1 // pred_check
      _
    $region11: #{model_forward.31} parent=1 // pred_check_branch
      %16 = sbr.rel (0) target = $region13
    $region12: #{model_forward.31} parent=1 // pred_region
      _
    $region13: #{model_forward.31} parent=1 // pred_fallthru
      _
    %v18 = vld [vmem:[%s1] sm:$0xf]
    %v19 = vld [vmem:[%s1 + $0x4] sm:$0xf]
    %v20 = vld [vmem:[%s1 + $0x8] sm:$0xf]
    %v21 = vld [vmem:[%s1 + $0xc] sm:$0xf]
    %v22 = vld [vmem:[%s2] sm:$0xf]
    %v23 = vld [vmem:[%s2 + $0x4] sm:$0xf]
    %v24 = vld [vmem:[%s2 + $0x8] sm:$0xf]
    %v25 = vld [vmem:[%s2 + $0xc] sm:$0xf]
    %v26 = vld [vmem:[%s2 + $0x10] sm:$0xf]
    %v27 = vld [vmem:[%s2 + $0x14] sm:$0xf]
    %v28 = vld [vmem:[%s2 + $0x18] sm:$0xf]
    %v29 = vld [vmem:[%s2 + $0x1c] sm:$0xf]
    %v30 = vld [vmem:[%s0] sm:$0xff]
    %v31 = vld [vmem:[%s0 + $0x8] sm:$0xff]
    %v32 = vpack.c.bf16 %v31, %v30
    %v37 = vunpack.c.l.b16 %v18
    %v38 = vunpack.c.l.b16 %v19
    %v39 = vunpack.c.l.b16 %v20
    %v40 = vunpack.c.l.b16 %v21
    %v41 = vpack.c.b16 %v38, %v37
    %v42 = vpack.c.b16 %v40, %v39
    %vm45 = vcmask 261120
    %v47 = vsel %vm45, %v32, 0
    %49 = vmatprep.subr.bf16.mxu0 0
    %50 = vmatpush1.bf16.msra.mxu0 %v41
    %51 = vmatprep.subr.bf16.mxu0 0
    %52 = vmatpush1.bf16.msra.mxu0 %v42
    %53 = vmatprep.subr.bf16.mxu0 0
    %54 = vmatpush1.bf16.msra.mxu0 0
    %55 = vmatprep.subr.bf16.mxu0 0
    %56 = vmatpush1.bf16.msra.mxu0 0
    %57 = vmatprep.subr.bf16.mxu0 0
    %58 = vmatpush1.bf16.msra.mxu0 0
    %59 = vmatprep.subr.bf16.mxu0 0
    %60 = vmatpush1.bf16.msra.mxu0 0
    %61 = vmatprep.subr.bf16.mxu0 0
    %62 = vmatpush1.bf16.msra.mxu0 0
    %63 = vmatprep.subr.bf16.mxu0 0
    %64 = vmatpush1.bf16.msra.mxu0 0
    %65 = vmatprep.subr.bf16.mxu0 0
    %66 = vmatpush1.bf16.msra.mxu0 0
    %67 = vmatprep.subr.bf16.mxu0 0
    %68 = vmatpush1.bf16.msra.mxu0 0
    %69 = vmatprep.subr.bf16.mxu0 0
    %70 = vmatpush1.bf16.msra.mxu0 0
    %71 = vmatprep.subr.bf16.mxu0 0
    %72 = vmatpush1.bf16.msra.mxu0 0
    %73 = vmatprep.subr.bf16.mxu0 0
    %74 = vmatpush1.bf16.msra.mxu0 0
    %75 = vmatprep.subr.bf16.mxu0 0
    %76 = vmatpush1.bf16.msra.mxu0 0
    %77 = vmatprep.subr.bf16.mxu0 0
    %78 = vmatpush1.bf16.msra.mxu0 0
    %79 = vmatprep.subr.bf16.mxu0 0
    %80 = vmatpush1.bf16.msra.mxu0 0
    %81 = vmatprep.mubr.bf16.mxu0 0
    %82 = vmatmul.mubr.bf16.gmra.mrb[0].mxu0 %v47
    %v83 = vpop.f32.mrb[0].mxu0
    %v84 = vadd.f32 0.0, %v83
    %v85 = vpop.f32.mrb[0].mxu0
    %v86 = vpop.f32.mrb[0].mxu0
    %v87 = vadd.f32 0.0, %v86
    %v88 = vpop.f32.mrb[0].mxu0
    %89 = vdwg.mxu0
    %v90 = vmax.f32 %v84, 0.0
    %v91 = vmax.f32 %v87, 0.0
    %v92 = vpack.c.bf16 %v91, %v90
    %v101 = vunpack.c.l.b16 %v22
    %v102 = vunpack.c.l.b16 %v23
    %v103 = vunpack.c.l.b16 %v24
    %v104 = vunpack.c.l.b16 %v25
    %v105 = vunpack.c.l.b16 %v26
    %v106 = vunpack.c.l.b16 %v27
    %v107 = vunpack.c.l.b16 %v28
    %v108 = vunpack.c.l.b16 %v29
    %v109 = vpack.c.b16 %v102, %v101
    %v110 = vpack.c.b16 %v104, %v103
    %v111 = vpack.c.b16 %v106, %v105
    %v112 = vpack.c.b16 %v108, %v107
    %vm117 = vcmask 523264
    %v119 = vsel %vm117, %v92, 0
    %121 = vmatprep.subr.bf16.mxu0 0
    %122 = vmatpush1.bf16.msra.mxu0 %v109
    %123 = vmatprep.subr.bf16.mxu0 0
    %124 = vmatpush1.bf16.msra.mxu0 %v110
    %125 = vmatprep.subr.bf16.mxu0 0
    %126 = vmatpush1.bf16.msra.mxu0 %v111
    %127 = vmatprep.subr.bf16.mxu0 0
    %128 = vmatpush1.bf16.msra.mxu0 %v112
    %129 = vmatprep.subr.bf16.mxu0 0
    %130 = vmatpush1.bf16.msra.mxu0 0
    %131 = vmatprep.subr.bf16.mxu0 0
    %132 = vmatpush1.bf16.msra.mxu0 0
    %133 = vmatprep.subr.bf16.mxu0 0
    %134 = vmatpush1.bf16.msra.mxu0 0
    %135 = vmatprep.subr.bf16.mxu0 0
    %136 = vmatpush1.bf16.msra.mxu0 0
    %137 = vmatprep.subr.bf16.mxu0 0
    %138 = vmatpush1.bf16.msra.mxu0 0
    %139 = vmatprep.subr.bf16.mxu0 0
    %140 = vmatpush1.bf16.msra.mxu0 0
    %141 = vmatprep.subr.bf16.mxu0 0
    %142 = vmatpush1.bf16.msra.mxu0 0
    %143 = vmatprep.subr.bf16.mxu0 0
    %144 = vmatpush1.bf16.msra.mxu0 0
    %145 = vmatprep.subr.bf16.mxu0 0
    %146 = vmatpush1.bf16.msra.mxu0 0
    %147 = vmatprep.subr.bf16.mxu0 0
    %148 = vmatpush1.bf16.msra.mxu0 0
    %149 = vmatprep.subr.bf16.mxu0 0
    %150 = vmatpush1.bf16.msra.mxu0 0
    %151 = vmatprep.subr.bf16.mxu0 0
    %152 = vmatpush1.bf16.msra.mxu0 0
    %153 = vmatprep.mubr.bf16.mxu0 0
    %154 = vmatmul.mubr.bf16.gmra.mrb[0].mxu0 %v119
    %v155 = vpop.f32.mrb[0].mxu0
    %v156 = vadd.f32 0.0, %v155
    %v157 = vpop.f32.mrb[0].mxu0
    %v158 = vpop.f32.mrb[0].mxu0
    %v159 = vadd.f32 0.0, %v158
    %v160 = vpop.f32.mrb[0].mxu0
    %161 = vdwg.mxu0
    %v162 = vadd.f32 %v30, %v156
    %v163 = vadd.f32 %v31, %v159
    %vm166 = vcmask 1040384
    %v167 = vrot.slane %v162, 7
    %v168 = vrot.slane %v163, 7
    %v169 = vsel %vm166, %v167, %v168
    %v172 = vsel %vm166, %v162, %v167
    %vm173 = vcmask 1046528
    %v174 = vrot.slane %v162, 1
    %v175 = vrot.slane %v163, 1
    %v176 = vsel %vm173, %v174, %v175
    %v179 = vsel %vm173, %v175, %v163
    %v180 = vadd.f32 %v162, %v172
    %v181 = vadd.f32 %v163, %v169
    %v182 = vadd.f32 %v180, %v176
    %v183 = vadd.f32 %v181, %v179
    %vm184 = vcmask 1041408
    %v185 = vrot.slane %v162, 6
    %v186 = vrot.slane %v163, 6
    %v187 = vsel %vm184, %v185, %v186
    %v190 = vsel %vm184, %v172, %v185
    %vm191 = vcmask 1045504
    %v192 = vrot.slane %v162, 2
    %v193 = vrot.slane %v163, 2
    %v194 = vsel %vm191, %v192, %v193
    %v197 = vsel %vm191, %v193, %v175
    %v198 = vsel %vm173, %v197, %v163
    %v199 = vadd.f32 %v182, %v190
    %v200 = vadd.f32 %v183, %v187
    %v201 = vadd.f32 %v199, %v194
    %v202 = vadd.f32 %v200, %v198
    %v203 = vmul.f32 %v201, 0.2
    %v204 = vmul.f32 %v202, 0.2
    %v205 = vsub.f32 %v162, %v203
    %v206 = vsub.f32 %v163, %v204
    %207 = vst.msk [vmem:[%s3] sm:$0xff] %vm45, %v205
    %208 = vst.msk [vmem:[%s3 + $0x8] sm:$0xff] %vm45, %v206
    %209 = vst.msk [vmem:[#allocation2] sm:$0xff] %vm45, %v203
    %210 = vst.msk [vmem:[#allocation2 + $0x8] sm:$0xff] %vm45, %v204
    %s211 = scalar_lea.vmem %s0, 16
    %v212 = vld [vmem:[%s211] sm:$0xff]
    %v213 = vld [vmem:[%s211 + $0x8] sm:$0xff]
    %v214 = vpack.c.bf16 %v213, %v212
    %v216 = vsel %vm45, %v214, 0
    %218 = vmatprep.subr.bf16.mxu0 0
    %219 = vmatpush1.bf16.msra.mxu0 %v41
    %220 = vmatprep.subr.bf16.mxu0 0
    %221 = vmatpush1.bf16.msra.mxu0 %v42
    %222 = vmatprep.subr.bf16.mxu0 0
    %223 = vmatpush1.bf16.msra.mxu0 0
    %224 = vmatprep.subr.bf16.mxu0 0
    %225 = vmatpush1.bf16.msra.mxu0 0
    %226 = vmatprep.subr.bf16.mxu0 0
    %227 = vmatpush1.bf16.msra.mxu0 0
    %228 = vmatprep.subr.bf16.mxu0 0
    %229 = vmatpush1.bf16.msra.mxu0 0
    %230 = vmatprep.subr.bf16.mxu0 0
    %231 = vmatpush1.bf16.msra.mxu0 0
    %232 = vmatprep.subr.bf16.mxu0 0
    %233 = vmatpush1.bf16.msra.mxu0 0
    %234 = vmatprep.subr.bf16.mxu0 0
    %235 = vmatpush1.bf16.msra.mxu0 0
    %236 = vmatprep.subr.bf16.mxu0 0
    %237 = vmatpush1.bf16.msra.mxu0 0
    %238 = vmatprep.subr.bf16.mxu0 0
    %239 = vmatpush1.bf16.msra.mxu0 0
    %240 = vmatprep.subr.bf16.mxu0 0
    %241 = vmatpush1.bf16.msra.mxu0 0
    %242 = vmatprep.subr.bf16.mxu0 0
    %243 = vmatpush1.bf16.msra.mxu0 0
    %244 = vmatprep.subr.bf16.mxu0 0
    %245 = vmatpush1.bf16.msra.mxu0 0
    %246 = vmatprep.subr.bf16.mxu0 0
    %247 = vmatpush1.bf16.msra.mxu0 0
    %248 = vmatprep.subr.bf16.mxu0 0
    %249 = vmatpush1.bf16.msra.mxu0 0
    %250 = vmatprep.mubr.bf16.mxu0 0
    %251 = vmatmul.mubr.bf16.gmra.mrb[0].mxu0 %v216
    %v252 = vpop.f32.mrb[0].mxu0
    %v253 = vadd.f32 0.0, %v252
    %v254 = vpop.f32.mrb[0].mxu0
    %v255 = vpop.f32.mrb[0].mxu0
    %v256 = vadd.f32 0.0, %v255
    %v257 = vpop.f32.mrb[0].mxu0
    %258 = vdwg.mxu0
    %v259 = vmax.f32 %v253, 0.0
    %v260 = vmax.f32 %v256, 0.0
    %v261 = vpack.c.bf16 %v260, %v259
    %v263 = vsel %vm117, %v261, 0
    %265 = vmatprep.subr.bf16.mxu0 0
    %266 = vmatpush1.bf16.msra.mxu0 %v109
    %267 = vmatprep.subr.bf16.mxu0 0
    %268 = vmatpush1.bf16.msra.mxu0 %v110
    %269 = vmatprep.subr.bf16.mxu0 0
    %270 = vmatpush1.bf16.msra.mxu0 %v111
    %271 = vmatprep.subr.bf16.mxu0 0
    %272 = vmatpush1.bf16.msra.mxu0 %v112
    %273 = vmatprep.subr.bf16.mxu0 0
    %274 = vmatpush1.bf16.msra.mxu0 0
    %275 = vmatprep.subr.bf16.mxu0 0
    %276 = vmatpush1.bf16.msra.mxu0 0
    %277 = vmatprep.subr.bf16.mxu0 0
    %278 = vmatpush1.bf16.msra.mxu0 0
    %279 = vmatprep.subr.bf16.mxu0 0
    %280 = vmatpush1.bf16.msra.mxu0 0
    %281 = vmatprep.subr.bf16.mxu0 0
    %282 = vmatpush1.bf16.msra.mxu0 0
    %283 = vmatprep.subr.bf16.mxu0 0
    %284 = vmatpush1.bf16.msra.mxu0 0
    %285 = vmatprep.subr.bf16.mxu0 0
    %286 = vmatpush1.bf16.msra.mxu0 0
    %287 = vmatprep.subr.bf16.mxu0 0
    %288 = vmatpush1.bf16.msra.mxu0 0
    %289 = vmatprep.subr.bf16.mxu0 0
    %290 = vmatpush1.bf16.msra.mxu0 0
    %291 = vmatprep.subr.bf16.mxu0 0
    %292 = vmatpush1.bf16.msra.mxu0 0
    %293 = vmatprep.subr.bf16.mxu0 0
    %294 = vmatpush1.bf16.msra.mxu0 0
    %295 = vmatprep.subr.bf16.mxu0 0
    %296 = vmatpush1.bf16.msra.mxu0 0
    %297 = vmatprep.mubr.bf16.mxu0 0
    %298 = vmatmul.mubr.bf16.gmra.mrb[0].mxu0 %v263
    %v299 = vpop.f32.mrb[0].mxu0
    %v300 = vadd.f32 0.0, %v299
    %v301 = vpop.f32.mrb[0].mxu0
    %v302 = vpop.f32.mrb[0].mxu0
    %v303 = vadd.f32 0.0, %v302
    %v304 = vpop.f32.mrb[0].mxu0
    %305 = vdwg.mxu0
    %v306 = vadd.f32 %v212, %v300
    %v307 = vadd.f32 %v213, %v303
    %v310 = vrot.slane %v306, 7
    %v311 = vrot.slane %v307, 7
    %v312 = vsel %vm166, %v310, %v311
    %v315 = vsel %vm166, %v306, %v310
    %v316 = vrot.slane %v306, 1
    %v317 = vrot.slane %v307, 1
    %v318 = vsel %vm173, %v316, %v317
    %v321 = vsel %vm173, %v317, %v307
    %v322 = vadd.f32 %v306, %v315
    %v323 = vadd.f32 %v307, %v312
    %v324 = vadd.f32 %v322, %v318
    %v325 = vadd.f32 %v323, %v321
    %v326 = vrot.slane %v306, 6
    %v327 = vrot.slane %v307, 6
    %v328 = vsel %vm184, %v326, %v327
    %v331 = vsel %vm184, %v315, %v326
    %v332 = vrot.slane %v306, 2
    %v333 = vrot.slane %v307, 2
    %v334 = vsel %vm191, %v332, %v333
    %v337 = vsel %vm191, %v333, %v317
    %v338 = vsel %vm173, %v337, %v307
    %v339 = vadd.f32 %v324, %v331
    %v340 = vadd.f32 %v325, %v328
    %v341 = vadd.f32 %v339, %v334
    %v342 = vadd.f32 %v340, %v338
    %v343 = vmul.f32 %v341, 0.2
    %v344 = vmul.f32 %v342, 0.2
    %v345 = vsub.f32 %v306, %v343
    %v346 = vsub.f32 %v307, %v344
    %s347 = scalar_lea.vmem %s3, 16
    %348 = vst.msk [vmem:[%s347] sm:$0xff] %vm45, %v345
    %349 = vst.msk [vmem:[%s347 + $0x8] sm:$0xff] %vm45, %v346
    %s350 = scalar_lea.vmem [#allocation2], 16
    %351 = vst.msk [vmem:[%s350] sm:$0xff] %vm45, %v343
    %352 = vst.msk [vmem:[%s350 + $0x8] sm:$0xff] %vm45, %v344
    // Predicated region
    $region14: #{model_forward.31} parent=1 // pred_check
      _
    $region15: #{model_forward.31} parent=1 // pred_check_branch
      %354 = sbr.rel (0) target = $region17
    $region16: #{model_forward.31} parent=1 // pred_region
      _
    $region17: #{model_forward.31} parent=1 // pred_fallthru
      _
    // Predicated region
    $region18: #{model_forward.31} parent=1 // pred_check
      _
    $region19: #{model_forward.31} parent=1 // pred_check_branch
      %356 = sbr.rel (0) target = $region21
    $region20: #{model_forward.31} parent=1 // pred_region
      %s358 = ssub.s32 512, 512
      %359 = vsyncadd [#allocation3], %s358
      %s360 = sshll.u32 [#allocation2], 4
      %s361 = int_to_ptr.vmem [resolvable:$true] %s360
      %366 = dma.vmem_to_hbm [thread:$0]  %s361, 512, %s4, [#allocation3], 128, 128, 8
    $region21: #{model_forward.31} parent=1 // pred_fallthru
      _
    // Predicated region
    $region22: #{model_forward.31} parent=1 // pred_check
      _
    $region23: #{model_forward.31} parent=1 // pred_check_branch
      %368 = sbr.rel (0) target = $region25
    $region24: #{model_forward.31} parent=1 // pred_region
      _
    $region25: #{model_forward.31} parent=1 // pred_fallthru
      _
    // Predicated region
    $region26: #{model_forward.31} parent=1 // pred_check
      _
    $region27: #{model_forward.31} parent=1 // pred_check_branch
      %370 = sbr.rel (0) target = $region29
    $region28: #{model_forward.31} parent=1 // pred_region
      %371 = dma.done [#allocation3], 512
    $region29: #{model_forward.31} parent=1 // pred_fallthru
      _
    %372 = vsyncpa [#allocation3], 1

// kernel: model_forward.33
$region0: #{model_forward.33}
  #allocation0 [shape = 'u32[]', space=smem, size = 0x4, offset = 0x4, fixed_abs, tag = 'smem constant byte address 0x4 - core index']
  #allocation1 [shape = 'u32[144,128]{1,0:T(1,128)}', space=vmem, size = 0x12000, scoped, tag = 'internal scratch']
  %s0 = inlined_call_operand.vmem [shape: f32[2,8,32], index: 0, kind: input, shape index: {}]
  %s1 = inlined_call_operand.vmem [shape: bf16[32,96], index: 1, kind: input, shape index: {}]
  %s2 = inlined_call_operand.vmem [shape: f32[1,96], index: 2, kind: input, shape index: {}]
  %s3 = inlined_call_operand.vmem [shape: f32[2,8,96], index: 3, kind: output, shape index: {}]
  %s4 = sld [smem:[#allocation0]]
  $region22: #{model_forward.33} parent=0
    _
  %s6 = ssub.s32 1, %s4
  %s7 = scalar_select 0, %s6, %s4
  // Predicated region
  $region2: #{model_forward.33} parent=0 // pred_check
    _
  $region3: #{model_forward.33} parent=0 // pred_check_branch
    %9 = sbr.rel (0) target = $region5
  $region4: #{model_forward.33} parent=0 // pred_region
    _
  $region5: #{model_forward.33} parent=0 // pred_fallthru
    _
  // Predicated region
  $region6: #{model_forward.33} parent=0 // pred_check
    _
  $region7: #{model_forward.33} parent=0 // pred_check_branch
    %11 = sbr.rel (0) target = $region9
  $region8: #{model_forward.33} parent=0 // pred_region
    _
  $region9: #{model_forward.33} parent=0 // pred_fallthru
    _
  // Predicated region
  $region10: #{model_forward.33} parent=0 // pred_check
    _
  $region11: #{model_forward.33} parent=0 // pred_check_branch
    %13 = sbr.rel (0) target = $region13
  $region12: #{model_forward.33} parent=0 // pred_region
    _
  $region13: #{model_forward.33} parent=0 // pred_fallthru
    _
  %v15 = vld [vmem:[%s1] sm:$0xf]
  %v16 = vld [vmem:[%s1 + $0x4] sm:$0xf]
  %v17 = vld [vmem:[%s1 + $0x8] sm:$0xf]
  %v18 = vld [vmem:[%s1 + $0xc] sm:$0xf]
  %v19 = vld [vmem:[%s2] sm:$0x1]
  %v20 = vld [vmem:[%s0] sm:$0xff]
  %v21 = vpack.c.bf16 %v20, %v20
  %v23 = vlaneseq
  %v24 = vshrl.u32 %v23, 7
  %v25 = vsub.s32 0, %v24
  %v26 = vrot.slane %v19, %v25
  %v32 = vunpack.c.l.b16 %v15
  %v33 = vunpack.c.l.b16 %v16
  %v34 = vunpack.c.l.b16 %v17
  %v35 = vunpack.c.l.b16 %v18
  %v36 = vpack.c.b16 %v33, %v32
  %v37 = vpack.c.b16 %v35, %v34
  %vm40 = vcmask 261120
  %v42 = vsel %vm40, %v21, 0
  %44 = vmatprep.subr.bf16.mxu0 0
  %45 = vmatpush1.bf16.msra.mxu0 %v36
  %46 = vmatprep.subr.bf16.mxu0 0
  %47 = vmatpush1.bf16.msra.mxu0 %v37
  %48 = vmatprep.subr.bf16.mxu0 0
  %49 = vmatpush1.bf16.msra.mxu0 0
  %50 = vmatprep.subr.bf16.mxu0 0
  %51 = vmatpush1.bf16.msra.mxu0 0
  %52 = vmatprep.subr.bf16.mxu0 0
  %53 = vmatpush1.bf16.msra.mxu0 0
  %54 = vmatprep.subr.bf16.mxu0 0
  %55 = vmatpush1.bf16.msra.mxu0 0
  %56 = vmatprep.subr.bf16.mxu0 0
  %57 = vmatpush1.bf16.msra.mxu0 0
  %58 = vmatprep.subr.bf16.mxu0 0
  %59 = vmatpush1.bf16.msra.mxu0 0
  %60 = vmatprep.subr.bf16.mxu0 0
  %61 = vmatpush1.bf16.msra.mxu0 0
  %62 = vmatprep.subr.bf16.mxu0 0
  %63 = vmatpush1.bf16.msra.mxu0 0
  %64 = vmatprep.subr.bf16.mxu0 0
  %65 = vmatpush1.bf16.msra.mxu0 0
  %66 = vmatprep.subr.bf16.mxu0 0
  %67 = vmatpush1.bf16.msra.mxu0 0
  %68 = vmatprep.subr.bf16.mxu0 0
  %69 = vmatpush1.bf16.msra.mxu0 0
  %70 = vmatprep.subr.bf16.mxu0 0
  %71 = vmatpush1.bf16.msra.mxu0 0
  %72 = vmatprep.subr.bf16.mxu0 0
  %73 = vmatpush1.bf16.msra.mxu0 0
  %74 = vmatprep.subr.bf16.mxu0 0
  %75 = vmatpush1.bf16.msra.mxu0 0
  %76 = vmatprep.mubr.bf16.mxu0 0
  %77 = vmatmul.mubr.bf16.gmra.mrb[0].mxu0 %v42
  %v78 = vpop.f32.mrb[0].mxu0
  %v79 = vadd.f32 %v26, %v78
  %v80 = vpop.f32.mrb[0].mxu0
  %v81 = vpop.f32.mrb[0].mxu0
  %v82 = vpop.f32.mrb[0].mxu0
  %83 = vdwg.mxu0
  %vm84 = vcmask 785408
  %85 = vst.msk [vmem:[%s3] sm:$0xff] %vm84, %v79
  %s86 = scalar_lea.vmem %s0, 8
  %v87 = vld [vmem:[%s86] sm:$0xff]
  %v88 = vpack.c.bf16 %v87, %v87
  %v90 = vsel %vm40, %v88, 0
  %92 = vmatprep.subr.bf16.mxu0 0
  %93 = vmatpush1.bf16.msra.mxu0 %v36
  %94 = vmatprep.subr.bf16.mxu0 0
  %95 = vmatpush1.bf16.msra.mxu0 %v37
  %96 = vmatprep.subr.bf16.mxu0 0
  %97 = vmatpush1.bf16.msra.mxu0 0
  %98 = vmatprep.subr.bf16.mxu0 0
  %99 = vmatpush1.bf16.msra.mxu0 0
  %100 = vmatprep.subr.bf16.mxu0 0
  %101 = vmatpush1.bf16.msra.mxu0 0
  %102 = vmatprep.subr.bf16.mxu0 0
  %103 = vmatpush1.bf16.msra.mxu0 0
  %104 = vmatprep.subr.bf16.mxu0 0
  %105 = vmatpush1.bf16.msra.mxu0 0
  %106 = vmatprep.subr.bf16.mxu0 0
  %107 = vmatpush1.bf16.msra.mxu0 0
  %108 = vmatprep.subr.bf16.mxu0 0
  %109 = vmatpush1.bf16.msra.mxu0 0
  %110 = vmatprep.subr.bf16.mxu0 0
  %111 = vmatpush1.bf16.msra.mxu0 0
  %112 = vmatprep.subr.bf16.mxu0 0
  %113 = vmatpush1.bf16.msra.mxu0 0
  %114 = vmatprep.subr.bf16.mxu0 0
  %115 = vmatpush1.bf16.msra.mxu0 0
  %116 = vmatprep.subr.bf16.mxu0 0
  %117 = vmatpush1.bf16.msra.mxu0 0
  %118 = vmatprep.subr.bf16.mxu0 0
  %119 = vmatpush1.bf16.msra.mxu0 0
  %120 = vmatprep.subr.bf16.mxu0 0
  %121 = vmatpush1.bf16.msra.mxu0 0
  %122 = vmatprep.subr.bf16.mxu0 0
  %123 = vmatpush1.bf16.msra.mxu0 0
  %124 = vmatprep.mubr.bf16.mxu0 0
  %125 = vmatmul.mubr.bf16.gmra.mrb[0].mxu0 %v90
  %v126 = vpop.f32.mrb[0].mxu0
  %v127 = vadd.f32 %v26, %v126
  %v128 = vpop.f32.mrb[0].mxu0
  %v129 = vpop.f32.mrb[0].mxu0
  %v130 = vpop.f32.mrb[0].mxu0
  %131 = vdwg.mxu0
  %s132 = scalar_lea.vmem %s3, 8
  %133 = vst.msk [vmem:[%s132] sm:$0xff] %vm84, %v127
  // Predicated region
  $region14: #{model_forward.33} parent=0 // pred_check
    _
  $region15: #{model_forward.33} parent=0 // pred_check_branch
    %135 = sbr.rel (0) target = $region17
  $region16: #{model_forward.33} parent=0 // pred_region
    _
  $region17: #{model_forward.33} parent=0 // pred_fallthru
    _
  // Predicated region
  $region18: #{model_forward.33} parent=0 // pred_check
    _
  $region19: #{model_forward.33} parent=0 // pred_check_branch
    %137 = sbr.rel (0) target = $region21
  $region20: #{model_forward.33} parent=0 // pred_region
    _
  $region21: #{model_forward.33} parent=0 // pred_fallthru
    _

// kernel: reverse.7
$region0: #{reverse.7}
  %s0 = inlined_call_operand.vmem [shape: f32[2,4,8,3], index: 0, kind: input, shape index: {}]
  %s1 = inlined_call_operand.vmem [shape: f32[2,4,8,3], index: 1, kind: output, shape index: {}]
  $region1: #{reverse.7} parent=0
    #allocation0 [shape = 'u8[65536]{0}', space=vmem, size = 0x10000, scoped, tag = 'operand span for operand 0']
    #allocation1 [shape = 'u8[32768]{0}', space=vmem, size = 0x8000, scoped, tag = 'packed  for operand 0']
    #allocation2 [shape = 'u8[32768]{0}', space=vmem, size = 0x8000, scoped, tag = 'operand span for operand 1']
    #allocation3 [shape = 'u8[16384]{0}', space=vmem, size = 0x4000, scoped, tag = 'packed  for operand 1']
    %s2 = scalar_lea.vmem [#allocation1], 4
    // Predicated region
    $region2: #{reverse.7} parent=1 // pred_check
      _
    $region3: #{reverse.7} parent=1 // pred_check_branch
      %4 = sbr.rel (0) target = $region5
    $region4: #{reverse.7} parent=1 // pred_region
      // Predicated region
      $region6: #{reverse.7} parent=4 // pred_check
        _
      $region7: #{reverse.7} parent=4 // pred_check_branch
        %6 = sbr.rel target = $region9
      $region8: #{reverse.7} parent=4 // pred_region
        // Predicated region
        $region21: #{reverse.7} parent=8 // pred_check
          _
        $region22: #{reverse.7} parent=8 // pred_check_branch
          %35 = sbr.rel (0) target = $region24
        $region23: #{reverse.7} parent=8 // pred_region
          loop: start=0, step=1, limit=1
          $region25: #{reverse.7} parent=23 // loop_pre_header
            _
          $region26: #{reverse.7} parent=23 // loop_header
            %s37 = sphi 0, %s41
            %p38 = scmp.ge.s32.totalorder %s37, 1
            %s42 = sphi %s0, %s0
            %s43 = sphi %s2, %s2
          $region27: #{reverse.7} parent=23 // loop_header_branch
            %40 = sbr.rel (%p38) target = $region31
          $region28: #{reverse.7} parent=23 // loop_body
            _
          $region29: #{reverse.7} parent=23 // loop_footer
            %s41 = sadd.s32 1, %s37
          $region30: #{reverse.7} parent=23 // loop_footer_branch
            %36 = sbr.rel target = $region26
          $region31: #{reverse.7} parent=23 // loop_exit
            _
          loop: start=0, step=1, limit=1
          $region32: #{reverse.7} parent=23 // loop_pre_header
            _
          $region33: #{reverse.7} parent=23 // loop_header
            %s46 = sphi 0, %s50
            %p47 = scmp.ge.s32.totalorder %s46, 1
            %s51 = sphi %s0, %s0
            %s52 = sphi %s2, %s2
          $region34: #{reverse.7} parent=23 // loop_header_branch
            %49 = sbr.rel (%p47) target = $region38
          $region35: #{reverse.7} parent=23 // loop_body
            %v53 = vld [vmem:[%s51] sm:$0xf]
            %54 = vst [vmem:[%s52] sm:$0xf] %v53
            %v55 = vld [vmem:[%s51 + $0x4] sm:$0xf]
            %56 = vst [vmem:[%s52 + $0x8] sm:$0xf] %v55
            %v57 = vld [vmem:[%s51 + $0x8] sm:$0xf]
            %58 = vst [vmem:[%s52 + $0x10] sm:$0xf] %v57
            %v59 = vld [vmem:[%s51 + $0xc] sm:$0xf]
            %60 = vst [vmem:[%s52 + $0x18] sm:$0xf] %v59
            %v61 = vld [vmem:[%s51 + $0x10] sm:$0xf]
            %62 = vst [vmem:[%s52 + $0x20] sm:$0xf] %v61
            %v63 = vld [vmem:[%s51 + $0x14] sm:$0xf]
            %64 = vst [vmem:[%s52 + $0x28] sm:$0xf] %v63
            %v65 = vld [vmem:[%s51 + $0x18] sm:$0xf]
            %66 = vst [vmem:[%s52 + $0x30] sm:$0xf] %v65
            %v67 = vld [vmem:[%s51 + $0x1c] sm:$0xf]
            %68 = vst [vmem:[%s52 + $0x38] sm:$0xf] %v67
          $region36: #{reverse.7} parent=23 // loop_footer
            %s50 = sadd.s32 1, %s46
          $region37: #{reverse.7} parent=23 // loop_footer_branch
            %45 = sbr.rel target = $region33
          $region38: #{reverse.7} parent=23 // loop_exit
            _
        $region24: #{reverse.7} parent=8 // pred_fallthru
          _
      $region9: #{reverse.7} parent=4 // pred_fallthru
        _
      // Predicated region
      $region10: #{reverse.7} parent=4 // pred_check
        _
      $region11: #{reverse.7} parent=4 // pred_check_branch
        %8 = sbr.rel (0) target = $region13
      $region12: #{reverse.7} parent=4 // pred_region
        loop: start=0, step=1, limit=1
        $region14: #{reverse.7} parent=12 // loop_pre_header
          _
        $region15: #{reverse.7} parent=12 // loop_header
          %s11 = sphi 0, %s15
          %p12 = scmp.ge.s32.totalorder %s11, 1
          %s16 = sphi %s0, %s0
          %s17 = sphi %s2, %s2
        $region16: #{reverse.7} parent=12 // loop_header_branch
          %14 = sbr.rel (%p12) target = $region20
        $region17: #{reverse.7} parent=12 // loop_body
          %v18 = vld [vmem:[%s16] sm:$0xf]
          %19 = vst [vmem:[%s17] sm:$0xf] %v18
          %v20 = vld [vmem:[%s16 + $0x4] sm:$0xf]
          %21 = vst [vmem:[%s17 + $0x8] sm:$0xf] %v20
          %v22 = vld [vmem:[%s16 + $0x8] sm:$0xf]
          %23 = vst [vmem:[%s17 + $0x10] sm:$0xf] %v22
          %v24 = vld [vmem:[%s16 + $0xc] sm:$0xf]
          %25 = vst [vmem:[%s17 + $0x18] sm:$0xf] %v24
          %v26 = vld [vmem:[%s16 + $0x10] sm:$0xf]
          %27 = vst [vmem:[%s17 + $0x20] sm:$0xf] %v26
          %v28 = vld [vmem:[%s16 + $0x14] sm:$0xf]
          %29 = vst [vmem:[%s17 + $0x28] sm:$0xf] %v28
          %v30 = vld [vmem:[%s16 + $0x18] sm:$0xf]
          %31 = vst [vmem:[%s17 + $0x30] sm:$0xf] %v30
          %v32 = vld [vmem:[%s16 + $0x1c] sm:$0xf]
          %33 = vst [vmem:[%s17 + $0x38] sm:$0xf] %v32
        $region18: #{reverse.7} parent=12 // loop_footer
          %s15 = sadd.s32 1, %s11
        $region19: #{reverse.7} parent=12 // loop_footer_branch
          %10 = sbr.rel target = $region15
        $region20: #{reverse.7} parent=12 // loop_exit
          _
      $region13: #{reverse.7} parent=4 // pred_fallthru
        _
    $region5: #{reverse.7} parent=1 // pred_fallthru
      _
    %69 = vnop
    %s71 = sshllo.u32 0, 4
    %s72 = smul.addr 4, 15
    %s73 = scalar_lea.vmem [#allocation1], %s72
    %v74 = vld [vmem:[%s73] sm:%s71]
    %s75 = scalar_lea.vmem [#allocation0], 120
    %76 = vst [vmem:[%s75] sm:%s71] %v74
    %s77 = smul.addr 4, 14
    %s78 = scalar_lea.vmem [#allocation1], %s77
    %v79 = vld [vmem:[%s78] sm:%s71]
    %s80 = scalar_lea.vmem [#allocation0], 112
    %81 = vst [vmem:[%s80] sm:%s71] %v79
    %s82 = smul.addr 4, 13
    %s83 = scalar_lea.vmem [#allocation1], %s82
    %v84 = vld [vmem:[%s83] sm:%s71]
    %s85 = scalar_lea.vmem [#allocation0], 104
    %86 = vst [vmem:[%s85] sm:%s71] %v84
    %s87 = smul.addr 4, 12
    %s88 = scalar_lea.vmem [#allocation1], %s87
    %v89 = vld [vmem:[%s88] sm:%s71]
    %s90 = scalar_lea.vmem [#allocation0], 96
    %91 = vst [vmem:[%s90] sm:%s71] %v89
    %s92 = smul.addr 4, 11
    %s93 = scalar_lea.vmem [#allocation1], %s92
    %v94 = vld [vmem:[%s93] sm:%s71]
    %s95 = scalar_lea.vmem [#allocation0], 88
    %96 = vst [vmem:[%s95] sm:%s71] %v94
    %s97 = smul.addr 4, 10
    %s98 = scalar_lea.vmem [#allocation1], %s97
    %v99 = vld [vmem:[%s98] sm:%s71]
    %s100 = scalar_lea.vmem [#allocation0], 80
    %101 = vst [vmem:[%s100] sm:%s71] %v99
    %s102 = smul.addr 4, 9
    %s103 = scalar_lea.vmem [#allocation1], %s102
    %v104 = vld [vmem:[%s103] sm:%s71]
    %s105 = scalar_lea.vmem [#allocation0], 72
    %106 = vst [vmem:[%s105] sm:%s71] %v104
    %s107 = smul.addr 4, 8
    %s108 = scalar_lea.vmem [#allocation1], %s107
    %v109 = vld [vmem:[%s108] sm:%s71]
    %s110 = scalar_lea.vmem [#allocation0], 64
    %111 = vst [vmem:[%s110] sm:%s71] %v109
    %s112 = smul.addr 4, 7
    %s113 = scalar_lea.vmem [#allocation1], %s112
    %v114 = vld [vmem:[%s113] sm:%s71]
    %s115 = scalar_lea.vmem [#allocation0], 56
    %116 = vst [vmem:[%s115] sm:%s71] %v114
    %s117 = smul.addr 4, 6
    %s118 = scalar_lea.vmem [#allocation1], %s117
    %v119 = vld [vmem:[%s118] sm:%s71]
    %s120 = scalar_lea.vmem [#allocation0], 48
    %121 = vst [vmem:[%s120] sm:%s71] %v119
    %s122 = smul.addr 4, 5
    %s123 = scalar_lea.vmem [#allocation1], %s122
    %v124 = vld [vmem:[%s123] sm:%s71]
    %s125 = scalar_lea.vmem [#allocation0], 40
    %126 = vst [vmem:[%s125] sm:%s71] %v124
    %s127 = smul.addr 4, 4
    %s128 = scalar_lea.vmem [#allocation1], %s127
    %v129 = vld [vmem:[%s128] sm:%s71]
    %s130 = scalar_lea.vmem [#allocation0], 32
    %131 = vst [vmem:[%s130] sm:%s71] %v129
    %s132 = smul.addr 4, 3
    %s133 = scalar_lea.vmem [#allocation1], %s132
    %v134 = vld [vmem:[%s133] sm:%s71]
    %s135 = scalar_lea.vmem [#allocation0], 24
    %136 = vst [vmem:[%s135] sm:%s71] %v134
    %s137 = smul.addr 4, 2
    %s138 = scalar_lea.vmem [#allocation1], %s137
    %v139 = vld [vmem:[%s138] sm:%s71]
    %s140 = scalar_lea.vmem [#allocation0], 16
    %141 = vst [vmem:[%s140] sm:%s71] %v139
    %s142 = scalar_lea.vmem [#allocation1], 4
    %v143 = vld [vmem:[%s142] sm:%s71]
    %s144 = scalar_lea.vmem [#allocation0], 8
    %145 = vst [vmem:[%s144] sm:%s71] %v143
    %v146 = vld [vmem:[#allocation1] sm:%s71]
    %147 = vst [vmem:[#allocation0] sm:%s71] %v146
    %s148 = scalar_lea.vmem [#allocation0], 7
    %v149 = vld [vmem:[%s148] ss:$-1 sm:$0xff]
    %v150 = vrot.slane %v149, 5
    %151 = vst [vmem:[#allocation2] sm:$0xff] %v150
    %s152 = scalar_lea.vmem [#allocation0], 8
    %s153 = scalar_lea.vmem %s152, 7 [#allocation0]
    %v154 = vld [vmem:[%s153] ss:$-1 sm:$0xff]
    %v155 = vrot.slane %v154, 5
    %v156 = vlaneseq
    %v157 = vshrl.u32 %v156, 7
    %vm158 = vcmp.lt.s32.totalorder %v157, 3
    %159 = vst.msk [vmem:[#allocation2] sm:$0xff] %vm158, %v155
    %s160 = scalar_lea.vmem [#allocation2], 8
    %s161 = scalar_lea.vmem [#allocation0], 16
    %s162 = scalar_lea.vmem %s161, 7 [#allocation0]
    %v163 = vld [vmem:[%s162] ss:$-1 sm:$0xff]
    %v164 = vrot.slane %v163, 5
    %165 = vst [vmem:[%s160] sm:$0xff] %v164
    %s166 = scalar_lea.vmem %s161, 8 [#allocation0]
    %s167 = scalar_lea.vmem %s166, 7 [#allocation0]
    %v168 = vld [vmem:[%s167] ss:$-1 sm:$0xff]
    %v169 = vrot.slane %v168, 5
    %v170 = vlaneseq
    %v171 = vshrl.u32 %v170, 7
    %vm172 = vcmp.lt.s32.totalorder %v171, 3
    %173 = vst.msk [vmem:[%s160] sm:$0xff] %vm172, %v169
    %s174 = scalar_lea.vmem [#allocation2], 16
    %s175 = scalar_lea.vmem [#allocation0], 32
    %s176 = scalar_lea.vmem %s175, 7 [#allocation0]
    %v177 = vld [vmem:[%s176] ss:$-1 sm:$0xff]
    %v178 = vrot.slane %v177, 5
    %179 = vst [vmem:[%s174] sm:$0xff] %v178
    %s180 = scalar_lea.vmem %s175, 8 [#allocation0]
    %s181 = scalar_lea.vmem %s180, 7 [#allocation0]
    %v182 = vld [vmem:[%s181] ss:$-1 sm:$0xff]
    %v183 = vrot.slane %v182, 5
    %v184 = vlaneseq
    %v185 = vshrl.u32 %v184, 7
    %vm186 = vcmp.lt.s32.totalorder %v185, 3
    %187 = vst.msk [vmem:[%s174] sm:$0xff] %vm186, %v183
    %s188 = scalar_lea.vmem [#allocation2], 24
    %s189 = scalar_lea.vmem [#allocation0], 48
    %s190 = scalar_lea.vmem %s189, 7 [#allocation0]
    %v191 = vld [vmem:[%s190] ss:$-1 sm:$0xff]
    %v192 = vrot.slane %v191, 5
    %193 = vst [vmem:[%s188] sm:$0xff] %v192
    %s194 = scalar_lea.vmem %s189, 8 [#allocation0]
    %s195 = scalar_lea.vmem %s194, 7 [#allocation0]
    %v196 = vld [vmem:[%s195] ss:$-1 sm:$0xff]
    %v197 = vrot.slane %v196, 5
    %v198 = vlaneseq
    %v199 = vshrl.u32 %v198, 7
    %vm200 = vcmp.lt.s32.totalorder %v199, 3
    %201 = vst.msk [vmem:[%s188] sm:$0xff] %vm200, %v197
    %s202 = scalar_lea.vmem [#allocation2], 32
    %s203 = scalar_lea.vmem [#allocation0], 64
    %s204 = scalar_lea.vmem %s203, 7 [#allocation0]
    %v205 = vld [vmem:[%s204] ss:$-1 sm:$0xff]
    %v206 = vrot.slane %v205, 5
    %207 = vst [vmem:[%s202] sm:$0xff] %v206
    %s208 = scalar_lea.vmem %s203, 8 [#allocation0]
    %s209 = scalar_lea.vmem %s208, 7 [#allocation0]
    %v210 = vld [vmem:[%s209] ss:$-1 sm:$0xff]
    %v211 = vrot.slane %v210, 5
    %v212 = vlaneseq
    %v213 = vshrl.u32 %v212, 7
    %vm214 = vcmp.lt.s32.totalorder %v213, 3
    %215 = vst.msk [vmem:[%s202] sm:$0xff] %vm214, %v211
    %s216 = scalar_lea.vmem [#allocation2], 40
    %s217 = scalar_lea.vmem [#allocation0], 80
    %s218 = scalar_lea.vmem %s217, 7 [#allocation0]
    %v219 = vld [vmem:[%s218] ss:$-1 sm:$0xff]
    %v220 = vrot.slane %v219, 5
    %221 = vst [vmem:[%s216] sm:$0xff] %v220
    %s222 = scalar_lea.vmem %s217, 8 [#allocation0]
    %s223 = scalar_lea.vmem %s222, 7 [#allocation0]
    %v224 = vld [vmem:[%s223] ss:$-1 sm:$0xff]
    %v225 = vrot.slane %v224, 5
    %v226 = vlaneseq
    %v227 = vshrl.u32 %v226, 7
    %vm228 = vcmp.lt.s32.totalorder %v227, 3
    %229 = vst.msk [vmem:[%s216] sm:$0xff] %vm228, %v225
    %s230 = scalar_lea.vmem [#allocation2], 48
    %s231 = scalar_lea.vmem [#allocation0], 96
    %s232 = scalar_lea.vmem %s231, 7 [#allocation0]
    %v233 = vld [vmem:[%s232] ss:$-1 sm:$0xff]
    %v234 = vrot.slane %v233, 5
    %235 = vst [vmem:[%s230] sm:$0xff] %v234
    %s236 = scalar_lea.vmem %s231, 8 [#allocation0]
    %s237 = scalar_lea.vmem %s236, 7 [#allocation0]
    %v238 = vld [vmem:[%s237] ss:$-1 sm:$0xff]
    %v239 = vrot.slane %v238, 5
    %v240 = vlaneseq
    %v241 = vshrl.u32 %v240, 7
    %vm242 = vcmp.lt.s32.totalorder %v241, 3
    %243 = vst.msk [vmem:[%s230] sm:$0xff] %vm242, %v239
    %s244 = scalar_lea.vmem [#allocation2], 56
    %s245 = scalar_lea.vmem [#allocation0], 112
    %s246 = scalar_lea.vmem %s245, 7 [#allocation0]
    %v247 = vld [vmem:[%s246] ss:$-1 sm:$0xff]
    %v248 = vrot.slane %v247, 5
    %249 = vst [vmem:[%s244] sm:$0xff] %v248
    %s250 = scalar_lea.vmem %s245, 8 [#allocation0]
    %s251 = scalar_lea.vmem %s250, 7 [#allocation0]
    %v252 = vld [vmem:[%s251] ss:$-1 sm:$0xff]
    %v253 = vrot.slane %v252, 5
    %v254 = vlaneseq
    %v255 = vshrl.u32 %v254, 7
    %vm256 = vcmp.lt.s32.totalorder %v255, 3
    %257 = vst.msk [vmem:[%s244] sm:$0xff] %vm256, %v253
    %s259 = sshllo.u32 0, 4
    %v261 = vld [vmem:[#allocation2] sm:%s259]
    %s262 = sshllo.u32 0, 4
    %263 = vst [vmem:[#allocation3] sm:%s262] %v261
    %s264 = scalar_lea.vmem [#allocation2], 8
    %v265 = vld [vmem:[%s264] sm:%s259]
    %s266 = sshllo.u32 0, 4
    %s267 = scalar_lea.vmem [#allocation3], 4
    %268 = vst [vmem:[%s267] sm:%s266] %v265
    %s269 = scalar_lea.vmem [#allocation2], 16
    %v270 = vld [vmem:[%s269] sm:%s259]
    %s271 = sshllo.u32 0, 4
    %s272 = smul.addr 4, 2
    %s273 = scalar_lea.vmem [#allocation3], %s272
    %274 = vst [vmem:[%s273] sm:%s271] %v270
    %s275 = scalar_lea.vmem [#allocation2], 24
    %v276 = vld [vmem:[%s275] sm:%s259]
    %s277 = sshllo.u32 0, 4
    %s278 = smul.addr 4, 3
    %s279 = scalar_lea.vmem [#allocation3], %s278
    %280 = vst [vmem:[%s279] sm:%s277] %v276
    %s281 = scalar_lea.vmem [#allocation2], 32
    %v282 = vld [vmem:[%s281] sm:%s259]
    %s283 = sshllo.u32 0, 4
    %s284 = smul.addr 4, 4
    %s285 = scalar_lea.vmem [#allocation3], %s284
    %286 = vst [vmem:[%s285] sm:%s283] %v282
    %s287 = scalar_lea.vmem [#allocation2], 40
    %v288 = vld [vmem:[%s287] sm:%s259]
    %s289 = sshllo.u32 0, 4
    %s290 = smul.addr 4, 5
    %s291 = scalar_lea.vmem [#allocation3], %s290
    %292 = vst [vmem:[%s291] sm:%s289] %v288
    %s293 = scalar_lea.vmem [#allocation2], 48
    %v294 = vld [vmem:[%s293] sm:%s259]
    %s295 = sshllo.u32 0, 4
    %s296 = smul.addr 4, 6
    %s297 = scalar_lea.vmem [#allocation3], %s296
    %298 = vst [vmem:[%s297] sm:%s295] %v294
    %s299 = scalar_lea.vmem [#allocation2], 56
    %v300 = vld [vmem:[%s299] sm:%s259]
    %s301 = sshllo.u32 0, 4
    %s302 = smul.addr 4, 7
    %s303 = scalar_lea.vmem [#allocation3], %s302
    %304 = vst [vmem:[%s303] sm:%s301] %v300
    // Predicated region
    $region39: #{reverse.7} parent=1 // pred_check
      _
    $region40: #{reverse.7} parent=1 // pred_check_branch
      %306 = sbr.rel (0) target = $region42
    $region41: #{reverse.7} parent=1 // pred_region
      // Predicated region
      $region43: #{reverse.7} parent=41 // pred_check
        _
      $region44: #{reverse.7} parent=41 // pred_check_branch
        %308 = sbr.rel target = $region46
      $region45: #{reverse.7} parent=41 // pred_region
        // Predicated region
        $region58: #{reverse.7} parent=45 // pred_check
          _
        $region59: #{reverse.7} parent=45 // pred_check_branch
          %337 = sbr.rel (0) target = $region61
        $region60: #{reverse.7} parent=45 // pred_region
          loop: start=0, step=1, limit=1
          $region62: #{reverse.7} parent=60 // loop_pre_header
            _
          $region63: #{reverse.7} parent=60 // loop_header
            %s339 = sphi 0, %s343
            %p340 = scmp.ge.s32.totalorder %s339, 1
            %s344 = sphi [#allocation3], [#allocation3]
            %s345 = sphi %s1, %s1
          $region64: #{reverse.7} parent=60 // loop_header_branch
            %342 = sbr.rel (%p340) target = $region68
          $region65: #{reverse.7} parent=60 // loop_body
            _
          $region66: #{reverse.7} parent=60 // loop_footer
            %s343 = sadd.s32 1, %s339
          $region67: #{reverse.7} parent=60 // loop_footer_branch
            %338 = sbr.rel target = $region63
          $region68: #{reverse.7} parent=60 // loop_exit
            _
          loop: start=0, step=1, limit=1
          $region69: #{reverse.7} parent=60 // loop_pre_header
            _
          $region70: #{reverse.7} parent=60 // loop_header
            %s348 = sphi 0, %s352
            %p349 = scmp.ge.s32.totalorder %s348, 1
            %s353 = sphi [#allocation3], [#allocation3]
            %s354 = sphi %s1, %s1
          $region71: #{reverse.7} parent=60 // loop_header_branch
            %351 = sbr.rel (%p349) target = $region75
          $region72: #{reverse.7} parent=60 // loop_body
            %v355 = vld [vmem:[%s353] sm:$0xf]
            %356 = vst [vmem:[%s354] sm:$0xf] %v355
            %v357 = vld [vmem:[%s353 + $0x4] sm:$0xf]
            %358 = vst [vmem:[%s354 + $0x4] sm:$0xf] %v357
            %v359 = vld [vmem:[%s353 + $0x8] sm:$0xf]
            %360 = vst [vmem:[%s354 + $0x8] sm:$0xf] %v359
            %v361 = vld [vmem:[%s353 + $0xc] sm:$0xf]
            %362 = vst [vmem:[%s354 + $0xc] sm:$0xf] %v361
            %v363 = vld [vmem:[%s353 + $0x10] sm:$0xf]
            %364 = vst [vmem:[%s354 + $0x10] sm:$0xf] %v363
            %v365 = vld [vmem:[%s353 + $0x14] sm:$0xf]
            %366 = vst [vmem:[%s354 + $0x14] sm:$0xf] %v365
            %v367 = vld [vmem:[%s353 + $0x18] sm:$0xf]
            %368 = vst [vmem:[%s354 + $0x18] sm:$0xf] %v367
            %v369 = vld [vmem:[%s353 + $0x1c] sm:$0xf]
            %370 = vst [vmem:[%s354 + $0x1c] sm:$0xf] %v369
          $region73: #{reverse.7} parent=60 // loop_footer
            %s352 = sadd.s32 1, %s348
          $region74: #{reverse.7} parent=60 // loop_footer_branch
            %347 = sbr.rel target = $region70
          $region75: #{reverse.7} parent=60 // loop_exit
            _
        $region61: #{reverse.7} parent=45 // pred_fallthru
          _
      $region46: #{reverse.7} parent=41 // pred_fallthru
        _
      // Predicated region
      $region47: #{reverse.7} parent=41 // pred_check
        _
      $region48: #{reverse.7} parent=41 // pred_check_branch
        %310 = sbr.rel (0) target = $region50
      $region49: #{reverse.7} parent=41 // pred_region
        loop: start=0, step=1, limit=1
        $region51: #{reverse.7} parent=49 // loop_pre_header
          _
        $region52: #{reverse.7} parent=49 // loop_header
          %s313 = sphi 0, %s317
          %p314 = scmp.ge.s32.totalorder %s313, 1
          %s318 = sphi [#allocation3], [#allocation3]
          %s319 = sphi %s1, %s1
        $region53: #{reverse.7} parent=49 // loop_header_branch
          %316 = sbr.rel (%p314) target = $region57
        $region54: #{reverse.7} parent=49 // loop_body
          %v320 = vld [vmem:[%s318] sm:$0xf]
          %321 = vst [vmem:[%s319] sm:$0xf] %v320
          %v322 = vld [vmem:[%s318 + $0x4] sm:$0xf]
          %323 = vst [vmem:[%s319 + $0x4] sm:$0xf] %v322
          %v324 = vld [vmem:[%s318 + $0x8] sm:$0xf]
          %325 = vst [vmem:[%s319 + $0x8] sm:$0xf] %v324
          %v326 = vld [vmem:[%s318 + $0xc] sm:$0xf]
          %327 = vst [vmem:[%s319 + $0xc] sm:$0xf] %v326
          %v328 = vld [vmem:[%s318 + $0x10] sm:$0xf]
          %329 = vst [vmem:[%s319 + $0x10] sm:$0xf] %v328
          %v330 = vld [vmem:[%s318 + $0x14] sm:$0xf]
          %331 = vst [vmem:[%s319 + $0x14] sm:$0xf] %v330
          %v332 = vld [vmem:[%s318 + $0x18] sm:$0xf]
          %333 = vst [vmem:[%s319 + $0x18] sm:$0xf] %v332
          %v334 = vld [vmem:[%s318 + $0x1c] sm:$0xf]
          %335 = vst [vmem:[%s319 + $0x1c] sm:$0xf] %v334
        $region55: #{reverse.7} parent=49 // loop_footer
          %s317 = sadd.s32 1, %s313
        $region56: #{reverse.7} parent=49 // loop_footer_branch
          %312 = sbr.rel target = $region52
        $region57: #{reverse.7} parent=49 // loop_exit
          _
      $region50: #{reverse.7} parent=41 // pred_fallthru
        _
    $region42: #{reverse.7} parent=1 // pred_fallthru
      _
    %371 = vnop

// kernel: model_forward.34
$region0: #{model_forward.34}
  #allocation0 [shape = 'u32[]', space=smem, size = 0x4, offset = 0x4, fixed_abs, tag = 'smem constant byte address 0x4 - core index']
  #allocation1 [shape = 'u32[144,128]{1,0:T(1,128)}', space=vmem, size = 0x12000, scoped, tag = 'internal scratch']
  %s0 = inlined_call_operand.vmem [shape: f32[2,8,32], index: 0, kind: input, shape index: {}]
  %s1 = inlined_call_operand.vmem [shape: f32[2,8,32], index: 1, kind: input, shape index: {}]
  %s2 = inlined_call_operand.vmem [shape: bf16[32,32], index: 2, kind: input, shape index: {}]
  %s3 = inlined_call_operand.vmem [shape: f32[1,32], index: 3, kind: input, shape index: {}]
  %s4 = inlined_call_operand.vmem [shape: f32[2,8,32], index: 4, kind: output, shape index: {0}]
  %s5 = inlined_call_operand.hbm [shape: f32[2,8,32], index: 5, kind: output, shape index: {1}]
  %6 = xla_tuple %s4, %s5
  %s7 = sld [smem:[#allocation0]]
  $region34: #{model_forward.34} parent=0
    _
  %s9 = ssub.s32 1, %s7
  %s10 = scalar_select 0, %s9, %s7
  $region1: #{model_forward.34} parent=0
    #allocation2 [shape = 'u8[8192]{0}', space=vmem, size = 0x2000, scoped, tag = 'output window, operand 1, single buffered']
    #allocation3 [shape = 's32[1]{0}', space=sflag, size = 0x4, scoped, tag = 'scoped memory for model_forward.34']
    %11 = vsyncpa [#allocation3], 0
    // Predicated region
    $region2: #{model_forward.34} parent=1 // pred_check
      _
    $region3: #{model_forward.34} parent=1 // pred_check_branch
      %13 = sbr.rel (0) target = $region5
    $region4: #{model_forward.34} parent=1 // pred_region
      _
    $region5: #{model_forward.34} parent=1 // pred_fallthru
      _
    // Predicated region
    $region6: #{model_forward.34} parent=1 // pred_check
      _
    $region7: #{model_forward.34} parent=1 // pred_check_branch
      %15 = sbr.rel (0) target = $region9
    $region8: #{model_forward.34} parent=1 // pred_region
      _
    $region9: #{model_forward.34} parent=1 // pred_fallthru
      _
    // Predicated region
    $region10: #{model_forward.34} parent=1 // pred_check
      _
    $region11: #{model_forward.34} parent=1 // pred_check_branch
      %17 = sbr.rel (0) target = $region13
    $region12: #{model_forward.34} parent=1 // pred_region
      _
    $region13: #{model_forward.34} parent=1 // pred_fallthru
      _
    // Predicated region
    $region14: #{model_forward.34} parent=1 // pred_check
      _
    $region15: #{model_forward.34} parent=1 // pred_check_branch
      %19 = sbr.rel (0) target = $region17
    $region16: #{model_forward.34} parent=1 // pred_region
      _
    $region17: #{model_forward.34} parent=1 // pred_fallthru
      _
    %v21 = vld [vmem:[%s2] sm:$0xf]
    %v22 = vld [vmem:[%s2 + $0x4] sm:$0xf]
    %v23 = vld [vmem:[%s2 + $0x8] sm:$0xf]
    %v24 = vld [vmem:[%s2 + $0xc] sm:$0xf]
    %v25 = vld [vmem:[%s3] sm:$0x1]
    %v26 = vld [vmem:[%s0] sm:$0xff]
    %v27 = vpack.c.bf16 %v26, %v26
    %v29 = vlaneseq
    %v30 = vshrl.u32 %v29, 7
    %v31 = vsub.s32 0, %v30
    %v32 = vrot.slane %v25, %v31
    %v38 = vunpack.c.l.b16 %v21
    %v39 = vunpack.c.l.b16 %v22
    %v40 = vunpack.c.l.b16 %v23
    %v41 = vunpack.c.l.b16 %v24
    %v42 = vpack.c.b16 %v39, %v38
    %v43 = vpack.c.b16 %v41, %v40
    %vm46 = vcmask 261120
    %v48 = vsel %vm46, %v27, 0
    %50 = vmatprep.subr.bf16.mxu0 0
    %51 = vmatpush1.bf16.msra.mxu0 %v42
    %52 = vmatprep.subr.bf16.mxu0 0
    %53 = vmatpush1.bf16.msra.mxu0 %v43
    %54 = vmatprep.subr.bf16.mxu0 0
    %55 = vmatpush1.bf16.msra.mxu0 0
    %56 = vmatprep.subr.bf16.mxu0 0
    %57 = vmatpush1.bf16.msra.mxu0 0
    %58 = vmatprep.subr.bf16.mxu0 0
    %59 = vmatpush1.bf16.msra.mxu0 0
    %60 = vmatprep.subr.bf16.mxu0 0
    %61 = vmatpush1.bf16.msra.mxu0 0
    %62 = vmatprep.subr.bf16.mxu0 0
    %63 = vmatpush1.bf16.msra.mxu0 0
    %64 = vmatprep.subr.bf16.mxu0 0
    %65 = vmatpush1.bf16.msra.mxu0 0
    %66 = vmatprep.subr.bf16.mxu0 0
    %67 = vmatpush1.bf16.msra.mxu0 0
    %68 = vmatprep.subr.bf16.mxu0 0
    %69 = vmatpush1.bf16.msra.mxu0 0
    %70 = vmatprep.subr.bf16.mxu0 0
    %71 = vmatpush1.bf16.msra.mxu0 0
    %72 = vmatprep.subr.bf16.mxu0 0
    %73 = vmatpush1.bf16.msra.mxu0 0
    %74 = vmatprep.subr.bf16.mxu0 0
    %75 = vmatpush1.bf16.msra.mxu0 0
    %76 = vmatprep.subr.bf16.mxu0 0
    %77 = vmatpush1.bf16.msra.mxu0 0
    %78 = vmatprep.subr.bf16.mxu0 0
    %79 = vmatpush1.bf16.msra.mxu0 0
    %80 = vmatprep.subr.bf16.mxu0 0
    %81 = vmatpush1.bf16.msra.mxu0 0
    %82 = vmatprep.mubr.bf16.mxu0 0
    %83 = vmatmul.mubr.bf16.gmra.mrb[0].mxu0 %v48
    %v84 = vpop.f32.mrb[0].mxu0
    %v85 = vadd.f32 %v32, %v84
    %v86 = vpop.f32.mrb[0].mxu0
    %v87 = vpop.f32.mrb[0].mxu0
    %v88 = vpop.f32.mrb[0].mxu0
    %89 = vdwg.mxu0
    %v90 = vld [vmem:[%s1] sm:$0xff]
    %v91 = vadd.f32 %v90, %v85
    %v93 = vrot.slane %v91, 7
    %vm95 = vcmask 1040384
    %v96 = vsel %vm95, %v91, %v93
    %v97 = vrot.slane %v91, 1
    %vm99 = vcmask 1046528
    %v100 = vsel %vm99, %v97, %v91
    %v101 = vadd.f32 %v91, %v96
    %v102 = vadd.f32 %v101, %v100
    %v103 = vrot.slane %v91, 6
    %vm105 = vcmask 1041408
    %v106 = vsel %vm105, %v96, %v103
    %v107 = vrot.slane %v91, 2
    %vm109 = vcmask 1045504
    %v110 = vsel %vm109, %v107, %v97
    %v111 = vsel %vm99, %v110, %v91
    %v112 = vadd.f32 %v102, %v106
    %v113 = vadd.f32 %v112, %v111
    %v114 = vmul.f32 %v113, 0.2
    %v115 = vsub.f32 %v91, %v114
    %116 = vst.msk [vmem:[%s4] sm:$0xff] %vm46, %v115
    %117 = vst.msk [vmem:[#allocation2] sm:$0xff] %vm46, %v114
    %s118 = scalar_lea.vmem %s0, 8
    %v119 = vld [vmem:[%s118] sm:$0xff]
    %v120 = vpack.c.bf16 %v119, %v119
    %v122 = vsel %vm46, %v120, 0
    %124 = vmatprep.subr.bf16.mxu0 0
    %125 = vmatpush1.bf16.msra.mxu0 %v42
    %126 = vmatprep.subr.bf16.mxu0 0
    %127 = vmatpush1.bf16.msra.mxu0 %v43
    %128 = vmatprep.subr.bf16.mxu0 0
    %129 = vmatpush1.bf16.msra.mxu0 0
    %130 = vmatprep.subr.bf16.mxu0 0
    %131 = vmatpush1.bf16.msra.mxu0 0
    %132 = vmatprep.subr.bf16.mxu0 0
    %133 = vmatpush1.bf16.msra.mxu0 0
    %134 = vmatprep.subr.bf16.mxu0 0
    %135 = vmatpush1.bf16.msra.mxu0 0
    %136 = vmatprep.subr.bf16.mxu0 0
    %137 = vmatpush1.bf16.msra.mxu0 0
    %138 = vmatprep.subr.bf16.mxu0 0
    %139 = vmatpush1.bf16.msra.mxu0 0
    %140 = vmatprep.subr.bf16.mxu0 0
    %141 = vmatpush1.bf16.msra.mxu0 0
    %142 = vmatprep.subr.bf16.mxu0 0
    %143 = vmatpush1.bf16.msra.mxu0 0
    %144 = vmatprep.subr.bf16.mxu0 0
    %145 = vmatpush1.bf16.msra.mxu0 0
    %146 = vmatprep.subr.bf16.mxu0 0
    %147 = vmatpush1.bf16.msra.mxu0 0
    %148 = vmatprep.subr.bf16.mxu0 0
    %149 = vmatpush1.bf16.msra.mxu0 0
    %150 = vmatprep.subr.bf16.mxu0 0
    %151 = vmatpush1.bf16.msra.mxu0 0
    %152 = vmatprep.subr.bf16.mxu0 0
    %153 = vmatpush1.bf16.msra.mxu0 0
    %154 = vmatprep.subr.bf16.mxu0 0
    %155 = vmatpush1.bf16.msra.mxu0 0
    %156 = vmatprep.mubr.bf16.mxu0 0
    %157 = vmatmul.mubr.bf16.gmra.mrb[0].mxu0 %v122
    %v158 = vpop.f32.mrb[0].mxu0
    %v159 = vadd.f32 %v32, %v158
    %v160 = vpop.f32.mrb[0].mxu0
    %v161 = vpop.f32.mrb[0].mxu0
    %v162 = vpop.f32.mrb[0].mxu0
    %163 = vdwg.mxu0
    %s164 = scalar_lea.vmem %s1, 8
    %v165 = vld [vmem:[%s164] sm:$0xff]
    %v166 = vadd.f32 %v165, %v159
    %v168 = vrot.slane %v166, 7
    %v170 = vsel %vm95, %v166, %v168
    %v171 = vrot.slane %v166, 1
    %v173 = vsel %vm99, %v171, %v166
    %v174 = vadd.f32 %v166, %v170
    %v175 = vadd.f32 %v174, %v173
    %v176 = vrot.slane %v166, 6
    %v178 = vsel %vm105, %v170, %v176
    %v179 = vrot.slane %v166, 2
    %v181 = vsel %vm109, %v179, %v171
    %v182 = vsel %vm99, %v181, %v166
    %v183 = vadd.f32 %v175, %v178
    %v184 = vadd.f32 %v183, %v182
    %v185 = vmul.f32 %v184, 0.2
    %v186 = vsub.f32 %v166, %v185
    %s187 = scalar_lea.vmem %s4, 8
    %188 = vst.msk [vmem:[%s187] sm:$0xff] %vm46, %v186
    %s189 = scalar_lea.vmem [#allocation2], 8
    %190 = vst.msk [vmem:[%s189] sm:$0xff] %vm46, %v185
    // Predicated region
    $region18: #{model_forward.34} parent=1 // pred_check
      _
    $region19: #{model_forward.34} parent=1 // pred_check_branch
      %192 = sbr.rel (0) target = $region21
    $region20: #{model_forward.34} parent=1 // pred_region
      _
    $region21: #{model_forward.34} parent=1 // pred_fallthru
      _
    // Predicated region
    $region22: #{model_forward.34} parent=1 // pred_check
      _
    $region23: #{model_forward.34} parent=1 // pred_check_branch
      %194 = sbr.rel (0) target = $region25
    $region24: #{model_forward.34} parent=1 // pred_region
      %s196 = ssub.s32 256, 256
      %197 = vsyncadd [#allocation3], %s196
      %s198 = sshll.u32 [#allocation2], 4
      %s199 = int_to_ptr.vmem [resolvable:$true] %s198
      %204 = dma.vmem_to_hbm [thread:$0]  %s199, 256, %s5, [#allocation3], 128, 128, 8
    $region25: #{model_forward.34} parent=1 // pred_fallthru
      _
    // Predicated region
    $region26: #{model_forward.34} parent=1 // pred_check
      _
    $region27: #{model_forward.34} parent=1 // pred_check_branch
      %206 = sbr.rel (0) target = $region29
    $region28: #{model_forward.34} parent=1 // pred_region
      _
    $region29: #{model_forward.34} parent=1 // pred_fallthru
      _
    // Predicated region
    $region30: #{model_forward.34} parent=1 // pred_check
      _
    $region31: #{model_forward.34} parent=1 // pred_check_branch
      %208 = sbr.rel (0) target = $region33
    $region32: #{model_forward.34} parent=1 // pred_region
      %209 = dma.done [#allocation3], 256
    $region33: #{model_forward.34} parent=1 // pred_fallthru
      _
    %210 = vsyncpa [#allocation3], 1

// kernel: model_forward.35
$region0: #{model_forward.35}
  #allocation0 [shape = 'u32[]', space=smem, size = 0x4, offset = 0x4, fixed_abs, tag = 'smem constant byte address 0x4 - core index']
  #allocation1 [shape = 'u32[144,128]{1,0:T(1,128)}', space=vmem, size = 0x12000, scoped, tag = 'internal scratch']
  %s0 = inlined_call_operand.vmem [shape: f32[2,8,32], index: 0, kind: input, shape index: {}]
  %s1 = inlined_call_operand.vmem [shape: bf16[32,64], index: 1, kind: input, shape index: {}]
  %s2 = inlined_call_operand.vmem [shape: bf16[64,32], index: 2, kind: input, shape index: {}]
  %s3 = inlined_call_operand.vmem [shape: f32[2,8,32], index: 3, kind: output, shape index: {0}]
  %s4 = inlined_call_operand.hbm [shape: f32[2,8,32], index: 4, kind: output, shape index: {1}]
  %5 = xla_tuple %s3, %s4
  %s6 = sld [smem:[#allocation0]]
  $region30: #{model_forward.35} parent=0
    _
  %s8 = ssub.s32 1, %s6
  %s9 = scalar_select 0, %s8, %s6
  $region1: #{model_forward.35} parent=0
    #allocation2 [shape = 'u8[8192]{0}', space=vmem, size = 0x2000, scoped, tag = 'output window, operand 1, single buffered']
    #allocation3 [shape = 's32[1]{0}', space=sflag, size = 0x4, scoped, tag = 'scoped memory for model_forward.35']
    %10 = vsyncpa [#allocation3], 0
    // Predicated region
    $region2: #{model_forward.35} parent=1 // pred_check
      _
    $region3: #{model_forward.35} parent=1 // pred_check_branch
      %12 = sbr.rel (0) target = $region5
    $region4: #{model_forward.35} parent=1 // pred_region
      _
    $region5: #{model_forward.35} parent=1 // pred_fallthru
      _
    // Predicated region
    $region6: #{model_forward.35} parent=1 // pred_check
      _
    $region7: #{model_forward.35} parent=1 // pred_check_branch
      %14 = sbr.rel (0) target = $region9
    $region8: #{model_forward.35} parent=1 // pred_region
      _
    $region9: #{model_forward.35} parent=1 // pred_fallthru
      _
    // Predicated region
    $region10: #{model_forward.35} parent=1 // pred_check
      _
    $region11: #{model_forward.35} parent=1 // pred_check_branch
      %16 = sbr.rel (0) target = $region13
    $region12: #{model_forward.35} parent=1 // pred_region
      _
    $region13: #{model_forward.35} parent=1 // pred_fallthru
      _
    %v18 = vld [vmem:[%s1] sm:$0xf]
    %v19 = vld [vmem:[%s1 + $0x4] sm:$0xf]
    %v20 = vld [vmem:[%s1 + $0x8] sm:$0xf]
    %v21 = vld [vmem:[%s1 + $0xc] sm:$0xf]
    %v22 = vld [vmem:[%s2] sm:$0xf]
    %v23 = vld [vmem:[%s2 + $0x4] sm:$0xf]
    %v24 = vld [vmem:[%s2 + $0x8] sm:$0xf]
    %v25 = vld [vmem:[%s2 + $0xc] sm:$0xf]
    %v26 = vld [vmem:[%s2 + $0x10] sm:$0xf]
    %v27 = vld [vmem:[%s2 + $0x14] sm:$0xf]
    %v28 = vld [vmem:[%s2 + $0x18] sm:$0xf]
    %v29 = vld [vmem:[%s2 + $0x1c] sm:$0xf]
    %v30 = vld [vmem:[%s0] sm:$0xff]
    %v31 = vpack.c.bf16 %v30, %v30
    %v36 = vunpack.c.l.b16 %v18
    %v37 = vunpack.c.l.b16 %v19
    %v38 = vunpack.c.l.b16 %v20
    %v39 = vunpack.c.l.b16 %v21
    %v40 = vpack.c.b16 %v37, %v36
    %v41 = vpack.c.b16 %v39, %v38
    %vm44 = vcmask 261120
    %v46 = vsel %vm44, %v31, 0
    %48 = vmatprep.subr.bf16.mxu0 0
    %49 = vmatpush1.bf16.msra.mxu0 %v40
    %50 = vmatprep.subr.bf16.mxu0 0
    %51 = vmatpush1.bf16.msra.mxu0 %v41
    %52 = vmatprep.subr.bf16.mxu0 0
    %53 = vmatpush1.bf16.msra.mxu0 0
    %54 = vmatprep.subr.bf16.mxu0 0
    %55 = vmatpush1.bf16.msra.mxu0 0
    %56 = vmatprep.subr.bf16.mxu0 0
    %57 = vmatpush1.bf16.msra.mxu0 0
    %58 = vmatprep.subr.bf16.mxu0 0
    %59 = vmatpush1.bf16.msra.mxu0 0
    %60 = vmatprep.subr.bf16.mxu0 0
    %61 = vmatpush1.bf16.msra.mxu0 0
    %62 = vmatprep.subr.bf16.mxu0 0
    %63 = vmatpush1.bf16.msra.mxu0 0
    %64 = vmatprep.subr.bf16.mxu0 0
    %65 = vmatpush1.bf16.msra.mxu0 0
    %66 = vmatprep.subr.bf16.mxu0 0
    %67 = vmatpush1.bf16.msra.mxu0 0
    %68 = vmatprep.subr.bf16.mxu0 0
    %69 = vmatpush1.bf16.msra.mxu0 0
    %70 = vmatprep.subr.bf16.mxu0 0
    %71 = vmatpush1.bf16.msra.mxu0 0
    %72 = vmatprep.subr.bf16.mxu0 0
    %73 = vmatpush1.bf16.msra.mxu0 0
    %74 = vmatprep.subr.bf16.mxu0 0
    %75 = vmatpush1.bf16.msra.mxu0 0
    %76 = vmatprep.subr.bf16.mxu0 0
    %77 = vmatpush1.bf16.msra.mxu0 0
    %78 = vmatprep.subr.bf16.mxu0 0
    %79 = vmatpush1.bf16.msra.mxu0 0
    %80 = vmatprep.mubr.bf16.mxu0 0
    %81 = vmatmul.mubr.bf16.gmra.mrb[0].mxu0 %v46
    %v82 = vpop.f32.mrb[0].mxu0
    %v83 = vadd.f32 0.0, %v82
    %v84 = vpop.f32.mrb[0].mxu0
    %v85 = vpop.f32.mrb[0].mxu0
    %v86 = vpop.f32.mrb[0].mxu0
    %87 = vdwg.mxu0
    %v88 = vmax.f32 %v83, 0.0
    %v89 = vpack.c.bf16 %v88, %v88
    %v98 = vunpack.c.l.b16 %v22
    %v99 = vunpack.c.l.b16 %v23
    %v100 = vunpack.c.l.b16 %v24
    %v101 = vunpack.c.l.b16 %v25
    %v102 = vunpack.c.l.b16 %v26
    %v103 = vunpack.c.l.b16 %v27
    %v104 = vunpack.c.l.b16 %v28
    %v105 = vunpack.c.l.b16 %v29
    %v106 = vpack.c.b16 %v99, %v98
    %v107 = vpack.c.b16 %v101, %v100
    %v108 = vpack.c.b16 %v103, %v102
    %v109 = vpack.c.b16 %v105, %v104
    %vm114 = vcmask 523264
    %v116 = vsel %vm114, %v89, 0
    %118 = vmatprep.subr.bf16.mxu0 0
    %119 = vmatpush1.bf16.msra.mxu0 %v106
    %120 = vmatprep.subr.bf16.mxu0 0
    %121 = vmatpush1.bf16.msra.mxu0 %v107
    %122 = vmatprep.subr.bf16.mxu0 0
    %123 = vmatpush1.bf16.msra.mxu0 %v108
    %124 = vmatprep.subr.bf16.mxu0 0
    %125 = vmatpush1.bf16.msra.mxu0 %v109
    %126 = vmatprep.subr.bf16.mxu0 0
    %127 = vmatpush1.bf16.msra.mxu0 0
    %128 = vmatprep.subr.bf16.mxu0 0
    %129 = vmatpush1.bf16.msra.mxu0 0
    %130 = vmatprep.subr.bf16.mxu0 0
    %131 = vmatpush1.bf16.msra.mxu0 0
    %132 = vmatprep.subr.bf16.mxu0 0
    %133 = vmatpush1.bf16.msra.mxu0 0
    %134 = vmatprep.subr.bf16.mxu0 0
    %135 = vmatpush1.bf16.msra.mxu0 0
    %136 = vmatprep.subr.bf16.mxu0 0
    %137 = vmatpush1.bf16.msra.mxu0 0
    %138 = vmatprep.subr.bf16.mxu0 0
    %139 = vmatpush1.bf16.msra.mxu0 0
    %140 = vmatprep.subr.bf16.mxu0 0
    %141 = vmatpush1.bf16.msra.mxu0 0
    %142 = vmatprep.subr.bf16.mxu0 0
    %143 = vmatpush1.bf16.msra.mxu0 0
    %144 = vmatprep.subr.bf16.mxu0 0
    %145 = vmatpush1.bf16.msra.mxu0 0
    %146 = vmatprep.subr.bf16.mxu0 0
    %147 = vmatpush1.bf16.msra.mxu0 0
    %148 = vmatprep.subr.bf16.mxu0 0
    %149 = vmatpush1.bf16.msra.mxu0 0
    %150 = vmatprep.mubr.bf16.mxu0 0
    %151 = vmatmul.mubr.bf16.gmra.mrb[0].mxu0 %v116
    %v152 = vpop.f32.mrb[0].mxu0
    %v153 = vadd.f32 0.0, %v152
    %v154 = vpop.f32.mrb[0].mxu0
    %v155 = vpop.f32.mrb[0].mxu0
    %v156 = vpop.f32.mrb[0].mxu0
    %157 = vdwg.mxu0
    %v158 = vadd.f32 %v30, %v153
    %v160 = vrot.slane %v158, 7
    %vm162 = vcmask 1040384
    %v163 = vsel %vm162, %v158, %v160
    %v164 = vrot.slane %v158, 1
    %vm166 = vcmask 1046528
    %v167 = vsel %vm166, %v164, %v158
    %v168 = vadd.f32 %v158, %v163
    %v169 = vadd.f32 %v168, %v167
    %v170 = vrot.slane %v158, 6
    %vm172 = vcmask 1041408
    %v173 = vsel %vm172, %v163, %v170
    %v174 = vrot.slane %v158, 2
    %vm176 = vcmask 1045504
    %v177 = vsel %vm176, %v174, %v164
    %v178 = vsel %vm166, %v177, %v158
    %v179 = vadd.f32 %v169, %v173
    %v180 = vadd.f32 %v179, %v178
    %v181 = vmul.f32 %v180, 0.2
    %v182 = vsub.f32 %v158, %v181
    %183 = vst.msk [vmem:[%s3] sm:$0xff] %vm44, %v182
    %184 = vst.msk [vmem:[#allocation2] sm:$0xff] %vm44, %v181
    %s185 = scalar_lea.vmem %s0, 8
    %v186 = vld [vmem:[%s185] sm:$0xff]
    %v187 = vpack.c.bf16 %v186, %v186
    %v189 = vsel %vm44, %v187, 0
    %191 = vmatprep.subr.bf16.mxu0 0
    %192 = vmatpush1.bf16.msra.mxu0 %v40
    %193 = vmatprep.subr.bf16.mxu0 0
    %194 = vmatpush1.bf16.msra.mxu0 %v41
    %195 = vmatprep.subr.bf16.mxu0 0
    %196 = vmatpush1.bf16.msra.mxu0 0
    %197 = vmatprep.subr.bf16.mxu0 0
    %198 = vmatpush1.bf16.msra.mxu0 0
    %199 = vmatprep.subr.bf16.mxu0 0
    %200 = vmatpush1.bf16.msra.mxu0 0
    %201 = vmatprep.subr.bf16.mxu0 0
    %202 = vmatpush1.bf16.msra.mxu0 0
    %203 = vmatprep.subr.bf16.mxu0 0
    %204 = vmatpush1.bf16.msra.mxu0 0
    %205 = vmatprep.subr.bf16.mxu0 0
    %206 = vmatpush1.bf16.msra.mxu0 0
    %207 = vmatprep.subr.bf16.mxu0 0
    %208 = vmatpush1.bf16.msra.mxu0 0
    %209 = vmatprep.subr.bf16.mxu0 0
    %210 = vmatpush1.bf16.msra.mxu0 0
    %211 = vmatprep.subr.bf16.mxu0 0
    %212 = vmatpush1.bf16.msra.mxu0 0
    %213 = vmatprep.subr.bf16.mxu0 0
    %214 = vmatpush1.bf16.msra.mxu0 0
    %215 = vmatprep.subr.bf16.mxu0 0
    %216 = vmatpush1.bf16.msra.mxu0 0
    %217 = vmatprep.subr.bf16.mxu0 0
    %218 = vmatpush1.bf16.msra.mxu0 0
    %219 = vmatprep.subr.bf16.mxu0 0
    %220 = vmatpush1.bf16.msra.mxu0 0
    %221 = vmatprep.subr.bf16.mxu0 0
    %222 = vmatpush1.bf16.msra.mxu0 0
    %223 = vmatprep.mubr.bf16.mxu0 0
    %224 = vmatmul.mubr.bf16.gmra.mrb[0].mxu0 %v189
    %v225 = vpop.f32.mrb[0].mxu0
    %v226 = vadd.f32 0.0, %v225
    %v227 = vpop.f32.mrb[0].mxu0
    %v228 = vpop.f32.mrb[0].mxu0
    %v229 = vpop.f32.mrb[0].mxu0
    %230 = vdwg.mxu0
    %v231 = vmax.f32 %v226, 0.0
    %v232 = vpack.c.bf16 %v231, %v231
    %v234 = vsel %vm114, %v232, 0
    %236 = vmatprep.subr.bf16.mxu0 0
    %237 = vmatpush1.bf16.msra.mxu0 %v106
    %238 = vmatprep.subr.bf16.mxu0 0
    %239 = vmatpush1.bf16.msra.mxu0 %v107
    %240 = vmatprep.subr.bf16.mxu0 0
    %241 = vmatpush1.bf16.msra.mxu0 %v108
    %242 = vmatprep.subr.bf16.mxu0 0
    %243 = vmatpush1.bf16.msra.mxu0 %v109
    %244 = vmatprep.subr.bf16.mxu0 0
    %245 = vmatpush1.bf16.msra.mxu0 0
    %246 = vmatprep.subr.bf16.mxu0 0
    %247 = vmatpush1.bf16.msra.mxu0 0
    %248 = vmatprep.subr.bf16.mxu0 0
    %249 = vmatpush1.bf16.msra.mxu0 0
    %250 = vmatprep.subr.bf16.mxu0 0
    %251 = vmatpush1.bf16.msra.mxu0 0
    %252 = vmatprep.subr.bf16.mxu0 0
    %253 = vmatpush1.bf16.msra.mxu0 0
    %254 = vmatprep.subr.bf16.mxu0 0
    %255 = vmatpush1.bf16.msra.mxu0 0
    %256 = vmatprep.subr.bf16.mxu0 0
    %257 = vmatpush1.bf16.msra.mxu0 0
    %258 = vmatprep.subr.bf16.mxu0 0
    %259 = vmatpush1.bf16.msra.mxu0 0
    %260 = vmatprep.subr.bf16.mxu0 0
    %261 = vmatpush1.bf16.msra.mxu0 0
    %262 = vmatprep.subr.bf16.mxu0 0
    %263 = vmatpush1.bf16.msra.mxu0 0
    %264 = vmatprep.subr.bf16.mxu0 0
    %265 = vmatpush1.bf16.msra.mxu0 0
    %266 = vmatprep.subr.bf16.mxu0 0
    %267 = vmatpush1.bf16.msra.mxu0 0
    %268 = vmatprep.mubr.bf16.mxu0 0
    %269 = vmatmul.mubr.bf16.gmra.mrb[0].mxu0 %v234
    %v270 = vpop.f32.mrb[0].mxu0
    %v271 = vadd.f32 0.0, %v270
    %v272 = vpop.f32.mrb[0].mxu0
    %v273 = vpop.f32.mrb[0].mxu0
    %v274 = vpop.f32.mrb[0].mxu0
    %275 = vdwg.mxu0
    %v276 = vadd.f32 %v186, %v271
    %v278 = vrot.slane %v276, 7
    %v280 = vsel %vm162, %v276, %v278
    %v281 = vrot.slane %v276, 1
    %v283 = vsel %vm166, %v281, %v276
    %v284 = vadd.f32 %v276, %v280
    %v285 = vadd.f32 %v284, %v283
    %v286 = vrot.slane %v276, 6
    %v288 = vsel %vm172, %v280, %v286
    %v289 = vrot.slane %v276, 2
    %v291 = vsel %vm176, %v289, %v281
    %v292 = vsel %vm166, %v291, %v276
    %v293 = vadd.f32 %v285, %v288
    %v294 = vadd.f32 %v293, %v292
    %v295 = vmul.f32 %v294, 0.2
    %v296 = vsub.f32 %v276, %v295
    %s297 = scalar_lea.vmem %s3, 8
    %298 = vst.msk [vmem:[%s297] sm:$0xff] %vm44, %v296
    %s299 = scalar_lea.vmem [#allocation2], 8
    %300 = vst.msk [vmem:[%s299] sm:$0xff] %vm44, %v295
    // Predicated region
    $region14: #{model_forward.35} parent=1 // pred_check
      _
    $region15: #{model_forward.35} parent=1 // pred_check_branch
      %302 = sbr.rel (0) target = $region17
    $region16: #{model_forward.35} parent=1 // pred_region
      _
    $region17: #{model_forward.35} parent=1 // pred_fallthru
      _
    // Predicated region
    $region18: #{model_forward.35} parent=1 // pred_check
      _
    $region19: #{model_forward.35} parent=1 // pred_check_branch
      %304 = sbr.rel (0) target = $region21
    $region20: #{model_forward.35} parent=1 // pred_region
      %s306 = ssub.s32 256, 256
      %307 = vsyncadd [#allocation3], %s306
      %s308 = sshll.u32 [#allocation2], 4
      %s309 = int_to_ptr.vmem [resolvable:$true] %s308
      %314 = dma.vmem_to_hbm [thread:$0]  %s309, 256, %s4, [#allocation3], 128, 128, 8
    $region21: #{model_forward.35} parent=1 // pred_fallthru
      _
    // Predicated region
    $region22: #{model_forward.35} parent=1 // pred_check
      _
    $region23: #{model_forward.35} parent=1 // pred_check_branch
      %316 = sbr.rel (0) target = $region25
    $region24: #{model_forward.35} parent=1 // pred_region
      _
    $region25: #{model_forward.35} parent=1 // pred_fallthru
      _
    // Predicated region
    $region26: #{model_forward.35} parent=1 // pred_check
      _
    $region27: #{model_forward.35} parent=1 // pred_check_branch
      %318 = sbr.rel (0) target = $region29
    $region28: #{model_forward.35} parent=1 // pred_region
      %319 = dma.done [#allocation3], 256
    $region29: #{model_forward.35} parent=1 // pred_fallthru
      _
    %320 = vsyncpa [#allocation3], 1

// kernel: model_forward.36
$region0: #{model_forward.36}
  #allocation0 [shape = 'u32[]', space=smem, size = 0x4, offset = 0x4, fixed_abs, tag = 'smem constant byte address 0x4 - core index']
  #allocation1 [shape = 'u32[144,128]{1,0:T(1,128)}', space=vmem, size = 0x12000, scoped, tag = 'internal scratch']
  %s0 = inlined_call_operand.vmem [shape: f32[2,8,32], index: 0, kind: input, shape index: {}]
  %s1 = inlined_call_operand.vmem [shape: f32[1,32], index: 1, kind: input, shape index: {}]
  %s2 = inlined_call_operand.vmem [shape: f32[1,32], index: 2, kind: input, shape index: {}]
  %s3 = inlined_call_operand.vmem [shape: f32[2,8,32], index: 3, kind: output, shape index: {}]
  %s4 = sld [smem:[#allocation0]]
  $region22: #{model_forward.36} parent=0
    _
  %s6 = ssub.s32 1, %s4
  %s7 = scalar_select 0, %s6, %s4
  // Predicated region
  $region2: #{model_forward.36} parent=0 // pred_check
    _
  $region3: #{model_forward.36} parent=0 // pred_check_branch
    %9 = sbr.rel (0) target = $region5
  $region4: #{model_forward.36} parent=0 // pred_region
    _
  $region5: #{model_forward.36} parent=0 // pred_fallthru
    _
  // Predicated region
  $region6: #{model_forward.36} parent=0 // pred_check
    _
  $region7: #{model_forward.36} parent=0 // pred_check_branch
    %11 = sbr.rel (0) target = $region9
  $region8: #{model_forward.36} parent=0 // pred_region
    _
  $region9: #{model_forward.36} parent=0 // pred_fallthru
    _
  // Predicated region
  $region10: #{model_forward.36} parent=0 // pred_check
    _
  $region11: #{model_forward.36} parent=0 // pred_check_branch
    %13 = sbr.rel (0) target = $region13
  $region12: #{model_forward.36} parent=0 // pred_region
    _
  $region13: #{model_forward.36} parent=0 // pred_fallthru
    _
  %v14 = vld [vmem:[%s1] sm:$0x1]
  %v15 = vld [vmem:[%s2] sm:$0x1]
  %v16 = vld [vmem:[%s0] sm:$0xff]
  %vm17 = vcmask 261120
  %v18 = vsel %vm17, %v16, 0.0
  %19 = vadd.xlane.f32.xlu0 %v18
  %v20 = vpop.xlane.xlu0 %19
  %v21 = vrcp.pop 32.0
  %v22 = vmul.f32 %v20, %v21
  %v23 = vsub.f32 %v16, %v22
  %v24 = vmul.f32 %v23, %v23
  %v25 = vsel %vm17, %v24, 0.0
  %26 = vadd.xlane.f32.xlu0 %v25
  %v27 = vpop.xlane.xlu0 %26
  %v28 = vmul.f32 %v27, %v21
  %v29 = vadd.f32 %v28, 1e-05
  %v30 = vrsqrt.pop %v29
  %v31 = vmul.f32 %v23, %v30
  %v33 = vlaneseq
  %v34 = vshrl.u32 %v33, 7
  %v35 = vsub.s32 0, %v34
  %v36 = vrot.slane %v14, %v35
  %v38 = vmul.f32 %v31, %v36
  %v40 = vlaneseq
  %v41 = vshrl.u32 %v40, 7
  %v42 = vsub.s32 0, %v41
  %v43 = vrot.slane %v15, %v42
  %v45 = vadd.f32 %v38, %v43
  %v46 = vsel %vm17, %v45, 0.0
  %v47 = vrot.slane %v46, 4
  %v48 = vadd.f32 %v46, %v47
  %v49 = vrot.slane %v48, 2
  %v50 = vadd.f32 %v48, %v49
  %v51 = vrot.slane %v50, 1
  %v52 = vadd.f32 %v50, %v51
  %v53 = vrcp.pop 8.0
  %v54 = vmul.f32 %v52, %v53
  %v55 = vsub.f32 %v45, %v54
  %56 = vst.msk [vmem:[%s3] sm:$0xff] %vm17, %v55
  %s57 = scalar_lea.vmem %s0, 8
  %v58 = vld [vmem:[%s57] sm:$0xff]
  %v59 = vsel %vm17, %v58, 0.0
  %60 = vadd.xlane.f32.xlu0 %v59
  %v61 = vpop.xlane.xlu0 %60
  %v62 = vmul.f32 %v61, %v21
  %v63 = vsub.f32 %v58, %v62
  %v64 = vmul.f32 %v63, %v63
  %v65 = vsel %vm17, %v64, 0.0
  %66 = vadd.xlane.f32.xlu0 %v65
  %v67 = vpop.xlane.xlu0 %66
  %v68 = vmul.f32 %v67, %v21
  %v69 = vadd.f32 %v68, 1e-05
  %v70 = vrsqrt.pop %v69
  %v71 = vmul.f32 %v63, %v70
  %v72 = vmul.f32 %v71, %v36
  %v73 = vadd.f32 %v72, %v43
  %v74 = vsel %vm17, %v73, 0.0
  %v75 = vrot.slane %v74, 4
  %v76 = vadd.f32 %v74, %v75
  %v77 = vrot.slane %v76, 2
  %v78 = vadd.f32 %v76, %v77
  %v79 = vrot.slane %v78, 1
  %v80 = vadd.f32 %v78, %v79
  %v81 = vmul.f32 %v80, %v53
  %v82 = vsub.f32 %v73, %v81
  %s83 = scalar_lea.vmem %s3, 8
  %84 = vst.msk [vmem:[%s83] sm:$0xff] %vm17, %v82
  // Predicated region
  $region14: #{model_forward.36} parent=0 // pred_check
    _
  $region15: #{model_forward.36} parent=0 // pred_check_branch
    %86 = sbr.rel (0) target = $region17
  $region16: #{model_forward.36} parent=0 // pred_region
    _
  $region17: #{model_forward.36} parent=0 // pred_fallthru
    _
  // Predicated region
  $region18: #{model_forward.36} parent=0 // pred_check
    _
  $region19: #{model_forward.36} parent=0 // pred_check_branch
    %88 = sbr.rel (0) target = $region21
  $region20: #{model_forward.36} parent=0 // pred_region
    _
  $region21: #{model_forward.36} parent=0 // pred_fallthru
    _

// kernel: model_forward.24
$region0: #{model_forward.24}
  #allocation0 [shape = 'u32[]', space=smem, size = 0x4, offset = 0x4, fixed_abs, tag = 'smem constant byte address 0x4 - core index']
  #allocation1 [shape = 'u32[144,128]{1,0:T(1,128)}', space=vmem, size = 0x12000, scoped, tag = 'internal scratch']
  %s0 = inlined_call_operand.vmem [shape: f32[2,16,4], index: 0, kind: input, shape index: {}]
  %s1 = inlined_call_operand.vmem [shape: f32[2,16,4], index: 1, kind: output, shape index: {0}]
  %s2 = inlined_call_operand.vmem [shape: f32[2,16,4], index: 2, kind: output, shape index: {1}]
  %3 = xla_tuple %s1, %s2
  %s4 = sld [smem:[#allocation0]]
  $region22: #{model_forward.24} parent=0
    _
  %s6 = ssub.s32 1, %s4
  %s7 = scalar_select 0, %s6, %s4
  // Predicated region
  $region2: #{model_forward.24} parent=0 // pred_check
    _
  $region3: #{model_forward.24} parent=0 // pred_check_branch
    %9 = sbr.rel (0) target = $region5
  $region4: #{model_forward.24} parent=0 // pred_region
    _
  $region5: #{model_forward.24} parent=0 // pred_fallthru
    _
  %v10 = vld [vmem:[%s0] sm:$0xff]
  %v11 = vld [vmem:[%s0 + $0x8] sm:$0xff]
  %vm14 = vcmask 1040384
  %v15 = vrot.slane %v10, 7
  %v16 = vrot.slane %v11, 7
  %v17 = vsel %vm14, %v15, %v16
  %v20 = vsel %vm14, %v10, %v15
  %vm21 = vcmask 1046528
  %v22 = vrot.slane %v10, 1
  %v23 = vrot.slane %v11, 1
  %v24 = vsel %vm21, %v22, %v23
  %v27 = vsel %vm21, %v23, %v11
  %v28 = vadd.f32 %v10, %v20
  %v29 = vadd.f32 %v11, %v17
  %v30 = vadd.f32 %v28, %v24
  %v31 = vadd.f32 %v29, %v27
  %vm32 = vcmask 1041408
  %v33 = vrot.slane %v10, 6
  %v34 = vrot.slane %v11, 6
  %v35 = vsel %vm32, %v33, %v34
  %v38 = vsel %vm32, %v20, %v33
  %vm39 = vcmask 1045504
  %v40 = vrot.slane %v10, 2
  %v41 = vrot.slane %v11, 2
  %v42 = vsel %vm39, %v40, %v41
  %v45 = vsel %vm39, %v41, %v23
  %v46 = vsel %vm21, %v45, %v11
  %v47 = vadd.f32 %v30, %v38
  %v48 = vadd.f32 %v31, %v35
  %v49 = vadd.f32 %v47, %v42
  %v50 = vadd.f32 %v48, %v46
  %v51 = vmul.f32 %v49, 0.2
  %v52 = vmul.f32 %v50, 0.2
  %v53 = vsub.f32 %v10, %v51
  %v54 = vsub.f32 %v11, %v52
  %vm55 = vcmask 31744
  %56 = vst.msk [vmem:[%s1] sm:$0xff] %vm55, %v53
  %57 = vst.msk [vmem:[%s1 + $0x8] sm:$0xff] %vm55, %v54
  %58 = vst.msk [vmem:[%s2] sm:$0xff] %vm55, %v51
  %59 = vst.msk [vmem:[%s2 + $0x8] sm:$0xff] %vm55, %v52
  %s60 = scalar_lea.vmem %s0, 16
  %v61 = vld [vmem:[%s60] sm:$0xff]
  %v62 = vld [vmem:[%s60 + $0x8] sm:$0xff]
  %v65 = vrot.slane %v61, 7
  %v66 = vrot.slane %v62, 7
  %v67 = vsel %vm14, %v65, %v66
  %v70 = vsel %vm14, %v61, %v65
  %v71 = vrot.slane %v61, 1
  %v72 = vrot.slane %v62, 1
  %v73 = vsel %vm21, %v71, %v72
  %v76 = vsel %vm21, %v72, %v62
  %v77 = vadd.f32 %v61, %v70
  %v78 = vadd.f32 %v62, %v67
  %v79 = vadd.f32 %v77, %v73
  %v80 = vadd.f32 %v78, %v76
  %v81 = vrot.slane %v61, 6
  %v82 = vrot.slane %v62, 6
  %v83 = vsel %vm32, %v81, %v82
  %v86 = vsel %vm32, %v70, %v81
  %v87 = vrot.slane %v61, 2
  %v88 = vrot.slane %v62, 2
  %v89 = vsel %vm39, %v87, %v88
  %v92 = vsel %vm39, %v88, %v72
  %v93 = vsel %vm21, %v92, %v62
  %v94 = vadd.f32 %v79, %v86
  %v95 = vadd.f32 %v80, %v83
  %v96 = vadd.f32 %v94, %v89
  %v97 = vadd.f32 %v95, %v93
  %v98 = vmul.f32 %v96, 0.2
  %v99 = vmul.f32 %v97, 0.2
  %v100 = vsub.f32 %v61, %v98
  %v101 = vsub.f32 %v62, %v99
  %s102 = scalar_lea.vmem %s1, 16
  %103 = vst.msk [vmem:[%s102] sm:$0xff] %vm55, %v100
  %104 = vst.msk [vmem:[%s102 + $0x8] sm:$0xff] %vm55, %v101
  %s105 = scalar_lea.vmem %s2, 16
  %106 = vst.msk [vmem:[%s105] sm:$0xff] %vm55, %v98
  %107 = vst.msk [vmem:[%s105 + $0x8] sm:$0xff] %vm55, %v99
  // Predicated region
  $region6: #{model_forward.24} parent=0 // pred_check
    _
  $region7: #{model_forward.24} parent=0 // pred_check_branch
    %109 = sbr.rel (0) target = $region9
  $region8: #{model_forward.24} parent=0 // pred_region
    _
  $region9: #{model_forward.24} parent=0 // pred_fallthru
    _
  // Predicated region
  $region10: #{model_forward.24} parent=0 // pred_check
    _
  $region11: #{model_forward.24} parent=0 // pred_check_branch
    %111 = sbr.rel (0) target = $region13
  $region12: #{model_forward.24} parent=0 // pred_region
    _
  $region13: #{model_forward.24} parent=0 // pred_fallthru
    _
  // Predicated region
  $region14: #{model_forward.24} parent=0 // pred_check
    _
  $region15: #{model_forward.24} parent=0 // pred_check_branch
    %113 = sbr.rel (0) target = $region17
  $region16: #{model_forward.24} parent=0 // pred_region
    _
  $region17: #{model_forward.24} parent=0 // pred_fallthru
    _
  // Predicated region
  $region18: #{model_forward.24} parent=0 // pred_check
    _
  $region19: #{model_forward.24} parent=0 // pred_check_branch
    %115 = sbr.rel (0) target = $region21
  $region20: #{model_forward.24} parent=0 // pred_region
    _
  $region21: #{model_forward.24} parent=0 // pred_fallthru
    _

// kernel: model_forward.26
$region0: #{model_forward.26}
  #allocation0 [shape = 'u32[]', space=smem, size = 0x4, offset = 0x4, fixed_abs, tag = 'smem constant byte address 0x4 - core index']
  #allocation1 [shape = 'u32[144,128]{1,0:T(1,128)}', space=vmem, size = 0x12000, scoped, tag = 'internal scratch']
  %s0 = inlined_call_operand.vmem [shape: f32[2,12,32], index: 0, kind: input, shape index: {}]
  %s1 = inlined_call_operand.vmem [shape: bf16[32,96], index: 1, kind: input, shape index: {}]
  %s2 = inlined_call_operand.vmem [shape: f32[1,96], index: 2, kind: input, shape index: {}]
  %s3 = inlined_call_operand.vmem [shape: f32[2,12,96], index: 3, kind: output, shape index: {}]
  %s4 = sld [smem:[#allocation0]]
  $region22: #{model_forward.26} parent=0
    _
  %s6 = ssub.s32 1, %s4
  %s7 = scalar_select 0, %s6, %s4
  // Predicated region
  $region2: #{model_forward.26} parent=0 // pred_check
    _
  $region3: #{model_forward.26} parent=0 // pred_check_branch
    %9 = sbr.rel (0) target = $region5
  $region4: #{model_forward.26} parent=0 // pred_region
    _
  $region5: #{model_forward.26} parent=0 // pred_fallthru
    _
  // Predicated region
  $region6: #{model_forward.26} parent=0 // pred_check
    _
  $region7: #{model_forward.26} parent=0 // pred_check_branch
    %11 = sbr.rel (0) target = $region9
  $region8: #{model_forward.26} parent=0 // pred_region
    _
  $region9: #{model_forward.26} parent=0 // pred_fallthru
    _
  // Predicated region
  $region10: #{model_forward.26} parent=0 // pred_check
    _
  $region11: #{model_forward.26} parent=0 // pred_check_branch
    %13 = sbr.rel (0) target = $region13
  $region12: #{model_forward.26} parent=0 // pred_region
    _
  $region13: #{model_forward.26} parent=0 // pred_fallthru
    _
  %v15 = vld [vmem:[%s1] sm:$0xf]
  %v16 = vld [vmem:[%s1 + $0x4] sm:$0xf]
  %v17 = vld [vmem:[%s1 + $0x8] sm:$0xf]
  %v18 = vld [vmem:[%s1 + $0xc] sm:$0xf]
  %v19 = vld [vmem:[%s2] sm:$0x1]
  %v20 = vld [vmem:[%s0] sm:$0xff]
  %v21 = vld [vmem:[%s0 + $0x8] sm:$0xf]
  %v22 = vpack.c.bf16 %v21, %v20
  %v24 = vlaneseq
  %v25 = vshrl.u32 %v24, 7
  %v26 = vsub.s32 0, %v25
  %v27 = vrot.slane %v19, %v26
  %v33 = vunpack.c.l.b16 %v15
  %v34 = vunpack.c.l.b16 %v16
  %v35 = vunpack.c.l.b16 %v17
  %v36 = vunpack.c.l.b16 %v18
  %v37 = vpack.c.b16 %v34, %v33
  %v38 = vpack.c.b16 %v36, %v35
  %vm41 = vcmask 261120
  %v43 = vsel %vm41, %v22, 0
  %45 = vmatprep.subr.bf16.mxu0 0
  %46 = vmatpush1.bf16.msra.mxu0 %v37
  %47 = vmatprep.subr.bf16.mxu0 0
  %48 = vmatpush1.bf16.msra.mxu0 %v38
  %49 = vmatprep.subr.bf16.mxu0 0
  %50 = vmatpush1.bf16.msra.mxu0 0
  %51 = vmatprep.subr.bf16.mxu0 0
  %52 = vmatpush1.bf16.msra.mxu0 0
  %53 = vmatprep.subr.bf16.mxu0 0
  %54 = vmatpush1.bf16.msra.mxu0 0
  %55 = vmatprep.subr.bf16.mxu0 0
  %56 = vmatpush1.bf16.msra.mxu0 0
  %57 = vmatprep.subr.bf16.mxu0 0
  %58 = vmatpush1.bf16.msra.mxu0 0
  %59 = vmatprep.subr.bf16.mxu0 0
  %60 = vmatpush1.bf16.msra.mxu0 0
  %61 = vmatprep.subr.bf16.mxu0 0
  %62 = vmatpush1.bf16.msra.mxu0 0
  %63 = vmatprep.subr.bf16.mxu0 0
  %64 = vmatpush1.bf16.msra.mxu0 0
  %65 = vmatprep.subr.bf16.mxu0 0
  %66 = vmatpush1.bf16.msra.mxu0 0
  %67 = vmatprep.subr.bf16.mxu0 0
  %68 = vmatpush1.bf16.msra.mxu0 0
  %69 = vmatprep.subr.bf16.mxu0 0
  %70 = vmatpush1.bf16.msra.mxu0 0
  %71 = vmatprep.subr.bf16.mxu0 0
  %72 = vmatpush1.bf16.msra.mxu0 0
  %73 = vmatprep.subr.bf16.mxu0 0
  %74 = vmatpush1.bf16.msra.mxu0 0
  %75 = vmatprep.subr.bf16.mxu0 0
  %76 = vmatpush1.bf16.msra.mxu0 0
  %77 = vmatprep.mubr.bf16.mxu0 0
  %78 = vmatmul.mubr.bf16.gmra.mrb[0].mxu0 %v43
  %v79 = vpop.f32.mrb[0].mxu0
  %v80 = vadd.f32 %v27, %v79
  %v81 = vpop.f32.mrb[0].mxu0
  %v82 = vpop.f32.mrb[0].mxu0
  %v83 = vadd.f32 %v27, %v82
  %v84 = vpop.f32.mrb[0].mxu0
  %85 = vdwg.mxu0
  %vm86 = vcmask 785408
  %87 = vst.msk [vmem:[%s3] sm:$0xff] %vm86, %v80
  %vm88 = vcmask 781312
  %89 = vst.msk [vmem:[%s3 + $0x8] sm:$0xf] %vm88, %v83
  %s90 = scalar_lea.vmem %s0, 16
  %v91 = vld [vmem:[%s90] sm:$0xff]
  %v92 = vld [vmem:[%s90 + $0x8] sm:$0xf]
  %v93 = vpack.c.bf16 %v92, %v91
  %v95 = vsel %vm41, %v93, 0
  %97 = vmatprep.subr.bf16.mxu0 0
  %98 = vmatpush1.bf16.msra.mxu0 %v37
  %99 = vmatprep.subr.bf16.mxu0 0
  %100 = vmatpush1.bf16.msra.mxu0 %v38
  %101 = vmatprep.subr.bf16.mxu0 0
  %102 = vmatpush1.bf16.msra.mxu0 0
  %103 = vmatprep.subr.bf16.mxu0 0
  %104 = vmatpush1.bf16.msra.mxu0 0
  %105 = vmatprep.subr.bf16.mxu0 0
  %106 = vmatpush1.bf16.msra.mxu0 0
  %107 = vmatprep.subr.bf16.mxu0 0
  %108 = vmatpush1.bf16.msra.mxu0 0
  %109 = vmatprep.subr.bf16.mxu0 0
  %110 = vmatpush1.bf16.msra.mxu0 0
  %111 = vmatprep.subr.bf16.mxu0 0
  %112 = vmatpush1.bf16.msra.mxu0 0
  %113 = vmatprep.subr.bf16.mxu0 0
  %114 = vmatpush1.bf16.msra.mxu0 0
  %115 = vmatprep.subr.bf16.mxu0 0
  %116 = vmatpush1.bf16.msra.mxu0 0
  %117 = vmatprep.subr.bf16.mxu0 0
  %118 = vmatpush1.bf16.msra.mxu0 0
  %119 = vmatprep.subr.bf16.mxu0 0
  %120 = vmatpush1.bf16.msra.mxu0 0
  %121 = vmatprep.subr.bf16.mxu0 0
  %122 = vmatpush1.bf16.msra.mxu0 0
  %123 = vmatprep.subr.bf16.mxu0 0
  %124 = vmatpush1.bf16.msra.mxu0 0
  %125 = vmatprep.subr.bf16.mxu0 0
  %126 = vmatpush1.bf16.msra.mxu0 0
  %127 = vmatprep.subr.bf16.mxu0 0
  %128 = vmatpush1.bf16.msra.mxu0 0
  %129 = vmatprep.mubr.bf16.mxu0 0
  %130 = vmatmul.mubr.bf16.gmra.mrb[0].mxu0 %v95
  %v131 = vpop.f32.mrb[0].mxu0
  %v132 = vadd.f32 %v27, %v131
  %v133 = vpop.f32.mrb[0].mxu0
  %v134 = vpop.f32.mrb[0].mxu0
  %v135 = vadd.f32 %v27, %v134
  %v136 = vpop.f32.mrb[0].mxu0
  %137 = vdwg.mxu0
  %s138 = scalar_lea.vmem %s3, 16
  %139 = vst.msk [vmem:[%s138] sm:$0xff] %vm86, %v132
  %140 = vst.msk [vmem:[%s138 + $0x8] sm:$0xf] %vm88, %v135
  // Predicated region
  $region14: #{model_forward.26} parent=0 // pred_check
    _
  $region15: #{model_forward.26} parent=0 // pred_check_branch
    %142 = sbr.rel (0) target = $region17
  $region16: #{model_forward.26} parent=0 // pred_region
    _
  $region17: #{model_forward.26} parent=0 // pred_fallthru
    _
  // Predicated region
  $region18: #{model_forward.26} parent=0 // pred_check
    _
  $region19: #{model_forward.26} parent=0 // pred_check_branch
    %144 = sbr.rel (0) target = $region21
  $region20: #{model_forward.26} parent=0 // pred_region
    _
  $region21: #{model_forward.26} parent=0 // pred_fallthru
    _

// kernel: model_forward.25
$region0: #{model_forward.25}
  #allocation0 [shape = 'u32[]', space=smem, size = 0x4, offset = 0x4, fixed_abs, tag = 'smem constant byte address 0x4 - core index']
  #allocation1 [shape = 'u32[144,128]{1,0:T(1,128)}', space=vmem, size = 0x12000, scoped, tag = 'internal scratch']
  %s0 = inlined_call_operand.vmem [shape: f32[2,24,4], index: 0, kind: input, shape index: {}]
  %s1 = inlined_call_operand.vmem [shape: f32[2,24,4], index: 1, kind: input, shape index: {}]
  %s2 = inlined_call_operand.vmem [shape: bf16[4,32], index: 2, kind: input, shape index: {}]
  %s3 = inlined_call_operand.vmem [shape: bf16[4,32], index: 3, kind: input, shape index: {}]
  %s4 = inlined_call_operand.vmem [shape: bf16[4,32], index: 4, kind: input, shape index: {}]
  %s5 = inlined_call_operand.vmem [shape: bf16[4,32], index: 5, kind: input, shape index: {}]
  %s6 = inlined_call_operand.vmem [shape: f32[2,24,32], index: 6, kind: output, shape index: {}]
  %s7 = sld [smem:[#allocation0]]
  $region34: #{model_forward.25} parent=0
    _
  %s9 = ssub.s32 1, %s7
  %s10 = scalar_select 0, %s9, %s7
  // Predicated region
  $region2: #{model_forward.25} parent=0 // pred_check
    _
  $region3: #{model_forward.25} parent=0 // pred_check_branch
    %12 = sbr.rel (0) target = $region5
  $region4: #{model_forward.25} parent=0 // pred_region
    _
  $region5: #{model_forward.25} parent=0 // pred_fallthru
    _
  // Predicated region
  $region6: #{model_forward.25} parent=0 // pred_check
    _
  $region7: #{model_forward.25} parent=0 // pred_check_branch
    %14 = sbr.rel (0) target = $region9
  $region8: #{model_forward.25} parent=0 // pred_region
    _
  $region9: #{model_forward.25} parent=0 // pred_fallthru
    _
  // Predicated region
  $region10: #{model_forward.25} parent=0 // pred_check
    _
  $region11: #{model_forward.25} parent=0 // pred_check_branch
    %16 = sbr.rel (0) target = $region13
  $region12: #{model_forward.25} parent=0 // pred_region
    _
  $region13: #{model_forward.25} parent=0 // pred_fallthru
    _
  // Predicated region
  $region14: #{model_forward.25} parent=0 // pred_check
    _
  $region15: #{model_forward.25} parent=0 // pred_check_branch
    %18 = sbr.rel (0) target = $region17
  $region16: #{model_forward.25} parent=0 // pred_region
    _
  $region17: #{model_forward.25} parent=0 // pred_fallthru
    _
  // Predicated region
  $region18: #{model_forward.25} parent=0 // pred_check
    _
  $region19: #{model_forward.25} parent=0 // pred_check_branch
    %20 = sbr.rel (0) target = $region21
  $region20: #{model_forward.25} parent=0 // pred_region
    _
  $region21: #{model_forward.25} parent=0 // pred_fallthru
    _
  // Predicated region
  $region22: #{model_forward.25} parent=0 // pred_check
    _
  $region23: #{model_forward.25} parent=0 // pred_check_branch
    %22 = sbr.rel (0) target = $region25
  $region24: #{model_forward.25} parent=0 // pred_region
    _
  $region25: #{model_forward.25} parent=0 // pred_fallthru
    _
  %v24 = vld [vmem:[%s2] sm:$0x3]
  %v25 = vld [vmem:[%s3] sm:$0x3]
  %v26 = vld [vmem:[%s4] sm:$0x3]
  %v27 = vld [vmem:[%s5] sm:$0x3]
  %v28 = vld [vmem:[%s0] sm:$0xff]
  %v29 = vld [vmem:[%s0 + $0x8] sm:$0xff]
  %v30 = vld [vmem:[%s0 + $0x10] sm:$0xff]
  %v31 = vld [vmem:[%s1] sm:$0xff]
  %v32 = vld [vmem:[%s1 + $0x8] sm:$0xff]
  %v33 = vld [vmem:[%s1 + $0x10] sm:$0xff]
  %v35 = vrot.slane %v30, 7
  %vm39 = vcmask 1040384
  %v40 = vrot.slane %v28, 7
  %v41 = vrot.slane %v29, 7
  %v42 = vsel %vm39, %v40, %v41
  %v43 = vsel %vm39, %v41, %v35
  %v47 = vsel %vm39, %v35, %v40
  %v48 = vpack.c.bf16 %v42, %v47
  %v49 = vpack.c.bf16 %v43, %v43
  %v50 = vpack.c.bf16 %v29, %v28
  %v51 = vpack.c.bf16 %v30, %v30
  %vm52 = vcmask 31744
  %v54 = vsel %vm52, %v50, 0
  %v57 = vsel %vm52, %v51, 0
  %vm59 = vcmask 1041408
  %v61 = vsel %vm59, %v25, 0
  %63 = vmatprep.subr.bf16.mxu0 0
  %64 = vmatpush1.bf16.msra.mxu0 %v61
  %65 = vmatprep.subr.bf16.mxu0 0
  %66 = vmatpush1.bf16.msra.mxu0 0
  %67 = vmatprep.subr.bf16.mxu0 0
  %68 = vmatpush1.bf16.msra.mxu0 0
  %69 = vmatprep.subr.bf16.mxu0 0
  %70 = vmatpush1.bf16.msra.mxu0 0
  %71 = vmatprep.subr.bf16.mxu0 0
  %72 = vmatpush1.bf16.msra.mxu0 0
  %73 = vmatprep.subr.bf16.mxu0 0
  %74 = vmatpush1.bf16.msra.mxu0 0
  %75 = vmatprep.subr.bf16.mxu0 0
  %76 = vmatpush1.bf16.msra.mxu0 0
  %77 = vmatprep.subr.bf16.mxu0 0
  %78 = vmatpush1.bf16.msra.mxu0 0
  %79 = vmatprep.subr.bf16.mxu0 0
  %80 = vmatpush1.bf16.msra.mxu0 0
  %81 = vmatprep.subr.bf16.mxu0 0
  %82 = vmatpush1.bf16.msra.mxu0 0
  %83 = vmatprep.subr.bf16.mxu0 0
  %84 = vmatpush1.bf16.msra.mxu0 0
  %85 = vmatprep.subr.bf16.mxu0 0
  %86 = vmatpush1.bf16.msra.mxu0 0
  %87 = vmatprep.subr.bf16.mxu0 0
  %88 = vmatpush1.bf16.msra.mxu0 0
  %89 = vmatprep.subr.bf16.mxu0 0
  %90 = vmatpush1.bf16.msra.mxu0 0
  %91 = vmatprep.subr.bf16.mxu0 0
  %92 = vmatpush1.bf16.msra.mxu0 0
  %93 = vmatprep.subr.bf16.mxu0 0
  %94 = vmatpush1.bf16.msra.mxu0 0
  %95 = vmatprep.mubr.bf16.mxu0 0
  %96 = vmatmul.mubr.bf16.gmra.mrb[0].mxu0 %v54
  %v97 = vpop.f32.mrb[0].mxu0
  %v98 = vadd.f32 0.0, %v97
  %v99 = vpop.f32.mrb[0].mxu0
  %v100 = vpop.f32.mrb[0].mxu0
  %v101 = vadd.f32 0.0, %v100
  %v102 = vpop.f32.mrb[0].mxu0
  %103 = vmatprep.mubr.bf16.mxu0 0
  %104 = vmatmul.mubr.bf16.gmra.mrb[0].mxu0 %v57
  %v105 = vpop.f32.mrb[0].mxu0
  %v106 = vadd.f32 0.0, %v105
  %v107 = vpop.f32.mrb[0].mxu0
  %v108 = vpop.f32.mrb[0].mxu0
  %v109 = vpop.f32.mrb[0].mxu0
  %110 = vdwg.mxu0
  %v112 = vsel %vm52, %v48, 0
  %v115 = vsel %vm52, %v49, 0
  %v118 = vsel %vm59, %v24, 0
  %120 = vmatprep.subr.bf16.mxu0 0
  %121 = vmatpush1.bf16.msra.mxu0 %v118
  %122 = vmatprep.subr.bf16.mxu0 0
  %123 = vmatpush1.bf16.msra.mxu0 0
  %124 = vmatprep.subr.bf16.mxu0 0
  %125 = vmatpush1.bf16.msra.mxu0 0
  %126 = vmatprep.subr.bf16.mxu0 0
  %127 = vmatpush1.bf16.msra.mxu0 0
  %128 = vmatprep.subr.bf16.mxu0 0
  %129 = vmatpush1.bf16.msra.mxu0 0
  %130 = vmatprep.subr.bf16.mxu0 0
  %131 = vmatpush1.bf16.msra.mxu0 0
  %132 = vmatprep.subr.bf16.mxu0 0
  %133 = vmatpush1.bf16.msra.mxu0 0
  %134 = vmatprep.subr.bf16.mxu0 0
  %135 = vmatpush1.bf16.msra.mxu0 0
  %136 = vmatprep.subr.bf16.mxu0 0
  %137 = vmatpush1.bf16.msra.mxu0 0
  %138 = vmatprep.subr.bf16.mxu0 0
  %139 = vmatpush1.bf16.msra.mxu0 0
  %140 = vmatprep.subr.bf16.mxu0 0
  %141 = vmatpush1.bf16.msra.mxu0 0
  %142 = vmatprep.subr.bf16.mxu0 0
  %143 = vmatpush1.bf16.msra.mxu0 0
  %144 = vmatprep.subr.bf16.mxu0 0
  %145 = vmatpush1.bf16.msra.mxu0 0
  %146 = vmatprep.subr.bf16.mxu0 0
  %147 = vmatpush1.bf16.msra.mxu0 0
  %148 = vmatprep.subr.bf16.mxu0 0
  %149 = vmatpush1.bf16.msra.mxu0 0
  %150 = vmatprep.subr.bf16.mxu0 0
  %151 = vmatpush1.bf16.msra.mxu0 0
  %152 = vmatprep.mubr.bf16.mxu0 0
  %153 = vmatmul.mubr.bf16.gmra.mrb[0].mxu0 %v112
  %v154 = vpop.f32.mrb[0].mxu0
  %v155 = vadd.f32 %v98, %v154
  %v156 = vpop.f32.mrb[0].mxu0
  %v157 = vpop.f32.mrb[0].mxu0
  %v158 = vadd.f32 %v101, %v157
  %v159 = vpop.f32.mrb[0].mxu0
  %160 = vmatprep.mubr.bf16.mxu0 0
  %161 = vmatmul.mubr.bf16.gmra.mrb[0].mxu0 %v115
  %v162 = vpop.f32.mrb[0].mxu0
  %v163 = vadd.f32 %v106, %v162
  %v164 = vpop.f32.mrb[0].mxu0
  %v165 = vpop.f32.mrb[0].mxu0
  %v166 = vpop.f32.mrb[0].mxu0
  %167 = vdwg.mxu0
  %vm168 = vcmask 1046528
  %v169 = vrot.slane %v28, 1
  %v170 = vrot.slane %v29, 1
  %v171 = vsel %vm168, %v169, %v170
  %v172 = vrot.slane %v30, 1
  %v173 = vsel %vm168, %v170, %v172
  %v178 = vsel %vm168, %v172, %v169
  %v179 = vpack.c.bf16 %v173, %v171
  %v180 = vpack.c.bf16 %v178, %v178
  %v182 = vsel %vm52, %v179, 0
  %v185 = vsel %vm52, %v180, 0
  %v188 = vsel %vm59, %v26, 0
  %190 = vmatprep.subr.bf16.mxu0 0
  %191 = vmatpush1.bf16.msra.mxu0 %v188
  %192 = vmatprep.subr.bf16.mxu0 0
  %193 = vmatpush1.bf16.msra.mxu0 0
  %194 = vmatprep.subr.bf16.mxu0 0
  %195 = vmatpush1.bf16.msra.mxu0 0
  %196 = vmatprep.subr.bf16.mxu0 0
  %197 = vmatpush1.bf16.msra.mxu0 0
  %198 = vmatprep.subr.bf16.mxu0 0
  %199 = vmatpush1.bf16.msra.mxu0 0
  %200 = vmatprep.subr.bf16.mxu0 0
  %201 = vmatpush1.bf16.msra.mxu0 0
  %202 = vmatprep.subr.bf16.mxu0 0
  %203 = vmatpush1.bf16.msra.mxu0 0
  %204 = vmatprep.subr.bf16.mxu0 0
  %205 = vmatpush1.bf16.msra.mxu0 0
  %206 = vmatprep.subr.bf16.mxu0 0
  %207 = vmatpush1.bf16.msra.mxu0 0
  %208 = vmatprep.subr.bf16.mxu0 0
  %209 = vmatpush1.bf16.msra.mxu0 0
  %210 = vmatprep.subr.bf16.mxu0 0
  %211 = vmatpush1.bf16.msra.mxu0 0
  %212 = vmatprep.subr.bf16.mxu0 0
  %213 = vmatpush1.bf16.msra.mxu0 0
  %214 = vmatprep.subr.bf16.mxu0 0
  %215 = vmatpush1.bf16.msra.mxu0 0
  %216 = vmatprep.subr.bf16.mxu0 0
  %217 = vmatpush1.bf16.msra.mxu0 0
  %218 = vmatprep.subr.bf16.mxu0 0
  %219 = vmatpush1.bf16.msra.mxu0 0
  %220 = vmatprep.subr.bf16.mxu0 0
  %221 = vmatpush1.bf16.msra.mxu0 0
  %222 = vmatprep.mubr.bf16.mxu0 0
  %223 = vmatmul.mubr.bf16.gmra.mrb[0].mxu0 %v182
  %v224 = vpop.f32.mrb[0].mxu0
  %v225 = vadd.f32 0.0, %v224
  %v226 = vpop.f32.mrb[0].mxu0
  %v227 = vpop.f32.mrb[0].mxu0
  %v228 = vadd.f32 0.0, %v227
  %v229 = vpop.f32.mrb[0].mxu0
  %230 = vmatprep.mubr.bf16.mxu0 0
  %231 = vmatmul.mubr.bf16.gmra.mrb[0].mxu0 %v185
  %v232 = vpop.f32.mrb[0].mxu0
  %v233 = vadd.f32 0.0, %v232
  %v234 = vpop.f32.mrb[0].mxu0
  %v235 = vpop.f32.mrb[0].mxu0
  %v236 = vpop.f32.mrb[0].mxu0
  %237 = vdwg.mxu0
  %v238 = vadd.f32 %v155, %v225
  %v239 = vadd.f32 %v158, %v228
  %v240 = vadd.f32 %v163, %v233
  %v241 = vpack.c.bf16 %v32, %v31
  %v242 = vpack.c.bf16 %v33, %v33
  %v244 = vsel %vm52, %v241, 0
  %v247 = vsel %vm52, %v242, 0
  %v250 = vsel %vm59, %v27, 0
  %252 = vmatprep.subr.bf16.mxu0 0
  %253 = vmatpush1.bf16.msra.mxu0 %v250
  %254 = vmatprep.subr.bf16.mxu0 0
  %255 = vmatpush1.bf16.msra.mxu0 0
  %256 = vmatprep.subr.bf16.mxu0 0
  %257 = vmatpush1.bf16.msra.mxu0 0
  %258 = vmatprep.subr.bf16.mxu0 0
  %259 = vmatpush1.bf16.msra.mxu0 0
  %260 = vmatprep.subr.bf16.mxu0 0
  %261 = vmatpush1.bf16.msra.mxu0 0
  %262 = vmatprep.subr.bf16.mxu0 0
  %263 = vmatpush1.bf16.msra.mxu0 0
  %264 = vmatprep.subr.bf16.mxu0 0
  %265 = vmatpush1.bf16.msra.mxu0 0
  %266 = vmatprep.subr.bf16.mxu0 0
  %267 = vmatpush1.bf16.msra.mxu0 0
  %268 = vmatprep.subr.bf16.mxu0 0
  %269 = vmatpush1.bf16.msra.mxu0 0
  %270 = vmatprep.subr.bf16.mxu0 0
  %271 = vmatpush1.bf16.msra.mxu0 0
  %272 = vmatprep.subr.bf16.mxu0 0
  %273 = vmatpush1.bf16.msra.mxu0 0
  %274 = vmatprep.subr.bf16.mxu0 0
  %275 = vmatpush1.bf16.msra.mxu0 0
  %276 = vmatprep.subr.bf16.mxu0 0
  %277 = vmatpush1.bf16.msra.mxu0 0
  %278 = vmatprep.subr.bf16.mxu0 0
  %279 = vmatpush1.bf16.msra.mxu0 0
  %280 = vmatprep.subr.bf16.mxu0 0
  %281 = vmatpush1.bf16.msra.mxu0 0
  %282 = vmatprep.subr.bf16.mxu0 0
  %283 = vmatpush1.bf16.msra.mxu0 0
  %284 = vmatprep.mubr.bf16.mxu0 0
  %285 = vmatmul.mubr.bf16.gmra.mrb[0].mxu0 %v244
  %v286 = vpop.f32.mrb[0].mxu0
  %v287 = vadd.f32 0.0, %v286
  %v288 = vpop.f32.mrb[0].mxu0
  %v289 = vpop.f32.mrb[0].mxu0
  %v290 = vadd.f32 0.0, %v289
  %v291 = vpop.f32.mrb[0].mxu0
  %292 = vmatprep.mubr.bf16.mxu0 0
  %293 = vmatmul.mubr.bf16.gmra.mrb[0].mxu0 %v247
  %v294 = vpop.f32.mrb[0].mxu0
  %v295 = vadd.f32 0.0, %v294
  %v296 = vpop.f32.mrb[0].mxu0
  %v297 = vpop.f32.mrb[0].mxu0
  %v298 = vpop.f32.mrb[0].mxu0
  %299 = vdwg.mxu0
  %v300 = vadd.f32 %v238, %v287
  %v301 = vadd.f32 %v239, %v290
  %v302 = vadd.f32 %v240, %v295
  %vm303 = vcmask 261120
  %304 = vst.msk [vmem:[%s6] sm:$0xff] %vm303, %v300
  %305 = vst.msk [vmem:[%s6 + $0x8] sm:$0xff] %vm303, %v301
  %306 = vst.msk [vmem:[%s6 + $0x10] sm:$0xff] %vm303, %v302
  %s307 = scalar_lea.vmem %s0, 24
  %v308 = vld [vmem:[%s307] sm:$0xff]
  %v309 = vld [vmem:[%s307 + $0x8] sm:$0xff]
  %v310 = vld [vmem:[%s307 + $0x10] sm:$0xff]
  %s311 = scalar_lea.vmem %s1, 24
  %v312 = vld [vmem:[%s311] sm:$0xff]
  %v313 = vld [vmem:[%s311 + $0x8] sm:$0xff]
  %v314 = vld [vmem:[%s311 + $0x10] sm:$0xff]
  %v316 = vrot.slane %v310, 7
  %v320 = vrot.slane %v308, 7
  %v321 = vrot.slane %v309, 7
  %v322 = vsel %vm39, %v320, %v321
  %v323 = vsel %vm39, %v321, %v316
  %v327 = vsel %vm39, %v316, %v320
  %v328 = vpack.c.bf16 %v322, %v327
  %v329 = vpack.c.bf16 %v323, %v323
  %v330 = vpack.c.bf16 %v309, %v308
  %v331 = vpack.c.bf16 %v310, %v310
  %v333 = vsel %vm52, %v330, 0
  %v336 = vsel %vm52, %v331, 0
  %338 = vmatprep.subr.bf16.mxu0 0
  %339 = vmatpush1.bf16.msra.mxu0 %v61
  %340 = vmatprep.subr.bf16.mxu0 0
  %341 = vmatpush1.bf16.msra.mxu0 0
  %342 = vmatprep.subr.bf16.mxu0 0
  %343 = vmatpush1.bf16.msra.mxu0 0
  %344 = vmatprep.subr.bf16.mxu0 0
  %345 = vmatpush1.bf16.msra.mxu0 0
  %346 = vmatprep.subr.bf16.mxu0 0
  %347 = vmatpush1.bf16.msra.mxu0 0
  %348 = vmatprep.subr.bf16.mxu0 0
  %349 = vmatpush1.bf16.msra.mxu0 0
  %350 = vmatprep.subr.bf16.mxu0 0
  %351 = vmatpush1.bf16.msra.mxu0 0
  %352 = vmatprep.subr.bf16.mxu0 0
  %353 = vmatpush1.bf16.msra.mxu0 0
  %354 = vmatprep.subr.bf16.mxu0 0
  %355 = vmatpush1.bf16.msra.mxu0 0
  %356 = vmatprep.subr.bf16.mxu0 0
  %357 = vmatpush1.bf16.msra.mxu0 0
  %358 = vmatprep.subr.bf16.mxu0 0
  %359 = vmatpush1.bf16.msra.mxu0 0
  %360 = vmatprep.subr.bf16.mxu0 0
  %361 = vmatpush1.bf16.msra.mxu0 0
  %362 = vmatprep.subr.bf16.mxu0 0
  %363 = vmatpush1.bf16.msra.mxu0 0
  %364 = vmatprep.subr.bf16.mxu0 0
  %365 = vmatpush1.bf16.msra.mxu0 0
  %366 = vmatprep.subr.bf16.mxu0 0
  %367 = vmatpush1.bf16.msra.mxu0 0
  %368 = vmatprep.subr.bf16.mxu0 0
  %369 = vmatpush1.bf16.msra.mxu0 0
  %370 = vmatprep.mubr.bf16.mxu0 0
  %371 = vmatmul.mubr.bf16.gmra.mrb[0].mxu0 %v333
  %v372 = vpop.f32.mrb[0].mxu0
  %v373 = vadd.f32 0.0, %v372
  %v374 = vpop.f32.mrb[0].mxu0
  %v375 = vpop.f32.mrb[0].mxu0
  %v376 = vadd.f32 0.0, %v375
  %v377 = vpop.f32.mrb[0].mxu0
  %378 = vmatprep.mubr.bf16.mxu0 0
  %379 = vmatmul.mubr.bf16.gmra.mrb[0].mxu0 %v336
  %v380 = vpop.f32.mrb[0].mxu0
  %v381 = vadd.f32 0.0, %v380
  %v382 = vpop.f32.mrb[0].mxu0
  %v383 = vpop.f32.mrb[0].mxu0
  %v384 = vpop.f32.mrb[0].mxu0
  %385 = vdwg.mxu0
  %v387 = vsel %vm52, %v328, 0
  %v390 = vsel %vm52, %v329, 0
  %392 = vmatprep.subr.bf16.mxu0 0
  %393 = vmatpush1.bf16.msra.mxu0 %v118
  %394 = vmatprep.subr.bf16.mxu0 0
  %395 = vmatpush1.bf16.msra.mxu0 0
  %396 = vmatprep.subr.bf16.mxu0 0
  %397 = vmatpush1.bf16.msra.mxu0 0
  %398 = vmatprep.subr.bf16.mxu0 0
  %399 = vmatpush1.bf16.msra.mxu0 0
  %400 = vmatprep.subr.bf16.mxu0 0
  %401 = vmatpush1.bf16.msra.mxu0 0
  %402 = vmatprep.subr.bf16.mxu0 0
  %403 = vmatpush1.bf16.msra.mxu0 0
  %404 = vmatprep.subr.bf16.mxu0 0
  %405 = vmatpush1.bf16.msra.mxu0 0
  %406 = vmatprep.subr.bf16.mxu0 0
  %407 = vmatpush1.bf16.msra.mxu0 0
  %408 = vmatprep.subr.bf16.mxu0 0
  %409 = vmatpush1.bf16.msra.mxu0 0
  %410 = vmatprep.subr.bf16.mxu0 0
  %411 = vmatpush1.bf16.msra.mxu0 0
  %412 = vmatprep.subr.bf16.mxu0 0
  %413 = vmatpush1.bf16.msra.mxu0 0
  %414 = vmatprep.subr.bf16.mxu0 0
  %415 = vmatpush1.bf16.msra.mxu0 0
  %416 = vmatprep.subr.bf16.mxu0 0
  %417 = vmatpush1.bf16.msra.mxu0 0
  %418 = vmatprep.subr.bf16.mxu0 0
  %419 = vmatpush1.bf16.msra.mxu0 0
  %420 = vmatprep.subr.bf16.mxu0 0
  %421 = vmatpush1.bf16.msra.mxu0 0
  %422 = vmatprep.subr.bf16.mxu0 0
  %423 = vmatpush1.bf16.msra.mxu0 0
  %424 = vmatprep.mubr.bf16.mxu0 0
  %425 = vmatmul.mubr.bf16.gmra.mrb[0].mxu0 %v387
  %v426 = vpop.f32.mrb[0].mxu0
  %v427 = vadd.f32 %v373, %v426
  %v428 = vpop.f32.mrb[0].mxu0
  %v429 = vpop.f32.mrb[0].mxu0
  %v430 = vadd.f32 %v376, %v429
  %v431 = vpop.f32.mrb[0].mxu0
  %432 = vmatprep.mubr.bf16.mxu0 0
  %433 = vmatmul.mubr.bf16.gmra.mrb[0].mxu0 %v390
  %v434 = vpop.f32.mrb[0].mxu0
  %v435 = vadd.f32 %v381, %v434
  %v436 = vpop.f32.mrb[0].mxu0
  %v437 = vpop.f32.mrb[0].mxu0
  %v438 = vpop.f32.mrb[0].mxu0
  %439 = vdwg.mxu0
  %v440 = vrot.slane %v308, 1
  %v441 = vrot.slane %v309, 1
  %v442 = vsel %vm168, %v440, %v441
  %v443 = vrot.slane %v310, 1
  %v444 = vsel %vm168, %v441, %v443
  %v449 = vsel %vm168, %v443, %v440
  %v450 = vpack.c.bf16 %v444, %v442
  %v451 = vpack.c.bf16 %v449, %v449
  %v453 = vsel %vm52, %v450, 0
  %v456 = vsel %vm52, %v451, 0
  %458 = vmatprep.subr.bf16.mxu0 0
  %459 = vmatpush1.bf16.msra.mxu0 %v188
  %460 = vmatprep.subr.bf16.mxu0 0
  %461 = vmatpush1.bf16.msra.mxu0 0
  %462 = vmatprep.subr.bf16.mxu0 0
  %463 = vmatpush1.bf16.msra.mxu0 0
  %464 = vmatprep.subr.bf16.mxu0 0
  %465 = vmatpush1.bf16.msra.mxu0 0
  %466 = vmatprep.subr.bf16.mxu0 0
  %467 = vmatpush1.bf16.msra.mxu0 0
  %468 = vmatprep.subr.bf16.mxu0 0
  %469 = vmatpush1.bf16.msra.mxu0 0
  %470 = vmatprep.subr.bf16.mxu0 0
  %471 = vmatpush1.bf16.msra.mxu0 0
  %472 = vmatprep.subr.bf16.mxu0 0
  %473 = vmatpush1.bf16.msra.mxu0 0
  %474 = vmatprep.subr.bf16.mxu0 0
  %475 = vmatpush1.bf16.msra.mxu0 0
  %476 = vmatprep.subr.bf16.mxu0 0
  %477 = vmatpush1.bf16.msra.mxu0 0
  %478 = vmatprep.subr.bf16.mxu0 0
  %479 = vmatpush1.bf16.msra.mxu0 0
  %480 = vmatprep.subr.bf16.mxu0 0
  %481 = vmatpush1.bf16.msra.mxu0 0
  %482 = vmatprep.subr.bf16.mxu0 0
  %483 = vmatpush1.bf16.msra.mxu0 0
  %484 = vmatprep.subr.bf16.mxu0 0
  %485 = vmatpush1.bf16.msra.mxu0 0
  %486 = vmatprep.subr.bf16.mxu0 0
  %487 = vmatpush1.bf16.msra.mxu0 0
  %488 = vmatprep.subr.bf16.mxu0 0
  %489 = vmatpush1.bf16.msra.mxu0 0
  %490 = vmatprep.mubr.bf16.mxu0 0
  %491 = vmatmul.mubr.bf16.gmra.mrb[0].mxu0 %v453
  %v492 = vpop.f32.mrb[0].mxu0
  %v493 = vadd.f32 0.0, %v492
  %v494 = vpop.f32.mrb[0].mxu0
  %v495 = vpop.f32.mrb[0].mxu0
  %v496 = vadd.f32 0.0, %v495
  %v497 = vpop.f32.mrb[0].mxu0
  %498 = vmatprep.mubr.bf16.mxu0 0
  %499 = vmatmul.mubr.bf16.gmra.mrb[0].mxu0 %v456
  %v500 = vpop.f32.mrb[0].mxu0
  %v501 = vadd.f32 0.0, %v500
  %v502 = vpop.f32.mrb[0].mxu0
  %v503 = vpop.f32.mrb[0].mxu0
  %v504 = vpop.f32.mrb[0].mxu0
  %505 = vdwg.mxu0
  %v506 = vadd.f32 %v427, %v493
  %v507 = vadd.f32 %v430, %v496
  %v508 = vadd.f32 %v435, %v501
  %v509 = vpack.c.bf16 %v313, %v312
  %v510 = vpack.c.bf16 %v314, %v314
  %v512 = vsel %vm52, %v509, 0
  %v515 = vsel %vm52, %v510, 0
  %517 = vmatprep.subr.bf16.mxu0 0
  %518 = vmatpush1.bf16.msra.mxu0 %v250
  %519 = vmatprep.subr.bf16.mxu0 0
  %520 = vmatpush1.bf16.msra.mxu0 0
  %521 = vmatprep.subr.bf16.mxu0 0
  %522 = vmatpush1.bf16.msra.mxu0 0
  %523 = vmatprep.subr.bf16.mxu0 0
  %524 = vmatpush1.bf16.msra.mxu0 0
  %525 = vmatprep.subr.bf16.mxu0 0
  %526 = vmatpush1.bf16.msra.mxu0 0
  %527 = vmatprep.subr.bf16.mxu0 0
  %528 = vmatpush1.bf16.msra.mxu0 0
  %529 = vmatprep.subr.bf16.mxu0 0
  %530 = vmatpush1.bf16.msra.mxu0 0
  %531 = vmatprep.subr.bf16.mxu0 0
  %532 = vmatpush1.bf16.msra.mxu0 0
  %533 = vmatprep.subr.bf16.mxu0 0
  %534 = vmatpush1.bf16.msra.mxu0 0
  %535 = vmatprep.subr.bf16.mxu0 0
  %536 = vmatpush1.bf16.msra.mxu0 0
  %537 = vmatprep.subr.bf16.mxu0 0
  %538 = vmatpush1.bf16.msra.mxu0 0
  %539 = vmatprep.subr.bf16.mxu0 0
  %540 = vmatpush1.bf16.msra.mxu0 0
  %541 = vmatprep.subr.bf16.mxu0 0
  %542 = vmatpush1.bf16.msra.mxu0 0
  %543 = vmatprep.subr.bf16.mxu0 0
  %544 = vmatpush1.bf16.msra.mxu0 0
  %545 = vmatprep.subr.bf16.mxu0 0
  %546 = vmatpush1.bf16.msra.mxu0 0
  %547 = vmatprep.subr.bf16.mxu0 0
  %548 = vmatpush1.bf16.msra.mxu0 0
  %549 = vmatprep.mubr.bf16.mxu0 0
  %550 = vmatmul.mubr.bf16.gmra.mrb[0].mxu0 %v512
  %v551 = vpop.f32.mrb[0].mxu0
  %v552 = vadd.f32 0.0, %v551
  %v553 = vpop.f32.mrb[0].mxu0
  %v554 = vpop.f32.mrb[0].mxu0
  %v555 = vadd.f32 0.0, %v554
  %v556 = vpop.f32.mrb[0].mxu0
  %557 = vmatprep.mubr.bf16.mxu0 0
  %558 = vmatmul.mubr.bf16.gmra.mrb[0].mxu0 %v515
  %v559 = vpop.f32.mrb[0].mxu0
  %v560 = vadd.f32 0.0, %v559
  %v561 = vpop.f32.mrb[0].mxu0
  %v562 = vpop.f32.mrb[0].mxu0
  %v563 = vpop.f32.mrb[0].mxu0
  %564 = vdwg.mxu0
  %v565 = vadd.f32 %v506, %v552
  %v566 = vadd.f32 %v507, %v555
  %v567 = vadd.f32 %v508, %v560
  %s568 = scalar_lea.vmem %s6, 24
  %569 = vst.msk [vmem:[%s568] sm:$0xff] %vm303, %v565
  %570 = vst.msk [vmem:[%s568 + $0x8] sm:$0xff] %vm303, %v566
  %571 = vst.msk [vmem:[%s568 + $0x10] sm:$0xff] %vm303, %v567
  // Predicated region
  $region26: #{model_forward.25} parent=0 // pred_check
    _
  $region27: #{model_forward.25} parent=0 // pred_check_branch
    %573 = sbr.rel (0) target = $region29
  $region28: #{model_forward.25} parent=0 // pred_region
    _
  $region29: #{model_forward.25} parent=0 // pred_fallthru
    _
  // Predicated region
  $region30: #{model_forward.25} parent=0 // pred_check
    _
  $region31: #{model_forward.25} parent=0 // pred_check_branch
    %575 = sbr.rel (0) target = $region33
  $region32: #{model_forward.25} parent=0 // pred_region
    _
  $region33: #{model_forward.25} parent=0 // pred_fallthru
    _

// kernel: reverse.13
$region0: #{reverse.13}
  %s0 = inlined_call_operand.vmem [shape: f32[2,4,8,5], index: 0, kind: input, shape index: {}]
  %s1 = inlined_call_operand.vmem [shape: f32[2,4,8,5], index: 1, kind: output, shape index: {}]
  %v2 = vlaneseq
  %v3 = vsub.s32 4, %v2
  %4 = vset.pattern.permute.xlu0 %v3
  $region1: #{reverse.13} parent=0
    #allocation0 [shape = 'u8[32768]{0}', space=vmem, size = 0x8000, scoped, tag = 'operand span for operand 0']
    #allocation1 [shape = 'u8[32768]{0}', space=vmem, size = 0x8000, scoped, tag = 'operand span for operand 1']
    // Predicated region
    $region2: #{reverse.13} parent=1 // pred_check
      _
    $region3: #{reverse.13} parent=1 // pred_check_branch
      %6 = sbr.rel (0) target = $region5
    $region4: #{reverse.13} parent=1 // pred_region
      // Predicated region
      $region6: #{reverse.13} parent=4 // pred_check
        _
      $region7: #{reverse.13} parent=4 // pred_check_branch
        %8 = sbr.rel (0) target = $region9
      $region8: #{reverse.13} parent=4 // pred_region
        // Predicated region
        $region21: #{reverse.13} parent=8 // pred_check
          _
        $region22: #{reverse.13} parent=8 // pred_check_branch
          %37 = sbr.rel (0) target = $region24
        $region23: #{reverse.13} parent=8 // pred_region
          loop: start=0, step=1, limit=1
          $region25: #{reverse.13} parent=23 // loop_pre_header
            _
          $region26: #{reverse.13} parent=23 // loop_header
            %s39 = sphi 0, %s43
            %p40 = scmp.ge.s32.totalorder %s39, 1
            %s44 = sphi %s0, %s0
            %s45 = sphi [#allocation0], [#allocation0]
          $region27: #{reverse.13} parent=23 // loop_header_branch
            %42 = sbr.rel (%p40) target = $region31
          $region28: #{reverse.13} parent=23 // loop_body
            %v46 = vld [vmem:[%s44] sm:$0xff]
            %47 = vst [vmem:[%s45] sm:$0xff] %v46
            %v48 = vld [vmem:[%s44 + $0x8] sm:$0xff]
            %49 = vst [vmem:[%s45 + $0x8] sm:$0xff] %v48
            %v50 = vld [vmem:[%s44 + $0x10] sm:$0xff]
            %51 = vst [vmem:[%s45 + $0x10] sm:$0xff] %v50
            %v52 = vld [vmem:[%s44 + $0x18] sm:$0xff]
            %53 = vst [vmem:[%s45 + $0x18] sm:$0xff] %v52
            %v54 = vld [vmem:[%s44 + $0x20] sm:$0xff]
            %55 = vst [vmem:[%s45 + $0x20] sm:$0xff] %v54
            %v56 = vld [vmem:[%s44 + $0x28] sm:$0xff]
            %57 = vst [vmem:[%s45 + $0x28] sm:$0xff] %v56
            %v58 = vld [vmem:[%s44 + $0x30] sm:$0xff]
            %59 = vst [vmem:[%s45 + $0x30] sm:$0xff] %v58
            %v60 = vld [vmem:[%s44 + $0x38] sm:$0xff]
            %61 = vst [vmem:[%s45 + $0x38] sm:$0xff] %v60
          $region29: #{reverse.13} parent=23 // loop_footer
            %s43 = sadd.s32 1, %s39
          $region30: #{reverse.13} parent=23 // loop_footer_branch
            %38 = sbr.rel target = $region26
          $region31: #{reverse.13} parent=23 // loop_exit
            _
        $region24: #{reverse.13} parent=8 // pred_fallthru
          _
        // Predicated region
        $region32: #{reverse.13} parent=8 // pred_check
          _
        $region33: #{reverse.13} parent=8 // pred_check_branch
          %63 = sbr.rel target = $region35
        $region34: #{reverse.13} parent=8 // pred_region
          _
        $region35: #{reverse.13} parent=8 // pred_fallthru
          _
      $region9: #{reverse.13} parent=4 // pred_fallthru
        _
      // Predicated region
      $region10: #{reverse.13} parent=4 // pred_check
        _
      $region11: #{reverse.13} parent=4 // pred_check_branch
        %10 = sbr.rel target = $region13
      $region12: #{reverse.13} parent=4 // pred_region
        loop: start=0, step=1, limit=1
        $region14: #{reverse.13} parent=12 // loop_pre_header
          _
        $region15: #{reverse.13} parent=12 // loop_header
          %s13 = sphi 0, %s17
          %p14 = scmp.ge.s32.totalorder %s13, 1
          %s18 = sphi %s0, %s0
          %s19 = sphi [#allocation0], [#allocation0]
        $region16: #{reverse.13} parent=12 // loop_header_branch
          %16 = sbr.rel (%p14) target = $region20
        $region17: #{reverse.13} parent=12 // loop_body
          %v20 = vld [vmem:[%s18] sm:$0xff]
          %21 = vst [vmem:[%s19] sm:$0xff] %v20
          %v22 = vld [vmem:[%s18 + $0x8] sm:$0xff]
          %23 = vst [vmem:[%s19 + $0x8] sm:$0xff] %v22
          %v24 = vld [vmem:[%s18 + $0x10] sm:$0xff]
          %25 = vst [vmem:[%s19 + $0x10] sm:$0xff] %v24
          %v26 = vld [vmem:[%s18 + $0x18] sm:$0xff]
          %27 = vst [vmem:[%s19 + $0x18] sm:$0xff] %v26
          %v28 = vld [vmem:[%s18 + $0x20] sm:$0xff]
          %29 = vst [vmem:[%s19 + $0x20] sm:$0xff] %v28
          %v30 = vld [vmem:[%s18 + $0x28] sm:$0xff]
          %31 = vst [vmem:[%s19 + $0x28] sm:$0xff] %v30
          %v32 = vld [vmem:[%s18 + $0x30] sm:$0xff]
          %33 = vst [vmem:[%s19 + $0x30] sm:$0xff] %v32
          %v34 = vld [vmem:[%s18 + $0x38] sm:$0xff]
          %35 = vst [vmem:[%s19 + $0x38] sm:$0xff] %v34
        $region18: #{reverse.13} parent=12 // loop_footer
          %s17 = sadd.s32 1, %s13
        $region19: #{reverse.13} parent=12 // loop_footer_branch
          %12 = sbr.rel target = $region15
        $region20: #{reverse.13} parent=12 // loop_exit
          _
      $region13: #{reverse.13} parent=4 // pred_fallthru
        _
    $region5: #{reverse.13} parent=1 // pred_fallthru
      _
    %64 = vnop
    %v65 = vld [vmem:[#allocation0] sm:$0xff]
    %66 = vperm.xlu0 %4, %v65
    %v67 = vpop.permute.xlu0 %66
    %68 = vst [vmem:[#allocation1] sm:$0xff] %v67
    %s69 = scalar_lea.vmem [#allocation1], 8
    %s70 = scalar_lea.vmem [#allocation0], 8
    %v71 = vld [vmem:[%s70] sm:$0xff]
    %72 = vperm.xlu0 %4, %v71
    %v73 = vpop.permute.xlu0 %72
    %74 = vst [vmem:[%s69] sm:$0xff] %v73
    %s75 = scalar_lea.vmem [#allocation1], 16
    %s76 = scalar_lea.vmem [#allocation0], 16
    %v77 = vld [vmem:[%s76] sm:$0xff]
    %78 = vperm.xlu0 %4, %v77
    %v79 = vpop.permute.xlu0 %78
    %80 = vst [vmem:[%s75] sm:$0xff] %v79
    %s81 = scalar_lea.vmem [#allocation1], 24
    %s82 = scalar_lea.vmem [#allocation0], 24
    %v83 = vld [vmem:[%s82] sm:$0xff]
    %84 = vperm.xlu0 %4, %v83
    %v85 = vpop.permute.xlu0 %84
    %86 = vst [vmem:[%s81] sm:$0xff] %v85
    %s87 = scalar_lea.vmem [#allocation1], 32
    %s88 = scalar_lea.vmem [#allocation0], 32
    %v89 = vld [vmem:[%s88] sm:$0xff]
    %90 = vperm.xlu0 %4, %v89
    %v91 = vpop.permute.xlu0 %90
    %92 = vst [vmem:[%s87] sm:$0xff] %v91
    %s93 = scalar_lea.vmem [#allocation1], 40
    %s94 = scalar_lea.vmem [#allocation0], 40
    %v95 = vld [vmem:[%s94] sm:$0xff]
    %96 = vperm.xlu0 %4, %v95
    %v97 = vpop.permute.xlu0 %96
    %98 = vst [vmem:[%s93] sm:$0xff] %v97
    %s99 = scalar_lea.vmem [#allocation1], 48
    %s100 = scalar_lea.vmem [#allocation0], 48
    %v101 = vld [vmem:[%s100] sm:$0xff]
    %102 = vperm.xlu0 %4, %v101
    %v103 = vpop.permute.xlu0 %102
    %104 = vst [vmem:[%s99] sm:$0xff] %v103
    %s105 = scalar_lea.vmem [#allocation1], 56
    %s106 = scalar_lea.vmem [#allocation0], 56
    %v107 = vld [vmem:[%s106] sm:$0xff]
    %108 = vperm.xlu0 %4, %v107
    %v109 = vpop.permute.xlu0 %108
    %110 = vst [vmem:[%s105] sm:$0xff] %v109
    // Predicated region
    $region36: #{reverse.13} parent=1 // pred_check
      _
    $region37: #{reverse.13} parent=1 // pred_check_branch
      %112 = sbr.rel (0) target = $region39
    $region38: #{reverse.13} parent=1 // pred_region
      // Predicated region
      $region40: #{reverse.13} parent=38 // pred_check
        _
      $region41: #{reverse.13} parent=38 // pred_check_branch
        %114 = sbr.rel (0) target = $region43
      $region42: #{reverse.13} parent=38 // pred_region
        // Predicated region
        $region55: #{reverse.13} parent=42 // pred_check
          _
        $region56: #{reverse.13} parent=42 // pred_check_branch
          %143 = sbr.rel (0) target = $region58
        $region57: #{reverse.13} parent=42 // pred_region
          loop: start=0, step=1, limit=1
          $region59: #{reverse.13} parent=57 // loop_pre_header
            _
          $region60: #{reverse.13} parent=57 // loop_header
            %s145 = sphi 0, %s149
            %p146 = scmp.ge.s32.totalorder %s145, 1
            %s150 = sphi [#allocation1], [#allocation1]
            %s151 = sphi %s1, %s1
          $region61: #{reverse.13} parent=57 // loop_header_branch
            %148 = sbr.rel (%p146) target = $region65
          $region62: #{reverse.13} parent=57 // loop_body
            %v152 = vld [vmem:[%s150] sm:$0xff]
            %153 = vst [vmem:[%s151] sm:$0xff] %v152
            %v154 = vld [vmem:[%s150 + $0x8] sm:$0xff]
            %155 = vst [vmem:[%s151 + $0x8] sm:$0xff] %v154
            %v156 = vld [vmem:[%s150 + $0x10] sm:$0xff]
            %157 = vst [vmem:[%s151 + $0x10] sm:$0xff] %v156
            %v158 = vld [vmem:[%s150 + $0x18] sm:$0xff]
            %159 = vst [vmem:[%s151 + $0x18] sm:$0xff] %v158
            %v160 = vld [vmem:[%s150 + $0x20] sm:$0xff]
            %161 = vst [vmem:[%s151 + $0x20] sm:$0xff] %v160
            %v162 = vld [vmem:[%s150 + $0x28] sm:$0xff]
            %163 = vst [vmem:[%s151 + $0x28] sm:$0xff] %v162
            %v164 = vld [vmem:[%s150 + $0x30] sm:$0xff]
            %165 = vst [vmem:[%s151 + $0x30] sm:$0xff] %v164
            %v166 = vld [vmem:[%s150 + $0x38] sm:$0xff]
            %167 = vst [vmem:[%s151 + $0x38] sm:$0xff] %v166
          $region63: #{reverse.13} parent=57 // loop_footer
            %s149 = sadd.s32 1, %s145
          $region64: #{reverse.13} parent=57 // loop_footer_branch
            %144 = sbr.rel target = $region60
          $region65: #{reverse.13} parent=57 // loop_exit
            _
        $region58: #{reverse.13} parent=42 // pred_fallthru
          _
        // Predicated region
        $region66: #{reverse.13} parent=42 // pred_check
          _
        $region67: #{reverse.13} parent=42 // pred_check_branch
          %169 = sbr.rel target = $region69
        $region68: #{reverse.13} parent=42 // pred_region
          _
        $region69: #{reverse.13} parent=42 // pred_fallthru
          _
      $region43: #{reverse.13} parent=38 // pred_fallthru
        _
      // Predicated region
      $region44: #{reverse.13} parent=38 // pred_check
        _
      $region45: #{reverse.13} parent=38 // pred_check_branch
        %116 = sbr.rel target = $region47
      $region46: #{reverse.13} parent=38 // pred_region
        loop: start=0, step=1, limit=1
        $region48: #{reverse.13} parent=46 // loop_pre_header
          _
        $region49: #{reverse.13} parent=46 // loop_header
          %s119 = sphi 0, %s123
          %p120 = scmp.ge.s32.totalorder %s119, 1
          %s124 = sphi [#allocation1], [#allocation1]
          %s125 = sphi %s1, %s1
        $region50: #{reverse.13} parent=46 // loop_header_branch
          %122 = sbr.rel (%p120) target = $region54
        $region51: #{reverse.13} parent=46 // loop_body
          %v126 = vld [vmem:[%s124] sm:$0xff]
          %127 = vst [vmem:[%s125] sm:$0xff] %v126
          %v128 = vld [vmem:[%s124 + $0x8] sm:$0xff]
          %129 = vst [vmem:[%s125 + $0x8] sm:$0xff] %v128
          %v130 = vld [vmem:[%s124 + $0x10] sm:$0xff]
          %131 = vst [vmem:[%s125 + $0x10] sm:$0xff] %v130
          %v132 = vld [vmem:[%s124 + $0x18] sm:$0xff]
          %133 = vst [vmem:[%s125 + $0x18] sm:$0xff] %v132
          %v134 = vld [vmem:[%s124 + $0x20] sm:$0xff]
          %135 = vst [vmem:[%s125 + $0x20] sm:$0xff] %v134
          %v136 = vld [vmem:[%s124 + $0x28] sm:$0xff]
          %137 = vst [vmem:[%s125 + $0x28] sm:$0xff] %v136
          %v138 = vld [vmem:[%s124 + $0x30] sm:$0xff]
          %139 = vst [vmem:[%s125 + $0x30] sm:$0xff] %v138
          %v140 = vld [vmem:[%s124 + $0x38] sm:$0xff]
          %141 = vst [vmem:[%s125 + $0x38] sm:$0xff] %v140
        $region52: #{reverse.13} parent=46 // loop_footer
          %s123 = sadd.s32 1, %s119
        $region53: #{reverse.13} parent=46 // loop_footer_branch
          %118 = sbr.rel target = $region49
        $region54: #{reverse.13} parent=46 // loop_exit
          _
      $region47: #{reverse.13} parent=38 // pred_fallthru
        _
    $region39: #{reverse.13} parent=1 // pred_fallthru
      _
    %170 = vnop

// kernel: model_forward.37
$region0: #{model_forward.37}
  #allocation0 [shape = 'u32[]', space=smem, size = 0x4, offset = 0x4, fixed_abs, tag = 'smem constant byte address 0x4 - core index']
  #allocation1 [shape = 'u32[144,128]{1,0:T(1,128)}', space=vmem, size = 0x12000, scoped, tag = 'internal scratch']
  %s0 = inlined_call_operand.vmem [shape: f32[2,12,32], index: 0, kind: input, shape index: {}]
  %s1 = inlined_call_operand.vmem [shape: f32[2,8,32], index: 1, kind: input, shape index: {}]
  %s2 = inlined_call_operand.vmem [shape: bf16[32,32], index: 2, kind: input, shape index: {}]
  %s3 = inlined_call_operand.vmem [shape: f32[1,32], index: 3, kind: input, shape index: {}]
  %s4 = inlined_call_operand.vmem [shape: bf16[32,64], index: 4, kind: input, shape index: {}]
  %s5 = inlined_call_operand.vmem [shape: f32[1,64], index: 5, kind: input, shape index: {}]
  %s6 = inlined_call_operand.vmem [shape: f32[2,12,32], index: 6, kind: output, shape index: {0}]
  %s7 = inlined_call_operand.vmem [shape: f32[2,8,64], index: 7, kind: output, shape index: {1}]
  %8 = xla_tuple %s6, %s7
  %s9 = sld [smem:[#allocation0]]
  $region42: #{model_forward.37} parent=0
    _
  %s11 = ssub.s32 1, %s9
  %s12 = scalar_select 0, %s11, %s9
  // Predicated region
  $region2: #{model_forward.37} parent=0 // pred_check
    _
  $region3: #{model_forward.37} parent=0 // pred_check_branch
    %14 = sbr.rel (0) target = $region5
  $region4: #{model_forward.37} parent=0 // pred_region
    _
  $region5: #{model_forward.37} parent=0 // pred_fallthru
    _
  // Predicated region
  $region6: #{model_forward.37} parent=0 // pred_check
    _
  $region7: #{model_forward.37} parent=0 // pred_check_branch
    %16 = sbr.rel (0) target = $region9
  $region8: #{model_forward.37} parent=0 // pred_region
    _
  $region9: #{model_forward.37} parent=0 // pred_fallthru
    _
  // Predicated region
  $region10: #{model_forward.37} parent=0 // pred_check
    _
  $region11: #{model_forward.37} parent=0 // pred_check_branch
    %18 = sbr.rel (0) target = $region13
  $region12: #{model_forward.37} parent=0 // pred_region
    _
  $region13: #{model_forward.37} parent=0 // pred_fallthru
    _
  // Predicated region
  $region14: #{model_forward.37} parent=0 // pred_check
    _
  $region15: #{model_forward.37} parent=0 // pred_check_branch
    %20 = sbr.rel (0) target = $region17
  $region16: #{model_forward.37} parent=0 // pred_region
    _
  $region17: #{model_forward.37} parent=0 // pred_fallthru
    _
  // Predicated region
  $region18: #{model_forward.37} parent=0 // pred_check
    _
  $region19: #{model_forward.37} parent=0 // pred_check_branch
    %22 = sbr.rel (0) target = $region21
  $region20: #{model_forward.37} parent=0 // pred_region
    _
  $region21: #{model_forward.37} parent=0 // pred_fallthru
    _
  // Predicated region
  $region22: #{model_forward.37} parent=0 // pred_check
    _
  $region23: #{model_forward.37} parent=0 // pred_check_branch
    %24 = sbr.rel (0) target = $region25
  $region24: #{model_forward.37} parent=0 // pred_region
    _
  $region25: #{model_forward.37} parent=0 // pred_fallthru
    _
  %v26 = vld [vmem:[%s2] sm:$0xf]
  %v27 = vld [vmem:[%s2 + $0x4] sm:$0xf]
  %v28 = vld [vmem:[%s2 + $0x8] sm:$0xf]
  %v29 = vld [vmem:[%s2 + $0xc] sm:$0xf]
  %v30 = vld [vmem:[%s3] sm:$0x1]
  %v31 = vld [vmem:[%s4] sm:$0xf]
  %v32 = vld [vmem:[%s4 + $0x4] sm:$0xf]
  %v33 = vld [vmem:[%s4 + $0x8] sm:$0xf]
  %v34 = vld [vmem:[%s4 + $0xc] sm:$0xf]
  %v35 = vld [vmem:[%s5] sm:$0x1]
  %v36 = vld [vmem:[%s0] sm:$0xff]
  %v37 = vld [vmem:[%s0 + $0x8] sm:$0xf]
  %v38 = vpack.c.bf16 %v37, %v36
  %v40 = vlaneseq
  %v41 = vshrl.u32 %v40, 7
  %v42 = vsub.s32 0, %v41
  %v43 = vrot.slane %v30, %v42
  %v49 = vunpack.c.l.b16 %v26
  %v50 = vunpack.c.l.b16 %v27
  %v51 = vunpack.c.l.b16 %v28
  %v52 = vunpack.c.l.b16 %v29
  %v53 = vpack.c.b16 %v50, %v49
  %v54 = vpack.c.b16 %v52, %v51
  %vm57 = vcmask 261120
  %v59 = vsel %vm57, %v38, 0
  %61 = vmatprep.subr.bf16.mxu0 0
  %62 = vmatpush1.bf16.msra.mxu0 %v53
  %63 = vmatprep.subr.bf16.mxu0 0
  %64 = vmatpush1.bf16.msra.mxu0 %v54
  %65 = vmatprep.subr.bf16.mxu0 0
  %66 = vmatpush1.bf16.msra.mxu0 0
  %67 = vmatprep.subr.bf16.mxu0 0
  %68 = vmatpush1.bf16.msra.mxu0 0
  %69 = vmatprep.subr.bf16.mxu0 0
  %70 = vmatpush1.bf16.msra.mxu0 0
  %71 = vmatprep.subr.bf16.mxu0 0
  %72 = vmatpush1.bf16.msra.mxu0 0
  %73 = vmatprep.subr.bf16.mxu0 0
  %74 = vmatpush1.bf16.msra.mxu0 0
  %75 = vmatprep.subr.bf16.mxu0 0
  %76 = vmatpush1.bf16.msra.mxu0 0
  %77 = vmatprep.subr.bf16.mxu0 0
  %78 = vmatpush1.bf16.msra.mxu0 0
  %79 = vmatprep.subr.bf16.mxu0 0
  %80 = vmatpush1.bf16.msra.mxu0 0
  %81 = vmatprep.subr.bf16.mxu0 0
  %82 = vmatpush1.bf16.msra.mxu0 0
  %83 = vmatprep.subr.bf16.mxu0 0
  %84 = vmatpush1.bf16.msra.mxu0 0
  %85 = vmatprep.subr.bf16.mxu0 0
  %86 = vmatpush1.bf16.msra.mxu0 0
  %87 = vmatprep.subr.bf16.mxu0 0
  %88 = vmatpush1.bf16.msra.mxu0 0
  %89 = vmatprep.subr.bf16.mxu0 0
  %90 = vmatpush1.bf16.msra.mxu0 0
  %91 = vmatprep.subr.bf16.mxu0 0
  %92 = vmatpush1.bf16.msra.mxu0 0
  %93 = vmatprep.mubr.bf16.mxu0 0
  %94 = vmatmul.mubr.bf16.gmra.mrb[0].mxu0 %v59
  %v95 = vpop.f32.mrb[0].mxu0
  %v96 = vadd.f32 %v43, %v95
  %v97 = vpop.f32.mrb[0].mxu0
  %v98 = vpop.f32.mrb[0].mxu0
  %v99 = vadd.f32 %v43, %v98
  %v100 = vpop.f32.mrb[0].mxu0
  %101 = vdwg.mxu0
  %102 = vst.msk [vmem:[%s6] sm:$0xff] %vm57, %v96
  %vm103 = vcmask 257024
  %104 = vst.msk [vmem:[%s6 + $0x8] sm:$0xf] %vm103, %v99
  %v105 = vld [vmem:[%s1] sm:$0xff]
  %v106 = vpack.c.bf16 %v105, %v105
  %v108 = vlaneseq
  %v109 = vshrl.u32 %v108, 7
  %v110 = vsub.s32 0, %v109
  %v111 = vrot.slane %v35, %v110
  %v117 = vunpack.c.l.b16 %v31
  %v118 = vunpack.c.l.b16 %v32
  %v119 = vunpack.c.l.b16 %v33
  %v120 = vunpack.c.l.b16 %v34
  %v121 = vpack.c.b16 %v118, %v117
  %v122 = vpack.c.b16 %v120, %v119
  %v126 = vsel %vm57, %v106, 0
  %128 = vmatprep.subr.bf16.mxu0 0
  %129 = vmatpush1.bf16.msra.mxu0 %v121
  %130 = vmatprep.subr.bf16.mxu0 0
  %131 = vmatpush1.bf16.msra.mxu0 %v122
  %132 = vmatprep.subr.bf16.mxu0 0
  %133 = vmatpush1.bf16.msra.mxu0 0
  %134 = vmatprep.subr.bf16.mxu0 0
  %135 = vmatpush1.bf16.msra.mxu0 0
  %136 = vmatprep.subr.bf16.mxu0 0
  %137 = vmatpush1.bf16.msra.mxu0 0
  %138 = vmatprep.subr.bf16.mxu0 0
  %139 = vmatpush1.bf16.msra.mxu0 0
  %140 = vmatprep.subr.bf16.mxu0 0
  %141 = vmatpush1.bf16.msra.mxu0 0
  %142 = vmatprep.subr.bf16.mxu0 0
  %143 = vmatpush1.bf16.msra.mxu0 0
  %144 = vmatprep.subr.bf16.mxu0 0
  %145 = vmatpush1.bf16.msra.mxu0 0
  %146 = vmatprep.subr.bf16.mxu0 0
  %147 = vmatpush1.bf16.msra.mxu0 0
  %148 = vmatprep.subr.bf16.mxu0 0
  %149 = vmatpush1.bf16.msra.mxu0 0
  %150 = vmatprep.subr.bf16.mxu0 0
  %151 = vmatpush1.bf16.msra.mxu0 0
  %152 = vmatprep.subr.bf16.mxu0 0
  %153 = vmatpush1.bf16.msra.mxu0 0
  %154 = vmatprep.subr.bf16.mxu0 0
  %155 = vmatpush1.bf16.msra.mxu0 0
  %156 = vmatprep.subr.bf16.mxu0 0
  %157 = vmatpush1.bf16.msra.mxu0 0
  %158 = vmatprep.subr.bf16.mxu0 0
  %159 = vmatpush1.bf16.msra.mxu0 0
  %160 = vmatprep.mubr.bf16.mxu0 0
  %161 = vmatmul.mubr.bf16.gmra.mrb[0].mxu0 %v126
  %v162 = vpop.f32.mrb[0].mxu0
  %v163 = vadd.f32 %v111, %v162
  %v164 = vpop.f32.mrb[0].mxu0
  %v165 = vpop.f32.mrb[0].mxu0
  %v166 = vpop.f32.mrb[0].mxu0
  %167 = vdwg.mxu0
  %vm168 = vcmask 523264
  %169 = vst.msk [vmem:[%s7] sm:$0xff] %vm168, %v163
  %s170 = scalar_lea.vmem %s0, 16
  %v171 = vld [vmem:[%s170] sm:$0xff]
  %v172 = vld [vmem:[%s170 + $0x8] sm:$0xf]
  %v173 = vpack.c.bf16 %v172, %v171
  %v175 = vsel %vm57, %v173, 0
  %177 = vmatprep.subr.bf16.mxu0 0
  %178 = vmatpush1.bf16.msra.mxu0 %v53
  %179 = vmatprep.subr.bf16.mxu0 0
  %180 = vmatpush1.bf16.msra.mxu0 %v54
  %181 = vmatprep.subr.bf16.mxu0 0
  %182 = vmatpush1.bf16.msra.mxu0 0
  %183 = vmatprep.subr.bf16.mxu0 0
  %184 = vmatpush1.bf16.msra.mxu0 0
  %185 = vmatprep.subr.bf16.mxu0 0
  %186 = vmatpush1.bf16.msra.mxu0 0
  %187 = vmatprep.subr.bf16.mxu0 0
  %188 = vmatpush1.bf16.msra.mxu0 0
  %189 = vmatprep.subr.bf16.mxu0 0
  %190 = vmatpush1.bf16.msra.mxu0 0
  %191 = vmatprep.subr.bf16.mxu0 0
  %192 = vmatpush1.bf16.msra.mxu0 0
  %193 = vmatprep.subr.bf16.mxu0 0
  %194 = vmatpush1.bf16.msra.mxu0 0
  %195 = vmatprep.subr.bf16.mxu0 0
  %196 = vmatpush1.bf16.msra.mxu0 0
  %197 = vmatprep.subr.bf16.mxu0 0
  %198 = vmatpush1.bf16.msra.mxu0 0
  %199 = vmatprep.subr.bf16.mxu0 0
  %200 = vmatpush1.bf16.msra.mxu0 0
  %201 = vmatprep.subr.bf16.mxu0 0
  %202 = vmatpush1.bf16.msra.mxu0 0
  %203 = vmatprep.subr.bf16.mxu0 0
  %204 = vmatpush1.bf16.msra.mxu0 0
  %205 = vmatprep.subr.bf16.mxu0 0
  %206 = vmatpush1.bf16.msra.mxu0 0
  %207 = vmatprep.subr.bf16.mxu0 0
  %208 = vmatpush1.bf16.msra.mxu0 0
  %209 = vmatprep.mubr.bf16.mxu0 0
  %210 = vmatmul.mubr.bf16.gmra.mrb[0].mxu0 %v175
  %v211 = vpop.f32.mrb[0].mxu0
  %v212 = vadd.f32 %v43, %v211
  %v213 = vpop.f32.mrb[0].mxu0
  %v214 = vpop.f32.mrb[0].mxu0
  %v215 = vadd.f32 %v43, %v214
  %v216 = vpop.f32.mrb[0].mxu0
  %217 = vdwg.mxu0
  %s218 = scalar_lea.vmem %s6, 16
  %219 = vst.msk [vmem:[%s218] sm:$0xff] %vm57, %v212
  %220 = vst.msk [vmem:[%s218 + $0x8] sm:$0xf] %vm103, %v215
  %s221 = scalar_lea.vmem %s1, 8
  %v222 = vld [vmem:[%s221] sm:$0xff]
  %v223 = vpack.c.bf16 %v222, %v222
  %v225 = vsel %vm57, %v223, 0
  %227 = vmatprep.subr.bf16.mxu0 0
  %228 = vmatpush1.bf16.msra.mxu0 %v121
  %229 = vmatprep.subr.bf16.mxu0 0
  %230 = vmatpush1.bf16.msra.mxu0 %v122
  %231 = vmatprep.subr.bf16.mxu0 0
  %232 = vmatpush1.bf16.msra.mxu0 0
  %233 = vmatprep.subr.bf16.mxu0 0
  %234 = vmatpush1.bf16.msra.mxu0 0
  %235 = vmatprep.subr.bf16.mxu0 0
  %236 = vmatpush1.bf16.msra.mxu0 0
  %237 = vmatprep.subr.bf16.mxu0 0
  %238 = vmatpush1.bf16.msra.mxu0 0
  %239 = vmatprep.subr.bf16.mxu0 0
  %240 = vmatpush1.bf16.msra.mxu0 0
  %241 = vmatprep.subr.bf16.mxu0 0
  %242 = vmatpush1.bf16.msra.mxu0 0
  %243 = vmatprep.subr.bf16.mxu0 0
  %244 = vmatpush1.bf16.msra.mxu0 0
  %245 = vmatprep.subr.bf16.mxu0 0
  %246 = vmatpush1.bf16.msra.mxu0 0
  %247 = vmatprep.subr.bf16.mxu0 0
  %248 = vmatpush1.bf16.msra.mxu0 0
  %249 = vmatprep.subr.bf16.mxu0 0
  %250 = vmatpush1.bf16.msra.mxu0 0
  %251 = vmatprep.subr.bf16.mxu0 0
  %252 = vmatpush1.bf16.msra.mxu0 0
  %253 = vmatprep.subr.bf16.mxu0 0
  %254 = vmatpush1.bf16.msra.mxu0 0
  %255 = vmatprep.subr.bf16.mxu0 0
  %256 = vmatpush1.bf16.msra.mxu0 0
  %257 = vmatprep.subr.bf16.mxu0 0
  %258 = vmatpush1.bf16.msra.mxu0 0
  %259 = vmatprep.mubr.bf16.mxu0 0
  %260 = vmatmul.mubr.bf16.gmra.mrb[0].mxu0 %v225
  %v261 = vpop.f32.mrb[0].mxu0
  %v262 = vadd.f32 %v111, %v261
  %v263 = vpop.f32.mrb[0].mxu0
  %v264 = vpop.f32.mrb[0].mxu0
  %v265 = vpop.f32.mrb[0].mxu0
  %266 = vdwg.mxu0
  %s267 = scalar_lea.vmem %s7, 8
  %268 = vst.msk [vmem:[%s267] sm:$0xff] %vm168, %v262
  // Predicated region
  $region26: #{model_forward.37} parent=0 // pred_check
    _
  $region27: #{model_forward.37} parent=0 // pred_check_branch
    %270 = sbr.rel (0) target = $region29
  $region28: #{model_forward.37} parent=0 // pred_region
    _
  $region29: #{model_forward.37} parent=0 // pred_fallthru
    _
  // Predicated region
  $region30: #{model_forward.37} parent=0 // pred_check
    _
  $region31: #{model_forward.37} parent=0 // pred_check_branch
    %272 = sbr.rel (0) target = $region33
  $region32: #{model_forward.37} parent=0 // pred_region
    _
  $region33: #{model_forward.37} parent=0 // pred_fallthru
    _
  // Predicated region
  $region34: #{model_forward.37} parent=0 // pred_check
    _
  $region35: #{model_forward.37} parent=0 // pred_check_branch
    %274 = sbr.rel (0) target = $region37
  $region36: #{model_forward.37} parent=0 // pred_region
    _
  $region37: #{model_forward.37} parent=0 // pred_fallthru
    _
  // Predicated region
  $region38: #{model_forward.37} parent=0 // pred_check
    _
  $region39: #{model_forward.37} parent=0 // pred_check_branch
    %276 = sbr.rel (0) target = $region41
  $region40: #{model_forward.37} parent=0 // pred_region
    _
  $region41: #{model_forward.37} parent=0 // pred_fallthru
    _

// kernel: model_forward.27
$region0: #{model_forward.27}
  #allocation0 [shape = 'u32[]', space=smem, size = 0x4, offset = 0x4, fixed_abs, tag = 'smem constant byte address 0x4 - core index']
  #allocation1 [shape = 'u32[144,128]{1,0:T(1,128)}', space=vmem, size = 0x12000, scoped, tag = 'internal scratch']
  %s0 = inlined_call_operand.vmem [shape: f32[2,12,32], index: 0, kind: input, shape index: {}]
  %s1 = inlined_call_operand.vmem [shape: f32[2,12,32], index: 1, kind: input, shape index: {}]
  %s2 = inlined_call_operand.vmem [shape: bf16[32,32], index: 2, kind: input, shape index: {}]
  %s3 = inlined_call_operand.vmem [shape: f32[1,32], index: 3, kind: input, shape index: {}]
  %s4 = inlined_call_operand.vmem [shape: f32[2,12,32], index: 4, kind: output, shape index: {0}]
  %s5 = inlined_call_operand.hbm [shape: f32[2,12,32], index: 5, kind: output, shape index: {1}]
  %6 = xla_tuple %s4, %s5
  %s7 = sld [smem:[#allocation0]]
  $region34: #{model_forward.27} parent=0
    _
  %s9 = ssub.s32 1, %s7
  %s10 = scalar_select 0, %s9, %s7
  $region1: #{model_forward.27} parent=0
    #allocation2 [shape = 'u8[16384]{0}', space=vmem, size = 0x4000, scoped, tag = 'output window, operand 1, single buffered']
    #allocation3 [shape = 's32[1]{0}', space=sflag, size = 0x4, scoped, tag = 'scoped memory for model_forward.27']
    %11 = vsyncpa [#allocation3], 0
    // Predicated region
    $region2: #{model_forward.27} parent=1 // pred_check
      _
    $region3: #{model_forward.27} parent=1 // pred_check_branch
      %13 = sbr.rel (0) target = $region5
    $region4: #{model_forward.27} parent=1 // pred_region
      _
    $region5: #{model_forward.27} parent=1 // pred_fallthru
      _
    // Predicated region
    $region6: #{model_forward.27} parent=1 // pred_check
      _
    $region7: #{model_forward.27} parent=1 // pred_check_branch
      %15 = sbr.rel (0) target = $region9
    $region8: #{model_forward.27} parent=1 // pred_region
      _
    $region9: #{model_forward.27} parent=1 // pred_fallthru
      _
    // Predicated region
    $region10: #{model_forward.27} parent=1 // pred_check
      _
    $region11: #{model_forward.27} parent=1 // pred_check_branch
      %17 = sbr.rel (0) target = $region13
    $region12: #{model_forward.27} parent=1 // pred_region
      _
    $region13: #{model_forward.27} parent=1 // pred_fallthru
      _
    // Predicated region
    $region14: #{model_forward.27} parent=1 // pred_check
      _
    $region15: #{model_forward.27} parent=1 // pred_check_branch
      %19 = sbr.rel (0) target = $region17
    $region16: #{model_forward.27} parent=1 // pred_region
      _
    $region17: #{model_forward.27} parent=1 // pred_fallthru
      _
    %v21 = vld [vmem:[%s2] sm:$0xf]
    %v22 = vld [vmem:[%s2 + $0x4] sm:$0xf]
    %v23 = vld [vmem:[%s2 + $0x8] sm:$0xf]
    %v24 = vld [vmem:[%s2 + $0xc] sm:$0xf]
    %v25 = vld [vmem:[%s3] sm:$0x1]
    %v26 = vld [vmem:[%s0] sm:$0xff]
    %v27 = vld [vmem:[%s0 + $0x8] sm:$0xf]
    %v28 = vpack.c.bf16 %v27, %v26
    %v30 = vlaneseq
    %v31 = vshrl.u32 %v30, 7
    %v32 = vsub.s32 0, %v31
    %v33 = vrot.slane %v25, %v32
    %v39 = vunpack.c.l.b16 %v21
    %v40 = vunpack.c.l.b16 %v22
    %v41 = vunpack.c.l.b16 %v23
    %v42 = vunpack.c.l.b16 %v24
    %v43 = vpack.c.b16 %v40, %v39
    %v44 = vpack.c.b16 %v42, %v41
    %vm47 = vcmask 261120
    %v49 = vsel %vm47, %v28, 0
    %51 = vmatprep.subr.bf16.mxu0 0
    %52 = vmatpush1.bf16.msra.mxu0 %v43
    %53 = vmatprep.subr.bf16.mxu0 0
    %54 = vmatpush1.bf16.msra.mxu0 %v44
    %55 = vmatprep.subr.bf16.mxu0 0
    %56 = vmatpush1.bf16.msra.mxu0 0
    %57 = vmatprep.subr.bf16.mxu0 0
    %58 = vmatpush1.bf16.msra.mxu0 0
    %59 = vmatprep.subr.bf16.mxu0 0
    %60 = vmatpush1.bf16.msra.mxu0 0
    %61 = vmatprep.subr.bf16.mxu0 0
    %62 = vmatpush1.bf16.msra.mxu0 0
    %63 = vmatprep.subr.bf16.mxu0 0
    %64 = vmatpush1.bf16.msra.mxu0 0
    %65 = vmatprep.subr.bf16.mxu0 0
    %66 = vmatpush1.bf16.msra.mxu0 0
    %67 = vmatprep.subr.bf16.mxu0 0
    %68 = vmatpush1.bf16.msra.mxu0 0
    %69 = vmatprep.subr.bf16.mxu0 0
    %70 = vmatpush1.bf16.msra.mxu0 0
    %71 = vmatprep.subr.bf16.mxu0 0
    %72 = vmatpush1.bf16.msra.mxu0 0
    %73 = vmatprep.subr.bf16.mxu0 0
    %74 = vmatpush1.bf16.msra.mxu0 0
    %75 = vmatprep.subr.bf16.mxu0 0
    %76 = vmatpush1.bf16.msra.mxu0 0
    %77 = vmatprep.subr.bf16.mxu0 0
    %78 = vmatpush1.bf16.msra.mxu0 0
    %79 = vmatprep.subr.bf16.mxu0 0
    %80 = vmatpush1.bf16.msra.mxu0 0
    %81 = vmatprep.subr.bf16.mxu0 0
    %82 = vmatpush1.bf16.msra.mxu0 0
    %83 = vmatprep.mubr.bf16.mxu0 0
    %84 = vmatmul.mubr.bf16.gmra.mrb[0].mxu0 %v49
    %v85 = vpop.f32.mrb[0].mxu0
    %v86 = vadd.f32 %v33, %v85
    %v87 = vpop.f32.mrb[0].mxu0
    %v88 = vpop.f32.mrb[0].mxu0
    %v89 = vadd.f32 %v33, %v88
    %v90 = vpop.f32.mrb[0].mxu0
    %91 = vdwg.mxu0
    %v92 = vld [vmem:[%s1] sm:$0xff]
    %v93 = vld [vmem:[%s1 + $0x8] sm:$0xf]
    %v94 = vadd.f32 %v92, %v86
    %v95 = vadd.f32 %v93, %v89
    %vm98 = vcmask 1040384
    %v99 = vrot.slane %v94, 7
    %v100 = vrot.slane %v95, 7
    %v101 = vsel %vm98, %v99, %v100
    %v104 = vsel %vm98, %v94, %v99
    %vm105 = vcmask 1046528
    %v106 = vrot.slane %v94, 1
    %v107 = vrot.slane %v95, 1
    %v108 = vsel %vm105, %v106, %v107
    %vm111 = vcmask 1042432
    %v112 = vsel %vm111, %v107, %v95
    %v113 = vadd.f32 %v94, %v104
    %v114 = vadd.f32 %v95, %v101
    %v115 = vadd.f32 %v113, %v108
    %v116 = vadd.f32 %v114, %v112
    %vm117 = vcmask 1041408
    %v118 = vrot.slane %v94, 6
    %v119 = vrot.slane %v95, 6
    %v120 = vsel %vm117, %v118, %v119
    %v123 = vsel %vm117, %v104, %v118
    %vm124 = vcmask 1045504
    %v125 = vrot.slane %v94, 2
    %v126 = vrot.slane %v95, 2
    %v127 = vsel %vm124, %v125, %v126
    %v130 = vsel %vm117, %v126, %v107
    %v131 = vsel %vm111, %v130, %v95
    %v132 = vadd.f32 %v115, %v123
    %v133 = vadd.f32 %v116, %v120
    %v134 = vadd.f32 %v132, %v127
    %v135 = vadd.f32 %v133, %v131
    %v136 = vmul.f32 %v134, 0.2
    %v137 = vmul.f32 %v135, 0.2
    %v138 = vsub.f32 %v94, %v136
    %v139 = vsub.f32 %v95, %v137
    %140 = vst.msk [vmem:[%s4] sm:$0xff] %vm47, %v138
    %vm141 = vcmask 257024
    %142 = vst.msk [vmem:[%s4 + $0x8] sm:$0xf] %vm141, %v139
    %143 = vst.msk [vmem:[#allocation2] sm:$0xff] %vm47, %v136
    %144 = vst.msk [vmem:[#allocation2 + $0x8] sm:$0xf] %vm141, %v137
    %s145 = scalar_lea.vmem %s0, 16
    %v146 = vld [vmem:[%s145] sm:$0xff]
    %v147 = vld [vmem:[%s145 + $0x8] sm:$0xf]
    %v148 = vpack.c.bf16 %v147, %v146
    %v150 = vsel %vm47, %v148, 0
    %152 = vmatprep.subr.bf16.mxu0 0
    %153 = vmatpush1.bf16.msra.mxu0 %v43
    %154 = vmatprep.subr.bf16.mxu0 0
    %155 = vmatpush1.bf16.msra.mxu0 %v44
    %156 = vmatprep.subr.bf16.mxu0 0
    %157 = vmatpush1.bf16.msra.mxu0 0
    %158 = vmatprep.subr.bf16.mxu0 0
    %159 = vmatpush1.bf16.msra.mxu0 0
    %160 = vmatprep.subr.bf16.mxu0 0
    %161 = vmatpush1.bf16.msra.mxu0 0
    %162 = vmatprep.subr.bf16.mxu0 0
    %163 = vmatpush1.bf16.msra.mxu0 0
    %164 = vmatprep.subr.bf16.mxu0 0
    %165 = vmatpush1.bf16.msra.mxu0 0
    %166 = vmatprep.subr.bf16.mxu0 0
    %167 = vmatpush1.bf16.msra.mxu0 0
    %168 = vmatprep.subr.bf16.mxu0 0
    %169 = vmatpush1.bf16.msra.mxu0 0
    %170 = vmatprep.subr.bf16.mxu0 0
    %171 = vmatpush1.bf16.msra.mxu0 0
    %172 = vmatprep.subr.bf16.mxu0 0
    %173 = vmatpush1.bf16.msra.mxu0 0
    %174 = vmatprep.subr.bf16.mxu0 0
    %175 = vmatpush1.bf16.msra.mxu0 0
    %176 = vmatprep.subr.bf16.mxu0 0
    %177 = vmatpush1.bf16.msra.mxu0 0
    %178 = vmatprep.subr.bf16.mxu0 0
    %179 = vmatpush1.bf16.msra.mxu0 0
    %180 = vmatprep.subr.bf16.mxu0 0
    %181 = vmatpush1.bf16.msra.mxu0 0
    %182 = vmatprep.subr.bf16.mxu0 0
    %183 = vmatpush1.bf16.msra.mxu0 0
    %184 = vmatprep.mubr.bf16.mxu0 0
    %185 = vmatmul.mubr.bf16.gmra.mrb[0].mxu0 %v150
    %v186 = vpop.f32.mrb[0].mxu0
    %v187 = vadd.f32 %v33, %v186
    %v188 = vpop.f32.mrb[0].mxu0
    %v189 = vpop.f32.mrb[0].mxu0
    %v190 = vadd.f32 %v33, %v189
    %v191 = vpop.f32.mrb[0].mxu0
    %192 = vdwg.mxu0
    %s193 = scalar_lea.vmem %s1, 16
    %v194 = vld [vmem:[%s193] sm:$0xff]
    %v195 = vld [vmem:[%s193 + $0x8] sm:$0xf]
    %v196 = vadd.f32 %v194, %v187
    %v197 = vadd.f32 %v195, %v190
    %v200 = vrot.slane %v196, 7
    %v201 = vrot.slane %v197, 7
    %v202 = vsel %vm98, %v200, %v201
    %v205 = vsel %vm98, %v196, %v200
    %v206 = vrot.slane %v196, 1
    %v207 = vrot.slane %v197, 1
    %v208 = vsel %vm105, %v206, %v207
    %v211 = vsel %vm111, %v207, %v197
    %v212 = vadd.f32 %v196, %v205
    %v213 = vadd.f32 %v197, %v202
    %v214 = vadd.f32 %v212, %v208
    %v215 = vadd.f32 %v213, %v211
    %v216 = vrot.slane %v196, 6
    %v217 = vrot.slane %v197, 6
    %v218 = vsel %vm117, %v216, %v217
    %v221 = vsel %vm117, %v205, %v216
    %v222 = vrot.slane %v196, 2
    %v223 = vrot.slane %v197, 2
    %v224 = vsel %vm124, %v222, %v223
    %v227 = vsel %vm117, %v223, %v207
    %v228 = vsel %vm111, %v227, %v197
    %v229 = vadd.f32 %v214, %v221
    %v230 = vadd.f32 %v215, %v218
    %v231 = vadd.f32 %v229, %v224
    %v232 = vadd.f32 %v230, %v228
    %v233 = vmul.f32 %v231, 0.2
    %v234 = vmul.f32 %v232, 0.2
    %v235 = vsub.f32 %v196, %v233
    %v236 = vsub.f32 %v197, %v234
    %s237 = scalar_lea.vmem %s4, 16
    %238 = vst.msk [vmem:[%s237] sm:$0xff] %vm47, %v235
    %239 = vst.msk [vmem:[%s237 + $0x8] sm:$0xf] %vm141, %v236
    %s240 = scalar_lea.vmem [#allocation2], 16
    %241 = vst.msk [vmem:[%s240] sm:$0xff] %vm47, %v233
    %242 = vst.msk [vmem:[%s240 + $0x8] sm:$0xf] %vm141, %v234
    // Predicated region
    $region18: #{model_forward.27} parent=1 // pred_check
      _
    $region19: #{model_forward.27} parent=1 // pred_check_branch
      %244 = sbr.rel (0) target = $region21
    $region20: #{model_forward.27} parent=1 // pred_region
      _
    $region21: #{model_forward.27} parent=1 // pred_fallthru
      _
    // Predicated region
    $region22: #{model_forward.27} parent=1 // pred_check
      _
    $region23: #{model_forward.27} parent=1 // pred_check_branch
      %246 = sbr.rel (0) target = $region25
    $region24: #{model_forward.27} parent=1 // pred_region
      %s248 = ssub.s32 512, 512
      %249 = vsyncadd [#allocation3], %s248
      %s250 = sshll.u32 [#allocation2], 4
      %s251 = int_to_ptr.vmem [resolvable:$true] %s250
      %256 = dma.vmem_to_hbm [thread:$0]  %s251, 512, %s5, [#allocation3], 128, 128, 8
    $region25: #{model_forward.27} parent=1 // pred_fallthru
      _
    // Predicated region
    $region26: #{model_forward.27} parent=1 // pred_check
      _
    $region27: #{model_forward.27} parent=1 // pred_check_branch
      %258 = sbr.rel (0) target = $region29
    $region28: #{model_forward.27} parent=1 // pred_region
      _
    $region29: #{model_forward.27} parent=1 // pred_fallthru
      _
    // Predicated region
    $region30: #{model_forward.27} parent=1 // pred_check
      _
    $region31: #{model_forward.27} parent=1 // pred_check_branch
      %260 = sbr.rel (0) target = $region33
    $region32: #{model_forward.27} parent=1 // pred_region
      %261 = dma.done [#allocation3], 512
    $region33: #{model_forward.27} parent=1 // pred_fallthru
      _
    %262 = vsyncpa [#allocation3], 1

// kernel: model_forward.40
$region0: #{model_forward.40}
  #allocation0 [shape = 'u32[]', space=smem, size = 0x4, offset = 0x4, fixed_abs, tag = 'smem constant byte address 0x4 - core index']
  #allocation1 [shape = 'u32[144,128]{1,0:T(1,128)}', space=vmem, size = 0x12000, scoped, tag = 'internal scratch']
  %s0 = inlined_call_operand.vmem [shape: f32[2,12,32], index: 0, kind: input, shape index: {}]
  %s1 = inlined_call_operand.vmem [shape: f32[1,32], index: 1, kind: input, shape index: {}]
  %s2 = inlined_call_operand.vmem [shape: f32[1,32], index: 2, kind: input, shape index: {}]
  %s3 = inlined_call_operand.vmem [shape: f32[2,12,32], index: 3, kind: output, shape index: {}]
  %s4 = sld [smem:[#allocation0]]
  $region22: #{model_forward.40} parent=0
    _
  %s6 = ssub.s32 1, %s4
  %s7 = scalar_select 0, %s6, %s4
  // Predicated region
  $region2: #{model_forward.40} parent=0 // pred_check
    _
  $region3: #{model_forward.40} parent=0 // pred_check_branch
    %9 = sbr.rel (0) target = $region5
  $region4: #{model_forward.40} parent=0 // pred_region
    _
  $region5: #{model_forward.40} parent=0 // pred_fallthru
    _
  // Predicated region
  $region6: #{model_forward.40} parent=0 // pred_check
    _
  $region7: #{model_forward.40} parent=0 // pred_check_branch
    %11 = sbr.rel (0) target = $region9
  $region8: #{model_forward.40} parent=0 // pred_region
    _
  $region9: #{model_forward.40} parent=0 // pred_fallthru
    _
  // Predicated region
  $region10: #{model_forward.40} parent=0 // pred_check
    _
  $region11: #{model_forward.40} parent=0 // pred_check_branch
    %13 = sbr.rel (0) target = $region13
  $region12: #{model_forward.40} parent=0 // pred_region
    _
  $region13: #{model_forward.40} parent=0 // pred_fallthru
    _
  %v14 = vld [vmem:[%s1] sm:$0x1]
  %v15 = vld [vmem:[%s2] sm:$0x1]
  %v16 = vld [vmem:[%s0] sm:$0xff]
  %v17 = vld [vmem:[%s0 + $0x8] sm:$0xf]
  %vm18 = vcmask 261120
  %v19 = vsel %vm18, %v16, 0.0
  %20 = vadd.xlane.f32.xlu0 %v19
  %v21 = vpop.xlane.xlu0 %20
  %vm22 = vcmask 257024
  %v23 = vsel %vm22, %v17, 0.0
  %24 = vadd.xlane.f32.xlu0 %v23
  %v25 = vpop.xlane.xlu0 %24
  %v26 = vrcp.pop 32.0
  %v27 = vmul.f32 %v21, %v26
  %v28 = vmul.f32 %v25, %v26
  %v29 = vsub.f32 %v16, %v27
  %v30 = vsub.f32 %v17, %v28
  %v31 = vmul.f32 %v29, %v29
  %v32 = vmul.f32 %v30, %v30
  %v33 = vsel %vm18, %v31, 0.0
  %34 = vadd.xlane.f32.xlu0 %v33
  %v35 = vpop.xlane.xlu0 %34
  %v36 = vsel %vm22, %v32, 0.0
  %37 = vadd.xlane.f32.xlu0 %v36
  %v38 = vpop.xlane.xlu0 %37
  %v39 = vmul.f32 %v35, %v26
  %v40 = vmul.f32 %v38, %v26
  %v41 = vadd.f32 %v39, 1e-05
  %v42 = vadd.f32 %v40, 1e-05
  %v43 = vrsqrt.pop %v41
  %v44 = vrsqrt.pop %v42
  %v45 = vmul.f32 %v29, %v43
  %v46 = vmul.f32 %v30, %v44
  %v48 = vlaneseq
  %v49 = vshrl.u32 %v48, 7
  %v50 = vsub.s32 0, %v49
  %v51 = vrot.slane %v14, %v50
  %v53 = vmul.f32 %v45, %v51
  %v54 = vmul.f32 %v46, %v51
  %v56 = vlaneseq
  %v57 = vshrl.u32 %v56, 7
  %v58 = vsub.s32 0, %v57
  %v59 = vrot.slane %v15, %v58
  %v61 = vadd.f32 %v53, %v59
  %v62 = vadd.f32 %v54, %v59
  %v63 = vsel %vm18, %v61, 0.0
  %v64 = vsel %vm22, %v62, 0.0
  %v65 = vadd.f32 %v63, %v64
  %v66 = vrot.slane %v65, 4
  %v67 = vadd.f32 %v65, %v66
  %v68 = vrot.slane %v67, 2
  %v69 = vadd.f32 %v67, %v68
  %v70 = vrot.slane %v69, 1
  %v71 = vadd.f32 %v69, %v70
  %v72 = vrcp.pop 12.0
  %v73 = vmul.f32 %v71, %v72
  %v74 = vsub.f32 %v61, %v73
  %v75 = vsub.f32 %v62, %v73
  %76 = vst.msk [vmem:[%s3] sm:$0xff] %vm18, %v74
  %77 = vst.msk [vmem:[%s3 + $0x8] sm:$0xf] %vm22, %v75
  %s78 = scalar_lea.vmem %s0, 16
  %v79 = vld [vmem:[%s78] sm:$0xff]
  %v80 = vld [vmem:[%s78 + $0x8] sm:$0xf]
  %v81 = vsel %vm18, %v79, 0.0
  %82 = vadd.xlane.f32.xlu0 %v81
  %v83 = vpop.xlane.xlu0 %82
  %v84 = vsel %vm22, %v80, 0.0
  %85 = vadd.xlane.f32.xlu0 %v84
  %v86 = vpop.xlane.xlu0 %85
  %v87 = vmul.f32 %v83, %v26
  %v88 = vmul.f32 %v86, %v26
  %v89 = vsub.f32 %v79, %v87
  %v90 = vsub.f32 %v80, %v88
  %v91 = vmul.f32 %v89, %v89
  %v92 = vmul.f32 %v90, %v90
  %v93 = vsel %vm18, %v91, 0.0
  %94 = vadd.xlane.f32.xlu0 %v93
  %v95 = vpop.xlane.xlu0 %94
  %v96 = vsel %vm22, %v92, 0.0
  %97 = vadd.xlane.f32.xlu0 %v96
  %v98 = vpop.xlane.xlu0 %97
  %v99 = vmul.f32 %v95, %v26
  %v100 = vmul.f32 %v98, %v26
  %v101 = vadd.f32 %v99, 1e-05
  %v102 = vadd.f32 %v100, 1e-05
  %v103 = vrsqrt.pop %v101
  %v104 = vrsqrt.pop %v102
  %v105 = vmul.f32 %v89, %v103
  %v106 = vmul.f32 %v90, %v104
  %v107 = vmul.f32 %v105, %v51
  %v108 = vmul.f32 %v106, %v51
  %v109 = vadd.f32 %v107, %v59
  %v110 = vadd.f32 %v108, %v59
  %v111 = vsel %vm18, %v109, 0.0
  %v112 = vsel %vm22, %v110, 0.0
  %v113 = vadd.f32 %v111, %v112
  %v114 = vrot.slane %v113, 4
  %v115 = vadd.f32 %v113, %v114
  %v116 = vrot.slane %v115, 2
  %v117 = vadd.f32 %v115, %v116
  %v118 = vrot.slane %v117, 1
  %v119 = vadd.f32 %v117, %v118
  %v120 = vmul.f32 %v119, %v72
  %v121 = vsub.f32 %v109, %v120
  %v122 = vsub.f32 %v110, %v120
  %s123 = scalar_lea.vmem %s3, 16
  %124 = vst.msk [vmem:[%s123] sm:$0xff] %vm18, %v121
  %125 = vst.msk [vmem:[%s123 + $0x8] sm:$0xf] %vm22, %v122
  // Predicated region
  $region14: #{model_forward.40} parent=0 // pred_check
    _
  $region15: #{model_forward.40} parent=0 // pred_check_branch
    %127 = sbr.rel (0) target = $region17
  $region16: #{model_forward.40} parent=0 // pred_region
    _
  $region17: #{model_forward.40} parent=0 // pred_fallthru
    _
  // Predicated region
  $region18: #{model_forward.40} parent=0 // pred_check
    _
  $region19: #{model_forward.40} parent=0 // pred_check_branch
    %129 = sbr.rel (0) target = $region21
  $region20: #{model_forward.40} parent=0 // pred_region
    _
  $region21: #{model_forward.40} parent=0 // pred_fallthru
    _

// kernel: model_forward.39
$region0: #{model_forward.39}
  #allocation0 [shape = 'u32[]', space=smem, size = 0x4, offset = 0x4, fixed_abs, tag = 'smem constant byte address 0x4 - core index']
  #allocation1 [shape = 'u32[144,128]{1,0:T(1,128)}', space=vmem, size = 0x12000, scoped, tag = 'internal scratch']
  %s0 = inlined_call_operand.vmem [shape: f32[2,12,32], index: 0, kind: input, shape index: {}]
  %s1 = inlined_call_operand.vmem [shape: bf16[32,64], index: 1, kind: input, shape index: {}]
  %s2 = inlined_call_operand.vmem [shape: bf16[64,32], index: 2, kind: input, shape index: {}]
  %s3 = inlined_call_operand.vmem [shape: f32[2,12,32], index: 3, kind: output, shape index: {0}]
  %s4 = inlined_call_operand.hbm [shape: f32[2,12,32], index: 4, kind: output, shape index: {1}]
  %5 = xla_tuple %s3, %s4
  %s6 = sld [smem:[#allocation0]]
  $region30: #{model_forward.39} parent=0
    _
  %s8 = ssub.s32 1, %s6
  %s9 = scalar_select 0, %s8, %s6
  $region1: #{model_forward.39} parent=0
    #allocation2 [shape = 'u8[16384]{0}', space=vmem, size = 0x4000, scoped, tag = 'output window, operand 1, single buffered']
    #allocation3 [shape = 's32[1]{0}', space=sflag, size = 0x4, scoped, tag = 'scoped memory for model_forward.39']
    %10 = vsyncpa [#allocation3], 0
    // Predicated region
    $region2: #{model_forward.39} parent=1 // pred_check
      _
    $region3: #{model_forward.39} parent=1 // pred_check_branch
      %12 = sbr.rel (0) target = $region5
    $region4: #{model_forward.39} parent=1 // pred_region
      _
    $region5: #{model_forward.39} parent=1 // pred_fallthru
      _
    // Predicated region
    $region6: #{model_forward.39} parent=1 // pred_check
      _
    $region7: #{model_forward.39} parent=1 // pred_check_branch
      %14 = sbr.rel (0) target = $region9
    $region8: #{model_forward.39} parent=1 // pred_region
      _
    $region9: #{model_forward.39} parent=1 // pred_fallthru
      _
    // Predicated region
    $region10: #{model_forward.39} parent=1 // pred_check
      _
    $region11: #{model_forward.39} parent=1 // pred_check_branch
      %16 = sbr.rel (0) target = $region13
    $region12: #{model_forward.39} parent=1 // pred_region
      _
    $region13: #{model_forward.39} parent=1 // pred_fallthru
      _
    %v18 = vld [vmem:[%s1] sm:$0xf]
    %v19 = vld [vmem:[%s1 + $0x4] sm:$0xf]
    %v20 = vld [vmem:[%s1 + $0x8] sm:$0xf]
    %v21 = vld [vmem:[%s1 + $0xc] sm:$0xf]
    %v22 = vld [vmem:[%s2] sm:$0xf]
    %v23 = vld [vmem:[%s2 + $0x4] sm:$0xf]
    %v24 = vld [vmem:[%s2 + $0x8] sm:$0xf]
    %v25 = vld [vmem:[%s2 + $0xc] sm:$0xf]
    %v26 = vld [vmem:[%s2 + $0x10] sm:$0xf]
    %v27 = vld [vmem:[%s2 + $0x14] sm:$0xf]
    %v28 = vld [vmem:[%s2 + $0x18] sm:$0xf]
    %v29 = vld [vmem:[%s2 + $0x1c] sm:$0xf]
    %v30 = vld [vmem:[%s0] sm:$0xff]
    %v31 = vld [vmem:[%s0 + $0x8] sm:$0xf]
    %v32 = vpack.c.bf16 %v31, %v30
    %v37 = vunpack.c.l.b16 %v18
    %v38 = vunpack.c.l.b16 %v19
    %v39 = vunpack.c.l.b16 %v20
    %v40 = vunpack.c.l.b16 %v21
    %v41 = vpack.c.b16 %v38, %v37
    %v42 = vpack.c.b16 %v40, %v39
    %vm45 = vcmask 261120
    %v47 = vsel %vm45, %v32, 0
    %49 = vmatprep.subr.bf16.mxu0 0
    %50 = vmatpush1.bf16.msra.mxu0 %v41
    %51 = vmatprep.subr.bf16.mxu0 0
    %52 = vmatpush1.bf16.msra.mxu0 %v42
    %53 = vmatprep.subr.bf16.mxu0 0
    %54 = vmatpush1.bf16.msra.mxu0 0
    %55 = vmatprep.subr.bf16.mxu0 0
    %56 = vmatpush1.bf16.msra.mxu0 0
    %57 = vmatprep.subr.bf16.mxu0 0
    %58 = vmatpush1.bf16.msra.mxu0 0
    %59 = vmatprep.subr.bf16.mxu0 0
    %60 = vmatpush1.bf16.msra.mxu0 0
    %61 = vmatprep.subr.bf16.mxu0 0
    %62 = vmatpush1.bf16.msra.mxu0 0
    %63 = vmatprep.subr.bf16.mxu0 0
    %64 = vmatpush1.bf16.msra.mxu0 0
    %65 = vmatprep.subr.bf16.mxu0 0
    %66 = vmatpush1.bf16.msra.mxu0 0
    %67 = vmatprep.subr.bf16.mxu0 0
    %68 = vmatpush1.bf16.msra.mxu0 0
    %69 = vmatprep.subr.bf16.mxu0 0
    %70 = vmatpush1.bf16.msra.mxu0 0
    %71 = vmatprep.subr.bf16.mxu0 0
    %72 = vmatpush1.bf16.msra.mxu0 0
    %73 = vmatprep.subr.bf16.mxu0 0
    %74 = vmatpush1.bf16.msra.mxu0 0
    %75 = vmatprep.subr.bf16.mxu0 0
    %76 = vmatpush1.bf16.msra.mxu0 0
    %77 = vmatprep.subr.bf16.mxu0 0
    %78 = vmatpush1.bf16.msra.mxu0 0
    %79 = vmatprep.subr.bf16.mxu0 0
    %80 = vmatpush1.bf16.msra.mxu0 0
    %81 = vmatprep.mubr.bf16.mxu0 0
    %82 = vmatmul.mubr.bf16.gmra.mrb[0].mxu0 %v47
    %v83 = vpop.f32.mrb[0].mxu0
    %v84 = vadd.f32 0.0, %v83
    %v85 = vpop.f32.mrb[0].mxu0
    %v86 = vpop.f32.mrb[0].mxu0
    %v87 = vadd.f32 0.0, %v86
    %v88 = vpop.f32.mrb[0].mxu0
    %89 = vdwg.mxu0
    %v90 = vmax.f32 %v84, 0.0
    %v91 = vmax.f32 %v87, 0.0
    %v92 = vpack.c.bf16 %v91, %v90
    %v101 = vunpack.c.l.b16 %v22
    %v102 = vunpack.c.l.b16 %v23
    %v103 = vunpack.c.l.b16 %v24
    %v104 = vunpack.c.l.b16 %v25
    %v105 = vunpack.c.l.b16 %v26
    %v106 = vunpack.c.l.b16 %v27
    %v107 = vunpack.c.l.b16 %v28
    %v108 = vunpack.c.l.b16 %v29
    %v109 = vpack.c.b16 %v102, %v101
    %v110 = vpack.c.b16 %v104, %v103
    %v111 = vpack.c.b16 %v106, %v105
    %v112 = vpack.c.b16 %v108, %v107
    %vm117 = vcmask 523264
    %v119 = vsel %vm117, %v92, 0
    %121 = vmatprep.subr.bf16.mxu0 0
    %122 = vmatpush1.bf16.msra.mxu0 %v109
    %123 = vmatprep.subr.bf16.mxu0 0
    %124 = vmatpush1.bf16.msra.mxu0 %v110
    %125 = vmatprep.subr.bf16.mxu0 0
    %126 = vmatpush1.bf16.msra.mxu0 %v111
    %127 = vmatprep.subr.bf16.mxu0 0
    %128 = vmatpush1.bf16.msra.mxu0 %v112
    %129 = vmatprep.subr.bf16.mxu0 0
    %130 = vmatpush1.bf16.msra.mxu0 0
    %131 = vmatprep.subr.bf16.mxu0 0
    %132 = vmatpush1.bf16.msra.mxu0 0
    %133 = vmatprep.subr.bf16.mxu0 0
    %134 = vmatpush1.bf16.msra.mxu0 0
    %135 = vmatprep.subr.bf16.mxu0 0
    %136 = vmatpush1.bf16.msra.mxu0 0
    %137 = vmatprep.subr.bf16.mxu0 0
    %138 = vmatpush1.bf16.msra.mxu0 0
    %139 = vmatprep.subr.bf16.mxu0 0
    %140 = vmatpush1.bf16.msra.mxu0 0
    %141 = vmatprep.subr.bf16.mxu0 0
    %142 = vmatpush1.bf16.msra.mxu0 0
    %143 = vmatprep.subr.bf16.mxu0 0
    %144 = vmatpush1.bf16.msra.mxu0 0
    %145 = vmatprep.subr.bf16.mxu0 0
    %146 = vmatpush1.bf16.msra.mxu0 0
    %147 = vmatprep.subr.bf16.mxu0 0
    %148 = vmatpush1.bf16.msra.mxu0 0
    %149 = vmatprep.subr.bf16.mxu0 0
    %150 = vmatpush1.bf16.msra.mxu0 0
    %151 = vmatprep.subr.bf16.mxu0 0
    %152 = vmatpush1.bf16.msra.mxu0 0
    %153 = vmatprep.mubr.bf16.mxu0 0
    %154 = vmatmul.mubr.bf16.gmra.mrb[0].mxu0 %v119
    %v155 = vpop.f32.mrb[0].mxu0
    %v156 = vadd.f32 0.0, %v155
    %v157 = vpop.f32.mrb[0].mxu0
    %v158 = vpop.f32.mrb[0].mxu0
    %v159 = vadd.f32 0.0, %v158
    %v160 = vpop.f32.mrb[0].mxu0
    %161 = vdwg.mxu0
    %v162 = vadd.f32 %v30, %v156
    %v163 = vadd.f32 %v31, %v159
    %vm166 = vcmask 1040384
    %v167 = vrot.slane %v162, 7
    %v168 = vrot.slane %v163, 7
    %v169 = vsel %vm166, %v167, %v168
    %v172 = vsel %vm166, %v162, %v167
    %vm173 = vcmask 1046528
    %v174 = vrot.slane %v162, 1
    %v175 = vrot.slane %v163, 1
    %v176 = vsel %vm173, %v174, %v175
    %vm179 = vcmask 1042432
    %v180 = vsel %vm179, %v175, %v163
    %v181 = vadd.f32 %v162, %v172
    %v182 = vadd.f32 %v163, %v169
    %v183 = vadd.f32 %v181, %v176
    %v184 = vadd.f32 %v182, %v180
    %vm185 = vcmask 1041408
    %v186 = vrot.slane %v162, 6
    %v187 = vrot.slane %v163, 6
    %v188 = vsel %vm185, %v186, %v187
    %v191 = vsel %vm185, %v172, %v186
    %vm192 = vcmask 1045504
    %v193 = vrot.slane %v162, 2
    %v194 = vrot.slane %v163, 2
    %v195 = vsel %vm192, %v193, %v194
    %v198 = vsel %vm185, %v194, %v175
    %v199 = vsel %vm179, %v198, %v163
    %v200 = vadd.f32 %v183, %v191
    %v201 = vadd.f32 %v184, %v188
    %v202 = vadd.f32 %v200, %v195
    %v203 = vadd.f32 %v201, %v199
    %v204 = vmul.f32 %v202, 0.2
    %v205 = vmul.f32 %v203, 0.2
    %v206 = vsub.f32 %v162, %v204
    %v207 = vsub.f32 %v163, %v205
    %208 = vst.msk [vmem:[%s3] sm:$0xff] %vm45, %v206
    %vm209 = vcmask 257024
    %210 = vst.msk [vmem:[%s3 + $0x8] sm:$0xf] %vm209, %v207
    %211 = vst.msk [vmem:[#allocation2] sm:$0xff] %vm45, %v204
    %212 = vst.msk [vmem:[#allocation2 + $0x8] sm:$0xf] %vm209, %v205
    %s213 = scalar_lea.vmem %s0, 16
    %v214 = vld [vmem:[%s213] sm:$0xff]
    %v215 = vld [vmem:[%s213 + $0x8] sm:$0xf]
    %v216 = vpack.c.bf16 %v215, %v214
    %v218 = vsel %vm45, %v216, 0
    %220 = vmatprep.subr.bf16.mxu0 0
    %221 = vmatpush1.bf16.msra.mxu0 %v41
    %222 = vmatprep.subr.bf16.mxu0 0
    %223 = vmatpush1.bf16.msra.mxu0 %v42
    %224 = vmatprep.subr.bf16.mxu0 0
    %225 = vmatpush1.bf16.msra.mxu0 0
    %226 = vmatprep.subr.bf16.mxu0 0
    %227 = vmatpush1.bf16.msra.mxu0 0
    %228 = vmatprep.subr.bf16.mxu0 0
    %229 = vmatpush1.bf16.msra.mxu0 0
    %230 = vmatprep.subr.bf16.mxu0 0
    %231 = vmatpush1.bf16.msra.mxu0 0
    %232 = vmatprep.subr.bf16.mxu0 0
    %233 = vmatpush1.bf16.msra.mxu0 0
    %234 = vmatprep.subr.bf16.mxu0 0
    %235 = vmatpush1.bf16.msra.mxu0 0
    %236 = vmatprep.subr.bf16.mxu0 0
    %237 = vmatpush1.bf16.msra.mxu0 0
    %238 = vmatprep.subr.bf16.mxu0 0
    %239 = vmatpush1.bf16.msra.mxu0 0
    %240 = vmatprep.subr.bf16.mxu0 0
    %241 = vmatpush1.bf16.msra.mxu0 0
    %242 = vmatprep.subr.bf16.mxu0 0
    %243 = vmatpush1.bf16.msra.mxu0 0
    %244 = vmatprep.subr.bf16.mxu0 0
    %245 = vmatpush1.bf16.msra.mxu0 0
    %246 = vmatprep.subr.bf16.mxu0 0
    %247 = vmatpush1.bf16.msra.mxu0 0
    %248 = vmatprep.subr.bf16.mxu0 0
    %249 = vmatpush1.bf16.msra.mxu0 0
    %250 = vmatprep.subr.bf16.mxu0 0
    %251 = vmatpush1.bf16.msra.mxu0 0
    %252 = vmatprep.mubr.bf16.mxu0 0
    %253 = vmatmul.mubr.bf16.gmra.mrb[0].mxu0 %v218
    %v254 = vpop.f32.mrb[0].mxu0
    %v255 = vadd.f32 0.0, %v254
    %v256 = vpop.f32.mrb[0].mxu0
    %v257 = vpop.f32.mrb[0].mxu0
    %v258 = vadd.f32 0.0, %v257
    %v259 = vpop.f32.mrb[0].mxu0
    %260 = vdwg.mxu0
    %v261 = vmax.f32 %v255, 0.0
    %v262 = vmax.f32 %v258, 0.0
    %v263 = vpack.c.bf16 %v262, %v261
    %v265 = vsel %vm117, %v263, 0
    %267 = vmatprep.subr.bf16.mxu0 0
    %268 = vmatpush1.bf16.msra.mxu0 %v109
    %269 = vmatprep.subr.bf16.mxu0 0
    %270 = vmatpush1.bf16.msra.mxu0 %v110
    %271 = vmatprep.subr.bf16.mxu0 0
    %272 = vmatpush1.bf16.msra.mxu0 %v111
    %273 = vmatprep.subr.bf16.mxu0 0
    %274 = vmatpush1.bf16.msra.mxu0 %v112
    %275 = vmatprep.subr.bf16.mxu0 0
    %276 = vmatpush1.bf16.msra.mxu0 0
    %277 = vmatprep.subr.bf16.mxu0 0
    %278 = vmatpush1.bf16.msra.mxu0 0
    %279 = vmatprep.subr.bf16.mxu0 0
    %280 = vmatpush1.bf16.msra.mxu0 0
    %281 = vmatprep.subr.bf16.mxu0 0
    %282 = vmatpush1.bf16.msra.mxu0 0
    %283 = vmatprep.subr.bf16.mxu0 0
    %284 = vmatpush1.bf16.msra.mxu0 0
    %285 = vmatprep.subr.bf16.mxu0 0
    %286 = vmatpush1.bf16.msra.mxu0 0
    %287 = vmatprep.subr.bf16.mxu0 0
    %288 = vmatpush1.bf16.msra.mxu0 0
    %289 = vmatprep.subr.bf16.mxu0 0
    %290 = vmatpush1.bf16.msra.mxu0 0
    %291 = vmatprep.subr.bf16.mxu0 0
    %292 = vmatpush1.bf16.msra.mxu0 0
    %293 = vmatprep.subr.bf16.mxu0 0
    %294 = vmatpush1.bf16.msra.mxu0 0
    %295 = vmatprep.subr.bf16.mxu0 0
    %296 = vmatpush1.bf16.msra.mxu0 0
    %297 = vmatprep.subr.bf16.mxu0 0
    %298 = vmatpush1.bf16.msra.mxu0 0
    %299 = vmatprep.mubr.bf16.mxu0 0
    %300 = vmatmul.mubr.bf16.gmra.mrb[0].mxu0 %v265
    %v301 = vpop.f32.mrb[0].mxu0
    %v302 = vadd.f32 0.0, %v301
    %v303 = vpop.f32.mrb[0].mxu0
    %v304 = vpop.f32.mrb[0].mxu0
    %v305 = vadd.f32 0.0, %v304
    %v306 = vpop.f32.mrb[0].mxu0
    %307 = vdwg.mxu0
    %v308 = vadd.f32 %v214, %v302
    %v309 = vadd.f32 %v215, %v305
    %v312 = vrot.slane %v308, 7
    %v313 = vrot.slane %v309, 7
    %v314 = vsel %vm166, %v312, %v313
    %v317 = vsel %vm166, %v308, %v312
    %v318 = vrot.slane %v308, 1
    %v319 = vrot.slane %v309, 1
    %v320 = vsel %vm173, %v318, %v319
    %v323 = vsel %vm179, %v319, %v309
    %v324 = vadd.f32 %v308, %v317
    %v325 = vadd.f32 %v309, %v314
    %v326 = vadd.f32 %v324, %v320
    %v327 = vadd.f32 %v325, %v323
    %v328 = vrot.slane %v308, 6
    %v329 = vrot.slane %v309, 6
    %v330 = vsel %vm185, %v328, %v329
    %v333 = vsel %vm185, %v317, %v328
    %v334 = vrot.slane %v308, 2
    %v335 = vrot.slane %v309, 2
    %v336 = vsel %vm192, %v334, %v335
    %v339 = vsel %vm185, %v335, %v319
    %v340 = vsel %vm179, %v339, %v309
    %v341 = vadd.f32 %v326, %v333
    %v342 = vadd.f32 %v327, %v330
    %v343 = vadd.f32 %v341, %v336
    %v344 = vadd.f32 %v342, %v340
    %v345 = vmul.f32 %v343, 0.2
    %v346 = vmul.f32 %v344, 0.2
    %v347 = vsub.f32 %v308, %v345
    %v348 = vsub.f32 %v309, %v346
    %s349 = scalar_lea.vmem %s3, 16
    %350 = vst.msk [vmem:[%s349] sm:$0xff] %vm45, %v347
    %351 = vst.msk [vmem:[%s349 + $0x8] sm:$0xf] %vm209, %v348
    %s352 = scalar_lea.vmem [#allocation2], 16
    %353 = vst.msk [vmem:[%s352] sm:$0xff] %vm45, %v345
    %354 = vst.msk [vmem:[%s352 + $0x8] sm:$0xf] %vm209, %v346
    // Predicated region
    $region14: #{model_forward.39} parent=1 // pred_check
      _
    $region15: #{model_forward.39} parent=1 // pred_check_branch
      %356 = sbr.rel (0) target = $region17
    $region16: #{model_forward.39} parent=1 // pred_region
      _
    $region17: #{model_forward.39} parent=1 // pred_fallthru
      _
    // Predicated region
    $region18: #{model_forward.39} parent=1 // pred_check
      _
    $region19: #{model_forward.39} parent=1 // pred_check_branch
      %358 = sbr.rel (0) target = $region21
    $region20: #{model_forward.39} parent=1 // pred_region
      %s360 = ssub.s32 512, 512
      %361 = vsyncadd [#allocation3], %s360
      %s362 = sshll.u32 [#allocation2], 4
      %s363 = int_to_ptr.vmem [resolvable:$true] %s362
      %368 = dma.vmem_to_hbm [thread:$0]  %s363, 512, %s4, [#allocation3], 128, 128, 8
    $region21: #{model_forward.39} parent=1 // pred_fallthru
      _
    // Predicated region
    $region22: #{model_forward.39} parent=1 // pred_check
      _
    $region23: #{model_forward.39} parent=1 // pred_check_branch
      %370 = sbr.rel (0) target = $region25
    $region24: #{model_forward.39} parent=1 // pred_region
      _
    $region25: #{model_forward.39} parent=1 // pred_fallthru
      _
    // Predicated region
    $region26: #{model_forward.39} parent=1 // pred_check
      _
    $region27: #{model_forward.39} parent=1 // pred_check_branch
      %372 = sbr.rel (0) target = $region29
    $region28: #{model_forward.39} parent=1 // pred_region
      %373 = dma.done [#allocation3], 512
    $region29: #{model_forward.39} parent=1 // pred_fallthru
      _
    %374 = vsyncpa [#allocation3], 1

// kernel: model_forward.41
$region0: #{model_forward.41}
  #allocation0 [shape = 'u32[]', space=smem, size = 0x4, offset = 0x4, fixed_abs, tag = 'smem constant byte address 0x4 - core index']
  #allocation1 [shape = 'u32[144,128]{1,0:T(1,128)}', space=vmem, size = 0x12000, scoped, tag = 'internal scratch']
  %s0 = inlined_call_operand.vmem [shape: f32[2,24,32], index: 0, kind: input, shape index: {}]
  %s1 = inlined_call_operand.vmem [shape: bf16[32,96], index: 1, kind: input, shape index: {}]
  %s2 = inlined_call_operand.vmem [shape: f32[1,96], index: 2, kind: input, shape index: {}]
  %s3 = inlined_call_operand.vmem [shape: f32[2,24,96], index: 3, kind: output, shape index: {}]
  %s4 = sld [smem:[#allocation0]]
  $region22: #{model_forward.41} parent=0
    _
  %s6 = ssub.s32 1, %s4
  %s7 = scalar_select 0, %s6, %s4
  // Predicated region
  $region2: #{model_forward.41} parent=0 // pred_check
    _
  $region3: #{model_forward.41} parent=0 // pred_check_branch
    %9 = sbr.rel (0) target = $region5
  $region4: #{model_forward.41} parent=0 // pred_region
    _
  $region5: #{model_forward.41} parent=0 // pred_fallthru
    _
  // Predicated region
  $region6: #{model_forward.41} parent=0 // pred_check
    _
  $region7: #{model_forward.41} parent=0 // pred_check_branch
    %11 = sbr.rel (0) target = $region9
  $region8: #{model_forward.41} parent=0 // pred_region
    _
  $region9: #{model_forward.41} parent=0 // pred_fallthru
    _
  // Predicated region
  $region10: #{model_forward.41} parent=0 // pred_check
    _
  $region11: #{model_forward.41} parent=0 // pred_check_branch
    %13 = sbr.rel (0) target = $region13
  $region12: #{model_forward.41} parent=0 // pred_region
    _
  $region13: #{model_forward.41} parent=0 // pred_fallthru
    _
  %v15 = vld [vmem:[%s1] sm:$0xf]
  %v16 = vld [vmem:[%s1 + $0x4] sm:$0xf]
  %v17 = vld [vmem:[%s1 + $0x8] sm:$0xf]
  %v18 = vld [vmem:[%s1 + $0xc] sm:$0xf]
  %v19 = vld [vmem:[%s2] sm:$0x1]
  %v20 = vld [vmem:[%s0] sm:$0xff]
  %v21 = vld [vmem:[%s0 + $0x8] sm:$0xff]
  %v22 = vld [vmem:[%s0 + $0x10] sm:$0xff]
  %v23 = vpack.c.bf16 %v21, %v20
  %v24 = vpack.c.bf16 %v22, %v22
  %v26 = vlaneseq
  %v27 = vshrl.u32 %v26, 7
  %v28 = vsub.s32 0, %v27
  %v29 = vrot.slane %v19, %v28
  %v35 = vunpack.c.l.b16 %v15
  %v36 = vunpack.c.l.b16 %v16
  %v37 = vunpack.c.l.b16 %v17
  %v38 = vunpack.c.l.b16 %v18
  %v39 = vpack.c.b16 %v36, %v35
  %v40 = vpack.c.b16 %v38, %v37
  %vm43 = vcmask 261120
  %v45 = vsel %vm43, %v23, 0
  %v48 = vsel %vm43, %v24, 0
  %50 = vmatprep.subr.bf16.mxu0 0
  %51 = vmatpush1.bf16.msra.mxu0 %v39
  %52 = vmatprep.subr.bf16.mxu0 0
  %53 = vmatpush1.bf16.msra.mxu0 %v40
  %54 = vmatprep.subr.bf16.mxu0 0
  %55 = vmatpush1.bf16.msra.mxu0 0
  %56 = vmatprep.subr.bf16.mxu0 0
  %57 = vmatpush1.bf16.msra.mxu0 0
  %58 = vmatprep.subr.bf16.mxu0 0
  %59 = vmatpush1.bf16.msra.mxu0 0
  %60 = vmatprep.subr.bf16.mxu0 0
  %61 = vmatpush1.bf16.msra.mxu0 0
  %62 = vmatprep.subr.bf16.mxu0 0
  %63 = vmatpush1.bf16.msra.mxu0 0
  %64 = vmatprep.subr.bf16.mxu0 0
  %65 = vmatpush1.bf16.msra.mxu0 0
  %66 = vmatprep.subr.bf16.mxu0 0
  %67 = vmatpush1.bf16.msra.mxu0 0
  %68 = vmatprep.subr.bf16.mxu0 0
  %69 = vmatpush1.bf16.msra.mxu0 0
  %70 = vmatprep.subr.bf16.mxu0 0
  %71 = vmatpush1.bf16.msra.mxu0 0
  %72 = vmatprep.subr.bf16.mxu0 0
  %73 = vmatpush1.bf16.msra.mxu0 0
  %74 = vmatprep.subr.bf16.mxu0 0
  %75 = vmatpush1.bf16.msra.mxu0 0
  %76 = vmatprep.subr.bf16.mxu0 0
  %77 = vmatpush1.bf16.msra.mxu0 0
  %78 = vmatprep.subr.bf16.mxu0 0
  %79 = vmatpush1.bf16.msra.mxu0 0
  %80 = vmatprep.subr.bf16.mxu0 0
  %81 = vmatpush1.bf16.msra.mxu0 0
  %82 = vmatprep.mubr.bf16.mxu0 0
  %83 = vmatmul.mubr.bf16.gmra.mrb[0].mxu0 %v45
  %v84 = vpop.f32.mrb[0].mxu0
  %v85 = vadd.f32 %v29, %v84
  %v86 = vpop.f32.mrb[0].mxu0
  %v87 = vpop.f32.mrb[0].mxu0
  %v88 = vadd.f32 %v29, %v87
  %v89 = vpop.f32.mrb[0].mxu0
  %90 = vmatprep.mubr.bf16.mxu0 0
  %91 = vmatmul.mubr.bf16.gmra.mrb[0].mxu0 %v48
  %v92 = vpop.f32.mrb[0].mxu0
  %v93 = vadd.f32 %v29, %v92
  %v94 = vpop.f32.mrb[0].mxu0
  %v95 = vpop.f32.mrb[0].mxu0
  %v96 = vpop.f32.mrb[0].mxu0
  %97 = vdwg.mxu0
  %vm98 = vcmask 785408
  %99 = vst.msk [vmem:[%s3] sm:$0xff] %vm98, %v85
  %100 = vst.msk [vmem:[%s3 + $0x8] sm:$0xff] %vm98, %v88
  %101 = vst.msk [vmem:[%s3 + $0x10] sm:$0xff] %vm98, %v93
  %s102 = scalar_lea.vmem %s0, 24
  %v103 = vld [vmem:[%s102] sm:$0xff]
  %v104 = vld [vmem:[%s102 + $0x8] sm:$0xff]
  %v105 = vld [vmem:[%s102 + $0x10] sm:$0xff]
  %v106 = vpack.c.bf16 %v104, %v103
  %v107 = vpack.c.bf16 %v105, %v105
  %v109 = vsel %vm43, %v106, 0
  %v112 = vsel %vm43, %v107, 0
  %114 = vmatprep.subr.bf16.mxu0 0
  %115 = vmatpush1.bf16.msra.mxu0 %v39
  %116 = vmatprep.subr.bf16.mxu0 0
  %117 = vmatpush1.bf16.msra.mxu0 %v40
  %118 = vmatprep.subr.bf16.mxu0 0
  %119 = vmatpush1.bf16.msra.mxu0 0
  %120 = vmatprep.subr.bf16.mxu0 0
  %121 = vmatpush1.bf16.msra.mxu0 0
  %122 = vmatprep.subr.bf16.mxu0 0
  %123 = vmatpush1.bf16.msra.mxu0 0
  %124 = vmatprep.subr.bf16.mxu0 0
  %125 = vmatpush1.bf16.msra.mxu0 0
  %126 = vmatprep.subr.bf16.mxu0 0
  %127 = vmatpush1.bf16.msra.mxu0 0
  %128 = vmatprep.subr.bf16.mxu0 0
  %129 = vmatpush1.bf16.msra.mxu0 0
  %130 = vmatprep.subr.bf16.mxu0 0
  %131 = vmatpush1.bf16.msra.mxu0 0
  %132 = vmatprep.subr.bf16.mxu0 0
  %133 = vmatpush1.bf16.msra.mxu0 0
  %134 = vmatprep.subr.bf16.mxu0 0
  %135 = vmatpush1.bf16.msra.mxu0 0
  %136 = vmatprep.subr.bf16.mxu0 0
  %137 = vmatpush1.bf16.msra.mxu0 0
  %138 = vmatprep.subr.bf16.mxu0 0
  %139 = vmatpush1.bf16.msra.mxu0 0
  %140 = vmatprep.subr.bf16.mxu0 0
  %141 = vmatpush1.bf16.msra.mxu0 0
  %142 = vmatprep.subr.bf16.mxu0 0
  %143 = vmatpush1.bf16.msra.mxu0 0
  %144 = vmatprep.subr.bf16.mxu0 0
  %145 = vmatpush1.bf16.msra.mxu0 0
  %146 = vmatprep.mubr.bf16.mxu0 0
  %147 = vmatmul.mubr.bf16.gmra.mrb[0].mxu0 %v109
  %v148 = vpop.f32.mrb[0].mxu0
  %v149 = vadd.f32 %v29, %v148
  %v150 = vpop.f32.mrb[0].mxu0
  %v151 = vpop.f32.mrb[0].mxu0
  %v152 = vadd.f32 %v29, %v151
  %v153 = vpop.f32.mrb[0].mxu0
  %154 = vmatprep.mubr.bf16.mxu0 0
  %155 = vmatmul.mubr.bf16.gmra.mrb[0].mxu0 %v112
  %v156 = vpop.f32.mrb[0].mxu0
  %v157 = vadd.f32 %v29, %v156
  %v158 = vpop.f32.mrb[0].mxu0
  %v159 = vpop.f32.mrb[0].mxu0
  %v160 = vpop.f32.mrb[0].mxu0
  %161 = vdwg.mxu0
  %s162 = scalar_lea.vmem %s3, 24
  %163 = vst.msk [vmem:[%s162] sm:$0xff] %vm98, %v149
  %164 = vst.msk [vmem:[%s162 + $0x8] sm:$0xff] %vm98, %v152
  %165 = vst.msk [vmem:[%s162 + $0x10] sm:$0xff] %vm98, %v157
  // Predicated region
  $region14: #{model_forward.41} parent=0 // pred_check
    _
  $region15: #{model_forward.41} parent=0 // pred_check_branch
    %167 = sbr.rel (0) target = $region17
  $region16: #{model_forward.41} parent=0 // pred_region
    _
  $region17: #{model_forward.41} parent=0 // pred_fallthru
    _
  // Predicated region
  $region18: #{model_forward.41} parent=0 // pred_check
    _
  $region19: #{model_forward.41} parent=0 // pred_check_branch
    %169 = sbr.rel (0) target = $region21
  $region20: #{model_forward.41} parent=0 // pred_region
    _
  $region21: #{model_forward.41} parent=0 // pred_fallthru
    _

// kernel: reverse.17
$region0: #{reverse.17}
  %s0 = inlined_call_operand.vmem [shape: f32[2,4,8,11], index: 0, kind: input, shape index: {}]
  %s1 = inlined_call_operand.vmem [shape: f32[2,4,8,11], index: 1, kind: output, shape index: {}]
  %v2 = vlaneseq
  %v3 = vsub.s32 10, %v2
  %4 = vset.pattern.permute.xlu0 %v3
  $region1: #{reverse.17} parent=0
    #allocation0 [shape = 'u8[32768]{0}', space=vmem, size = 0x8000, scoped, tag = 'operand span for operand 0']
    #allocation1 [shape = 'u8[32768]{0}', space=vmem, size = 0x8000, scoped, tag = 'operand span for operand 1']
    // Predicated region
    $region2: #{reverse.17} parent=1 // pred_check
      _
    $region3: #{reverse.17} parent=1 // pred_check_branch
      %6 = sbr.rel (0) target = $region5
    $region4: #{reverse.17} parent=1 // pred_region
      // Predicated region
      $region6: #{reverse.17} parent=4 // pred_check
        _
      $region7: #{reverse.17} parent=4 // pred_check_branch
        %8 = sbr.rel (0) target = $region9
      $region8: #{reverse.17} parent=4 // pred_region
        // Predicated region
        $region21: #{reverse.17} parent=8 // pred_check
          _
        $region22: #{reverse.17} parent=8 // pred_check_branch
          %37 = sbr.rel (0) target = $region24
        $region23: #{reverse.17} parent=8 // pred_region
          loop: start=0, step=1, limit=1
          $region25: #{reverse.17} parent=23 // loop_pre_header
            _
          $region26: #{reverse.17} parent=23 // loop_header
            %s39 = sphi 0, %s43
            %p40 = scmp.ge.s32.totalorder %s39, 1
            %s44 = sphi %s0, %s0
            %s45 = sphi [#allocation0], [#allocation0]
          $region27: #{reverse.17} parent=23 // loop_header_branch
            %42 = sbr.rel (%p40) target = $region31
          $region28: #{reverse.17} parent=23 // loop_body
            %v46 = vld [vmem:[%s44] sm:$0xff]
            %47 = vst [vmem:[%s45] sm:$0xff] %v46
            %v48 = vld [vmem:[%s44 + $0x8] sm:$0xff]
            %49 = vst [vmem:[%s45 + $0x8] sm:$0xff] %v48
            %v50 = vld [vmem:[%s44 + $0x10] sm:$0xff]
            %51 = vst [vmem:[%s45 + $0x10] sm:$0xff] %v50
            %v52 = vld [vmem:[%s44 + $0x18] sm:$0xff]
            %53 = vst [vmem:[%s45 + $0x18] sm:$0xff] %v52
            %v54 = vld [vmem:[%s44 + $0x20] sm:$0xff]
            %55 = vst [vmem:[%s45 + $0x20] sm:$0xff] %v54
            %v56 = vld [vmem:[%s44 + $0x28] sm:$0xff]
            %57 = vst [vmem:[%s45 + $0x28] sm:$0xff] %v56
            %v58 = vld [vmem:[%s44 + $0x30] sm:$0xff]
            %59 = vst [vmem:[%s45 + $0x30] sm:$0xff] %v58
            %v60 = vld [vmem:[%s44 + $0x38] sm:$0xff]
            %61 = vst [vmem:[%s45 + $0x38] sm:$0xff] %v60
          $region29: #{reverse.17} parent=23 // loop_footer
            %s43 = sadd.s32 1, %s39
          $region30: #{reverse.17} parent=23 // loop_footer_branch
            %38 = sbr.rel target = $region26
          $region31: #{reverse.17} parent=23 // loop_exit
            _
        $region24: #{reverse.17} parent=8 // pred_fallthru
          _
        // Predicated region
        $region32: #{reverse.17} parent=8 // pred_check
          _
        $region33: #{reverse.17} parent=8 // pred_check_branch
          %63 = sbr.rel target = $region35
        $region34: #{reverse.17} parent=8 // pred_region
          _
        $region35: #{reverse.17} parent=8 // pred_fallthru
          _
      $region9: #{reverse.17} parent=4 // pred_fallthru
        _
      // Predicated region
      $region10: #{reverse.17} parent=4 // pred_check
        _
      $region11: #{reverse.17} parent=4 // pred_check_branch
        %10 = sbr.rel target = $region13
      $region12: #{reverse.17} parent=4 // pred_region
        loop: start=0, step=1, limit=1
        $region14: #{reverse.17} parent=12 // loop_pre_header
          _
        $region15: #{reverse.17} parent=12 // loop_header
          %s13 = sphi 0, %s17
          %p14 = scmp.ge.s32.totalorder %s13, 1
          %s18 = sphi %s0, %s0
          %s19 = sphi [#allocation0], [#allocation0]
        $region16: #{reverse.17} parent=12 // loop_header_branch
          %16 = sbr.rel (%p14) target = $region20
        $region17: #{reverse.17} parent=12 // loop_body
          %v20 = vld [vmem:[%s18] sm:$0xff]
          %21 = vst [vmem:[%s19] sm:$0xff] %v20
          %v22 = vld [vmem:[%s18 + $0x8] sm:$0xff]
          %23 = vst [vmem:[%s19 + $0x8] sm:$0xff] %v22
          %v24 = vld [vmem:[%s18 + $0x10] sm:$0xff]
          %25 = vst [vmem:[%s19 + $0x10] sm:$0xff] %v24
          %v26 = vld [vmem:[%s18 + $0x18] sm:$0xff]
          %27 = vst [vmem:[%s19 + $0x18] sm:$0xff] %v26
          %v28 = vld [vmem:[%s18 + $0x20] sm:$0xff]
          %29 = vst [vmem:[%s19 + $0x20] sm:$0xff] %v28
          %v30 = vld [vmem:[%s18 + $0x28] sm:$0xff]
          %31 = vst [vmem:[%s19 + $0x28] sm:$0xff] %v30
          %v32 = vld [vmem:[%s18 + $0x30] sm:$0xff]
          %33 = vst [vmem:[%s19 + $0x30] sm:$0xff] %v32
          %v34 = vld [vmem:[%s18 + $0x38] sm:$0xff]
          %35 = vst [vmem:[%s19 + $0x38] sm:$0xff] %v34
        $region18: #{reverse.17} parent=12 // loop_footer
          %s17 = sadd.s32 1, %s13
        $region19: #{reverse.17} parent=12 // loop_footer_branch
          %12 = sbr.rel target = $region15
        $region20: #{reverse.17} parent=12 // loop_exit
          _
      $region13: #{reverse.17} parent=4 // pred_fallthru
        _
    $region5: #{reverse.17} parent=1 // pred_fallthru
      _
    %64 = vnop
    %v65 = vld [vmem:[#allocation0] sm:$0xff]
    %66 = vperm.xlu0 %4, %v65
    %v67 = vpop.permute.xlu0 %66
    %68 = vst [vmem:[#allocation1] sm:$0xff] %v67
    %s69 = scalar_lea.vmem [#allocation1], 8
    %s70 = scalar_lea.vmem [#allocation0], 8
    %v71 = vld [vmem:[%s70] sm:$0xff]
    %72 = vperm.xlu0 %4, %v71
    %v73 = vpop.permute.xlu0 %72
    %74 = vst [vmem:[%s69] sm:$0xff] %v73
    %s75 = scalar_lea.vmem [#allocation1], 16
    %s76 = scalar_lea.vmem [#allocation0], 16
    %v77 = vld [vmem:[%s76] sm:$0xff]
    %78 = vperm.xlu0 %4, %v77
    %v79 = vpop.permute.xlu0 %78
    %80 = vst [vmem:[%s75] sm:$0xff] %v79
    %s81 = scalar_lea.vmem [#allocation1], 24
    %s82 = scalar_lea.vmem [#allocation0], 24
    %v83 = vld [vmem:[%s82] sm:$0xff]
    %84 = vperm.xlu0 %4, %v83
    %v85 = vpop.permute.xlu0 %84
    %86 = vst [vmem:[%s81] sm:$0xff] %v85
    %s87 = scalar_lea.vmem [#allocation1], 32
    %s88 = scalar_lea.vmem [#allocation0], 32
    %v89 = vld [vmem:[%s88] sm:$0xff]
    %90 = vperm.xlu0 %4, %v89
    %v91 = vpop.permute.xlu0 %90
    %92 = vst [vmem:[%s87] sm:$0xff] %v91
    %s93 = scalar_lea.vmem [#allocation1], 40
    %s94 = scalar_lea.vmem [#allocation0], 40
    %v95 = vld [vmem:[%s94] sm:$0xff]
    %96 = vperm.xlu0 %4, %v95
    %v97 = vpop.permute.xlu0 %96
    %98 = vst [vmem:[%s93] sm:$0xff] %v97
    %s99 = scalar_lea.vmem [#allocation1], 48
    %s100 = scalar_lea.vmem [#allocation0], 48
    %v101 = vld [vmem:[%s100] sm:$0xff]
    %102 = vperm.xlu0 %4, %v101
    %v103 = vpop.permute.xlu0 %102
    %104 = vst [vmem:[%s99] sm:$0xff] %v103
    %s105 = scalar_lea.vmem [#allocation1], 56
    %s106 = scalar_lea.vmem [#allocation0], 56
    %v107 = vld [vmem:[%s106] sm:$0xff]
    %108 = vperm.xlu0 %4, %v107
    %v109 = vpop.permute.xlu0 %108
    %110 = vst [vmem:[%s105] sm:$0xff] %v109
    // Predicated region
    $region36: #{reverse.17} parent=1 // pred_check
      _
    $region37: #{reverse.17} parent=1 // pred_check_branch
      %112 = sbr.rel (0) target = $region39
    $region38: #{reverse.17} parent=1 // pred_region
      // Predicated region
      $region40: #{reverse.17} parent=38 // pred_check
        _
      $region41: #{reverse.17} parent=38 // pred_check_branch
        %114 = sbr.rel (0) target = $region43
      $region42: #{reverse.17} parent=38 // pred_region
        // Predicated region
        $region55: #{reverse.17} parent=42 // pred_check
          _
        $region56: #{reverse.17} parent=42 // pred_check_branch
          %143 = sbr.rel (0) target = $region58
        $region57: #{reverse.17} parent=42 // pred_region
          loop: start=0, step=1, limit=1
          $region59: #{reverse.17} parent=57 // loop_pre_header
            _
          $region60: #{reverse.17} parent=57 // loop_header
            %s145 = sphi 0, %s149
            %p146 = scmp.ge.s32.totalorder %s145, 1
            %s150 = sphi [#allocation1], [#allocation1]
            %s151 = sphi %s1, %s1
          $region61: #{reverse.17} parent=57 // loop_header_branch
            %148 = sbr.rel (%p146) target = $region65
          $region62: #{reverse.17} parent=57 // loop_body
            %v152 = vld [vmem:[%s150] sm:$0xff]
            %153 = vst [vmem:[%s151] sm:$0xff] %v152
            %v154 = vld [vmem:[%s150 + $0x8] sm:$0xff]
            %155 = vst [vmem:[%s151 + $0x8] sm:$0xff] %v154
            %v156 = vld [vmem:[%s150 + $0x10] sm:$0xff]
            %157 = vst [vmem:[%s151 + $0x10] sm:$0xff] %v156
            %v158 = vld [vmem:[%s150 + $0x18] sm:$0xff]
            %159 = vst [vmem:[%s151 + $0x18] sm:$0xff] %v158
            %v160 = vld [vmem:[%s150 + $0x20] sm:$0xff]
            %161 = vst [vmem:[%s151 + $0x20] sm:$0xff] %v160
            %v162 = vld [vmem:[%s150 + $0x28] sm:$0xff]
            %163 = vst [vmem:[%s151 + $0x28] sm:$0xff] %v162
            %v164 = vld [vmem:[%s150 + $0x30] sm:$0xff]
            %165 = vst [vmem:[%s151 + $0x30] sm:$0xff] %v164
            %v166 = vld [vmem:[%s150 + $0x38] sm:$0xff]
            %167 = vst [vmem:[%s151 + $0x38] sm:$0xff] %v166
          $region63: #{reverse.17} parent=57 // loop_footer
            %s149 = sadd.s32 1, %s145
          $region64: #{reverse.17} parent=57 // loop_footer_branch
            %144 = sbr.rel target = $region60
          $region65: #{reverse.17} parent=57 // loop_exit
            _
        $region58: #{reverse.17} parent=42 // pred_fallthru
          _
        // Predicated region
        $region66: #{reverse.17} parent=42 // pred_check
          _
        $region67: #{reverse.17} parent=42 // pred_check_branch
          %169 = sbr.rel target = $region69
        $region68: #{reverse.17} parent=42 // pred_region
          _
        $region69: #{reverse.17} parent=42 // pred_fallthru
          _
      $region43: #{reverse.17} parent=38 // pred_fallthru
        _
      // Predicated region
      $region44: #{reverse.17} parent=38 // pred_check
        _
      $region45: #{reverse.17} parent=38 // pred_check_branch
        %116 = sbr.rel target = $region47
      $region46: #{reverse.17} parent=38 // pred_region
        loop: start=0, step=1, limit=1
        $region48: #{reverse.17} parent=46 // loop_pre_header
          _
        $region49: #{reverse.17} parent=46 // loop_header
          %s119 = sphi 0, %s123
          %p120 = scmp.ge.s32.totalorder %s119, 1
          %s124 = sphi [#allocation1], [#allocation1]
          %s125 = sphi %s1, %s1
        $region50: #{reverse.17} parent=46 // loop_header_branch
          %122 = sbr.rel (%p120) target = $region54
        $region51: #{reverse.17} parent=46 // loop_body
          %v126 = vld [vmem:[%s124] sm:$0xff]
          %127 = vst [vmem:[%s125] sm:$0xff] %v126
          %v128 = vld [vmem:[%s124 + $0x8] sm:$0xff]
          %129 = vst [vmem:[%s125 + $0x8] sm:$0xff] %v128
          %v130 = vld [vmem:[%s124 + $0x10] sm:$0xff]
          %131 = vst [vmem:[%s125 + $0x10] sm:$0xff] %v130
          %v132 = vld [vmem:[%s124 + $0x18] sm:$0xff]
          %133 = vst [vmem:[%s125 + $0x18] sm:$0xff] %v132
          %v134 = vld [vmem:[%s124 + $0x20] sm:$0xff]
          %135 = vst [vmem:[%s125 + $0x20] sm:$0xff] %v134
          %v136 = vld [vmem:[%s124 + $0x28] sm:$0xff]
          %137 = vst [vmem:[%s125 + $0x28] sm:$0xff] %v136
          %v138 = vld [vmem:[%s124 + $0x30] sm:$0xff]
          %139 = vst [vmem:[%s125 + $0x30] sm:$0xff] %v138
          %v140 = vld [vmem:[%s124 + $0x38] sm:$0xff]
          %141 = vst [vmem:[%s125 + $0x38] sm:$0xff] %v140
        $region52: #{reverse.17} parent=46 // loop_footer
          %s123 = sadd.s32 1, %s119
        $region53: #{reverse.17} parent=46 // loop_footer_branch
          %118 = sbr.rel target = $region49
        $region54: #{reverse.17} parent=46 // loop_exit
          _
      $region47: #{reverse.17} parent=38 // pred_fallthru
        _
    $region39: #{reverse.17} parent=1 // pred_fallthru
      _
    %170 = vnop

// kernel: model_forward.42
$region0: #{model_forward.42}
  #allocation0 [shape = 'u32[]', space=smem, size = 0x4, offset = 0x4, fixed_abs, tag = 'smem constant byte address 0x4 - core index']
  #allocation1 [shape = 'u32[144,128]{1,0:T(1,128)}', space=vmem, size = 0x12000, scoped, tag = 'internal scratch']
  %s0 = inlined_call_operand.vmem [shape: f32[2,24,32], index: 0, kind: input, shape index: {}]
  %s1 = inlined_call_operand.vmem [shape: f32[2,24,32], index: 1, kind: input, shape index: {}]
  %s2 = inlined_call_operand.vmem [shape: bf16[32,32], index: 2, kind: input, shape index: {}]
  %s3 = inlined_call_operand.vmem [shape: f32[1,32], index: 3, kind: input, shape index: {}]
  %s4 = inlined_call_operand.vmem [shape: f32[2,24,32], index: 4, kind: output, shape index: {0}]
  %s5 = inlined_call_operand.vmem [shape: f32[2,24,32], index: 5, kind: output, shape index: {1}]
  %6 = xla_tuple %s4, %s5
  %s7 = sld [smem:[#allocation0]]
  $region34: #{model_forward.42} parent=0
    _
  %s9 = ssub.s32 1, %s7
  %s10 = scalar_select 0, %s9, %s7
  // Predicated region
  $region2: #{model_forward.42} parent=0 // pred_check
    _
  $region3: #{model_forward.42} parent=0 // pred_check_branch
    %12 = sbr.rel (0) target = $region5
  $region4: #{model_forward.42} parent=0 // pred_region
    _
  $region5: #{model_forward.42} parent=0 // pred_fallthru
    _
  // Predicated region
  $region6: #{model_forward.42} parent=0 // pred_check
    _
  $region7: #{model_forward.42} parent=0 // pred_check_branch
    %14 = sbr.rel (0) target = $region9
  $region8: #{model_forward.42} parent=0 // pred_region
    _
  $region9: #{model_forward.42} parent=0 // pred_fallthru
    _
  // Predicated region
  $region10: #{model_forward.42} parent=0 // pred_check
    _
  $region11: #{model_forward.42} parent=0 // pred_check_branch
    %16 = sbr.rel (0) target = $region13
  $region12: #{model_forward.42} parent=0 // pred_region
    _
  $region13: #{model_forward.42} parent=0 // pred_fallthru
    _
  // Predicated region
  $region14: #{model_forward.42} parent=0 // pred_check
    _
  $region15: #{model_forward.42} parent=0 // pred_check_branch
    %18 = sbr.rel (0) target = $region17
  $region16: #{model_forward.42} parent=0 // pred_region
    _
  $region17: #{model_forward.42} parent=0 // pred_fallthru
    _
  %v20 = vld [vmem:[%s2] sm:$0xf]
  %v21 = vld [vmem:[%s2 + $0x4] sm:$0xf]
  %v22 = vld [vmem:[%s2 + $0x8] sm:$0xf]
  %v23 = vld [vmem:[%s2 + $0xc] sm:$0xf]
  %v24 = vld [vmem:[%s3] sm:$0x1]
  %v25 = vld [vmem:[%s0] sm:$0xff]
  %v26 = vld [vmem:[%s0 + $0x8] sm:$0xff]
  %v27 = vld [vmem:[%s0 + $0x10] sm:$0xff]
  %v28 = vpack.c.bf16 %v26, %v25
  %v29 = vpack.c.bf16 %v27, %v27
  %v31 = vlaneseq
  %v32 = vshrl.u32 %v31, 7
  %v33 = vsub.s32 0, %v32
  %v34 = vrot.slane %v24, %v33
  %v40 = vunpack.c.l.b16 %v20
  %v41 = vunpack.c.l.b16 %v21
  %v42 = vunpack.c.l.b16 %v22
  %v43 = vunpack.c.l.b16 %v23
  %v44 = vpack.c.b16 %v41, %v40
  %v45 = vpack.c.b16 %v43, %v42
  %vm48 = vcmask 261120
  %v50 = vsel %vm48, %v28, 0
  %v53 = vsel %vm48, %v29, 0
  %55 = vmatprep.subr.bf16.mxu0 0
  %56 = vmatpush1.bf16.msra.mxu0 %v44
  %57 = vmatprep.subr.bf16.mxu0 0
  %58 = vmatpush1.bf16.msra.mxu0 %v45
  %59 = vmatprep.subr.bf16.mxu0 0
  %60 = vmatpush1.bf16.msra.mxu0 0
  %61 = vmatprep.subr.bf16.mxu0 0
  %62 = vmatpush1.bf16.msra.mxu0 0
  %63 = vmatprep.subr.bf16.mxu0 0
  %64 = vmatpush1.bf16.msra.mxu0 0
  %65 = vmatprep.subr.bf16.mxu0 0
  %66 = vmatpush1.bf16.msra.mxu0 0
  %67 = vmatprep.subr.bf16.mxu0 0
  %68 = vmatpush1.bf16.msra.mxu0 0
  %69 = vmatprep.subr.bf16.mxu0 0
  %70 = vmatpush1.bf16.msra.mxu0 0
  %71 = vmatprep.subr.bf16.mxu0 0
  %72 = vmatpush1.bf16.msra.mxu0 0
  %73 = vmatprep.subr.bf16.mxu0 0
  %74 = vmatpush1.bf16.msra.mxu0 0
  %75 = vmatprep.subr.bf16.mxu0 0
  %76 = vmatpush1.bf16.msra.mxu0 0
  %77 = vmatprep.subr.bf16.mxu0 0
  %78 = vmatpush1.bf16.msra.mxu0 0
  %79 = vmatprep.subr.bf16.mxu0 0
  %80 = vmatpush1.bf16.msra.mxu0 0
  %81 = vmatprep.subr.bf16.mxu0 0
  %82 = vmatpush1.bf16.msra.mxu0 0
  %83 = vmatprep.subr.bf16.mxu0 0
  %84 = vmatpush1.bf16.msra.mxu0 0
  %85 = vmatprep.subr.bf16.mxu0 0
  %86 = vmatpush1.bf16.msra.mxu0 0
  %87 = vmatprep.mubr.bf16.mxu0 0
  %88 = vmatmul.mubr.bf16.gmra.mrb[0].mxu0 %v50
  %v89 = vpop.f32.mrb[0].mxu0
  %v90 = vadd.f32 %v34, %v89
  %v91 = vpop.f32.mrb[0].mxu0
  %v92 = vpop.f32.mrb[0].mxu0
  %v93 = vadd.f32 %v34, %v92
  %v94 = vpop.f32.mrb[0].mxu0
  %95 = vmatprep.mubr.bf16.mxu0 0
  %96 = vmatmul.mubr.bf16.gmra.mrb[0].mxu0 %v53
  %v97 = vpop.f32.mrb[0].mxu0
  %v98 = vadd.f32 %v34, %v97
  %v99 = vpop.f32.mrb[0].mxu0
  %v100 = vpop.f32.mrb[0].mxu0
  %v101 = vpop.f32.mrb[0].mxu0
  %102 = vdwg.mxu0
  %v103 = vld [vmem:[%s1] sm:$0xff]
  %v104 = vld [vmem:[%s1 + $0x8] sm:$0xff]
  %v105 = vld [vmem:[%s1 + $0x10] sm:$0xff]
  %v106 = vadd.f32 %v103, %v90
  %v107 = vadd.f32 %v104, %v93
  %v108 = vadd.f32 %v105, %v98
  %vm112 = vcmask 1040384
  %v113 = vrot.slane %v106, 7
  %v114 = vrot.slane %v107, 7
  %v115 = vsel %vm112, %v113, %v114
  %v116 = vrot.slane %v108, 7
  %v117 = vsel %vm112, %v114, %v116
  %v121 = vsel %vm112, %v106, %v113
  %vm122 = vcmask 1046528
  %v123 = vrot.slane %v106, 1
  %v124 = vrot.slane %v107, 1
  %v125 = vsel %vm122, %v123, %v124
  %v126 = vrot.slane %v108, 1
  %v127 = vsel %vm122, %v124, %v126
  %v131 = vsel %vm122, %v126, %v108
  %v132 = vadd.f32 %v106, %v121
  %v133 = vadd.f32 %v107, %v115
  %v134 = vadd.f32 %v108, %v117
  %v135 = vadd.f32 %v132, %v125
  %v136 = vadd.f32 %v133, %v127
  %v137 = vadd.f32 %v134, %v131
  %vm138 = vcmask 1041408
  %v139 = vrot.slane %v106, 6
  %v140 = vrot.slane %v107, 6
  %v141 = vsel %vm138, %v139, %v140
  %v142 = vrot.slane %v108, 6
  %v143 = vsel %vm138, %v140, %v142
  %v147 = vsel %vm138, %v121, %v139
  %vm148 = vcmask 1045504
  %v149 = vrot.slane %v106, 2
  %v150 = vrot.slane %v107, 2
  %v151 = vsel %vm148, %v149, %v150
  %v152 = vrot.slane %v108, 2
  %v153 = vsel %vm148, %v150, %v152
  %v157 = vsel %vm148, %v152, %v126
  %v158 = vsel %vm122, %v157, %v108
  %v159 = vadd.f32 %v135, %v147
  %v160 = vadd.f32 %v136, %v141
  %v161 = vadd.f32 %v137, %v143
  %v162 = vadd.f32 %v159, %v151
  %v163 = vadd.f32 %v160, %v153
  %v164 = vadd.f32 %v161, %v158
  %v165 = vmul.f32 %v162, 0.2
  %v166 = vmul.f32 %v163, 0.2
  %v167 = vmul.f32 %v164, 0.2
  %v168 = vsub.f32 %v106, %v165
  %v169 = vsub.f32 %v107, %v166
  %v170 = vsub.f32 %v108, %v167
  %171 = vst.msk [vmem:[%s4] sm:$0xff] %vm48, %v168
  %172 = vst.msk [vmem:[%s4 + $0x8] sm:$0xff] %vm48, %v169
  %173 = vst.msk [vmem:[%s4 + $0x10] sm:$0xff] %vm48, %v170
  %174 = vst.msk [vmem:[%s5] sm:$0xff] %vm48, %v165
  %175 = vst.msk [vmem:[%s5 + $0x8] sm:$0xff] %vm48, %v166
  %176 = vst.msk [vmem:[%s5 + $0x10] sm:$0xff] %vm48, %v167
  %s177 = scalar_lea.vmem %s0, 24
  %v178 = vld [vmem:[%s177] sm:$0xff]
  %v179 = vld [vmem:[%s177 + $0x8] sm:$0xff]
  %v180 = vld [vmem:[%s177 + $0x10] sm:$0xff]
  %v181 = vpack.c.bf16 %v179, %v178
  %v182 = vpack.c.bf16 %v180, %v180
  %v184 = vsel %vm48, %v181, 0
  %v187 = vsel %vm48, %v182, 0
  %189 = vmatprep.subr.bf16.mxu0 0
  %190 = vmatpush1.bf16.msra.mxu0 %v44
  %191 = vmatprep.subr.bf16.mxu0 0
  %192 = vmatpush1.bf16.msra.mxu0 %v45
  %193 = vmatprep.subr.bf16.mxu0 0
  %194 = vmatpush1.bf16.msra.mxu0 0
  %195 = vmatprep.subr.bf16.mxu0 0
  %196 = vmatpush1.bf16.msra.mxu0 0
  %197 = vmatprep.subr.bf16.mxu0 0
  %198 = vmatpush1.bf16.msra.mxu0 0
  %199 = vmatprep.subr.bf16.mxu0 0
  %200 = vmatpush1.bf16.msra.mxu0 0
  %201 = vmatprep.subr.bf16.mxu0 0
  %202 = vmatpush1.bf16.msra.mxu0 0
  %203 = vmatprep.subr.bf16.mxu0 0
  %204 = vmatpush1.bf16.msra.mxu0 0
  %205 = vmatprep.subr.bf16.mxu0 0
  %206 = vmatpush1.bf16.msra.mxu0 0
  %207 = vmatprep.subr.bf16.mxu0 0
  %208 = vmatpush1.bf16.msra.mxu0 0
  %209 = vmatprep.subr.bf16.mxu0 0
  %210 = vmatpush1.bf16.msra.mxu0 0
  %211 = vmatprep.subr.bf16.mxu0 0
  %212 = vmatpush1.bf16.msra.mxu0 0
  %213 = vmatprep.subr.bf16.mxu0 0
  %214 = vmatpush1.bf16.msra.mxu0 0
  %215 = vmatprep.subr.bf16.mxu0 0
  %216 = vmatpush1.bf16.msra.mxu0 0
  %217 = vmatprep.subr.bf16.mxu0 0
  %218 = vmatpush1.bf16.msra.mxu0 0
  %219 = vmatprep.subr.bf16.mxu0 0
  %220 = vmatpush1.bf16.msra.mxu0 0
  %221 = vmatprep.mubr.bf16.mxu0 0
  %222 = vmatmul.mubr.bf16.gmra.mrb[0].mxu0 %v184
  %v223 = vpop.f32.mrb[0].mxu0
  %v224 = vadd.f32 %v34, %v223
  %v225 = vpop.f32.mrb[0].mxu0
  %v226 = vpop.f32.mrb[0].mxu0
  %v227 = vadd.f32 %v34, %v226
  %v228 = vpop.f32.mrb[0].mxu0
  %229 = vmatprep.mubr.bf16.mxu0 0
  %230 = vmatmul.mubr.bf16.gmra.mrb[0].mxu0 %v187
  %v231 = vpop.f32.mrb[0].mxu0
  %v232 = vadd.f32 %v34, %v231
  %v233 = vpop.f32.mrb[0].mxu0
  %v234 = vpop.f32.mrb[0].mxu0
  %v235 = vpop.f32.mrb[0].mxu0
  %236 = vdwg.mxu0
  %s237 = scalar_lea.vmem %s1, 24
  %v238 = vld [vmem:[%s237] sm:$0xff]
  %v239 = vld [vmem:[%s237 + $0x8] sm:$0xff]
  %v240 = vld [vmem:[%s237 + $0x10] sm:$0xff]
  %v241 = vadd.f32 %v238, %v224
  %v242 = vadd.f32 %v239, %v227
  %v243 = vadd.f32 %v240, %v232
  %v247 = vrot.slane %v241, 7
  %v248 = vrot.slane %v242, 7
  %v249 = vsel %vm112, %v247, %v248
  %v250 = vrot.slane %v243, 7
  %v251 = vsel %vm112, %v248, %v250
  %v255 = vsel %vm112, %v241, %v247
  %v256 = vrot.slane %v241, 1
  %v257 = vrot.slane %v242, 1
  %v258 = vsel %vm122, %v256, %v257
  %v259 = vrot.slane %v243, 1
  %v260 = vsel %vm122, %v257, %v259
  %v264 = vsel %vm122, %v259, %v243
  %v265 = vadd.f32 %v241, %v255
  %v266 = vadd.f32 %v242, %v249
  %v267 = vadd.f32 %v243, %v251
  %v268 = vadd.f32 %v265, %v258
  %v269 = vadd.f32 %v266, %v260
  %v270 = vadd.f32 %v267, %v264
  %v271 = vrot.slane %v241, 6
  %v272 = vrot.slane %v242, 6
  %v273 = vsel %vm138, %v271, %v272
  %v274 = vrot.slane %v243, 6
  %v275 = vsel %vm138, %v272, %v274
  %v279 = vsel %vm138, %v255, %v271
  %v280 = vrot.slane %v241, 2
  %v281 = vrot.slane %v242, 2
  %v282 = vsel %vm148, %v280, %v281
  %v283 = vrot.slane %v243, 2
  %v284 = vsel %vm148, %v281, %v283
  %v288 = vsel %vm148, %v283, %v259
  %v289 = vsel %vm122, %v288, %v243
  %v290 = vadd.f32 %v268, %v279
  %v291 = vadd.f32 %v269, %v273
  %v292 = vadd.f32 %v270, %v275
  %v293 = vadd.f32 %v290, %v282
  %v294 = vadd.f32 %v291, %v284
  %v295 = vadd.f32 %v292, %v289
  %v296 = vmul.f32 %v293, 0.2
  %v297 = vmul.f32 %v294, 0.2
  %v298 = vmul.f32 %v295, 0.2
  %v299 = vsub.f32 %v241, %v296
  %v300 = vsub.f32 %v242, %v297
  %v301 = vsub.f32 %v243, %v298
  %s302 = scalar_lea.vmem %s4, 24
  %303 = vst.msk [vmem:[%s302] sm:$0xff] %vm48, %v299
  %304 = vst.msk [vmem:[%s302 + $0x8] sm:$0xff] %vm48, %v300
  %305 = vst.msk [vmem:[%s302 + $0x10] sm:$0xff] %vm48, %v301
  %s306 = scalar_lea.vmem %s5, 24
  %307 = vst.msk [vmem:[%s306] sm:$0xff] %vm48, %v296
  %308 = vst.msk [vmem:[%s306 + $0x8] sm:$0xff] %vm48, %v297
  %309 = vst.msk [vmem:[%s306 + $0x10] sm:$0xff] %vm48, %v298
  // Predicated region
  $region18: #{model_forward.42} parent=0 // pred_check
    _
  $region19: #{model_forward.42} parent=0 // pred_check_branch
    %311 = sbr.rel (0) target = $region21
  $region20: #{model_forward.42} parent=0 // pred_region
    _
  $region21: #{model_forward.42} parent=0 // pred_fallthru
    _
  // Predicated region
  $region22: #{model_forward.42} parent=0 // pred_check
    _
  $region23: #{model_forward.42} parent=0 // pred_check_branch
    %313 = sbr.rel (0) target = $region25
  $region24: #{model_forward.42} parent=0 // pred_region
    _
  $region25: #{model_forward.42} parent=0 // pred_fallthru
    _
  // Predicated region
  $region26: #{model_forward.42} parent=0 // pred_check
    _
  $region27: #{model_forward.42} parent=0 // pred_check_branch
    %315 = sbr.rel (0) target = $region29
  $region28: #{model_forward.42} parent=0 // pred_region
    _
  $region29: #{model_forward.42} parent=0 // pred_fallthru
    _
  // Predicated region
  $region30: #{model_forward.42} parent=0 // pred_check
    _
  $region31: #{model_forward.42} parent=0 // pred_check_branch
    %317 = sbr.rel (0) target = $region33
  $region32: #{model_forward.42} parent=0 // pred_region
    _
  $region33: #{model_forward.42} parent=0 // pred_fallthru
    _

// kernel: model_forward.43
$region0: #{model_forward.43}
  #allocation0 [shape = 'u32[]', space=smem, size = 0x4, offset = 0x4, fixed_abs, tag = 'smem constant byte address 0x4 - core index']
  #allocation1 [shape = 'u32[144,128]{1,0:T(1,128)}', space=vmem, size = 0x12000, scoped, tag = 'internal scratch']
  %s0 = inlined_call_operand.vmem [shape: f32[2,24,32], index: 0, kind: input, shape index: {}]
  %s1 = inlined_call_operand.vmem [shape: f32[2,16,32], index: 1, kind: input, shape index: {}]
  %s2 = inlined_call_operand.vmem [shape: bf16[32,32], index: 2, kind: input, shape index: {}]
  %s3 = inlined_call_operand.vmem [shape: f32[1,32], index: 3, kind: input, shape index: {}]
  %s4 = inlined_call_operand.vmem [shape: bf16[32,64], index: 4, kind: input, shape index: {}]
  %s5 = inlined_call_operand.vmem [shape: f32[1,64], index: 5, kind: input, shape index: {}]
  %s6 = inlined_call_operand.vmem [shape: f32[2,24,32], index: 6, kind: output, shape index: {0}]
  %s7 = inlined_call_operand.vmem [shape: f32[2,16,64], index: 7, kind: output, shape index: {1}]
  %8 = xla_tuple %s6, %s7
  %s9 = sld [smem:[#allocation0]]
  $region42: #{model_forward.43} parent=0
    _
  %s11 = ssub.s32 1, %s9
  %s12 = scalar_select 0, %s11, %s9
  // Predicated region
  $region2: #{model_forward.43} parent=0 // pred_check
    _
  $region3: #{model_forward.43} parent=0 // pred_check_branch
    %14 = sbr.rel (0) target = $region5
  $region4: #{model_forward.43} parent=0 // pred_region
    _
  $region5: #{model_forward.43} parent=0 // pred_fallthru
    _
  // Predicated region
  $region6: #{model_forward.43} parent=0 // pred_check
    _
  $region7: #{model_forward.43} parent=0 // pred_check_branch
    %16 = sbr.rel (0) target = $region9
  $region8: #{model_forward.43} parent=0 // pred_region
    _
  $region9: #{model_forward.43} parent=0 // pred_fallthru
    _
  // Predicated region
  $region10: #{model_forward.43} parent=0 // pred_check
    _
  $region11: #{model_forward.43} parent=0 // pred_check_branch
    %18 = sbr.rel (0) target = $region13
  $region12: #{model_forward.43} parent=0 // pred_region
    _
  $region13: #{model_forward.43} parent=0 // pred_fallthru
    _
  // Predicated region
  $region14: #{model_forward.43} parent=0 // pred_check
    _
  $region15: #{model_forward.43} parent=0 // pred_check_branch
    %20 = sbr.rel (0) target = $region17
  $region16: #{model_forward.43} parent=0 // pred_region
    _
  $region17: #{model_forward.43} parent=0 // pred_fallthru
    _
  // Predicated region
  $region18: #{model_forward.43} parent=0 // pred_check
    _
  $region19: #{model_forward.43} parent=0 // pred_check_branch
    %22 = sbr.rel (0) target = $region21
  $region20: #{model_forward.43} parent=0 // pred_region
    _
  $region21: #{model_forward.43} parent=0 // pred_fallthru
    _
  // Predicated region
  $region22: #{model_forward.43} parent=0 // pred_check
    _
  $region23: #{model_forward.43} parent=0 // pred_check_branch
    %24 = sbr.rel (0) target = $region25
  $region24: #{model_forward.43} parent=0 // pred_region
    _
  $region25: #{model_forward.43} parent=0 // pred_fallthru
    _
  %v26 = vld [vmem:[%s2] sm:$0xf]
  %v27 = vld [vmem:[%s2 + $0x4] sm:$0xf]
  %v28 = vld [vmem:[%s2 + $0x8] sm:$0xf]
  %v29 = vld [vmem:[%s2 + $0xc] sm:$0xf]
  %v30 = vld [vmem:[%s3] sm:$0x1]
  %v31 = vld [vmem:[%s4] sm:$0xf]
  %v32 = vld [vmem:[%s4 + $0x4] sm:$0xf]
  %v33 = vld [vmem:[%s4 + $0x8] sm:$0xf]
  %v34 = vld [vmem:[%s4 + $0xc] sm:$0xf]
  %v35 = vld [vmem:[%s5] sm:$0x1]
  %v36 = vld [vmem:[%s0] sm:$0xff]
  %v37 = vld [vmem:[%s0 + $0x8] sm:$0xff]
  %v38 = vld [vmem:[%s0 + $0x10] sm:$0xff]
  %v39 = vpack.c.bf16 %v37, %v36
  %v40 = vpack.c.bf16 %v38, %v38
  %v42 = vlaneseq
  %v43 = vshrl.u32 %v42, 7
  %v44 = vsub.s32 0, %v43
  %v45 = vrot.slane %v30, %v44
  %v51 = vunpack.c.l.b16 %v26
  %v52 = vunpack.c.l.b16 %v27
  %v53 = vunpack.c.l.b16 %v28
  %v54 = vunpack.c.l.b16 %v29
  %v55 = vpack.c.b16 %v52, %v51
  %v56 = vpack.c.b16 %v54, %v53
  %vm59 = vcmask 261120
  %v61 = vsel %vm59, %v39, 0
  %v64 = vsel %vm59, %v40, 0
  %66 = vmatprep.subr.bf16.mxu0 0
  %67 = vmatpush1.bf16.msra.mxu0 %v55
  %68 = vmatprep.subr.bf16.mxu0 0
  %69 = vmatpush1.bf16.msra.mxu0 %v56
  %70 = vmatprep.subr.bf16.mxu0 0
  %71 = vmatpush1.bf16.msra.mxu0 0
  %72 = vmatprep.subr.bf16.mxu0 0
  %73 = vmatpush1.bf16.msra.mxu0 0
  %74 = vmatprep.subr.bf16.mxu0 0
  %75 = vmatpush1.bf16.msra.mxu0 0
  %76 = vmatprep.subr.bf16.mxu0 0
  %77 = vmatpush1.bf16.msra.mxu0 0
  %78 = vmatprep.subr.bf16.mxu0 0
  %79 = vmatpush1.bf16.msra.mxu0 0
  %80 = vmatprep.subr.bf16.mxu0 0
  %81 = vmatpush1.bf16.msra.mxu0 0
  %82 = vmatprep.subr.bf16.mxu0 0
  %83 = vmatpush1.bf16.msra.mxu0 0
  %84 = vmatprep.subr.bf16.mxu0 0
  %85 = vmatpush1.bf16.msra.mxu0 0
  %86 = vmatprep.subr.bf16.mxu0 0
  %87 = vmatpush1.bf16.msra.mxu0 0
  %88 = vmatprep.subr.bf16.mxu0 0
  %89 = vmatpush1.bf16.msra.mxu0 0
  %90 = vmatprep.subr.bf16.mxu0 0
  %91 = vmatpush1.bf16.msra.mxu0 0
  %92 = vmatprep.subr.bf16.mxu0 0
  %93 = vmatpush1.bf16.msra.mxu0 0
  %94 = vmatprep.subr.bf16.mxu0 0
  %95 = vmatpush1.bf16.msra.mxu0 0
  %96 = vmatprep.subr.bf16.mxu0 0
  %97 = vmatpush1.bf16.msra.mxu0 0
  %98 = vmatprep.mubr.bf16.mxu0 0
  %99 = vmatmul.mubr.bf16.gmra.mrb[0].mxu0 %v61
  %v100 = vpop.f32.mrb[0].mxu0
  %v101 = vadd.f32 %v45, %v100
  %v102 = vpop.f32.mrb[0].mxu0
  %v103 = vpop.f32.mrb[0].mxu0
  %v104 = vadd.f32 %v45, %v103
  %v105 = vpop.f32.mrb[0].mxu0
  %106 = vmatprep.mubr.bf16.mxu0 0
  %107 = vmatmul.mubr.bf16.gmra.mrb[0].mxu0 %v64
  %v108 = vpop.f32.mrb[0].mxu0
  %v109 = vadd.f32 %v45, %v108
  %v110 = vpop.f32.mrb[0].mxu0
  %v111 = vpop.f32.mrb[0].mxu0
  %v112 = vpop.f32.mrb[0].mxu0
  %113 = vdwg.mxu0
  %114 = vst.msk [vmem:[%s6] sm:$0xff] %vm59, %v101
  %115 = vst.msk [vmem:[%s6 + $0x8] sm:$0xff] %vm59, %v104
  %116 = vst.msk [vmem:[%s6 + $0x10] sm:$0xff] %vm59, %v109
  %v117 = vld [vmem:[%s1] sm:$0xff]
  %v118 = vld [vmem:[%s1 + $0x8] sm:$0xff]
  %v119 = vpack.c.bf16 %v118, %v117
  %v121 = vlaneseq
  %v122 = vshrl.u32 %v121, 7
  %v123 = vsub.s32 0, %v122
  %v124 = vrot.slane %v35, %v123
  %v130 = vunpack.c.l.b16 %v31
  %v131 = vunpack.c.l.b16 %v32
  %v132 = vunpack.c.l.b16 %v33
  %v133 = vunpack.c.l.b16 %v34
  %v134 = vpack.c.b16 %v131, %v130
  %v135 = vpack.c.b16 %v133, %v132
  %v139 = vsel %vm59, %v119, 0
  %141 = vmatprep.subr.bf16.mxu0 0
  %142 = vmatpush1.bf16.msra.mxu0 %v134
  %143 = vmatprep.subr.bf16.mxu0 0
  %144 = vmatpush1.bf16.msra.mxu0 %v135
  %145 = vmatprep.subr.bf16.mxu0 0
  %146 = vmatpush1.bf16.msra.mxu0 0
  %147 = vmatprep.subr.bf16.mxu0 0
  %148 = vmatpush1.bf16.msra.mxu0 0
  %149 = vmatprep.subr.bf16.mxu0 0
  %150 = vmatpush1.bf16.msra.mxu0 0
  %151 = vmatprep.subr.bf16.mxu0 0
  %152 = vmatpush1.bf16.msra.mxu0 0
  %153 = vmatprep.subr.bf16.mxu0 0
  %154 = vmatpush1.bf16.msra.mxu0 0
  %155 = vmatprep.subr.bf16.mxu0 0
  %156 = vmatpush1.bf16.msra.mxu0 0
  %157 = vmatprep.subr.bf16.mxu0 0
  %158 = vmatpush1.bf16.msra.mxu0 0
  %159 = vmatprep.subr.bf16.mxu0 0
  %160 = vmatpush1.bf16.msra.mxu0 0
  %161 = vmatprep.subr.bf16.mxu0 0
  %162 = vmatpush1.bf16.msra.mxu0 0
  %163 = vmatprep.subr.bf16.mxu0 0
  %164 = vmatpush1.bf16.msra.mxu0 0
  %165 = vmatprep.subr.bf16.mxu0 0
  %166 = vmatpush1.bf16.msra.mxu0 0
  %167 = vmatprep.subr.bf16.mxu0 0
  %168 = vmatpush1.bf16.msra.mxu0 0
  %169 = vmatprep.subr.bf16.mxu0 0
  %170 = vmatpush1.bf16.msra.mxu0 0
  %171 = vmatprep.subr.bf16.mxu0 0
  %172 = vmatpush1.bf16.msra.mxu0 0
  %173 = vmatprep.mubr.bf16.mxu0 0
  %174 = vmatmul.mubr.bf16.gmra.mrb[0].mxu0 %v139
  %v175 = vpop.f32.mrb[0].mxu0
  %v176 = vadd.f32 %v124, %v175
  %v177 = vpop.f32.mrb[0].mxu0
  %v178 = vpop.f32.mrb[0].mxu0
  %v179 = vadd.f32 %v124, %v178
  %v180 = vpop.f32.mrb[0].mxu0
  %181 = vdwg.mxu0
  %vm182 = vcmask 523264
  %183 = vst.msk [vmem:[%s7] sm:$0xff] %vm182, %v176
  %184 = vst.msk [vmem:[%s7 + $0x8] sm:$0xff] %vm182, %v179
  %s185 = scalar_lea.vmem %s0, 24
  %v186 = vld [vmem:[%s185] sm:$0xff]
  %v187 = vld [vmem:[%s185 + $0x8] sm:$0xff]
  %v188 = vld [vmem:[%s185 + $0x10] sm:$0xff]
  %v189 = vpack.c.bf16 %v187, %v186
  %v190 = vpack.c.bf16 %v188, %v188
  %v192 = vsel %vm59, %v189, 0
  %v195 = vsel %vm59, %v190, 0
  %197 = vmatprep.subr.bf16.mxu0 0
  %198 = vmatpush1.bf16.msra.mxu0 %v55
  %199 = vmatprep.subr.bf16.mxu0 0
  %200 = vmatpush1.bf16.msra.mxu0 %v56
  %201 = vmatprep.subr.bf16.mxu0 0
  %202 = vmatpush1.bf16.msra.mxu0 0
  %203 = vmatprep.subr.bf16.mxu0 0
  %204 = vmatpush1.bf16.msra.mxu0 0
  %205 = vmatprep.subr.bf16.mxu0 0
  %206 = vmatpush1.bf16.msra.mxu0 0
  %207 = vmatprep.subr.bf16.mxu0 0
  %208 = vmatpush1.bf16.msra.mxu0 0
  %209 = vmatprep.subr.bf16.mxu0 0
  %210 = vmatpush1.bf16.msra.mxu0 0
  %211 = vmatprep.subr.bf16.mxu0 0
  %212 = vmatpush1.bf16.msra.mxu0 0
  %213 = vmatprep.subr.bf16.mxu0 0
  %214 = vmatpush1.bf16.msra.mxu0 0
  %215 = vmatprep.subr.bf16.mxu0 0
  %216 = vmatpush1.bf16.msra.mxu0 0
  %217 = vmatprep.subr.bf16.mxu0 0
  %218 = vmatpush1.bf16.msra.mxu0 0
  %219 = vmatprep.subr.bf16.mxu0 0
  %220 = vmatpush1.bf16.msra.mxu0 0
  %221 = vmatprep.subr.bf16.mxu0 0
  %222 = vmatpush1.bf16.msra.mxu0 0
  %223 = vmatprep.subr.bf16.mxu0 0
  %224 = vmatpush1.bf16.msra.mxu0 0
  %225 = vmatprep.subr.bf16.mxu0 0
  %226 = vmatpush1.bf16.msra.mxu0 0
  %227 = vmatprep.subr.bf16.mxu0 0
  %228 = vmatpush1.bf16.msra.mxu0 0
  %229 = vmatprep.mubr.bf16.mxu0 0
  %230 = vmatmul.mubr.bf16.gmra.mrb[0].mxu0 %v192
  %v231 = vpop.f32.mrb[0].mxu0
  %v232 = vadd.f32 %v45, %v231
  %v233 = vpop.f32.mrb[0].mxu0
  %v234 = vpop.f32.mrb[0].mxu0
  %v235 = vadd.f32 %v45, %v234
  %v236 = vpop.f32.mrb[0].mxu0
  %237 = vmatprep.mubr.bf16.mxu0 0
  %238 = vmatmul.mubr.bf16.gmra.mrb[0].mxu0 %v195
  %v239 = vpop.f32.mrb[0].mxu0
  %v240 = vadd.f32 %v45, %v239
  %v241 = vpop.f32.mrb[0].mxu0
  %v242 = vpop.f32.mrb[0].mxu0
  %v243 = vpop.f32.mrb[0].mxu0
  %244 = vdwg.mxu0
  %s245 = scalar_lea.vmem %s6, 24
  %246 = vst.msk [vmem:[%s245] sm:$0xff] %vm59, %v232
  %247 = vst.msk [vmem:[%s245 + $0x8] sm:$0xff] %vm59, %v235
  %248 = vst.msk [vmem:[%s245 + $0x10] sm:$0xff] %vm59, %v240
  %s249 = scalar_lea.vmem %s1, 16
  %v250 = vld [vmem:[%s249] sm:$0xff]
  %v251 = vld [vmem:[%s249 + $0x8] sm:$0xff]
  %v252 = vpack.c.bf16 %v251, %v250
  %v254 = vsel %vm59, %v252, 0
  %256 = vmatprep.subr.bf16.mxu0 0
  %257 = vmatpush1.bf16.msra.mxu0 %v134
  %258 = vmatprep.subr.bf16.mxu0 0
  %259 = vmatpush1.bf16.msra.mxu0 %v135
  %260 = vmatprep.subr.bf16.mxu0 0
  %261 = vmatpush1.bf16.msra.mxu0 0
  %262 = vmatprep.subr.bf16.mxu0 0
  %263 = vmatpush1.bf16.msra.mxu0 0
  %264 = vmatprep.subr.bf16.mxu0 0
  %265 = vmatpush1.bf16.msra.mxu0 0
  %266 = vmatprep.subr.bf16.mxu0 0
  %267 = vmatpush1.bf16.msra.mxu0 0
  %268 = vmatprep.subr.bf16.mxu0 0
  %269 = vmatpush1.bf16.msra.mxu0 0
  %270 = vmatprep.subr.bf16.mxu0 0
  %271 = vmatpush1.bf16.msra.mxu0 0
  %272 = vmatprep.subr.bf16.mxu0 0
  %273 = vmatpush1.bf16.msra.mxu0 0
  %274 = vmatprep.subr.bf16.mxu0 0
  %275 = vmatpush1.bf16.msra.mxu0 0
  %276 = vmatprep.subr.bf16.mxu0 0
  %277 = vmatpush1.bf16.msra.mxu0 0
  %278 = vmatprep.subr.bf16.mxu0 0
  %279 = vmatpush1.bf16.msra.mxu0 0
  %280 = vmatprep.subr.bf16.mxu0 0
  %281 = vmatpush1.bf16.msra.mxu0 0
  %282 = vmatprep.subr.bf16.mxu0 0
  %283 = vmatpush1.bf16.msra.mxu0 0
  %284 = vmatprep.subr.bf16.mxu0 0
  %285 = vmatpush1.bf16.msra.mxu0 0
  %286 = vmatprep.subr.bf16.mxu0 0
  %287 = vmatpush1.bf16.msra.mxu0 0
  %288 = vmatprep.mubr.bf16.mxu0 0
  %289 = vmatmul.mubr.bf16.gmra.mrb[0].mxu0 %v254
  %v290 = vpop.f32.mrb[0].mxu0
  %v291 = vadd.f32 %v124, %v290
  %v292 = vpop.f32.mrb[0].mxu0
  %v293 = vpop.f32.mrb[0].mxu0
  %v294 = vadd.f32 %v124, %v293
  %v295 = vpop.f32.mrb[0].mxu0
  %296 = vdwg.mxu0
  %s297 = scalar_lea.vmem %s7, 16
  %298 = vst.msk [vmem:[%s297] sm:$0xff] %vm182, %v291
  %299 = vst.msk [vmem:[%s297 + $0x8] sm:$0xff] %vm182, %v294
  // Predicated region
  $region26: #{model_forward.43} parent=0 // pred_check
    _
  $region27: #{model_forward.43} parent=0 // pred_check_branch
    %301 = sbr.rel (0) target = $region29
  $region28: #{model_forward.43} parent=0 // pred_region
    _
  $region29: #{model_forward.43} parent=0 // pred_fallthru
    _
  // Predicated region
  $region30: #{model_forward.43} parent=0 // pred_check
    _
  $region31: #{model_forward.43} parent=0 // pred_check_branch
    %303 = sbr.rel (0) target = $region33
  $region32: #{model_forward.43} parent=0 // pred_region
    _
  $region33: #{model_forward.43} parent=0 // pred_fallthru
    _
  // Predicated region
  $region34: #{model_forward.43} parent=0 // pred_check
    _
  $region35: #{model_forward.43} parent=0 // pred_check_branch
    %305 = sbr.rel (0) target = $region37
  $region36: #{model_forward.43} parent=0 // pred_region
    _
  $region37: #{model_forward.43} parent=0 // pred_fallthru
    _
  // Predicated region
  $region38: #{model_forward.43} parent=0 // pred_check
    _
  $region39: #{model_forward.43} parent=0 // pred_check_branch
    %307 = sbr.rel (0) target = $region41
  $region40: #{model_forward.43} parent=0 // pred_region
    _
  $region41: #{model_forward.43} parent=0 // pred_fallthru
    _

// kernel: model_forward.45
$region0: #{model_forward.45}
  #allocation0 [shape = 'u32[]', space=smem, size = 0x4, offset = 0x4, fixed_abs, tag = 'smem constant byte address 0x4 - core index']
  #allocation1 [shape = 'u32[144,128]{1,0:T(1,128)}', space=vmem, size = 0x12000, scoped, tag = 'internal scratch']
  %s0 = inlined_call_operand.vmem [shape: f32[2,24,32], index: 0, kind: input, shape index: {}]
  %s1 = inlined_call_operand.vmem [shape: bf16[32,64], index: 1, kind: input, shape index: {}]
  %s2 = inlined_call_operand.vmem [shape: bf16[64,32], index: 2, kind: input, shape index: {}]
  %s3 = inlined_call_operand.vmem [shape: f32[2,24,32], index: 3, kind: output, shape index: {0}]
  %s4 = inlined_call_operand.vmem [shape: f32[2,24,32], index: 4, kind: output, shape index: {1}]
  %5 = xla_tuple %s3, %s4
  %s6 = sld [smem:[#allocation0]]
  $region30: #{model_forward.45} parent=0
    _
  %s8 = ssub.s32 1, %s6
  %s9 = scalar_select 0, %s8, %s6
  // Predicated region
  $region2: #{model_forward.45} parent=0 // pred_check
    _
  $region3: #{model_forward.45} parent=0 // pred_check_branch
    %11 = sbr.rel (0) target = $region5
  $region4: #{model_forward.45} parent=0 // pred_region
    _
  $region5: #{model_forward.45} parent=0 // pred_fallthru
    _
  // Predicated region
  $region6: #{model_forward.45} parent=0 // pred_check
    _
  $region7: #{model_forward.45} parent=0 // pred_check_branch
    %13 = sbr.rel (0) target = $region9
  $region8: #{model_forward.45} parent=0 // pred_region
    _
  $region9: #{model_forward.45} parent=0 // pred_fallthru
    _
  // Predicated region
  $region10: #{model_forward.45} parent=0 // pred_check
    _
  $region11: #{model_forward.45} parent=0 // pred_check_branch
    %15 = sbr.rel (0) target = $region13
  $region12: #{model_forward.45} parent=0 // pred_region
    _
  $region13: #{model_forward.45} parent=0 // pred_fallthru
    _
  %v17 = vld [vmem:[%s1] sm:$0xf]
  %v18 = vld [vmem:[%s1 + $0x4] sm:$0xf]
  %v19 = vld [vmem:[%s1 + $0x8] sm:$0xf]
  %v20 = vld [vmem:[%s1 + $0xc] sm:$0xf]
  %v21 = vld [vmem:[%s2] sm:$0xf]
  %v22 = vld [vmem:[%s2 + $0x4] sm:$0xf]
  %v23 = vld [vmem:[%s2 + $0x8] sm:$0xf]
  %v24 = vld [vmem:[%s2 + $0xc] sm:$0xf]
  %v25 = vld [vmem:[%s2 + $0x10] sm:$0xf]
  %v26 = vld [vmem:[%s2 + $0x14] sm:$0xf]
  %v27 = vld [vmem:[%s2 + $0x18] sm:$0xf]
  %v28 = vld [vmem:[%s2 + $0x1c] sm:$0xf]
  %v29 = vld [vmem:[%s0] sm:$0xff]
  %v30 = vld [vmem:[%s0 + $0x8] sm:$0xff]
  %v31 = vld [vmem:[%s0 + $0x10] sm:$0xff]
  %v32 = vpack.c.bf16 %v30, %v29
  %v33 = vpack.c.bf16 %v31, %v31
  %v38 = vunpack.c.l.b16 %v17
  %v39 = vunpack.c.l.b16 %v18
  %v40 = vunpack.c.l.b16 %v19
  %v41 = vunpack.c.l.b16 %v20
  %v42 = vpack.c.b16 %v39, %v38
  %v43 = vpack.c.b16 %v41, %v40
  %vm46 = vcmask 261120
  %v48 = vsel %vm46, %v32, 0
  %v51 = vsel %vm46, %v33, 0
  %53 = vmatprep.subr.bf16.mxu0 0
  %54 = vmatpush1.bf16.msra.mxu0 %v42
  %55 = vmatprep.subr.bf16.mxu0 0
  %56 = vmatpush1.bf16.msra.mxu0 %v43
  %57 = vmatprep.subr.bf16.mxu0 0
  %58 = vmatpush1.bf16.msra.mxu0 0
  %59 = vmatprep.subr.bf16.mxu0 0
  %60 = vmatpush1.bf16.msra.mxu0 0
  %61 = vmatprep.subr.bf16.mxu0 0
  %62 = vmatpush1.bf16.msra.mxu0 0
  %63 = vmatprep.subr.bf16.mxu0 0
  %64 = vmatpush1.bf16.msra.mxu0 0
  %65 = vmatprep.subr.bf16.mxu0 0
  %66 = vmatpush1.bf16.msra.mxu0 0
  %67 = vmatprep.subr.bf16.mxu0 0
  %68 = vmatpush1.bf16.msra.mxu0 0
  %69 = vmatprep.subr.bf16.mxu0 0
  %70 = vmatpush1.bf16.msra.mxu0 0
  %71 = vmatprep.subr.bf16.mxu0 0
  %72 = vmatpush1.bf16.msra.mxu0 0
  %73 = vmatprep.subr.bf16.mxu0 0
  %74 = vmatpush1.bf16.msra.mxu0 0
  %75 = vmatprep.subr.bf16.mxu0 0
  %76 = vmatpush1.bf16.msra.mxu0 0
  %77 = vmatprep.subr.bf16.mxu0 0
  %78 = vmatpush1.bf16.msra.mxu0 0
  %79 = vmatprep.subr.bf16.mxu0 0
  %80 = vmatpush1.bf16.msra.mxu0 0
  %81 = vmatprep.subr.bf16.mxu0 0
  %82 = vmatpush1.bf16.msra.mxu0 0
  %83 = vmatprep.subr.bf16.mxu0 0
  %84 = vmatpush1.bf16.msra.mxu0 0
  %85 = vmatprep.mubr.bf16.mxu0 0
  %86 = vmatmul.mubr.bf16.gmra.mrb[0].mxu0 %v48
  %v87 = vpop.f32.mrb[0].mxu0
  %v88 = vadd.f32 0.0, %v87
  %v89 = vpop.f32.mrb[0].mxu0
  %v90 = vpop.f32.mrb[0].mxu0
  %v91 = vadd.f32 0.0, %v90
  %v92 = vpop.f32.mrb[0].mxu0
  %93 = vmatprep.mubr.bf16.mxu0 0
  %94 = vmatmul.mubr.bf16.gmra.mrb[0].mxu0 %v51
  %v95 = vpop.f32.mrb[0].mxu0
  %v96 = vadd.f32 0.0, %v95
  %v97 = vpop.f32.mrb[0].mxu0
  %v98 = vpop.f32.mrb[0].mxu0
  %v99 = vpop.f32.mrb[0].mxu0
  %100 = vdwg.mxu0
  %v101 = vmax.f32 %v88, 0.0
  %v102 = vmax.f32 %v91, 0.0
  %v103 = vmax.f32 %v96, 0.0
  %v104 = vpack.c.bf16 %v102, %v101
  %v105 = vpack.c.bf16 %v103, %v103
  %v114 = vunpack.c.l.b16 %v21
  %v115 = vunpack.c.l.b16 %v22
  %v116 = vunpack.c.l.b16 %v23
  %v117 = vunpack.c.l.b16 %v24
  %v118 = vunpack.c.l.b16 %v25
  %v119 = vunpack.c.l.b16 %v26
  %v120 = vunpack.c.l.b16 %v27
  %v121 = vunpack.c.l.b16 %v28
  %v122 = vpack.c.b16 %v115, %v114
  %v123 = vpack.c.b16 %v117, %v116
  %v124 = vpack.c.b16 %v119, %v118
  %v125 = vpack.c.b16 %v121, %v120
  %vm130 = vcmask 523264
  %v132 = vsel %vm130, %v104, 0
  %v135 = vsel %vm130, %v105, 0
  %137 = vmatprep.subr.bf16.mxu0 0
  %138 = vmatpush1.bf16.msra.mxu0 %v122
  %139 = vmatprep.subr.bf16.mxu0 0
  %140 = vmatpush1.bf16.msra.mxu0 %v123
  %141 = vmatprep.subr.bf16.mxu0 0
  %142 = vmatpush1.bf16.msra.mxu0 %v124
  %143 = vmatprep.subr.bf16.mxu0 0
  %144 = vmatpush1.bf16.msra.mxu0 %v125
  %145 = vmatprep.subr.bf16.mxu0 0
  %146 = vmatpush1.bf16.msra.mxu0 0
  %147 = vmatprep.subr.bf16.mxu0 0
  %148 = vmatpush1.bf16.msra.mxu0 0
  %149 = vmatprep.subr.bf16.mxu0 0
  %150 = vmatpush1.bf16.msra.mxu0 0
  %151 = vmatprep.subr.bf16.mxu0 0
  %152 = vmatpush1.bf16.msra.mxu0 0
  %153 = vmatprep.subr.bf16.mxu0 0
  %154 = vmatpush1.bf16.msra.mxu0 0
  %155 = vmatprep.subr.bf16.mxu0 0
  %156 = vmatpush1.bf16.msra.mxu0 0
  %157 = vmatprep.subr.bf16.mxu0 0
  %158 = vmatpush1.bf16.msra.mxu0 0
  %159 = vmatprep.subr.bf16.mxu0 0
  %160 = vmatpush1.bf16.msra.mxu0 0
  %161 = vmatprep.subr.bf16.mxu0 0
  %162 = vmatpush1.bf16.msra.mxu0 0
  %163 = vmatprep.subr.bf16.mxu0 0
  %164 = vmatpush1.bf16.msra.mxu0 0
  %165 = vmatprep.subr.bf16.mxu0 0
  %166 = vmatpush1.bf16.msra.mxu0 0
  %167 = vmatprep.subr.bf16.mxu0 0
  %168 = vmatpush1.bf16.msra.mxu0 0
  %169 = vmatprep.mubr.bf16.mxu0 0
  %170 = vmatmul.mubr.bf16.gmra.mrb[0].mxu0 %v132
  %v171 = vpop.f32.mrb[0].mxu0
  %v172 = vadd.f32 0.0, %v171
  %v173 = vpop.f32.mrb[0].mxu0
  %v174 = vpop.f32.mrb[0].mxu0
  %v175 = vadd.f32 0.0, %v174
  %v176 = vpop.f32.mrb[0].mxu0
  %177 = vmatprep.mubr.bf16.mxu0 0
  %178 = vmatmul.mubr.bf16.gmra.mrb[0].mxu0 %v135
  %v179 = vpop.f32.mrb[0].mxu0
  %v180 = vadd.f32 0.0, %v179
  %v181 = vpop.f32.mrb[0].mxu0
  %v182 = vpop.f32.mrb[0].mxu0
  %v183 = vpop.f32.mrb[0].mxu0
  %184 = vdwg.mxu0
  %v185 = vadd.f32 %v29, %v172
  %v186 = vadd.f32 %v30, %v175
  %v187 = vadd.f32 %v31, %v180
  %vm191 = vcmask 1040384
  %v192 = vrot.slane %v185, 7
  %v193 = vrot.slane %v186, 7
  %v194 = vsel %vm191, %v192, %v193
  %v195 = vrot.slane %v187, 7
  %v196 = vsel %vm191, %v193, %v195
  %v200 = vsel %vm191, %v185, %v192
  %vm201 = vcmask 1046528
  %v202 = vrot.slane %v185, 1
  %v203 = vrot.slane %v186, 1
  %v204 = vsel %vm201, %v202, %v203
  %v205 = vrot.slane %v187, 1
  %v206 = vsel %vm201, %v203, %v205
  %v210 = vsel %vm201, %v205, %v187
  %v211 = vadd.f32 %v185, %v200
  %v212 = vadd.f32 %v186, %v194
  %v213 = vadd.f32 %v187, %v196
  %v214 = vadd.f32 %v211, %v204
  %v215 = vadd.f32 %v212, %v206
  %v216 = vadd.f32 %v213, %v210
  %vm217 = vcmask 1041408
  %v218 = vrot.slane %v185, 6
  %v219 = vrot.slane %v186, 6
  %v220 = vsel %vm217, %v218, %v219
  %v221 = vrot.slane %v187, 6
  %v222 = vsel %vm217, %v219, %v221
  %v226 = vsel %vm217, %v200, %v218
  %vm227 = vcmask 1045504
  %v228 = vrot.slane %v185, 2
  %v229 = vrot.slane %v186, 2
  %v230 = vsel %vm227, %v228, %v229
  %v231 = vrot.slane %v187, 2
  %v232 = vsel %vm227, %v229, %v231
  %v236 = vsel %vm227, %v231, %v205
  %v237 = vsel %vm201, %v236, %v187
  %v238 = vadd.f32 %v214, %v226
  %v239 = vadd.f32 %v215, %v220
  %v240 = vadd.f32 %v216, %v222
  %v241 = vadd.f32 %v238, %v230
  %v242 = vadd.f32 %v239, %v232
  %v243 = vadd.f32 %v240, %v237
  %v244 = vmul.f32 %v241, 0.2
  %v245 = vmul.f32 %v242, 0.2
  %v246 = vmul.f32 %v243, 0.2
  %v247 = vsub.f32 %v185, %v244
  %v248 = vsub.f32 %v186, %v245
  %v249 = vsub.f32 %v187, %v246
  %250 = vst.msk [vmem:[%s3] sm:$0xff] %vm46, %v247
  %251 = vst.msk [vmem:[%s3 + $0x8] sm:$0xff] %vm46, %v248
  %252 = vst.msk [vmem:[%s3 + $0x10] sm:$0xff] %vm46, %v249
  %253 = vst.msk [vmem:[%s4] sm:$0xff] %vm46, %v244
  %254 = vst.msk [vmem:[%s4 + $0x8] sm:$0xff] %vm46, %v245
  %255 = vst.msk [vmem:[%s4 + $0x10] sm:$0xff] %vm46, %v246
  %s256 = scalar_lea.vmem %s0, 24
  %v257 = vld [vmem:[%s256] sm:$0xff]
  %v258 = vld [vmem:[%s256 + $0x8] sm:$0xff]
  %v259 = vld [vmem:[%s256 + $0x10] sm:$0xff]
  %v260 = vpack.c.bf16 %v258, %v257
  %v261 = vpack.c.bf16 %v259, %v259
  %v263 = vsel %vm46, %v260, 0
  %v266 = vsel %vm46, %v261, 0
  %268 = vmatprep.subr.bf16.mxu0 0
  %269 = vmatpush1.bf16.msra.mxu0 %v42
  %270 = vmatprep.subr.bf16.mxu0 0
  %271 = vmatpush1.bf16.msra.mxu0 %v43
  %272 = vmatprep.subr.bf16.mxu0 0
  %273 = vmatpush1.bf16.msra.mxu0 0
  %274 = vmatprep.subr.bf16.mxu0 0
  %275 = vmatpush1.bf16.msra.mxu0 0
  %276 = vmatprep.subr.bf16.mxu0 0
  %277 = vmatpush1.bf16.msra.mxu0 0
  %278 = vmatprep.subr.bf16.mxu0 0
  %279 = vmatpush1.bf16.msra.mxu0 0
  %280 = vmatprep.subr.bf16.mxu0 0
  %281 = vmatpush1.bf16.msra.mxu0 0
  %282 = vmatprep.subr.bf16.mxu0 0
  %283 = vmatpush1.bf16.msra.mxu0 0
  %284 = vmatprep.subr.bf16.mxu0 0
  %285 = vmatpush1.bf16.msra.mxu0 0
  %286 = vmatprep.subr.bf16.mxu0 0
  %287 = vmatpush1.bf16.msra.mxu0 0
  %288 = vmatprep.subr.bf16.mxu0 0
  %289 = vmatpush1.bf16.msra.mxu0 0
  %290 = vmatprep.subr.bf16.mxu0 0
  %291 = vmatpush1.bf16.msra.mxu0 0
  %292 = vmatprep.subr.bf16.mxu0 0
  %293 = vmatpush1.bf16.msra.mxu0 0
  %294 = vmatprep.subr.bf16.mxu0 0
  %295 = vmatpush1.bf16.msra.mxu0 0
  %296 = vmatprep.subr.bf16.mxu0 0
  %297 = vmatpush1.bf16.msra.mxu0 0
  %298 = vmatprep.subr.bf16.mxu0 0
  %299 = vmatpush1.bf16.msra.mxu0 0
  %300 = vmatprep.mubr.bf16.mxu0 0
  %301 = vmatmul.mubr.bf16.gmra.mrb[0].mxu0 %v263
  %v302 = vpop.f32.mrb[0].mxu0
  %v303 = vadd.f32 0.0, %v302
  %v304 = vpop.f32.mrb[0].mxu0
  %v305 = vpop.f32.mrb[0].mxu0
  %v306 = vadd.f32 0.0, %v305
  %v307 = vpop.f32.mrb[0].mxu0
  %308 = vmatprep.mubr.bf16.mxu0 0
  %309 = vmatmul.mubr.bf16.gmra.mrb[0].mxu0 %v266
  %v310 = vpop.f32.mrb[0].mxu0
  %v311 = vadd.f32 0.0, %v310
  %v312 = vpop.f32.mrb[0].mxu0
  %v313 = vpop.f32.mrb[0].mxu0
  %v314 = vpop.f32.mrb[0].mxu0
  %315 = vdwg.mxu0
  %v316 = vmax.f32 %v303, 0.0
  %v317 = vmax.f32 %v306, 0.0
  %v318 = vmax.f32 %v311, 0.0
  %v319 = vpack.c.bf16 %v317, %v316
  %v320 = vpack.c.bf16 %v318, %v318
  %v322 = vsel %vm130, %v319, 0
  %v325 = vsel %vm130, %v320, 0
  %327 = vmatprep.subr.bf16.mxu0 0
  %328 = vmatpush1.bf16.msra.mxu0 %v122
  %329 = vmatprep.subr.bf16.mxu0 0
  %330 = vmatpush1.bf16.msra.mxu0 %v123
  %331 = vmatprep.subr.bf16.mxu0 0
  %332 = vmatpush1.bf16.msra.mxu0 %v124
  %333 = vmatprep.subr.bf16.mxu0 0
  %334 = vmatpush1.bf16.msra.mxu0 %v125
  %335 = vmatprep.subr.bf16.mxu0 0
  %336 = vmatpush1.bf16.msra.mxu0 0
  %337 = vmatprep.subr.bf16.mxu0 0
  %338 = vmatpush1.bf16.msra.mxu0 0
  %339 = vmatprep.subr.bf16.mxu0 0
  %340 = vmatpush1.bf16.msra.mxu0 0
  %341 = vmatprep.subr.bf16.mxu0 0
  %342 = vmatpush1.bf16.msra.mxu0 0
  %343 = vmatprep.subr.bf16.mxu0 0
  %344 = vmatpush1.bf16.msra.mxu0 0
  %345 = vmatprep.subr.bf16.mxu0 0
  %346 = vmatpush1.bf16.msra.mxu0 0
  %347 = vmatprep.subr.bf16.mxu0 0
  %348 = vmatpush1.bf16.msra.mxu0 0
  %349 = vmatprep.subr.bf16.mxu0 0
  %350 = vmatpush1.bf16.msra.mxu0 0
  %351 = vmatprep.subr.bf16.mxu0 0
  %352 = vmatpush1.bf16.msra.mxu0 0
  %353 = vmatprep.subr.bf16.mxu0 0
  %354 = vmatpush1.bf16.msra.mxu0 0
  %355 = vmatprep.subr.bf16.mxu0 0
  %356 = vmatpush1.bf16.msra.mxu0 0
  %357 = vmatprep.subr.bf16.mxu0 0
  %358 = vmatpush1.bf16.msra.mxu0 0
  %359 = vmatprep.mubr.bf16.mxu0 0
  %360 = vmatmul.mubr.bf16.gmra.mrb[0].mxu0 %v322
  %v361 = vpop.f32.mrb[0].mxu0
  %v362 = vadd.f32 0.0, %v361
  %v363 = vpop.f32.mrb[0].mxu0
  %v364 = vpop.f32.mrb[0].mxu0
  %v365 = vadd.f32 0.0, %v364
  %v366 = vpop.f32.mrb[0].mxu0
  %367 = vmatprep.mubr.bf16.mxu0 0
  %368 = vmatmul.mubr.bf16.gmra.mrb[0].mxu0 %v325
  %v369 = vpop.f32.mrb[0].mxu0
  %v370 = vadd.f32 0.0, %v369
  %v371 = vpop.f32.mrb[0].mxu0
  %v372 = vpop.f32.mrb[0].mxu0
  %v373 = vpop.f32.mrb[0].mxu0
  %374 = vdwg.mxu0
  %v375 = vadd.f32 %v257, %v362
  %v376 = vadd.f32 %v258, %v365
  %v377 = vadd.f32 %v259, %v370
  %v381 = vrot.slane %v375, 7
  %v382 = vrot.slane %v376, 7
  %v383 = vsel %vm191, %v381, %v382
  %v384 = vrot.slane %v377, 7
  %v385 = vsel %vm191, %v382, %v384
  %v389 = vsel %vm191, %v375, %v381
  %v390 = vrot.slane %v375, 1
  %v391 = vrot.slane %v376, 1
  %v392 = vsel %vm201, %v390, %v391
  %v393 = vrot.slane %v377, 1
  %v394 = vsel %vm201, %v391, %v393
  %v398 = vsel %vm201, %v393, %v377
  %v399 = vadd.f32 %v375, %v389
  %v400 = vadd.f32 %v376, %v383
  %v401 = vadd.f32 %v377, %v385
  %v402 = vadd.f32 %v399, %v392
  %v403 = vadd.f32 %v400, %v394
  %v404 = vadd.f32 %v401, %v398
  %v405 = vrot.slane %v375, 6
  %v406 = vrot.slane %v376, 6
  %v407 = vsel %vm217, %v405, %v406
  %v408 = vrot.slane %v377, 6
  %v409 = vsel %vm217, %v406, %v408
  %v413 = vsel %vm217, %v389, %v405
  %v414 = vrot.slane %v375, 2
  %v415 = vrot.slane %v376, 2
  %v416 = vsel %vm227, %v414, %v415
  %v417 = vrot.slane %v377, 2
  %v418 = vsel %vm227, %v415, %v417
  %v422 = vsel %vm227, %v417, %v393
  %v423 = vsel %vm201, %v422, %v377
  %v424 = vadd.f32 %v402, %v413
  %v425 = vadd.f32 %v403, %v407
  %v426 = vadd.f32 %v404, %v409
  %v427 = vadd.f32 %v424, %v416
  %v428 = vadd.f32 %v425, %v418
  %v429 = vadd.f32 %v426, %v423
  %v430 = vmul.f32 %v427, 0.2
  %v431 = vmul.f32 %v428, 0.2
  %v432 = vmul.f32 %v429, 0.2
  %v433 = vsub.f32 %v375, %v430
  %v434 = vsub.f32 %v376, %v431
  %v435 = vsub.f32 %v377, %v432
  %s436 = scalar_lea.vmem %s3, 24
  %437 = vst.msk [vmem:[%s436] sm:$0xff] %vm46, %v433
  %438 = vst.msk [vmem:[%s436 + $0x8] sm:$0xff] %vm46, %v434
  %439 = vst.msk [vmem:[%s436 + $0x10] sm:$0xff] %vm46, %v435
  %s440 = scalar_lea.vmem %s4, 24
  %441 = vst.msk [vmem:[%s440] sm:$0xff] %vm46, %v430
  %442 = vst.msk [vmem:[%s440 + $0x8] sm:$0xff] %vm46, %v431
  %443 = vst.msk [vmem:[%s440 + $0x10] sm:$0xff] %vm46, %v432
  // Predicated region
  $region14: #{model_forward.45} parent=0 // pred_check
    _
  $region15: #{model_forward.45} parent=0 // pred_check_branch
    %445 = sbr.rel (0) target = $region17
  $region16: #{model_forward.45} parent=0 // pred_region
    _
  $region17: #{model_forward.45} parent=0 // pred_fallthru
    _
  // Predicated region
  $region18: #{model_forward.45} parent=0 // pred_check
    _
  $region19: #{model_forward.45} parent=0 // pred_check_branch
    %447 = sbr.rel (0) target = $region21
  $region20: #{model_forward.45} parent=0 // pred_region
    _
  $region21: #{model_forward.45} parent=0 // pred_fallthru
    _
  // Predicated region
  $region22: #{model_forward.45} parent=0 // pred_check
    _
  $region23: #{model_forward.45} parent=0 // pred_check_branch
    %449 = sbr.rel (0) target = $region25
  $region24: #{model_forward.45} parent=0 // pred_region
    _
  $region25: #{model_forward.45} parent=0 // pred_fallthru
    _
  // Predicated region
  $region26: #{model_forward.45} parent=0 // pred_check
    _
  $region27: #{model_forward.45} parent=0 // pred_check_branch
    %451 = sbr.rel (0) target = $region29
  $region28: #{model_forward.45} parent=0 // pred_region
    _
  $region29: #{model_forward.45} parent=0 // pred_fallthru
    _

// kernel: model_forward.46
$region0: #{model_forward.46}
  #allocation0 [shape = 'u32[]', space=smem, size = 0x4, offset = 0x4, fixed_abs, tag = 'smem constant byte address 0x4 - core index']
  #allocation1 [shape = 'u32[144,128]{1,0:T(1,128)}', space=vmem, size = 0x12000, scoped, tag = 'internal scratch']
  %s0 = inlined_call_operand.vmem [shape: f32[2,24,32], index: 0, kind: input, shape index: {}]
  %s1 = inlined_call_operand.vmem [shape: f32[2,24,32], index: 1, kind: input, shape index: {}]
  %s2 = inlined_call_operand.vmem [shape: f32[2,24,32], index: 2, kind: input, shape index: {}]
  %s3 = inlined_call_operand.vmem [shape: bf16[32,4], index: 3, kind: input, shape index: {}]
  %s4 = inlined_call_operand.vmem [shape: bf16[32,4], index: 4, kind: input, shape index: {}]
  %s5 = inlined_call_operand.vmem [shape: bf16[32,4], index: 5, kind: input, shape index: {}]
  %s6 = inlined_call_operand.vmem [shape: f32[2,24,4], index: 6, kind: output, shape index: {}]
  %s7 = sld [smem:[#allocation0]]
  $region34: #{model_forward.46} parent=0
    _
  %s9 = ssub.s32 1, %s7
  %s10 = scalar_select 0, %s9, %s7
  // Predicated region
  $region2: #{model_forward.46} parent=0 // pred_check
    _
  $region3: #{model_forward.46} parent=0 // pred_check_branch
    %12 = sbr.rel (0) target = $region5
  $region4: #{model_forward.46} parent=0 // pred_region
    _
  $region5: #{model_forward.46} parent=0 // pred_fallthru
    _
  // Predicated region
  $region6: #{model_forward.46} parent=0 // pred_check
    _
  $region7: #{model_forward.46} parent=0 // pred_check_branch
    %14 = sbr.rel (0) target = $region9
  $region8: #{model_forward.46} parent=0 // pred_region
    _
  $region9: #{model_forward.46} parent=0 // pred_fallthru
    _
  // Predicated region
  $region10: #{model_forward.46} parent=0 // pred_check
    _
  $region11: #{model_forward.46} parent=0 // pred_check_branch
    %16 = sbr.rel (0) target = $region13
  $region12: #{model_forward.46} parent=0 // pred_region
    _
  $region13: #{model_forward.46} parent=0 // pred_fallthru
    _
  // Predicated region
  $region14: #{model_forward.46} parent=0 // pred_check
    _
  $region15: #{model_forward.46} parent=0 // pred_check_branch
    %18 = sbr.rel (0) target = $region17
  $region16: #{model_forward.46} parent=0 // pred_region
    _
  $region17: #{model_forward.46} parent=0 // pred_fallthru
    _
  // Predicated region
  $region18: #{model_forward.46} parent=0 // pred_check
    _
  $region19: #{model_forward.46} parent=0 // pred_check_branch
    %20 = sbr.rel (0) target = $region21
  $region20: #{model_forward.46} parent=0 // pred_region
    _
  $region21: #{model_forward.46} parent=0 // pred_fallthru
    _
  // Predicated region
  $region22: #{model_forward.46} parent=0 // pred_check
    _
  $region23: #{model_forward.46} parent=0 // pred_check_branch
    %22 = sbr.rel (0) target = $region25
  $region24: #{model_forward.46} parent=0 // pred_region
    _
  $region25: #{model_forward.46} parent=0 // pred_fallthru
    _
  %v24 = vld [vmem:[%s3] sm:$0xf]
  %v25 = vld [vmem:[%s3 + $0x4] sm:$0xf]
  %v26 = vld [vmem:[%s3 + $0x8] sm:$0xf]
  %v27 = vld [vmem:[%s3 + $0xc] sm:$0xf]
  %v28 = vld [vmem:[%s4] sm:$0xf]
  %v29 = vld [vmem:[%s4 + $0x4] sm:$0xf]
  %v30 = vld [vmem:[%s4 + $0x8] sm:$0xf]
  %v31 = vld [vmem:[%s4 + $0xc] sm:$0xf]
  %v32 = vld [vmem:[%s5] sm:$0xf]
  %v33 = vld [vmem:[%s5 + $0x4] sm:$0xf]
  %v34 = vld [vmem:[%s5 + $0x8] sm:$0xf]
  %v35 = vld [vmem:[%s5 + $0xc] sm:$0xf]
  %v36 = vld [vmem:[%s0] sm:$0xff]
  %v37 = vld [vmem:[%s0 + $0x8] sm:$0xff]
  %v38 = vld [vmem:[%s0 + $0x10] sm:$0xff]
  %v39 = vld [vmem:[%s1] sm:$0xff]
  %v40 = vld [vmem:[%s1 + $0x8] sm:$0xff]
  %v41 = vld [vmem:[%s1 + $0x10] sm:$0xff]
  %v42 = vadd.f32 %v36, %v39
  %v43 = vadd.f32 %v37, %v40
  %v44 = vadd.f32 %v38, %v41
  %v45 = vld [vmem:[%s2] sm:$0xff]
  %v46 = vld [vmem:[%s2 + $0x8] sm:$0xff]
  %v47 = vld [vmem:[%s2 + $0x10] sm:$0xff]
  %v48 = vadd.f32 %v42, %v45
  %v49 = vadd.f32 %v43, %v46
  %v50 = vadd.f32 %v44, %v47
  %v52 = vrot.slane %v50, 7
  %vm56 = vcmask 1040384
  %v57 = vrot.slane %v48, 7
  %v58 = vrot.slane %v49, 7
  %v59 = vsel %vm56, %v57, %v58
  %v60 = vsel %vm56, %v58, %v52
  %v64 = vsel %vm56, %v52, %v57
  %v65 = vpack.c.bf16 %v59, %v64
  %v66 = vpack.c.bf16 %v60, %v60
  %v67 = vpack.c.bf16 %v49, %v48
  %v68 = vpack.c.bf16 %v50, %v50
  %v73 = vunpack.c.l.b16 %v28
  %v74 = vunpack.c.l.b16 %v29
  %v75 = vunpack.c.l.b16 %v30
  %v76 = vunpack.c.l.b16 %v31
  %v77 = vpack.c.b16 %v74, %v73
  %v78 = vpack.c.b16 %v76, %v75
  %vm81 = vcmask 261120
  %v83 = vsel %vm81, %v67, 0
  %v86 = vsel %vm81, %v68, 0
  %88 = vmatprep.subr.bf16.mxu0 0
  %89 = vmatpush1.bf16.msra.mxu0 %v77
  %90 = vmatprep.subr.bf16.mxu0 0
  %91 = vmatpush1.bf16.msra.mxu0 %v78
  %92 = vmatprep.subr.bf16.mxu0 0
  %93 = vmatpush1.bf16.msra.mxu0 0
  %94 = vmatprep.subr.bf16.mxu0 0
  %95 = vmatpush1.bf16.msra.mxu0 0
  %96 = vmatprep.subr.bf16.mxu0 0
  %97 = vmatpush1.bf16.msra.mxu0 0
  %98 = vmatprep.subr.bf16.mxu0 0
  %99 = vmatpush1.bf16.msra.mxu0 0
  %100 = vmatprep.subr.bf16.mxu0 0
  %101 = vmatpush1.bf16.msra.mxu0 0
  %102 = vmatprep.subr.bf16.mxu0 0
  %103 = vmatpush1.bf16.msra.mxu0 0
  %104 = vmatprep.subr.bf16.mxu0 0
  %105 = vmatpush1.bf16.msra.mxu0 0
  %106 = vmatprep.subr.bf16.mxu0 0
  %107 = vmatpush1.bf16.msra.mxu0 0
  %108 = vmatprep.subr.bf16.mxu0 0
  %109 = vmatpush1.bf16.msra.mxu0 0
  %110 = vmatprep.subr.bf16.mxu0 0
  %111 = vmatpush1.bf16.msra.mxu0 0
  %112 = vmatprep.subr.bf16.mxu0 0
  %113 = vmatpush1.bf16.msra.mxu0 0
  %114 = vmatprep.subr.bf16.mxu0 0
  %115 = vmatpush1.bf16.msra.mxu0 0
  %116 = vmatprep.subr.bf16.mxu0 0
  %117 = vmatpush1.bf16.msra.mxu0 0
  %118 = vmatprep.subr.bf16.mxu0 0
  %119 = vmatpush1.bf16.msra.mxu0 0
  %120 = vmatprep.mubr.bf16.mxu0 0
  %121 = vmatmul.mubr.bf16.gmra.mrb[0].mxu0 %v83
  %v122 = vpop.f32.mrb[0].mxu0
  %v123 = vadd.f32 0.0, %v122
  %v124 = vpop.f32.mrb[0].mxu0
  %v125 = vpop.f32.mrb[0].mxu0
  %v126 = vadd.f32 0.0, %v125
  %v127 = vpop.f32.mrb[0].mxu0
  %128 = vmatprep.mubr.bf16.mxu0 0
  %129 = vmatmul.mubr.bf16.gmra.mrb[0].mxu0 %v86
  %v130 = vpop.f32.mrb[0].mxu0
  %v131 = vadd.f32 0.0, %v130
  %v132 = vpop.f32.mrb[0].mxu0
  %v133 = vpop.f32.mrb[0].mxu0
  %v134 = vpop.f32.mrb[0].mxu0
  %135 = vdwg.mxu0
  %v140 = vunpack.c.l.b16 %v24
  %v141 = vunpack.c.l.b16 %v25
  %v142 = vunpack.c.l.b16 %v26
  %v143 = vunpack.c.l.b16 %v27
  %v144 = vpack.c.b16 %v141, %v140
  %v145 = vpack.c.b16 %v143, %v142
  %v149 = vsel %vm81, %v65, 0
  %v152 = vsel %vm81, %v66, 0
  %154 = vmatprep.subr.bf16.mxu0 0
  %155 = vmatpush1.bf16.msra.mxu0 %v144
  %156 = vmatprep.subr.bf16.mxu0 0
  %157 = vmatpush1.bf16.msra.mxu0 %v145
  %158 = vmatprep.subr.bf16.mxu0 0
  %159 = vmatpush1.bf16.msra.mxu0 0
  %160 = vmatprep.subr.bf16.mxu0 0
  %161 = vmatpush1.bf16.msra.mxu0 0
  %162 = vmatprep.subr.bf16.mxu0 0
  %163 = vmatpush1.bf16.msra.mxu0 0
  %164 = vmatprep.subr.bf16.mxu0 0
  %165 = vmatpush1.bf16.msra.mxu0 0
  %166 = vmatprep.subr.bf16.mxu0 0
  %167 = vmatpush1.bf16.msra.mxu0 0
  %168 = vmatprep.subr.bf16.mxu0 0
  %169 = vmatpush1.bf16.msra.mxu0 0
  %170 = vmatprep.subr.bf16.mxu0 0
  %171 = vmatpush1.bf16.msra.mxu0 0
  %172 = vmatprep.subr.bf16.mxu0 0
  %173 = vmatpush1.bf16.msra.mxu0 0
  %174 = vmatprep.subr.bf16.mxu0 0
  %175 = vmatpush1.bf16.msra.mxu0 0
  %176 = vmatprep.subr.bf16.mxu0 0
  %177 = vmatpush1.bf16.msra.mxu0 0
  %178 = vmatprep.subr.bf16.mxu0 0
  %179 = vmatpush1.bf16.msra.mxu0 0
  %180 = vmatprep.subr.bf16.mxu0 0
  %181 = vmatpush1.bf16.msra.mxu0 0
  %182 = vmatprep.subr.bf16.mxu0 0
  %183 = vmatpush1.bf16.msra.mxu0 0
  %184 = vmatprep.subr.bf16.mxu0 0
  %185 = vmatpush1.bf16.msra.mxu0 0
  %186 = vmatprep.mubr.bf16.mxu0 0
  %187 = vmatmul.mubr.bf16.gmra.mrb[0].mxu0 %v149
  %v188 = vpop.f32.mrb[0].mxu0
  %v189 = vadd.f32 %v123, %v188
  %v190 = vpop.f32.mrb[0].mxu0
  %v191 = vpop.f32.mrb[0].mxu0
  %v192 = vadd.f32 %v126, %v191
  %v193 = vpop.f32.mrb[0].mxu0
  %194 = vmatprep.mubr.bf16.mxu0 0
  %195 = vmatmul.mubr.bf16.gmra.mrb[0].mxu0 %v152
  %v196 = vpop.f32.mrb[0].mxu0
  %v197 = vadd.f32 %v131, %v196
  %v198 = vpop.f32.mrb[0].mxu0
  %v199 = vpop.f32.mrb[0].mxu0
  %v200 = vpop.f32.mrb[0].mxu0
  %201 = vdwg.mxu0
  %vm202 = vcmask 1046528
  %v203 = vrot.slane %v48, 1
  %v204 = vrot.slane %v49, 1
  %v205 = vsel %vm202, %v203, %v204
  %v206 = vrot.slane %v50, 1
  %v207 = vsel %vm202, %v204, %v206
  %v212 = vsel %vm202, %v206, %v203
  %v213 = vpack.c.bf16 %v207, %v205
  %v214 = vpack.c.bf16 %v212, %v212
  %v219 = vunpack.c.l.b16 %v32
  %v220 = vunpack.c.l.b16 %v33
  %v221 = vunpack.c.l.b16 %v34
  %v222 = vunpack.c.l.b16 %v35
  %v223 = vpack.c.b16 %v220, %v219
  %v224 = vpack.c.b16 %v222, %v221
  %v228 = vsel %vm81, %v213, 0
  %v231 = vsel %vm81, %v214, 0
  %233 = vmatprep.subr.bf16.mxu0 0
  %234 = vmatpush1.bf16.msra.mxu0 %v223
  %235 = vmatprep.subr.bf16.mxu0 0
  %236 = vmatpush1.bf16.msra.mxu0 %v224
  %237 = vmatprep.subr.bf16.mxu0 0
  %238 = vmatpush1.bf16.msra.mxu0 0
  %239 = vmatprep.subr.bf16.mxu0 0
  %240 = vmatpush1.bf16.msra.mxu0 0
  %241 = vmatprep.subr.bf16.mxu0 0
  %242 = vmatpush1.bf16.msra.mxu0 0
  %243 = vmatprep.subr.bf16.mxu0 0
  %244 = vmatpush1.bf16.msra.mxu0 0
  %245 = vmatprep.subr.bf16.mxu0 0
  %246 = vmatpush1.bf16.msra.mxu0 0
  %247 = vmatprep.subr.bf16.mxu0 0
  %248 = vmatpush1.bf16.msra.mxu0 0
  %249 = vmatprep.subr.bf16.mxu0 0
  %250 = vmatpush1.bf16.msra.mxu0 0
  %251 = vmatprep.subr.bf16.mxu0 0
  %252 = vmatpush1.bf16.msra.mxu0 0
  %253 = vmatprep.subr.bf16.mxu0 0
  %254 = vmatpush1.bf16.msra.mxu0 0
  %255 = vmatprep.subr.bf16.mxu0 0
  %256 = vmatpush1.bf16.msra.mxu0 0
  %257 = vmatprep.subr.bf16.mxu0 0
  %258 = vmatpush1.bf16.msra.mxu0 0
  %259 = vmatprep.subr.bf16.mxu0 0
  %260 = vmatpush1.bf16.msra.mxu0 0
  %261 = vmatprep.subr.bf16.mxu0 0
  %262 = vmatpush1.bf16.msra.mxu0 0
  %263 = vmatprep.subr.bf16.mxu0 0
  %264 = vmatpush1.bf16.msra.mxu0 0
  %265 = vmatprep.mubr.bf16.mxu0 0
  %266 = vmatmul.mubr.bf16.gmra.mrb[0].mxu0 %v228
  %v267 = vpop.f32.mrb[0].mxu0
  %v268 = vadd.f32 0.0, %v267
  %v269 = vpop.f32.mrb[0].mxu0
  %v270 = vpop.f32.mrb[0].mxu0
  %v271 = vadd.f32 0.0, %v270
  %v272 = vpop.f32.mrb[0].mxu0
  %273 = vmatprep.mubr.bf16.mxu0 0
  %274 = vmatmul.mubr.bf16.gmra.mrb[0].mxu0 %v231
  %v275 = vpop.f32.mrb[0].mxu0
  %v276 = vadd.f32 0.0, %v275
  %v277 = vpop.f32.mrb[0].mxu0
  %v278 = vpop.f32.mrb[0].mxu0
  %v279 = vpop.f32.mrb[0].mxu0
  %280 = vdwg.mxu0
  %v281 = vadd.f32 %v189, %v268
  %v282 = vadd.f32 %v192, %v271
  %v283 = vadd.f32 %v197, %v276
  %vm284 = vcmask 31744
  %285 = vst.msk [vmem:[%s6] sm:$0xff] %vm284, %v281
  %286 = vst.msk [vmem:[%s6 + $0x8] sm:$0xff] %vm284, %v282
  %287 = vst.msk [vmem:[%s6 + $0x10] sm:$0xff] %vm284, %v283
  %s288 = scalar_lea.vmem %s0, 24
  %v289 = vld [vmem:[%s288] sm:$0xff]
  %v290 = vld [vmem:[%s288 + $0x8] sm:$0xff]
  %v291 = vld [vmem:[%s288 + $0x10] sm:$0xff]
  %s292 = scalar_lea.vmem %s1, 24
  %v293 = vld [vmem:[%s292] sm:$0xff]
  %v294 = vld [vmem:[%s292 + $0x8] sm:$0xff]
  %v295 = vld [vmem:[%s292 + $0x10] sm:$0xff]
  %v296 = vadd.f32 %v289, %v293
  %v297 = vadd.f32 %v290, %v294
  %v298 = vadd.f32 %v291, %v295
  %s299 = scalar_lea.vmem %s2, 24
  %v300 = vld [vmem:[%s299] sm:$0xff]
  %v301 = vld [vmem:[%s299 + $0x8] sm:$0xff]
  %v302 = vld [vmem:[%s299 + $0x10] sm:$0xff]
  %v303 = vadd.f32 %v296, %v300
  %v304 = vadd.f32 %v297, %v301
  %v305 = vadd.f32 %v298, %v302
  %v307 = vrot.slane %v305, 7
  %v311 = vrot.slane %v303, 7
  %v312 = vrot.slane %v304, 7
  %v313 = vsel %vm56, %v311, %v312
  %v314 = vsel %vm56, %v312, %v307
  %v318 = vsel %vm56, %v307, %v311
  %v319 = vpack.c.bf16 %v313, %v318
  %v320 = vpack.c.bf16 %v314, %v314
  %v321 = vpack.c.bf16 %v304, %v303
  %v322 = vpack.c.bf16 %v305, %v305
  %v324 = vsel %vm81, %v321, 0
  %v327 = vsel %vm81, %v322, 0
  %329 = vmatprep.subr.bf16.mxu0 0
  %330 = vmatpush1.bf16.msra.mxu0 %v77
  %331 = vmatprep.subr.bf16.mxu0 0
  %332 = vmatpush1.bf16.msra.mxu0 %v78
  %333 = vmatprep.subr.bf16.mxu0 0
  %334 = vmatpush1.bf16.msra.mxu0 0
  %335 = vmatprep.subr.bf16.mxu0 0
  %336 = vmatpush1.bf16.msra.mxu0 0
  %337 = vmatprep.subr.bf16.mxu0 0
  %338 = vmatpush1.bf16.msra.mxu0 0
  %339 = vmatprep.subr.bf16.mxu0 0
  %340 = vmatpush1.bf16.msra.mxu0 0
  %341 = vmatprep.subr.bf16.mxu0 0
  %342 = vmatpush1.bf16.msra.mxu0 0
  %343 = vmatprep.subr.bf16.mxu0 0
  %344 = vmatpush1.bf16.msra.mxu0 0
  %345 = vmatprep.subr.bf16.mxu0 0
  %346 = vmatpush1.bf16.msra.mxu0 0
  %347 = vmatprep.subr.bf16.mxu0 0
  %348 = vmatpush1.bf16.msra.mxu0 0
  %349 = vmatprep.subr.bf16.mxu0 0
  %350 = vmatpush1.bf16.msra.mxu0 0
  %351 = vmatprep.subr.bf16.mxu0 0
  %352 = vmatpush1.bf16.msra.mxu0 0
  %353 = vmatprep.subr.bf16.mxu0 0
  %354 = vmatpush1.bf16.msra.mxu0 0
  %355 = vmatprep.subr.bf16.mxu0 0
  %356 = vmatpush1.bf16.msra.mxu0 0
  %357 = vmatprep.subr.bf16.mxu0 0
  %358 = vmatpush1.bf16.msra.mxu0 0
  %359 = vmatprep.subr.bf16.mxu0 0
  %360 = vmatpush1.bf16.msra.mxu0 0
  %361 = vmatprep.mubr.bf16.mxu0 0
  %362 = vmatmul.mubr.bf16.gmra.mrb[0].mxu0 %v324
  %v363 = vpop.f32.mrb[0].mxu0
  %v364 = vadd.f32 0.0, %v363
  %v365 = vpop.f32.mrb[0].mxu0
  %v366 = vpop.f32.mrb[0].mxu0
  %v367 = vadd.f32 0.0, %v366
  %v368 = vpop.f32.mrb[0].mxu0
  %369 = vmatprep.mubr.bf16.mxu0 0
  %370 = vmatmul.mubr.bf16.gmra.mrb[0].mxu0 %v327
  %v371 = vpop.f32.mrb[0].mxu0
  %v372 = vadd.f32 0.0, %v371
  %v373 = vpop.f32.mrb[0].mxu0
  %v374 = vpop.f32.mrb[0].mxu0
  %v375 = vpop.f32.mrb[0].mxu0
  %376 = vdwg.mxu0
  %v378 = vsel %vm81, %v319, 0
  %v381 = vsel %vm81, %v320, 0
  %383 = vmatprep.subr.bf16.mxu0 0
  %384 = vmatpush1.bf16.msra.mxu0 %v144
  %385 = vmatprep.subr.bf16.mxu0 0
  %386 = vmatpush1.bf16.msra.mxu0 %v145
  %387 = vmatprep.subr.bf16.mxu0 0
  %388 = vmatpush1.bf16.msra.mxu0 0
  %389 = vmatprep.subr.bf16.mxu0 0
  %390 = vmatpush1.bf16.msra.mxu0 0
  %391 = vmatprep.subr.bf16.mxu0 0
  %392 = vmatpush1.bf16.msra.mxu0 0
  %393 = vmatprep.subr.bf16.mxu0 0
  %394 = vmatpush1.bf16.msra.mxu0 0
  %395 = vmatprep.subr.bf16.mxu0 0
  %396 = vmatpush1.bf16.msra.mxu0 0
  %397 = vmatprep.subr.bf16.mxu0 0
  %398 = vmatpush1.bf16.msra.mxu0 0
  %399 = vmatprep.subr.bf16.mxu0 0
  %400 = vmatpush1.bf16.msra.mxu0 0
  %401 = vmatprep.subr.bf16.mxu0 0
  %402 = vmatpush1.bf16.msra.mxu0 0
  %403 = vmatprep.subr.bf16.mxu0 0
  %404 = vmatpush1.bf16.msra.mxu0 0
  %405 = vmatprep.subr.bf16.mxu0 0
  %406 = vmatpush1.bf16.msra.mxu0 0
  %407 = vmatprep.subr.bf16.mxu0 0
  %408 = vmatpush1.bf16.msra.mxu0 0
  %409 = vmatprep.subr.bf16.mxu0 0
  %410 = vmatpush1.bf16.msra.mxu0 0
  %411 = vmatprep.subr.bf16.mxu0 0
  %412 = vmatpush1.bf16.msra.mxu0 0
  %413 = vmatprep.subr.bf16.mxu0 0
  %414 = vmatpush1.bf16.msra.mxu0 0
  %415 = vmatprep.mubr.bf16.mxu0 0
  %416 = vmatmul.mubr.bf16.gmra.mrb[0].mxu0 %v378
  %v417 = vpop.f32.mrb[0].mxu0
  %v418 = vadd.f32 %v364, %v417
  %v419 = vpop.f32.mrb[0].mxu0
  %v420 = vpop.f32.mrb[0].mxu0
  %v421 = vadd.f32 %v367, %v420
  %v422 = vpop.f32.mrb[0].mxu0
  %423 = vmatprep.mubr.bf16.mxu0 0
  %424 = vmatmul.mubr.bf16.gmra.mrb[0].mxu0 %v381
  %v425 = vpop.f32.mrb[0].mxu0
  %v426 = vadd.f32 %v372, %v425
  %v427 = vpop.f32.mrb[0].mxu0
  %v428 = vpop.f32.mrb[0].mxu0
  %v429 = vpop.f32.mrb[0].mxu0
  %430 = vdwg.mxu0
  %v431 = vrot.slane %v303, 1
  %v432 = vrot.slane %v304, 1
  %v433 = vsel %vm202, %v431, %v432
  %v434 = vrot.slane %v305, 1
  %v435 = vsel %vm202, %v432, %v434
  %v440 = vsel %vm202, %v434, %v431
  %v441 = vpack.c.bf16 %v435, %v433
  %v442 = vpack.c.bf16 %v440, %v440
  %v444 = vsel %vm81, %v441, 0
  %v447 = vsel %vm81, %v442, 0
  %449 = vmatprep.subr.bf16.mxu0 0
  %450 = vmatpush1.bf16.msra.mxu0 %v223
  %451 = vmatprep.subr.bf16.mxu0 0
  %452 = vmatpush1.bf16.msra.mxu0 %v224
  %453 = vmatprep.subr.bf16.mxu0 0
  %454 = vmatpush1.bf16.msra.mxu0 0
  %455 = vmatprep.subr.bf16.mxu0 0
  %456 = vmatpush1.bf16.msra.mxu0 0
  %457 = vmatprep.subr.bf16.mxu0 0
  %458 = vmatpush1.bf16.msra.mxu0 0
  %459 = vmatprep.subr.bf16.mxu0 0
  %460 = vmatpush1.bf16.msra.mxu0 0
  %461 = vmatprep.subr.bf16.mxu0 0
  %462 = vmatpush1.bf16.msra.mxu0 0
  %463 = vmatprep.subr.bf16.mxu0 0
  %464 = vmatpush1.bf16.msra.mxu0 0
  %465 = vmatprep.subr.bf16.mxu0 0
  %466 = vmatpush1.bf16.msra.mxu0 0
  %467 = vmatprep.subr.bf16.mxu0 0
  %468 = vmatpush1.bf16.msra.mxu0 0
  %469 = vmatprep.subr.bf16.mxu0 0
  %470 = vmatpush1.bf16.msra.mxu0 0
  %471 = vmatprep.subr.bf16.mxu0 0
  %472 = vmatpush1.bf16.msra.mxu0 0
  %473 = vmatprep.subr.bf16.mxu0 0
  %474 = vmatpush1.bf16.msra.mxu0 0
  %475 = vmatprep.subr.bf16.mxu0 0
  %476 = vmatpush1.bf16.msra.mxu0 0
  %477 = vmatprep.subr.bf16.mxu0 0
  %478 = vmatpush1.bf16.msra.mxu0 0
  %479 = vmatprep.subr.bf16.mxu0 0
  %480 = vmatpush1.bf16.msra.mxu0 0
  %481 = vmatprep.mubr.bf16.mxu0 0
  %482 = vmatmul.mubr.bf16.gmra.mrb[0].mxu0 %v444
  %v483 = vpop.f32.mrb[0].mxu0
  %v484 = vadd.f32 0.0, %v483
  %v485 = vpop.f32.mrb[0].mxu0
  %v486 = vpop.f32.mrb[0].mxu0
  %v487 = vadd.f32 0.0, %v486
  %v488 = vpop.f32.mrb[0].mxu0
  %489 = vmatprep.mubr.bf16.mxu0 0
  %490 = vmatmul.mubr.bf16.gmra.mrb[0].mxu0 %v447
  %v491 = vpop.f32.mrb[0].mxu0
  %v492 = vadd.f32 0.0, %v491
  %v493 = vpop.f32.mrb[0].mxu0
  %v494 = vpop.f32.mrb[0].mxu0
  %v495 = vpop.f32.mrb[0].mxu0
  %496 = vdwg.mxu0
  %v497 = vadd.f32 %v418, %v484
  %v498 = vadd.f32 %v421, %v487
  %v499 = vadd.f32 %v426, %v492
  %s500 = scalar_lea.vmem %s6, 24
  %501 = vst.msk [vmem:[%s500] sm:$0xff] %vm284, %v497
  %502 = vst.msk [vmem:[%s500 + $0x8] sm:$0xff] %vm284, %v498
  %503 = vst.msk [vmem:[%s500 + $0x10] sm:$0xff] %vm284, %v499
  // Predicated region
  $region26: #{model_forward.46} parent=0 // pred_check
    _
  $region27: #{model_forward.46} parent=0 // pred_check_branch
    %505 = sbr.rel (0) target = $region29
  $region28: #{model_forward.46} parent=0 // pred_region
    _
  $region29: #{model_forward.46} parent=0 // pred_fallthru
    _
  // Predicated region
  $region30: #{model_forward.46} parent=0 // pred_check
    _
  $region31: #{model_forward.46} parent=0 // pred_check_branch
    %507 = sbr.rel (0) target = $region33
  $region32: #{model_forward.46} parent=0 // pred_region
    _
  $region33: #{model_forward.46} parent=0 // pred_fallthru
    _

// kernel: model_forward.47
$region0: #{model_forward.47}
  #allocation0 [shape = 'u32[]', space=smem, size = 0x4, offset = 0x4, fixed_abs, tag = 'smem constant byte address 0x4 - core index']
  #allocation1 [shape = 'u32[144,128]{1,0:T(1,128)}', space=vmem, size = 0x12000, scoped, tag = 'internal scratch']
  %s0 = inlined_call_operand.vmem [shape: f32[2,24,32], index: 0, kind: input, shape index: {}]
  %s1 = inlined_call_operand.vmem [shape: f32[1,32], index: 1, kind: input, shape index: {}]
  %s2 = inlined_call_operand.vmem [shape: f32[1,32], index: 2, kind: input, shape index: {}]
  %s3 = inlined_call_operand.vmem [shape: bf16[32,4], index: 3, kind: input, shape index: {}]
  %s4 = inlined_call_operand.vmem [shape: f32[2,24,4], index: 4, kind: output, shape index: {}]
  %s5 = sld [smem:[#allocation0]]
  $region26: #{model_forward.47} parent=0
    _
  %s7 = ssub.s32 1, %s5
  %s8 = scalar_select 0, %s7, %s5
  // Predicated region
  $region2: #{model_forward.47} parent=0 // pred_check
    _
  $region3: #{model_forward.47} parent=0 // pred_check_branch
    %10 = sbr.rel (0) target = $region5
  $region4: #{model_forward.47} parent=0 // pred_region
    _
  $region5: #{model_forward.47} parent=0 // pred_fallthru
    _
  // Predicated region
  $region6: #{model_forward.47} parent=0 // pred_check
    _
  $region7: #{model_forward.47} parent=0 // pred_check_branch
    %12 = sbr.rel (0) target = $region9
  $region8: #{model_forward.47} parent=0 // pred_region
    _
  $region9: #{model_forward.47} parent=0 // pred_fallthru
    _
  // Predicated region
  $region10: #{model_forward.47} parent=0 // pred_check
    _
  $region11: #{model_forward.47} parent=0 // pred_check_branch
    %14 = sbr.rel (0) target = $region13
  $region12: #{model_forward.47} parent=0 // pred_region
    _
  $region13: #{model_forward.47} parent=0 // pred_fallthru
    _
  // Predicated region
  $region14: #{model_forward.47} parent=0 // pred_check
    _
  $region15: #{model_forward.47} parent=0 // pred_check_branch
    %16 = sbr.rel (0) target = $region17
  $region16: #{model_forward.47} parent=0 // pred_region
    _
  $region17: #{model_forward.47} parent=0 // pred_fallthru
    _
  %v18 = vld [vmem:[%s1] sm:$0x1]
  %v19 = vld [vmem:[%s2] sm:$0x1]
  %v20 = vld [vmem:[%s3] sm:$0xf]
  %v21 = vld [vmem:[%s3 + $0x4] sm:$0xf]
  %v22 = vld [vmem:[%s3 + $0x8] sm:$0xf]
  %v23 = vld [vmem:[%s3 + $0xc] sm:$0xf]
  %v24 = vld [vmem:[%s0] sm:$0xff]
  %v25 = vld [vmem:[%s0 + $0x8] sm:$0xff]
  %v26 = vld [vmem:[%s0 + $0x10] sm:$0xff]
  %vm27 = vcmask 261120
  %v28 = vsel %vm27, %v24, 0.0
  %29 = vadd.xlane.f32.xlu0 %v28
  %v30 = vpop.xlane.xlu0 %29
  %v31 = vsel %vm27, %v25, 0.0
  %32 = vadd.xlane.f32.xlu0 %v31
  %v33 = vpop.xlane.xlu0 %32
  %v34 = vsel %vm27, %v26, 0.0
  %35 = vadd.xlane.f32.xlu0 %v34
  %v36 = vpop.xlane.xlu0 %35
  %v37 = vrcp.pop 32.0
  %v38 = vmul.f32 %v30, %v37
  %v39 = vmul.f32 %v33, %v37
  %v40 = vmul.f32 %v36, %v37
  %v41 = vsub.f32 %v24, %v38
  %v42 = vsub.f32 %v25, %v39
  %v43 = vsub.f32 %v26, %v40
  %v44 = vmul.f32 %v41, %v41
  %v45 = vmul.f32 %v42, %v42
  %v46 = vmul.f32 %v43, %v43
  %v47 = vsel %vm27, %v44, 0.0
  %48 = vadd.xlane.f32.xlu0 %v47
  %v49 = vpop.xlane.xlu0 %48
  %v50 = vsel %vm27, %v45, 0.0
  %51 = vadd.xlane.f32.xlu0 %v50
  %v52 = vpop.xlane.xlu0 %51
  %v53 = vsel %vm27, %v46, 0.0
  %54 = vadd.xlane.f32.xlu0 %v53
  %v55 = vpop.xlane.xlu0 %54
  %v56 = vmul.f32 %v49, %v37
  %v57 = vmul.f32 %v52, %v37
  %v58 = vmul.f32 %v55, %v37
  %v59 = vadd.f32 %v56, 1e-05
  %v60 = vadd.f32 %v57, 1e-05
  %v61 = vadd.f32 %v58, 1e-05
  %v62 = vrsqrt.pop %v59
  %v63 = vrsqrt.pop %v60
  %v64 = vrsqrt.pop %v61
  %v65 = vmul.f32 %v41, %v62
  %v66 = vmul.f32 %v42, %v63
  %v67 = vmul.f32 %v43, %v64
  %v69 = vlaneseq
  %v70 = vshrl.u32 %v69, 7
  %v71 = vsub.s32 0, %v70
  %v72 = vrot.slane %v18, %v71
  %v74 = vmul.f32 %v65, %v72
  %v75 = vmul.f32 %v66, %v72
  %v76 = vmul.f32 %v67, %v72
  %v78 = vlaneseq
  %v79 = vshrl.u32 %v78, 7
  %v80 = vsub.s32 0, %v79
  %v81 = vrot.slane %v19, %v80
  %v83 = vadd.f32 %v74, %v81
  %v84 = vadd.f32 %v75, %v81
  %v85 = vadd.f32 %v76, %v81
  %v86 = vsel %vm27, %v83, 0.0
  %v87 = vsel %vm27, %v84, 0.0
  %v88 = vadd.f32 %v86, %v87
  %v89 = vsel %vm27, %v85, 0.0
  %v90 = vadd.f32 %v88, %v89
  %v91 = vrot.slane %v90, 4
  %v92 = vadd.f32 %v90, %v91
  %v93 = vrot.slane %v92, 2
  %v94 = vadd.f32 %v92, %v93
  %v95 = vrot.slane %v94, 1
  %v96 = vadd.f32 %v94, %v95
  %v97 = vrcp.pop 24.0
  %v98 = vmul.f32 %v96, %v97
  %v99 = vsub.f32 %v83, %v98
  %v100 = vsub.f32 %v84, %v98
  %v101 = vsub.f32 %v85, %v98
  %v102 = vpack.c.bf16 %v100, %v99
  %v103 = vpack.c.bf16 %v101, %v101
  %v108 = vunpack.c.l.b16 %v20
  %v109 = vunpack.c.l.b16 %v21
  %v110 = vunpack.c.l.b16 %v22
  %v111 = vunpack.c.l.b16 %v23
  %v112 = vpack.c.b16 %v109, %v108
  %v113 = vpack.c.b16 %v111, %v110
  %v117 = vsel %vm27, %v102, 0
  %v120 = vsel %vm27, %v103, 0
  %122 = vmatprep.subr.bf16.mxu0 0
  %123 = vmatpush1.bf16.msra.mxu0 %v112
  %124 = vmatprep.subr.bf16.mxu0 0
  %125 = vmatpush1.bf16.msra.mxu0 %v113
  %126 = vmatprep.subr.bf16.mxu0 0
  %127 = vmatpush1.bf16.msra.mxu0 0
  %128 = vmatprep.subr.bf16.mxu0 0
  %129 = vmatpush1.bf16.msra.mxu0 0
  %130 = vmatprep.subr.bf16.mxu0 0
  %131 = vmatpush1.bf16.msra.mxu0 0
  %132 = vmatprep.subr.bf16.mxu0 0
  %133 = vmatpush1.bf16.msra.mxu0 0
  %134 = vmatprep.subr.bf16.mxu0 0
  %135 = vmatpush1.bf16.msra.mxu0 0
  %136 = vmatprep.subr.bf16.mxu0 0
  %137 = vmatpush1.bf16.msra.mxu0 0
  %138 = vmatprep.subr.bf16.mxu0 0
  %139 = vmatpush1.bf16.msra.mxu0 0
  %140 = vmatprep.subr.bf16.mxu0 0
  %141 = vmatpush1.bf16.msra.mxu0 0
  %142 = vmatprep.subr.bf16.mxu0 0
  %143 = vmatpush1.bf16.msra.mxu0 0
  %144 = vmatprep.subr.bf16.mxu0 0
  %145 = vmatpush1.bf16.msra.mxu0 0
  %146 = vmatprep.subr.bf16.mxu0 0
  %147 = vmatpush1.bf16.msra.mxu0 0
  %148 = vmatprep.subr.bf16.mxu0 0
  %149 = vmatpush1.bf16.msra.mxu0 0
  %150 = vmatprep.subr.bf16.mxu0 0
  %151 = vmatpush1.bf16.msra.mxu0 0
  %152 = vmatprep.subr.bf16.mxu0 0
  %153 = vmatpush1.bf16.msra.mxu0 0
  %154 = vmatprep.mubr.bf16.mxu0 0
  %155 = vmatmul.mubr.bf16.gmra.mrb[0].mxu0 %v117
  %v156 = vpop.f32.mrb[0].mxu0
  %v157 = vadd.f32 0.0, %v156
  %v158 = vpop.f32.mrb[0].mxu0
  %v159 = vpop.f32.mrb[0].mxu0
  %v160 = vadd.f32 0.0, %v159
  %v161 = vpop.f32.mrb[0].mxu0
  %162 = vmatprep.mubr.bf16.mxu0 0
  %163 = vmatmul.mubr.bf16.gmra.mrb[0].mxu0 %v120
  %v164 = vpop.f32.mrb[0].mxu0
  %v165 = vadd.f32 0.0, %v164
  %v166 = vpop.f32.mrb[0].mxu0
  %v167 = vpop.f32.mrb[0].mxu0
  %v168 = vpop.f32.mrb[0].mxu0
  %169 = vdwg.mxu0
  %vm170 = vcmask 31744
  %171 = vst.msk [vmem:[%s4] sm:$0xff] %vm170, %v157
  %172 = vst.msk [vmem:[%s4 + $0x8] sm:$0xff] %vm170, %v160
  %173 = vst.msk [vmem:[%s4 + $0x10] sm:$0xff] %vm170, %v165
  %s174 = scalar_lea.vmem %s0, 24
  %v175 = vld [vmem:[%s174] sm:$0xff]
  %v176 = vld [vmem:[%s174 + $0x8] sm:$0xff]
  %v177 = vld [vmem:[%s174 + $0x10] sm:$0xff]
  %v178 = vsel %vm27, %v175, 0.0
  %179 = vadd.xlane.f32.xlu0 %v178
  %v180 = vpop.xlane.xlu0 %179
  %v181 = vsel %vm27, %v176, 0.0
  %182 = vadd.xlane.f32.xlu0 %v181
  %v183 = vpop.xlane.xlu0 %182
  %v184 = vsel %vm27, %v177, 0.0
  %185 = vadd.xlane.f32.xlu0 %v184
  %v186 = vpop.xlane.xlu0 %185
  %v187 = vmul.f32 %v180, %v37
  %v188 = vmul.f32 %v183, %v37
  %v189 = vmul.f32 %v186, %v37
  %v190 = vsub.f32 %v175, %v187
  %v191 = vsub.f32 %v176, %v188
  %v192 = vsub.f32 %v177, %v189
  %v193 = vmul.f32 %v190, %v190
  %v194 = vmul.f32 %v191, %v191
  %v195 = vmul.f32 %v192, %v192
  %v196 = vsel %vm27, %v193, 0.0
  %197 = vadd.xlane.f32.xlu0 %v196
  %v198 = vpop.xlane.xlu0 %197
  %v199 = vsel %vm27, %v194, 0.0
  %200 = vadd.xlane.f32.xlu0 %v199
  %v201 = vpop.xlane.xlu0 %200
  %v202 = vsel %vm27, %v195, 0.0
  %203 = vadd.xlane.f32.xlu0 %v202
  %v204 = vpop.xlane.xlu0 %203
  %v205 = vmul.f32 %v198, %v37
  %v206 = vmul.f32 %v201, %v37
  %v207 = vmul.f32 %v204, %v37
  %v208 = vadd.f32 %v205, 1e-05
  %v209 = vadd.f32 %v206, 1e-05
  %v210 = vadd.f32 %v207, 1e-05
  %v211 = vrsqrt.pop %v208
  %v212 = vrsqrt.pop %v209
  %v213 = vrsqrt.pop %v210
  %v214 = vmul.f32 %v190, %v211
  %v215 = vmul.f32 %v191, %v212
  %v216 = vmul.f32 %v192, %v213
  %v217 = vmul.f32 %v214, %v72
  %v218 = vmul.f32 %v215, %v72
  %v219 = vmul.f32 %v216, %v72
  %v220 = vadd.f32 %v217, %v81
  %v221 = vadd.f32 %v218, %v81
  %v222 = vadd.f32 %v219, %v81
  %v223 = vsel %vm27, %v220, 0.0
  %v224 = vsel %vm27, %v221, 0.0
  %v225 = vadd.f32 %v223, %v224
  %v226 = vsel %vm27, %v222, 0.0
  %v227 = vadd.f32 %v225, %v226
  %v228 = vrot.slane %v227, 4
  %v229 = vadd.f32 %v227, %v228
  %v230 = vrot.slane %v229, 2
  %v231 = vadd.f32 %v229, %v230
  %v232 = vrot.slane %v231, 1
  %v233 = vadd.f32 %v231, %v232
  %v234 = vmul.f32 %v233, %v97
  %v235 = vsub.f32 %v220, %v234
  %v236 = vsub.f32 %v221, %v234
  %v237 = vsub.f32 %v222, %v234
  %v238 = vpack.c.bf16 %v236, %v235
  %v239 = vpack.c.bf16 %v237, %v237
  %v241 = vsel %vm27, %v238, 0
  %v244 = vsel %vm27, %v239, 0
  %246 = vmatprep.subr.bf16.mxu0 0
  %247 = vmatpush1.bf16.msra.mxu0 %v112
  %248 = vmatprep.subr.bf16.mxu0 0
  %249 = vmatpush1.bf16.msra.mxu0 %v113
  %250 = vmatprep.subr.bf16.mxu0 0
  %251 = vmatpush1.bf16.msra.mxu0 0
  %252 = vmatprep.subr.bf16.mxu0 0
  %253 = vmatpush1.bf16.msra.mxu0 0
  %254 = vmatprep.subr.bf16.mxu0 0
  %255 = vmatpush1.bf16.msra.mxu0 0
  %256 = vmatprep.subr.bf16.mxu0 0
  %257 = vmatpush1.bf16.msra.mxu0 0
  %258 = vmatprep.subr.bf16.mxu0 0
  %259 = vmatpush1.bf16.msra.mxu0 0
  %260 = vmatprep.subr.bf16.mxu0 0
  %261 = vmatpush1.bf16.msra.mxu0 0
  %262 = vmatprep.subr.bf16.mxu0 0
  %263 = vmatpush1.bf16.msra.mxu0 0
  %264 = vmatprep.subr.bf16.mxu0 0
  %265 = vmatpush1.bf16.msra.mxu0 0
  %266 = vmatprep.subr.bf16.mxu0 0
  %267 = vmatpush1.bf16.msra.mxu0 0
  %268 = vmatprep.subr.bf16.mxu0 0
  %269 = vmatpush1.bf16.msra.mxu0 0
  %270 = vmatprep.subr.bf16.mxu0 0
  %271 = vmatpush1.bf16.msra.mxu0 0
  %272 = vmatprep.subr.bf16.mxu0 0
  %273 = vmatpush1.bf16.msra.mxu0 0
  %274 = vmatprep.subr.bf16.mxu0 0
  %275 = vmatpush1.bf16.msra.mxu0 0
  %276 = vmatprep.subr.bf16.mxu0 0
  %277 = vmatpush1.bf16.msra.mxu0 0
  %278 = vmatprep.mubr.bf16.mxu0 0
  %279 = vmatmul.mubr.bf16.gmra.mrb[0].mxu0 %v241
  %v280 = vpop.f32.mrb[0].mxu0
  %v281 = vadd.f32 0.0, %v280
  %v282 = vpop.f32.mrb[0].mxu0
  %v283 = vpop.f32.mrb[0].mxu0
  %v284 = vadd.f32 0.0, %v283
  %v285 = vpop.f32.mrb[0].mxu0
  %286 = vmatprep.mubr.bf16.mxu0 0
  %287 = vmatmul.mubr.bf16.gmra.mrb[0].mxu0 %v244
  %v288 = vpop.f32.mrb[0].mxu0
  %v289 = vadd.f32 0.0, %v288
  %v290 = vpop.f32.mrb[0].mxu0
  %v291 = vpop.f32.mrb[0].mxu0
  %v292 = vpop.f32.mrb[0].mxu0
  %293 = vdwg.mxu0
  %s294 = scalar_lea.vmem %s4, 24
  %295 = vst.msk [vmem:[%s294] sm:$0xff] %vm170, %v281
  %296 = vst.msk [vmem:[%s294 + $0x8] sm:$0xff] %vm170, %v284
  %297 = vst.msk [vmem:[%s294 + $0x10] sm:$0xff] %vm170, %v289
  // Predicated region
  $region18: #{model_forward.47} parent=0 // pred_check
    _
  $region19: #{model_forward.47} parent=0 // pred_check_branch
    %299 = sbr.rel (0) target = $region21
  $region20: #{model_forward.47} parent=0 // pred_region
    _
  $region21: #{model_forward.47} parent=0 // pred_fallthru
    _
  // Predicated region
  $region22: #{model_forward.47} parent=0 // pred_check
    _
  $region23: #{model_forward.47} parent=0 // pred_check_branch
    %301 = sbr.rel (0) target = $region25
  $region24: #{model_forward.47} parent=0 // pred_region
    _
  $region25: #{model_forward.47} parent=0 // pred_fallthru
    _

</llo_original>
